<compile_context>
chip_gen: v5e
topology: v5e:2x2
jax: 0.10.0
libtpu: 0.0.40
codegen_flags: <defaults>
</compile_context>

<pallas_src>
import functools

import jax
import jax.numpy as jnp
from jax.experimental import pallas as pl
from jax.experimental.pallas import tpu as pltpu

KSIZE = 7        # kernel-prediction footprint at 1/4 res
WIDTH = 64       # ConvChain width
DEPTH = 5        # ConvChain depth (valid 3x3 convs -> spatial shrink 2*DEPTH)
KPAD = 64        # taps per filter padded to a 64-lane group (49 real + 15 pad)
NEG_PAD = -1e30  # bias of padded logit lanes -> exp() == 0 -> softmax unaffected


# ----------------------------------------------------------------------------
# Fused Pallas kernel: ConvChain (5x im2col bf16 matmuls) + softmax kernel apply
# ----------------------------------------------------------------------------
def _bayer_kp_fused_kernel(cs_ref,
                           w1_ref, b1_ref, w2_ref, b2_ref, w3_ref, b3_ref,
                           w4_ref, b4_ref, w5_ref, b5_ref,
                           o_ref, *, tile_hk, wq, ksize):
    T, W = tile_hk, wq
    kk = ksize * ksize
    crop = (2 * DEPTH - (ksize - 1)) // 2          # = 2 for DEPTH=5, ksize=7
    mk = T * W                                     # pixels produced by this tile
    n_rows = mk + 2 * DEPTH * (W + 1)              # cs rows consumed by this tile

    w_refs = (w1_ref, w2_ref, w3_ref, w4_ref, w5_ref)
    b_refs = (b1_ref, b2_ref, b3_ref, b4_ref, b5_ref)

    # ---- load this tile's window of quarter-res samples [g0, b, r, g1] ------
    row0 = pl.multiple_of(pl.program_id(1) * mk, 8)
    x0 = cs_ref[0, pl.ds(row0, n_rows), :]         # (n_rows, 4) f32

    # ---- ConvChain: one im2col (K = 9*cin) bf16 matmul per layer on the MXU --
    x = x0.astype(jnp.bfloat16)
    rows = n_rows
    logits = None
    for li in range(DEPTH):
        out_rows = rows - 2 * W - 2
        patches = jnp.concatenate(
            [x[dy * W + dx: dy * W + dx + out_rows, :]
             for dy in range(3) for dx in range(3)], axis=1)   # (out_rows, 9*cin)
        y = jnp.dot(patches, w_refs[li][...],
                    preferred_element_type=jnp.float32) + b_refs[li][...]
        if li < DEPTH - 1:
            x = jnp.maximum(y, 0.0).astype(jnp.bfloat16)
        else:
            logits = y                                         # (mk, 10*KPAD) f32
        rows = out_rows

    # ---- kernel-prediction apply: per-pixel softmax over taps + weighted sum -
    # Taps sit on the lane axis (one 64-lane group per filter), so softmax and
    # the data-weighted reduction are lane ops — no per-tap lane extracts.
    def build_patch(col):                          # col: (n_rows, 1) plane samples
        taps = [col[(crop + ty) * W + (crop + tx):
                    (crop + ty) * W + (crop + tx) + mk, :]
                for ty in range(ksize) for tx in range(ksize)]
        taps.append(jnp.zeros((mk, KPAD - kk), jnp.float32))
        return jnp.concatenate(taps, axis=1).reshape(T, W, KPAD)

    p_g0 = build_patch(x0[:, 0:1])
    p_b = build_patch(x0[:, 1:2])
    p_r = build_patch(x0[:, 2:3])
    p_g1 = build_patch(x0[:, 3:4])
    p_gg = jnp.concatenate([p_g0, p_g1], axis=-1)  # (T, W, 2*KPAD)

    lg = logits.reshape(T, W, 10 * KPAD)           # leading-dim split (W % 8 == 0)

    def kp_one(lg_f, patch):
        m = jnp.max(lg_f, axis=-1, keepdims=True)
        e = jnp.exp(lg_f - m)
        inv = pl.reciprocal(jnp.sum(e, axis=-1, keepdims=True), approx=True)
        return jnp.sum((e * inv) * patch, axis=-1)             # (T, W)

    preds = []
    for f in range(3):                             # red filters (softmax over kk)
        preds.append(kp_one(lg[:, :, f * KPAD:(f + 1) * KPAD], p_r))
    for f in range(3, 6):                          # blue filters
        preds.append(kp_one(lg[:, :, f * KPAD:(f + 1) * KPAD], p_b))
    for j in range(2):                             # green: joint softmax, 2*kk taps
        base = (6 + 2 * j) * KPAD
        preds.append(kp_one(lg[:, :, base: base + 2 * KPAD], p_gg))

    o_ref[0] = jnp.stack(preds, axis=1).astype(o_ref.dtype)    # (T, 8, W)


def _fused_bayer_kp_call(cs_flat, packed_params, *, hk, w, tile_hk, ksize):
    bs, rows_pad, _ = cs_flat.shape
    n_tiles = hk // tile_hk
    in_specs = [pl.BlockSpec((1, rows_pad, 4), lambda b, t: (b, 0, 0))]
    inputs = [cs_flat]
    for wmat, bias in packed_params:               # weights/biases stay resident
        in_specs.append(pl.BlockSpec(wmat.shape, lambda b, t: (0, 0)))
        in_specs.append(pl.BlockSpec(bias.shape, lambda b, t: (0, 0)))
        inputs += [wmat, bias]
    kern = functools.partial(_bayer_kp_fused_kernel,
                             tile_hk=tile_hk, wq=w, ksize=ksize)
    return pl.pallas_call(
        kern,
        out_shape=jax.ShapeDtypeStruct((bs, hk, 8, w), jnp.float32),
        grid_spec=pltpu.PrefetchScalarGridSpec(
            num_scalar_prefetch=0,
            grid=(bs, n_tiles),
            in_specs=in_specs,
            out_specs=pl.BlockSpec((1, tile_hk, 8, w),
                                   lambda b, t: (b, t, 0, 0)),
        ),
        compiler_params=pltpu.CompilerParams(
            dimension_semantics=("parallel", "parallel"),
            vmem_limit_bytes=48 * 1024 * 1024),
    )(*inputs)


# ----------------------------------------------------------------------------
# Parameters (synthetic, deterministic) + repacking for the fused kernel
# ----------------------------------------------------------------------------
def init_params(key, ksize=KSIZE):
    """Synthetic ConvChain weights in the logical layout (3,3,cin,cout), bias (cout,)."""
    cins = [4] + [WIDTH] * (DEPTH - 1)
    couts = [WIDTH] * (DEPTH - 1) + [10 * ksize * ksize]
    params = []
    for cin, cout in zip(cins, couts):
        key, kw_, kb_ = jax.random.split(key, 3)
        wgt = jax.random.normal(kw_, (3, 3, cin, cout), jnp.float32) * jnp.sqrt(
            2.0 / (9.0 * cin))
        bias = jax.random.normal(kb_, (cout,), jnp.float32) * 0.01
        params.append((wgt, bias))
    return params


def pack_params(params, ksize=KSIZE):
    """Repack: (3,3,cin,cout) -> (9*cin, cout) im2col bf16 weights; last layer's
    490 logit channels padded to 10*KPAD=640 (64-lane group per filter, pad lanes
    get bias NEG_PAD so the softmax ignores them)."""
    kk = ksize * ksize
    assert kk <= KPAD and len(params) == DEPTH
    packed = []
    for li, (wgt, bias) in enumerate(params):
        cin = wgt.shape[2]
        if li == DEPTH - 1:
            assert wgt.shape[-1] == 10 * kk
            wgt = jnp.pad(wgt.reshape(3, 3, cin, 10, kk),
                          ((0, 0), (0, 0), (0, 0), (0, 0), (0, KPAD - kk)))
            wgt = wgt.reshape(3, 3, cin, 10 * KPAD)
            bias = jnp.pad(bias.reshape(10, kk), ((0, 0), (0, KPAD - kk)),
                           constant_values=NEG_PAD).reshape(10 * KPAD)
        cout = wgt.shape[-1]
        packed.append((wgt.reshape(9 * cin, cout).astype(jnp.bfloat16),
                       bias.reshape(1, cout).astype(jnp.float32)))
    return packed


# ----------------------------------------------------------------------------
# Full forward pass (JAX glue around the fused kernel)
# ----------------------------------------------------------------------------
def _pick_row_tile(hk, target=8):
    for t in range(min(hk, target), 0, -1):
        if hk % t == 0:
            return t
    return hk


def bayer_kp_forward(mosaic, packed_params, ksize=KSIZE, tile_hk=None):
    """mosaic: NCHW one-hot Bayer mosaic [bs, cm, H, W] -> NCHW [bs, 3, 2*hk, 2*wk]."""
    bs, _, H, W = mosaic.shape
    h, w = H // 2, W // 2
    hk, wk = h - 2 * DEPTH, w - 2 * DEPTH
    assert hk >= 1 and wk >= 1, "input too small for 5 valid 3x3 convs"
    assert w % 8 == 0, "quarter-res width must be a multiple of 8 (sublane tile)"
    assert 2 * DEPTH >= ksize - 1 and (2 * DEPTH - (ksize - 1)) % 2 == 0, \
        "apply_kernels crop would be asymmetric for this DEPTH/ksize"
    if tile_hk is None:
        tile_hk = _pick_row_tile(hk)
    assert hk % tile_hk == 0

    # gray mosaic + 2x2 unfold into quarter-res samples [g0, b, r, g1] (glue).
    # NOTE: as in the reference, the mosaic is assumed one-hot across channels.
    gray = jnp.sum(mosaic, axis=1)                                   # (bs, H, W)
    cs = jnp.transpose(gray.reshape(bs, h, 2, w, 2),
                       (0, 1, 3, 4, 2)).reshape(bs, h, w, 4)
    cs_flat = jnp.pad(cs.reshape(bs, h * w, 4),
                      ((0, 0), (0, 2 * DEPTH), (0, 0)))              # halo margin

    preds = _fused_bayer_kp_call(cs_flat, packed_params, hk=hk, w=w,
                                 tile_hk=tile_hk, ksize=ksize)       # (bs, hk, 8, w)
    preds = preds[:, :, :, :wk]                                      # drop wrap cols

    # crop_like of the raw samples + full-res interleave (glue).
    ch, cw = (h - hk) // 2, (w - wk) // 2
    g0c = cs[:, ch:ch + hk, cw:cw + wk, 0]
    bc = cs[:, ch:ch + hk, cw:cw + wk, 1]
    rc = cs[:, ch:ch + hk, cw:cw + wk, 2]
    g1c = cs[:, ch:ch + hk, cw:cw + wk, 3]

    def unroll(p00, p01, p10, p11):
        stk = jnp.stack([p00, p01, p10, p11], axis=-1).reshape(bs, hk, wk, 2, 2)
        return jnp.transpose(stk, (0, 1, 3, 2, 4)).reshape(bs, 2 * hk, 2 * wk)

    red = unroll(preds[:, :, 0], rc, preds[:, :, 1], preds[:, :, 2])
    blue = unroll(preds[:, :, 3], preds[:, :, 4], bc, preds[:, :, 5])
    green = unroll(g0c, preds[:, :, 6], preds[:, :, 7], g1c)
    return jnp.stack([red, green, blue], axis=1)                     # NCHW


if __name__ == "__main__":
    key = jax.random.PRNGKey(0)
    k_params, k_in = jax.random.split(key)
    packed = pack_params(init_params(k_params))

    bs, H, W = 2, 32, 32                          # mosaic NCHW [2, 3, 32, 32]
    mosaic = jax.random.uniform(k_in, (bs, 3, H, W), jnp.float32)

    # tile_hk=3 -> 2 spatial row tiles per image (exercises the tiled grid path).
    fwd = jax.jit(lambda m: bayer_kp_forward(m, packed, tile_hk=3))
    out = fwd(mosaic)
    jax.block_until_ready(out)

    hk = H // 2 - 2 * DEPTH
    wk = W // 2 - 2 * DEPTH
    assert out.shape == (bs, 3, 2 * hk, 2 * wk), out.shape
    assert bool(jnp.all(jnp.isfinite(out)))
    print("KERNEL_OK")
</pallas_src>

<mosaic_0001>
module attributes {stable_mosaic.version = 11 : i64} {
  func.func @_bayer_kp_fused_kernel(%arg0: i32, %arg1: i32, %arg2: memref<1x266x4xf32, #tpu.memory_space<vmem>>, %arg3: memref<36x64xbf16, #tpu.memory_space<vmem>>, %arg4: memref<1x64xf32, #tpu.memory_space<vmem>>, %arg5: memref<576x64xbf16, #tpu.memory_space<vmem>>, %arg6: memref<1x64xf32, #tpu.memory_space<vmem>>, %arg7: memref<576x64xbf16, #tpu.memory_space<vmem>>, %arg8: memref<1x64xf32, #tpu.memory_space<vmem>>, %arg9: memref<576x64xbf16, #tpu.memory_space<vmem>>, %arg10: memref<1x64xf32, #tpu.memory_space<vmem>>, %arg11: memref<576x640xbf16, #tpu.memory_space<vmem>>, %arg12: memref<1x640xf32, #tpu.memory_space<vmem>>, %arg13: memref<1x3x8x16xf32, #tpu.memory_space<vmem>>) attributes {dimension_semantics = [#tpu.dimension_semantics<parallel>, #tpu.dimension_semantics<parallel>], iteration_bounds = array<i64: 2, 2>, scalar_prefetch = 0 : i64, scratch_operands = 0 : i64, tpu.core_type = #tpu.core_type<tc>, window_params = [{transform_indices = @transform_0, window_bounds = array<i64: 1, 266, 4>}, {pipeline_mode = #tpu.pipeline_mode<synchronous>, transform_indices = @transform_1, window_bounds = array<i64: 36, 64>}, {pipeline_mode = #tpu.pipeline_mode<synchronous>, transform_indices = @transform_2, window_bounds = array<i64: 1, 64>}, {pipeline_mode = #tpu.pipeline_mode<synchronous>, transform_indices = @transform_3, window_bounds = array<i64: 576, 64>}, {pipeline_mode = #tpu.pipeline_mode<synchronous>, transform_indices = @transform_4, window_bounds = array<i64: 1, 64>}, {pipeline_mode = #tpu.pipeline_mode<synchronous>, transform_indices = @transform_5, window_bounds = array<i64: 576, 64>}, {pipeline_mode = #tpu.pipeline_mode<synchronous>, transform_indices = @transform_6, window_bounds = array<i64: 1, 64>}, {pipeline_mode = #tpu.pipeline_mode<synchronous>, transform_indices = @transform_7, window_bounds = array<i64: 576, 64>}, {pipeline_mode = #tpu.pipeline_mode<synchronous>, transform_indices = @transform_8, window_bounds = array<i64: 1, 64>}, {pipeline_mode = #tpu.pipeline_mode<synchronous>, transform_indices = @transform_9, window_bounds = array<i64: 576, 640>}, {pipeline_mode = #tpu.pipeline_mode<synchronous>, transform_indices = @transform_10, window_bounds = array<i64: 1, 640>}, {transform_indices = @transform_11, window_bounds = array<i64: 1, 3, 8, 16>}]} {
    %c48_i32 = arith.constant 48 : i32
    %0 = arith.muli %arg1, %c48_i32 : i32
    %1 = tpu.assume_multiple %0, 8 : i32
    %c0 = arith.constant 0 : index
    %2 = arith.index_cast %1 : i32 to index
    %c0_0 = arith.constant 0 : index
    %3 = vector.load %arg2[%c0, %2, %c0_0] : memref<1x266x4xf32, #tpu.memory_space<vmem>>, vector<1x218x4xf32>
    %4 = vector.shape_cast %3 : vector<1x218x4xf32> to vector<218x4xf32>
    %5 = arith.truncf %4 : vector<218x4xf32> to vector<218x4xbf16>
    %6 = vector.extract_strided_slice %5 {offsets = [0, 0], sizes = [184, 4], strides = [1, 1]} : vector<218x4xbf16> to vector<184x4xbf16>
    %7 = vector.extract_strided_slice %5 {offsets = [1, 0], sizes = [184, 4], strides = [1, 1]} : vector<218x4xbf16> to vector<184x4xbf16>
    %8 = vector.extract_strided_slice %5 {offsets = [2, 0], sizes = [184, 4], strides = [1, 1]} : vector<218x4xbf16> to vector<184x4xbf16>
    %9 = vector.extract_strided_slice %5 {offsets = [16, 0], sizes = [184, 4], strides = [1, 1]} : vector<218x4xbf16> to vector<184x4xbf16>
    %10 = vector.extract_strided_slice %5 {offsets = [17, 0], sizes = [184, 4], strides = [1, 1]} : vector<218x4xbf16> to vector<184x4xbf16>
    %11 = vector.extract_strided_slice %5 {offsets = [18, 0], sizes = [184, 4], strides = [1, 1]} : vector<218x4xbf16> to vector<184x4xbf16>
    %12 = vector.extract_strided_slice %5 {offsets = [32, 0], sizes = [184, 4], strides = [1, 1]} : vector<218x4xbf16> to vector<184x4xbf16>
    %13 = vector.extract_strided_slice %5 {offsets = [33, 0], sizes = [184, 4], strides = [1, 1]} : vector<218x4xbf16> to vector<184x4xbf16>
    %14 = vector.extract_strided_slice %5 {offsets = [34, 0], sizes = [184, 4], strides = [1, 1]} : vector<218x4xbf16> to vector<184x4xbf16>
    %15 = tpu.concatenate %6, %7, %8, %9, %10, %11, %12, %13, %14 in 1 : vector<184x4xbf16>, vector<184x4xbf16>, vector<184x4xbf16>, vector<184x4xbf16>, vector<184x4xbf16>, vector<184x4xbf16>, vector<184x4xbf16>, vector<184x4xbf16>, vector<184x4xbf16> -> vector<184x36xbf16>
    %c0_1 = arith.constant 0 : index
    %c0_2 = arith.constant 0 : index
    %16 = vector.load %arg3[%c0_1, %c0_2] : memref<36x64xbf16, #tpu.memory_space<vmem>>, vector<36x64xbf16>
    %cst = arith.constant dense<0.000000e+00> : vector<184x64xf32>
    %17 = tpu.matmul %15, %16, %cst {dimension_numbers = #tpu.dot_dimension_numbers<[1], [0], [0], [1], [0, 0, 1, 1], [], []>} : vector<184x36xbf16>, vector<36x64xbf16>, vector<184x64xf32> -> vector<184x64xf32>
    %c0_3 = arith.constant 0 : index
    %c0_4 = arith.constant 0 : index
    %18 = vector.load %arg4[%c0_3, %c0_4] : memref<1x64xf32, #tpu.memory_space<vmem>>, vector<1x64xf32>
    %19 = vector.broadcast %18 : vector<1x64xf32> to vector<184x64xf32>
    %20 = arith.addf %17, %19 : vector<184x64xf32>
    %cst_5 = arith.constant 0.000000e+00 : f32
    %21 = vector.broadcast %cst_5 : f32 to vector<184x64xf32>
    %22 = arith.maximumf %20, %21 : vector<184x64xf32>
    %23 = arith.truncf %22 : vector<184x64xf32> to vector<184x64xbf16>
    %24 = vector.extract_strided_slice %23 {offsets = [0, 0], sizes = [150, 64], strides = [1, 1]} : vector<184x64xbf16> to vector<150x64xbf16>
    %25 = vector.extract_strided_slice %23 {offsets = [1, 0], sizes = [150, 64], strides = [1, 1]} : vector<184x64xbf16> to vector<150x64xbf16>
    %26 = vector.extract_strided_slice %23 {offsets = [2, 0], sizes = [150, 64], strides = [1, 1]} : vector<184x64xbf16> to vector<150x64xbf16>
    %27 = vector.extract_strided_slice %23 {offsets = [16, 0], sizes = [150, 64], strides = [1, 1]} : vector<184x64xbf16> to vector<150x64xbf16>
    %28 = vector.extract_strided_slice %23 {offsets = [17, 0], sizes = [150, 64], strides = [1, 1]} : vector<184x64xbf16> to vector<150x64xbf16>
    %29 = vector.extract_strided_slice %23 {offsets = [18, 0], sizes = [150, 64], strides = [1, 1]} : vector<184x64xbf16> to vector<150x64xbf16>
    %30 = vector.extract_strided_slice %23 {offsets = [32, 0], sizes = [150, 64], strides = [1, 1]} : vector<184x64xbf16> to vector<150x64xbf16>
    %31 = vector.extract_strided_slice %23 {offsets = [33, 0], sizes = [150, 64], strides = [1, 1]} : vector<184x64xbf16> to vector<150x64xbf16>
    %32 = vector.extract_strided_slice %23 {offsets = [34, 0], sizes = [150, 64], strides = [1, 1]} : vector<184x64xbf16> to vector<150x64xbf16>
    %33 = tpu.concatenate %24, %25, %26, %27, %28, %29, %30, %31, %32 in 1 : vector<150x64xbf16>, vector<150x64xbf16>, vector<150x64xbf16>, vector<150x64xbf16>, vector<150x64xbf16>, vector<150x64xbf16>, vector<150x64xbf16>, vector<150x64xbf16>, vector<150x64xbf16> -> vector<150x576xbf16>
    %c0_6 = arith.constant 0 : index
    %c0_7 = arith.constant 0 : index
    %34 = vector.load %arg5[%c0_6, %c0_7] : memref<576x64xbf16, #tpu.memory_space<vmem>>, vector<576x64xbf16>
    %cst_8 = arith.constant dense<0.000000e+00> : vector<150x64xf32>
    %35 = tpu.matmul %33, %34, %cst_8 {dimension_numbers = #tpu.dot_dimension_numbers<[1], [0], [0], [1], [0, 0, 1, 1], [], []>} : vector<150x576xbf16>, vector<576x64xbf16>, vector<150x64xf32> -> vector<150x64xf32>
    %c0_9 = arith.constant 0 : index
    %c0_10 = arith.constant 0 : index
    %36 = vector.load %arg6[%c0_9, %c0_10] : memref<1x64xf32, #tpu.memory_space<vmem>>, vector<1x64xf32>
    %37 = vector.broadcast %36 : vector<1x64xf32> to vector<150x64xf32>
    %38 = arith.addf %35, %37 : vector<150x64xf32>
    %cst_11 = arith.constant 0.000000e+00 : f32
    %39 = vector.broadcast %cst_11 : f32 to vector<150x64xf32>
    %40 = arith.maximumf %38, %39 : vector<150x64xf32>
    %41 = arith.truncf %40 : vector<150x64xf32> to vector<150x64xbf16>
    %42 = vector.extract_strided_slice %41 {offsets = [0, 0], sizes = [116, 64], strides = [1, 1]} : vector<150x64xbf16> to vector<116x64xbf16>
    %43 = vector.extract_strided_slice %41 {offsets = [1, 0], sizes = [116, 64], strides = [1, 1]} : vector<150x64xbf16> to vector<116x64xbf16>
    %44 = vector.extract_strided_slice %41 {offsets = [2, 0], sizes = [116, 64], strides = [1, 1]} : vector<150x64xbf16> to vector<116x64xbf16>
    %45 = vector.extract_strided_slice %41 {offsets = [16, 0], sizes = [116, 64], strides = [1, 1]} : vector<150x64xbf16> to vector<116x64xbf16>
    %46 = vector.extract_strided_slice %41 {offsets = [17, 0], sizes = [116, 64], strides = [1, 1]} : vector<150x64xbf16> to vector<116x64xbf16>
    %47 = vector.extract_strided_slice %41 {offsets = [18, 0], sizes = [116, 64], strides = [1, 1]} : vector<150x64xbf16> to vector<116x64xbf16>
    %48 = vector.extract_strided_slice %41 {offsets = [32, 0], sizes = [116, 64], strides = [1, 1]} : vector<150x64xbf16> to vector<116x64xbf16>
    %49 = vector.extract_strided_slice %41 {offsets = [33, 0], sizes = [116, 64], strides = [1, 1]} : vector<150x64xbf16> to vector<116x64xbf16>
    %50 = vector.extract_strided_slice %41 {offsets = [34, 0], sizes = [116, 64], strides = [1, 1]} : vector<150x64xbf16> to vector<116x64xbf16>
    %51 = tpu.concatenate %42, %43, %44, %45, %46, %47, %48, %49, %50 in 1 : vector<116x64xbf16>, vector<116x64xbf16>, vector<116x64xbf16>, vector<116x64xbf16>, vector<116x64xbf16>, vector<116x64xbf16>, vector<116x64xbf16>, vector<116x64xbf16>, vector<116x64xbf16> -> vector<116x576xbf16>
    %c0_12 = arith.constant 0 : index
    %c0_13 = arith.constant 0 : index
    %52 = vector.load %arg7[%c0_12, %c0_13] : memref<576x64xbf16, #tpu.memory_space<vmem>>, vector<576x64xbf16>
    %cst_14 = arith.constant dense<0.000000e+00> : vector<116x64xf32>
    %53 = tpu.matmul %51, %52, %cst_14 {dimension_numbers = #tpu.dot_dimension_numbers<[1], [0], [0], [1], [0, 0, 1, 1], [], []>} : vector<116x576xbf16>, vector<576x64xbf16>, vector<116x64xf32> -> vector<116x64xf32>
    %c0_15 = arith.constant 0 : index
    %c0_16 = arith.constant 0 : index
    %54 = vector.load %arg8[%c0_15, %c0_16] : memref<1x64xf32, #tpu.memory_space<vmem>>, vector<1x64xf32>
    %55 = vector.broadcast %54 : vector<1x64xf32> to vector<116x64xf32>
    %56 = arith.addf %53, %55 : vector<116x64xf32>
    %cst_17 = arith.constant 0.000000e+00 : f32
    %57 = vector.broadcast %cst_17 : f32 to vector<116x64xf32>
    %58 = arith.maximumf %56, %57 : vector<116x64xf32>
    %59 = arith.truncf %58 : vector<116x64xf32> to vector<116x64xbf16>
    %60 = vector.extract_strided_slice %59 {offsets = [0, 0], sizes = [82, 64], strides = [1, 1]} : vector<116x64xbf16> to vector<82x64xbf16>
    %61 = vector.extract_strided_slice %59 {offsets = [1, 0], sizes = [82, 64], strides = [1, 1]} : vector<116x64xbf16> to vector<82x64xbf16>
    %62 = vector.extract_strided_slice %59 {offsets = [2, 0], sizes = [82, 64], strides = [1, 1]} : vector<116x64xbf16> to vector<82x64xbf16>
    %63 = vector.extract_strided_slice %59 {offsets = [16, 0], sizes = [82, 64], strides = [1, 1]} : vector<116x64xbf16> to vector<82x64xbf16>
    %64 = vector.extract_strided_slice %59 {offsets = [17, 0], sizes = [82, 64], strides = [1, 1]} : vector<116x64xbf16> to vector<82x64xbf16>
    %65 = vector.extract_strided_slice %59 {offsets = [18, 0], sizes = [82, 64], strides = [1, 1]} : vector<116x64xbf16> to vector<82x64xbf16>
    %66 = vector.extract_strided_slice %59 {offsets = [32, 0], sizes = [82, 64], strides = [1, 1]} : vector<116x64xbf16> to vector<82x64xbf16>
    %67 = vector.extract_strided_slice %59 {offsets = [33, 0], sizes = [82, 64], strides = [1, 1]} : vector<116x64xbf16> to vector<82x64xbf16>
    %68 = vector.extract_strided_slice %59 {offsets = [34, 0], sizes = [82, 64], strides = [1, 1]} : vector<116x64xbf16> to vector<82x64xbf16>
    %69 = tpu.concatenate %60, %61, %62, %63, %64, %65, %66, %67, %68 in 1 : vector<82x64xbf16>, vector<82x64xbf16>, vector<82x64xbf16>, vector<82x64xbf16>, vector<82x64xbf16>, vector<82x64xbf16>, vector<82x64xbf16>, vector<82x64xbf16>, vector<82x64xbf16> -> vector<82x576xbf16>
    %c0_18 = arith.constant 0 : index
    %c0_19 = arith.constant 0 : index
    %70 = vector.load %arg9[%c0_18, %c0_19] : memref<576x64xbf16, #tpu.memory_space<vmem>>, vector<576x64xbf16>
    %cst_20 = arith.constant dense<0.000000e+00> : vector<82x64xf32>
    %71 = tpu.matmul %69, %70, %cst_20 {dimension_numbers = #tpu.dot_dimension_numbers<[1], [0], [0], [1], [0, 0, 1, 1], [], []>} : vector<82x576xbf16>, vector<576x64xbf16>, vector<82x64xf32> -> vector<82x64xf32>
    %c0_21 = arith.constant 0 : index
    %c0_22 = arith.constant 0 : index
    %72 = vector.load %arg10[%c0_21, %c0_22] : memref<1x64xf32, #tpu.memory_space<vmem>>, vector<1x64xf32>
    %73 = vector.broadcast %72 : vector<1x64xf32> to vector<82x64xf32>
    %74 = arith.addf %71, %73 : vector<82x64xf32>
    %cst_23 = arith.constant 0.000000e+00 : f32
    %75 = vector.broadcast %cst_23 : f32 to vector<82x64xf32>
    %76 = arith.maximumf %74, %75 : vector<82x64xf32>
    %77 = arith.truncf %76 : vector<82x64xf32> to vector<82x64xbf16>
    %78 = vector.extract_strided_slice %77 {offsets = [0, 0], sizes = [48, 64], strides = [1, 1]} : vector<82x64xbf16> to vector<48x64xbf16>
    %79 = vector.extract_strided_slice %77 {offsets = [1, 0], sizes = [48, 64], strides = [1, 1]} : vector<82x64xbf16> to vector<48x64xbf16>
    %80 = vector.extract_strided_slice %77 {offsets = [2, 0], sizes = [48, 64], strides = [1, 1]} : vector<82x64xbf16> to vector<48x64xbf16>
    %81 = vector.extract_strided_slice %77 {offsets = [16, 0], sizes = [48, 64], strides = [1, 1]} : vector<82x64xbf16> to vector<48x64xbf16>
    %82 = vector.extract_strided_slice %77 {offsets = [17, 0], sizes = [48, 64], strides = [1, 1]} : vector<82x64xbf16> to vector<48x64xbf16>
    %83 = vector.extract_strided_slice %77 {offsets = [18, 0], sizes = [48, 64], strides = [1, 1]} : vector<82x64xbf16> to vector<48x64xbf16>
    %84 = vector.extract_strided_slice %77 {offsets = [32, 0], sizes = [48, 64], strides = [1, 1]} : vector<82x64xbf16> to vector<48x64xbf16>
    %85 = vector.extract_strided_slice %77 {offsets = [33, 0], sizes = [48, 64], strides = [1, 1]} : vector<82x64xbf16> to vector<48x64xbf16>
    %86 = vector.extract_strided_slice %77 {offsets = [34, 0], sizes = [48, 64], strides = [1, 1]} : vector<82x64xbf16> to vector<48x64xbf16>
    %87 = tpu.concatenate %78, %79, %80, %81, %82, %83, %84, %85, %86 in 1 : vector<48x64xbf16>, vector<48x64xbf16>, vector<48x64xbf16>, vector<48x64xbf16>, vector<48x64xbf16>, vector<48x64xbf16>, vector<48x64xbf16>, vector<48x64xbf16>, vector<48x64xbf16> -> vector<48x576xbf16>
    %c0_24 = arith.constant 0 : index
    %c0_25 = arith.constant 0 : index
    %88 = vector.load %arg11[%c0_24, %c0_25] : memref<576x640xbf16, #tpu.memory_space<vmem>>, vector<576x640xbf16>
    %cst_26 = arith.constant dense<0.000000e+00> : vector<48x640xf32>
    %89 = tpu.matmul %87, %88, %cst_26 {dimension_numbers = #tpu.dot_dimension_numbers<[1], [0], [0], [1], [0, 0, 1, 1], [], []>} : vector<48x576xbf16>, vector<576x640xbf16>, vector<48x640xf32> -> vector<48x640xf32>
    %c0_27 = arith.constant 0 : index
    %c0_28 = arith.constant 0 : index
    %90 = vector.load %arg12[%c0_27, %c0_28] : memref<1x640xf32, #tpu.memory_space<vmem>>, vector<1x640xf32>
    %91 = vector.broadcast %90 : vector<1x640xf32> to vector<48x640xf32>
    %92 = arith.addf %89, %91 : vector<48x640xf32>
    %93 = vector.extract_strided_slice %4 {offsets = [0, 0], sizes = [218, 1], strides = [1, 1]} : vector<218x4xf32> to vector<218x1xf32>
    %94 = vector.extract_strided_slice %93 {offsets = [34, 0], sizes = [48, 1], strides = [1, 1]} : vector<218x1xf32> to vector<48x1xf32>
    %95 = vector.extract_strided_slice %93 {offsets = [35, 0], sizes = [48, 1], strides = [1, 1]} : vector<218x1xf32> to vector<48x1xf32>
    %96 = vector.extract_strided_slice %93 {offsets = [36, 0], sizes = [48, 1], strides = [1, 1]} : vector<218x1xf32> to vector<48x1xf32>
    %97 = vector.extract_strided_slice %93 {offsets = [37, 0], sizes = [48, 1], strides = [1, 1]} : vector<218x1xf32> to vector<48x1xf32>
    %98 = vector.extract_strided_slice %93 {offsets = [38, 0], sizes = [48, 1], strides = [1, 1]} : vector<218x1xf32> to vector<48x1xf32>
    %99 = vector.extract_strided_slice %93 {offsets = [39, 0], sizes = [48, 1], strides = [1, 1]} : vector<218x1xf32> to vector<48x1xf32>
    %100 = vector.extract_strided_slice %93 {offsets = [40, 0], sizes = [48, 1], strides = [1, 1]} : vector<218x1xf32> to vector<48x1xf32>
    %101 = vector.extract_strided_slice %93 {offsets = [50, 0], sizes = [48, 1], strides = [1, 1]} : vector<218x1xf32> to vector<48x1xf32>
    %102 = vector.extract_strided_slice %93 {offsets = [51, 0], sizes = [48, 1], strides = [1, 1]} : vector<218x1xf32> to vector<48x1xf32>
    %103 = vector.extract_strided_slice %93 {offsets = [52, 0], sizes = [48, 1], strides = [1, 1]} : vector<218x1xf32> to vector<48x1xf32>
    %104 = vector.extract_strided_slice %93 {offsets = [53, 0], sizes = [48, 1], strides = [1, 1]} : vector<218x1xf32> to vector<48x1xf32>
    %105 = vector.extract_strided_slice %93 {offsets = [54, 0], sizes = [48, 1], strides = [1, 1]} : vector<218x1xf32> to vector<48x1xf32>
    %106 = vector.extract_strided_slice %93 {offsets = [55, 0], sizes = [48, 1], strides = [1, 1]} : vector<218x1xf32> to vector<48x1xf32>
    %107 = vector.extract_strided_slice %93 {offsets = [56, 0], sizes = [48, 1], strides = [1, 1]} : vector<218x1xf32> to vector<48x1xf32>
    %108 = vector.extract_strided_slice %93 {offsets = [66, 0], sizes = [48, 1], strides = [1, 1]} : vector<218x1xf32> to vector<48x1xf32>
    %109 = vector.extract_strided_slice %93 {offsets = [67, 0], sizes = [48, 1], strides = [1, 1]} : vector<218x1xf32> to vector<48x1xf32>
    %110 = vector.extract_strided_slice %93 {offsets = [68, 0], sizes = [48, 1], strides = [1, 1]} : vector<218x1xf32> to vector<48x1xf32>
    %111 = vector.extract_strided_slice %93 {offsets = [69, 0], sizes = [48, 1], strides = [1, 1]} : vector<218x1xf32> to vector<48x1xf32>
    %112 = vector.extract_strided_slice %93 {offsets = [70, 0], sizes = [48, 1], strides = [1, 1]} : vector<218x1xf32> to vector<48x1xf32>
    %113 = vector.extract_strided_slice %93 {offsets = [71, 0], sizes = [48, 1], strides = [1, 1]} : vector<218x1xf32> to vector<48x1xf32>
    %114 = vector.extract_strided_slice %93 {offsets = [72, 0], sizes = [48, 1], strides = [1, 1]} : vector<218x1xf32> to vector<48x1xf32>
    %115 = vector.extract_strided_slice %93 {offsets = [82, 0], sizes = [48, 1], strides = [1, 1]} : vector<218x1xf32> to vector<48x1xf32>
    %116 = vector.extract_strided_slice %93 {offsets = [83, 0], sizes = [48, 1], strides = [1, 1]} : vector<218x1xf32> to vector<48x1xf32>
    %117 = vector.extract_strided_slice %93 {offsets = [84, 0], sizes = [48, 1], strides = [1, 1]} : vector<218x1xf32> to vector<48x1xf32>
    %118 = vector.extract_strided_slice %93 {offsets = [85, 0], sizes = [48, 1], strides = [1, 1]} : vector<218x1xf32> to vector<48x1xf32>
    %119 = vector.extract_strided_slice %93 {offsets = [86, 0], sizes = [48, 1], strides = [1, 1]} : vector<218x1xf32> to vector<48x1xf32>
    %120 = vector.extract_strided_slice %93 {offsets = [87, 0], sizes = [48, 1], strides = [1, 1]} : vector<218x1xf32> to vector<48x1xf32>
    %121 = vector.extract_strided_slice %93 {offsets = [88, 0], sizes = [48, 1], strides = [1, 1]} : vector<218x1xf32> to vector<48x1xf32>
    %122 = vector.extract_strided_slice %93 {offsets = [98, 0], sizes = [48, 1], strides = [1, 1]} : vector<218x1xf32> to vector<48x1xf32>
    %123 = vector.extract_strided_slice %93 {offsets = [99, 0], sizes = [48, 1], strides = [1, 1]} : vector<218x1xf32> to vector<48x1xf32>
    %124 = vector.extract_strided_slice %93 {offsets = [100, 0], sizes = [48, 1], strides = [1, 1]} : vector<218x1xf32> to vector<48x1xf32>
    %125 = vector.extract_strided_slice %93 {offsets = [101, 0], sizes = [48, 1], strides = [1, 1]} : vector<218x1xf32> to vector<48x1xf32>
    %126 = vector.extract_strided_slice %93 {offsets = [102, 0], sizes = [48, 1], strides = [1, 1]} : vector<218x1xf32> to vector<48x1xf32>
    %127 = vector.extract_strided_slice %93 {offsets = [103, 0], sizes = [48, 1], strides = [1, 1]} : vector<218x1xf32> to vector<48x1xf32>
    %128 = vector.extract_strided_slice %93 {offsets = [104, 0], sizes = [48, 1], strides = [1, 1]} : vector<218x1xf32> to vector<48x1xf32>
    %129 = vector.extract_strided_slice %93 {offsets = [114, 0], sizes = [48, 1], strides = [1, 1]} : vector<218x1xf32> to vector<48x1xf32>
    %130 = vector.extract_strided_slice %93 {offsets = [115, 0], sizes = [48, 1], strides = [1, 1]} : vector<218x1xf32> to vector<48x1xf32>
    %131 = vector.extract_strided_slice %93 {offsets = [116, 0], sizes = [48, 1], strides = [1, 1]} : vector<218x1xf32> to vector<48x1xf32>
    %132 = vector.extract_strided_slice %93 {offsets = [117, 0], sizes = [48, 1], strides = [1, 1]} : vector<218x1xf32> to vector<48x1xf32>
    %133 = vector.extract_strided_slice %93 {offsets = [118, 0], sizes = [48, 1], strides = [1, 1]} : vector<218x1xf32> to vector<48x1xf32>
    %134 = vector.extract_strided_slice %93 {offsets = [119, 0], sizes = [48, 1], strides = [1, 1]} : vector<218x1xf32> to vector<48x1xf32>
    %135 = vector.extract_strided_slice %93 {offsets = [120, 0], sizes = [48, 1], strides = [1, 1]} : vector<218x1xf32> to vector<48x1xf32>
    %136 = vector.extract_strided_slice %93 {offsets = [130, 0], sizes = [48, 1], strides = [1, 1]} : vector<218x1xf32> to vector<48x1xf32>
    %137 = vector.extract_strided_slice %93 {offsets = [131, 0], sizes = [48, 1], strides = [1, 1]} : vector<218x1xf32> to vector<48x1xf32>
    %138 = vector.extract_strided_slice %93 {offsets = [132, 0], sizes = [48, 1], strides = [1, 1]} : vector<218x1xf32> to vector<48x1xf32>
    %139 = vector.extract_strided_slice %93 {offsets = [133, 0], sizes = [48, 1], strides = [1, 1]} : vector<218x1xf32> to vector<48x1xf32>
    %140 = vector.extract_strided_slice %93 {offsets = [134, 0], sizes = [48, 1], strides = [1, 1]} : vector<218x1xf32> to vector<48x1xf32>
    %141 = vector.extract_strided_slice %93 {offsets = [135, 0], sizes = [48, 1], strides = [1, 1]} : vector<218x1xf32> to vector<48x1xf32>
    %142 = vector.extract_strided_slice %93 {offsets = [136, 0], sizes = [48, 1], strides = [1, 1]} : vector<218x1xf32> to vector<48x1xf32>
    %cst_29 = arith.constant 0.000000e+00 : f32
    %143 = vector.broadcast %cst_29 : f32 to vector<48x15xf32>
    %144 = tpu.concatenate %94, %95, %96, %97, %98, %99, %100, %101, %102, %103, %104, %105, %106, %107, %108, %109 in 1 : vector<48x1xf32>, vector<48x1xf32>, vector<48x1xf32>, vector<48x1xf32>, vector<48x1xf32>, vector<48x1xf32>, vector<48x1xf32>, vector<48x1xf32>, vector<48x1xf32>, vector<48x1xf32>, vector<48x1xf32>, vector<48x1xf32>, vector<48x1xf32>, vector<48x1xf32>, vector<48x1xf32>, vector<48x1xf32> -> vector<48x16xf32>
    %145 = tpu.concatenate %110, %111, %112, %113, %114, %115, %116, %117, %118, %119, %120, %121, %122, %123, %124, %125 in 1 : vector<48x1xf32>, vector<48x1xf32>, vector<48x1xf32>, vector<48x1xf32>, vector<48x1xf32>, vector<48x1xf32>, vector<48x1xf32>, vector<48x1xf32>, vector<48x1xf32>, vector<48x1xf32>, vector<48x1xf32>, vector<48x1xf32>, vector<48x1xf32>, vector<48x1xf32>, vector<48x1xf32>, vector<48x1xf32> -> vector<48x16xf32>
    %146 = tpu.concatenate %126, %127, %128, %129, %130, %131, %132, %133, %134, %135, %136, %137, %138, %139, %140, %141 in 1 : vector<48x1xf32>, vector<48x1xf32>, vector<48x1xf32>, vector<48x1xf32>, vector<48x1xf32>, vector<48x1xf32>, vector<48x1xf32>, vector<48x1xf32>, vector<48x1xf32>, vector<48x1xf32>, vector<48x1xf32>, vector<48x1xf32>, vector<48x1xf32>, vector<48x1xf32>, vector<48x1xf32>, vector<48x1xf32> -> vector<48x16xf32>
    %147 = tpu.concatenate %142, %143 in 1 : vector<48x1xf32>, vector<48x15xf32> -> vector<48x16xf32>
    %148 = tpu.concatenate %144, %145, %146, %147 in 1 : vector<48x16xf32>, vector<48x16xf32>, vector<48x16xf32>, vector<48x16xf32> -> vector<48x64xf32>
    %149 = vector.shape_cast %148 : vector<48x64xf32> to vector<3x16x64xf32>
    %150 = vector.extract_strided_slice %4 {offsets = [0, 1], sizes = [218, 1], strides = [1, 1]} : vector<218x4xf32> to vector<218x1xf32>
    %151 = vector.extract_strided_slice %150 {offsets = [34, 0], sizes = [48, 1], strides = [1, 1]} : vector<218x1xf32> to vector<48x1xf32>
    %152 = vector.extract_strided_slice %150 {offsets = [35, 0], sizes = [48, 1], strides = [1, 1]} : vector<218x1xf32> to vector<48x1xf32>
    %153 = vector.extract_strided_slice %150 {offsets = [36, 0], sizes = [48, 1], strides = [1, 1]} : vector<218x1xf32> to vector<48x1xf32>
    %154 = vector.extract_strided_slice %150 {offsets = [37, 0], sizes = [48, 1], strides = [1, 1]} : vector<218x1xf32> to vector<48x1xf32>
    %155 = vector.extract_strided_slice %150 {offsets = [38, 0], sizes = [48, 1], strides = [1, 1]} : vector<218x1xf32> to vector<48x1xf32>
    %156 = vector.extract_strided_slice %150 {offsets = [39, 0], sizes = [48, 1], strides = [1, 1]} : vector<218x1xf32> to vector<48x1xf32>
    %157 = vector.extract_strided_slice %150 {offsets = [40, 0], sizes = [48, 1], strides = [1, 1]} : vector<218x1xf32> to vector<48x1xf32>
    %158 = vector.extract_strided_slice %150 {offsets = [50, 0], sizes = [48, 1], strides = [1, 1]} : vector<218x1xf32> to vector<48x1xf32>
    %159 = vector.extract_strided_slice %150 {offsets = [51, 0], sizes = [48, 1], strides = [1, 1]} : vector<218x1xf32> to vector<48x1xf32>
    %160 = vector.extract_strided_slice %150 {offsets = [52, 0], sizes = [48, 1], strides = [1, 1]} : vector<218x1xf32> to vector<48x1xf32>
    %161 = vector.extract_strided_slice %150 {offsets = [53, 0], sizes = [48, 1], strides = [1, 1]} : vector<218x1xf32> to vector<48x1xf32>
    %162 = vector.extract_strided_slice %150 {offsets = [54, 0], sizes = [48, 1], strides = [1, 1]} : vector<218x1xf32> to vector<48x1xf32>
    %163 = vector.extract_strided_slice %150 {offsets = [55, 0], sizes = [48, 1], strides = [1, 1]} : vector<218x1xf32> to vector<48x1xf32>
    %164 = vector.extract_strided_slice %150 {offsets = [56, 0], sizes = [48, 1], strides = [1, 1]} : vector<218x1xf32> to vector<48x1xf32>
    %165 = vector.extract_strided_slice %150 {offsets = [66, 0], sizes = [48, 1], strides = [1, 1]} : vector<218x1xf32> to vector<48x1xf32>
    %166 = vector.extract_strided_slice %150 {offsets = [67, 0], sizes = [48, 1], strides = [1, 1]} : vector<218x1xf32> to vector<48x1xf32>
    %167 = vector.extract_strided_slice %150 {offsets = [68, 0], sizes = [48, 1], strides = [1, 1]} : vector<218x1xf32> to vector<48x1xf32>
    %168 = vector.extract_strided_slice %150 {offsets = [69, 0], sizes = [48, 1], strides = [1, 1]} : vector<218x1xf32> to vector<48x1xf32>
    %169 = vector.extract_strided_slice %150 {offsets = [70, 0], sizes = [48, 1], strides = [1, 1]} : vector<218x1xf32> to vector<48x1xf32>
    %170 = vector.extract_strided_slice %150 {offsets = [71, 0], sizes = [48, 1], strides = [1, 1]} : vector<218x1xf32> to vector<48x1xf32>
    %171 = vector.extract_strided_slice %150 {offsets = [72, 0], sizes = [48, 1], strides = [1, 1]} : vector<218x1xf32> to vector<48x1xf32>
    %172 = vector.extract_strided_slice %150 {offsets = [82, 0], sizes = [48, 1], strides = [1, 1]} : vector<218x1xf32> to vector<48x1xf32>
    %173 = vector.extract_strided_slice %150 {offsets = [83, 0], sizes = [48, 1], strides = [1, 1]} : vector<218x1xf32> to vector<48x1xf32>
    %174 = vector.extract_strided_slice %150 {offsets = [84, 0], sizes = [48, 1], strides = [1, 1]} : vector<218x1xf32> to vector<48x1xf32>
    %175 = vector.extract_strided_slice %150 {offsets = [85, 0], sizes = [48, 1], strides = [1, 1]} : vector<218x1xf32> to vector<48x1xf32>
    %176 = vector.extract_strided_slice %150 {offsets = [86, 0], sizes = [48, 1], strides = [1, 1]} : vector<218x1xf32> to vector<48x1xf32>
    %177 = vector.extract_strided_slice %150 {offsets = [87, 0], sizes = [48, 1], strides = [1, 1]} : vector<218x1xf32> to vector<48x1xf32>
    %178 = vector.extract_strided_slice %150 {offsets = [88, 0], sizes = [48, 1], strides = [1, 1]} : vector<218x1xf32> to vector<48x1xf32>
    %179 = vector.extract_strided_slice %150 {offsets = [98, 0], sizes = [48, 1], strides = [1, 1]} : vector<218x1xf32> to vector<48x1xf32>
    %180 = vector.extract_strided_slice %150 {offsets = [99, 0], sizes = [48, 1], strides = [1, 1]} : vector<218x1xf32> to vector<48x1xf32>
    %181 = vector.extract_strided_slice %150 {offsets = [100, 0], sizes = [48, 1], strides = [1, 1]} : vector<218x1xf32> to vector<48x1xf32>
    %182 = vector.extract_strided_slice %150 {offsets = [101, 0], sizes = [48, 1], strides = [1, 1]} : vector<218x1xf32> to vector<48x1xf32>
    %183 = vector.extract_strided_slice %150 {offsets = [102, 0], sizes = [48, 1], strides = [1, 1]} : vector<218x1xf32> to vector<48x1xf32>
    %184 = vector.extract_strided_slice %150 {offsets = [103, 0], sizes = [48, 1], strides = [1, 1]} : vector<218x1xf32> to vector<48x1xf32>
    %185 = vector.extract_strided_slice %150 {offsets = [104, 0], sizes = [48, 1], strides = [1, 1]} : vector<218x1xf32> to vector<48x1xf32>
    %186 = vector.extract_strided_slice %150 {offsets = [114, 0], sizes = [48, 1], strides = [1, 1]} : vector<218x1xf32> to vector<48x1xf32>
    %187 = vector.extract_strided_slice %150 {offsets = [115, 0], sizes = [48, 1], strides = [1, 1]} : vector<218x1xf32> to vector<48x1xf32>
    %188 = vector.extract_strided_slice %150 {offsets = [116, 0], sizes = [48, 1], strides = [1, 1]} : vector<218x1xf32> to vector<48x1xf32>
    %189 = vector.extract_strided_slice %150 {offsets = [117, 0], sizes = [48, 1], strides = [1, 1]} : vector<218x1xf32> to vector<48x1xf32>
    %190 = vector.extract_strided_slice %150 {offsets = [118, 0], sizes = [48, 1], strides = [1, 1]} : vector<218x1xf32> to vector<48x1xf32>
    %191 = vector.extract_strided_slice %150 {offsets = [119, 0], sizes = [48, 1], strides = [1, 1]} : vector<218x1xf32> to vector<48x1xf32>
    %192 = vector.extract_strided_slice %150 {offsets = [120, 0], sizes = [48, 1], strides = [1, 1]} : vector<218x1xf32> to vector<48x1xf32>
    %193 = vector.extract_strided_slice %150 {offsets = [130, 0], sizes = [48, 1], strides = [1, 1]} : vector<218x1xf32> to vector<48x1xf32>
    %194 = vector.extract_strided_slice %150 {offsets = [131, 0], sizes = [48, 1], strides = [1, 1]} : vector<218x1xf32> to vector<48x1xf32>
    %195 = vector.extract_strided_slice %150 {offsets = [132, 0], sizes = [48, 1], strides = [1, 1]} : vector<218x1xf32> to vector<48x1xf32>
    %196 = vector.extract_strided_slice %150 {offsets = [133, 0], sizes = [48, 1], strides = [1, 1]} : vector<218x1xf32> to vector<48x1xf32>
    %197 = vector.extract_strided_slice %150 {offsets = [134, 0], sizes = [48, 1], strides = [1, 1]} : vector<218x1xf32> to vector<48x1xf32>
    %198 = vector.extract_strided_slice %150 {offsets = [135, 0], sizes = [48, 1], strides = [1, 1]} : vector<218x1xf32> to vector<48x1xf32>
    %199 = vector.extract_strided_slice %150 {offsets = [136, 0], sizes = [48, 1], strides = [1, 1]} : vector<218x1xf32> to vector<48x1xf32>
    %cst_30 = arith.constant 0.000000e+00 : f32
    %200 = vector.broadcast %cst_30 : f32 to vector<48x15xf32>
    %201 = tpu.concatenate %151, %152, %153, %154, %155, %156, %157, %158, %159, %160, %161, %162, %163, %164, %165, %166 in 1 : vector<48x1xf32>, vector<48x1xf32>, vector<48x1xf32>, vector<48x1xf32>, vector<48x1xf32>, vector<48x1xf32>, vector<48x1xf32>, vector<48x1xf32>, vector<48x1xf32>, vector<48x1xf32>, vector<48x1xf32>, vector<48x1xf32>, vector<48x1xf32>, vector<48x1xf32>, vector<48x1xf32>, vector<48x1xf32> -> vector<48x16xf32>
    %202 = tpu.concatenate %167, %168, %169, %170, %171, %172, %173, %174, %175, %176, %177, %178, %179, %180, %181, %182 in 1 : vector<48x1xf32>, vector<48x1xf32>, vector<48x1xf32>, vector<48x1xf32>, vector<48x1xf32>, vector<48x1xf32>, vector<48x1xf32>, vector<48x1xf32>, vector<48x1xf32>, vector<48x1xf32>, vector<48x1xf32>, vector<48x1xf32>, vector<48x1xf32>, vector<48x1xf32>, vector<48x1xf32>, vector<48x1xf32> -> vector<48x16xf32>
    %203 = tpu.concatenate %183, %184, %185, %186, %187, %188, %189, %190, %191, %192, %193, %194, %195, %196, %197, %198 in 1 : vector<48x1xf32>, vector<48x1xf32>, vector<48x1xf32>, vector<48x1xf32>, vector<48x1xf32>, vector<48x1xf32>, vector<48x1xf32>, vector<48x1xf32>, vector<48x1xf32>, vector<48x1xf32>, vector<48x1xf32>, vector<48x1xf32>, vector<48x1xf32>, vector<48x1xf32>, vector<48x1xf32>, vector<48x1xf32> -> vector<48x16xf32>
    %204 = tpu.concatenate %199, %200 in 1 : vector<48x1xf32>, vector<48x15xf32> -> vector<48x16xf32>
    %205 = tpu.concatenate %201, %202, %203, %204 in 1 : vector<48x16xf32>, vector<48x16xf32>, vector<48x16xf32>, vector<48x16xf32> -> vector<48x64xf32>
    %206 = vector.shape_cast %205 : vector<48x64xf32> to vector<3x16x64xf32>
    %207 = vector.extract_strided_slice %4 {offsets = [0, 2], sizes = [218, 1], strides = [1, 1]} : vector<218x4xf32> to vector<218x1xf32>
    %208 = vector.extract_strided_slice %207 {offsets = [34, 0], sizes = [48, 1], strides = [1, 1]} : vector<218x1xf32> to vector<48x1xf32>
    %209 = vector.extract_strided_slice %207 {offsets = [35, 0], sizes = [48, 1], strides = [1, 1]} : vector<218x1xf32> to vector<48x1xf32>
    %210 = vector.extract_strided_slice %207 {offsets = [36, 0], sizes = [48, 1], strides = [1, 1]} : vector<218x1xf32> to vector<48x1xf32>
    %211 = vector.extract_strided_slice %207 {offsets = [37, 0], sizes = [48, 1], strides = [1, 1]} : vector<218x1xf32> to vector<48x1xf32>
    %212 = vector.extract_strided_slice %207 {offsets = [38, 0], sizes = [48, 1], strides = [1, 1]} : vector<218x1xf32> to vector<48x1xf32>
    %213 = vector.extract_strided_slice %207 {offsets = [39, 0], sizes = [48, 1], strides = [1, 1]} : vector<218x1xf32> to vector<48x1xf32>
    %214 = vector.extract_strided_slice %207 {offsets = [40, 0], sizes = [48, 1], strides = [1, 1]} : vector<218x1xf32> to vector<48x1xf32>
    %215 = vector.extract_strided_slice %207 {offsets = [50, 0], sizes = [48, 1], strides = [1, 1]} : vector<218x1xf32> to vector<48x1xf32>
    %216 = vector.extract_strided_slice %207 {offsets = [51, 0], sizes = [48, 1], strides = [1, 1]} : vector<218x1xf32> to vector<48x1xf32>
    %217 = vector.extract_strided_slice %207 {offsets = [52, 0], sizes = [48, 1], strides = [1, 1]} : vector<218x1xf32> to vector<48x1xf32>
    %218 = vector.extract_strided_slice %207 {offsets = [53, 0], sizes = [48, 1], strides = [1, 1]} : vector<218x1xf32> to vector<48x1xf32>
    %219 = vector.extract_strided_slice %207 {offsets = [54, 0], sizes = [48, 1], strides = [1, 1]} : vector<218x1xf32> to vector<48x1xf32>
    %220 = vector.extract_strided_slice %207 {offsets = [55, 0], sizes = [48, 1], strides = [1, 1]} : vector<218x1xf32> to vector<48x1xf32>
    %221 = vector.extract_strided_slice %207 {offsets = [56, 0], sizes = [48, 1], strides = [1, 1]} : vector<218x1xf32> to vector<48x1xf32>
    %222 = vector.extract_strided_slice %207 {offsets = [66, 0], sizes = [48, 1], strides = [1, 1]} : vector<218x1xf32> to vector<48x1xf32>
    %223 = vector.extract_strided_slice %207 {offsets = [67, 0], sizes = [48, 1], strides = [1, 1]} : vector<218x1xf32> to vector<48x1xf32>
    %224 = vector.extract_strided_slice %207 {offsets = [68, 0], sizes = [48, 1], strides = [1, 1]} : vector<218x1xf32> to vector<48x1xf32>
    %225 = vector.extract_strided_slice %207 {offsets = [69, 0], sizes = [48, 1], strides = [1, 1]} : vector<218x1xf32> to vector<48x1xf32>
    %226 = vector.extract_strided_slice %207 {offsets = [70, 0], sizes = [48, 1], strides = [1, 1]} : vector<218x1xf32> to vector<48x1xf32>
    %227 = vector.extract_strided_slice %207 {offsets = [71, 0], sizes = [48, 1], strides = [1, 1]} : vector<218x1xf32> to vector<48x1xf32>
    %228 = vector.extract_strided_slice %207 {offsets = [72, 0], sizes = [48, 1], strides = [1, 1]} : vector<218x1xf32> to vector<48x1xf32>
    %229 = vector.extract_strided_slice %207 {offsets = [82, 0], sizes = [48, 1], strides = [1, 1]} : vector<218x1xf32> to vector<48x1xf32>
    %230 = vector.extract_strided_slice %207 {offsets = [83, 0], sizes = [48, 1], strides = [1, 1]} : vector<218x1xf32> to vector<48x1xf32>
    %231 = vector.extract_strided_slice %207 {offsets = [84, 0], sizes = [48, 1], strides = [1, 1]} : vector<218x1xf32> to vector<48x1xf32>
    %232 = vector.extract_strided_slice %207 {offsets = [85, 0], sizes = [48, 1], strides = [1, 1]} : vector<218x1xf32> to vector<48x1xf32>
    %233 = vector.extract_strided_slice %207 {offsets = [86, 0], sizes = [48, 1], strides = [1, 1]} : vector<218x1xf32> to vector<48x1xf32>
    %234 = vector.extract_strided_slice %207 {offsets = [87, 0], sizes = [48, 1], strides = [1, 1]} : vector<218x1xf32> to vector<48x1xf32>
    %235 = vector.extract_strided_slice %207 {offsets = [88, 0], sizes = [48, 1], strides = [1, 1]} : vector<218x1xf32> to vector<48x1xf32>
    %236 = vector.extract_strided_slice %207 {offsets = [98, 0], sizes = [48, 1], strides = [1, 1]} : vector<218x1xf32> to vector<48x1xf32>
    %237 = vector.extract_strided_slice %207 {offsets = [99, 0], sizes = [48, 1], strides = [1, 1]} : vector<218x1xf32> to vector<48x1xf32>
    %238 = vector.extract_strided_slice %207 {offsets = [100, 0], sizes = [48, 1], strides = [1, 1]} : vector<218x1xf32> to vector<48x1xf32>
    %239 = vector.extract_strided_slice %207 {offsets = [101, 0], sizes = [48, 1], strides = [1, 1]} : vector<218x1xf32> to vector<48x1xf32>
    %240 = vector.extract_strided_slice %207 {offsets = [102, 0], sizes = [48, 1], strides = [1, 1]} : vector<218x1xf32> to vector<48x1xf32>
    %241 = vector.extract_strided_slice %207 {offsets = [103, 0], sizes = [48, 1], strides = [1, 1]} : vector<218x1xf32> to vector<48x1xf32>
    %242 = vector.extract_strided_slice %207 {offsets = [104, 0], sizes = [48, 1], strides = [1, 1]} : vector<218x1xf32> to vector<48x1xf32>
    %243 = vector.extract_strided_slice %207 {offsets = [114, 0], sizes = [48, 1], strides = [1, 1]} : vector<218x1xf32> to vector<48x1xf32>
    %244 = vector.extract_strided_slice %207 {offsets = [115, 0], sizes = [48, 1], strides = [1, 1]} : vector<218x1xf32> to vector<48x1xf32>
    %245 = vector.extract_strided_slice %207 {offsets = [116, 0], sizes = [48, 1], strides = [1, 1]} : vector<218x1xf32> to vector<48x1xf32>
    %246 = vector.extract_strided_slice %207 {offsets = [117, 0], sizes = [48, 1], strides = [1, 1]} : vector<218x1xf32> to vector<48x1xf32>
    %247 = vector.extract_strided_slice %207 {offsets = [118, 0], sizes = [48, 1], strides = [1, 1]} : vector<218x1xf32> to vector<48x1xf32>
    %248 = vector.extract_strided_slice %207 {offsets = [119, 0], sizes = [48, 1], strides = [1, 1]} : vector<218x1xf32> to vector<48x1xf32>
    %249 = vector.extract_strided_slice %207 {offsets = [120, 0], sizes = [48, 1], strides = [1, 1]} : vector<218x1xf32> to vector<48x1xf32>
    %250 = vector.extract_strided_slice %207 {offsets = [130, 0], sizes = [48, 1], strides = [1, 1]} : vector<218x1xf32> to vector<48x1xf32>
    %251 = vector.extract_strided_slice %207 {offsets = [131, 0], sizes = [48, 1], strides = [1, 1]} : vector<218x1xf32> to vector<48x1xf32>
    %252 = vector.extract_strided_slice %207 {offsets = [132, 0], sizes = [48, 1], strides = [1, 1]} : vector<218x1xf32> to vector<48x1xf32>
    %253 = vector.extract_strided_slice %207 {offsets = [133, 0], sizes = [48, 1], strides = [1, 1]} : vector<218x1xf32> to vector<48x1xf32>
    %254 = vector.extract_strided_slice %207 {offsets = [134, 0], sizes = [48, 1], strides = [1, 1]} : vector<218x1xf32> to vector<48x1xf32>
    %255 = vector.extract_strided_slice %207 {offsets = [135, 0], sizes = [48, 1], strides = [1, 1]} : vector<218x1xf32> to vector<48x1xf32>
    %256 = vector.extract_strided_slice %207 {offsets = [136, 0], sizes = [48, 1], strides = [1, 1]} : vector<218x1xf32> to vector<48x1xf32>
    %cst_31 = arith.constant 0.000000e+00 : f32
    %257 = vector.broadcast %cst_31 : f32 to vector<48x15xf32>
    %258 = tpu.concatenate %208, %209, %210, %211, %212, %213, %214, %215, %216, %217, %218, %219, %220, %221, %222, %223 in 1 : vector<48x1xf32>, vector<48x1xf32>, vector<48x1xf32>, vector<48x1xf32>, vector<48x1xf32>, vector<48x1xf32>, vector<48x1xf32>, vector<48x1xf32>, vector<48x1xf32>, vector<48x1xf32>, vector<48x1xf32>, vector<48x1xf32>, vector<48x1xf32>, vector<48x1xf32>, vector<48x1xf32>, vector<48x1xf32> -> vector<48x16xf32>
    %259 = tpu.concatenate %224, %225, %226, %227, %228, %229, %230, %231, %232, %233, %234, %235, %236, %237, %238, %239 in 1 : vector<48x1xf32>, vector<48x1xf32>, vector<48x1xf32>, vector<48x1xf32>, vector<48x1xf32>, vector<48x1xf32>, vector<48x1xf32>, vector<48x1xf32>, vector<48x1xf32>, vector<48x1xf32>, vector<48x1xf32>, vector<48x1xf32>, vector<48x1xf32>, vector<48x1xf32>, vector<48x1xf32>, vector<48x1xf32> -> vector<48x16xf32>
    %260 = tpu.concatenate %240, %241, %242, %243, %244, %245, %246, %247, %248, %249, %250, %251, %252, %253, %254, %255 in 1 : vector<48x1xf32>, vector<48x1xf32>, vector<48x1xf32>, vector<48x1xf32>, vector<48x1xf32>, vector<48x1xf32>, vector<48x1xf32>, vector<48x1xf32>, vector<48x1xf32>, vector<48x1xf32>, vector<48x1xf32>, vector<48x1xf32>, vector<48x1xf32>, vector<48x1xf32>, vector<48x1xf32>, vector<48x1xf32> -> vector<48x16xf32>
    %261 = tpu.concatenate %256, %257 in 1 : vector<48x1xf32>, vector<48x15xf32> -> vector<48x16xf32>
    %262 = tpu.concatenate %258, %259, %260, %261 in 1 : vector<48x16xf32>, vector<48x16xf32>, vector<48x16xf32>, vector<48x16xf32> -> vector<48x64xf32>
    %263 = vector.shape_cast %262 : vector<48x64xf32> to vector<3x16x64xf32>
    %264 = vector.extract_strided_slice %4 {offsets = [0, 3], sizes = [218, 1], strides = [1, 1]} : vector<218x4xf32> to vector<218x1xf32>
    %265 = vector.extract_strided_slice %264 {offsets = [34, 0], sizes = [48, 1], strides = [1, 1]} : vector<218x1xf32> to vector<48x1xf32>
    %266 = vector.extract_strided_slice %264 {offsets = [35, 0], sizes = [48, 1], strides = [1, 1]} : vector<218x1xf32> to vector<48x1xf32>
    %267 = vector.extract_strided_slice %264 {offsets = [36, 0], sizes = [48, 1], strides = [1, 1]} : vector<218x1xf32> to vector<48x1xf32>
    %268 = vector.extract_strided_slice %264 {offsets = [37, 0], sizes = [48, 1], strides = [1, 1]} : vector<218x1xf32> to vector<48x1xf32>
    %269 = vector.extract_strided_slice %264 {offsets = [38, 0], sizes = [48, 1], strides = [1, 1]} : vector<218x1xf32> to vector<48x1xf32>
    %270 = vector.extract_strided_slice %264 {offsets = [39, 0], sizes = [48, 1], strides = [1, 1]} : vector<218x1xf32> to vector<48x1xf32>
    %271 = vector.extract_strided_slice %264 {offsets = [40, 0], sizes = [48, 1], strides = [1, 1]} : vector<218x1xf32> to vector<48x1xf32>
    %272 = vector.extract_strided_slice %264 {offsets = [50, 0], sizes = [48, 1], strides = [1, 1]} : vector<218x1xf32> to vector<48x1xf32>
    %273 = vector.extract_strided_slice %264 {offsets = [51, 0], sizes = [48, 1], strides = [1, 1]} : vector<218x1xf32> to vector<48x1xf32>
    %274 = vector.extract_strided_slice %264 {offsets = [52, 0], sizes = [48, 1], strides = [1, 1]} : vector<218x1xf32> to vector<48x1xf32>
    %275 = vector.extract_strided_slice %264 {offsets = [53, 0], sizes = [48, 1], strides = [1, 1]} : vector<218x1xf32> to vector<48x1xf32>
    %276 = vector.extract_strided_slice %264 {offsets = [54, 0], sizes = [48, 1], strides = [1, 1]} : vector<218x1xf32> to vector<48x1xf32>
    %277 = vector.extract_strided_slice %264 {offsets = [55, 0], sizes = [48, 1], strides = [1, 1]} : vector<218x1xf32> to vector<48x1xf32>
    %278 = vector.extract_strided_slice %264 {offsets = [56, 0], sizes = [48, 1], strides = [1, 1]} : vector<218x1xf32> to vector<48x1xf32>
    %279 = vector.extract_strided_slice %264 {offsets = [66, 0], sizes = [48, 1], strides = [1, 1]} : vector<218x1xf32> to vector<48x1xf32>
    %280 = vector.extract_strided_slice %264 {offsets = [67, 0], sizes = [48, 1], strides = [1, 1]} : vector<218x1xf32> to vector<48x1xf32>
    %281 = vector.extract_strided_slice %264 {offsets = [68, 0], sizes = [48, 1], strides = [1, 1]} : vector<218x1xf32> to vector<48x1xf32>
    %282 = vector.extract_strided_slice %264 {offsets = [69, 0], sizes = [48, 1], strides = [1, 1]} : vector<218x1xf32> to vector<48x1xf32>
    %283 = vector.extract_strided_slice %264 {offsets = [70, 0], sizes = [48, 1], strides = [1, 1]} : vector<218x1xf32> to vector<48x1xf32>
    %284 = vector.extract_strided_slice %264 {offsets = [71, 0], sizes = [48, 1], strides = [1, 1]} : vector<218x1xf32> to vector<48x1xf32>
    %285 = vector.extract_strided_slice %264 {offsets = [72, 0], sizes = [48, 1], strides = [1, 1]} : vector<218x1xf32> to vector<48x1xf32>
    %286 = vector.extract_strided_slice %264 {offsets = [82, 0], sizes = [48, 1], strides = [1, 1]} : vector<218x1xf32> to vector<48x1xf32>
    %287 = vector.extract_strided_slice %264 {offsets = [83, 0], sizes = [48, 1], strides = [1, 1]} : vector<218x1xf32> to vector<48x1xf32>
    %288 = vector.extract_strided_slice %264 {offsets = [84, 0], sizes = [48, 1], strides = [1, 1]} : vector<218x1xf32> to vector<48x1xf32>
    %289 = vector.extract_strided_slice %264 {offsets = [85, 0], sizes = [48, 1], strides = [1, 1]} : vector<218x1xf32> to vector<48x1xf32>
    %290 = vector.extract_strided_slice %264 {offsets = [86, 0], sizes = [48, 1], strides = [1, 1]} : vector<218x1xf32> to vector<48x1xf32>
    %291 = vector.extract_strided_slice %264 {offsets = [87, 0], sizes = [48, 1], strides = [1, 1]} : vector<218x1xf32> to vector<48x1xf32>
    %292 = vector.extract_strided_slice %264 {offsets = [88, 0], sizes = [48, 1], strides = [1, 1]} : vector<218x1xf32> to vector<48x1xf32>
    %293 = vector.extract_strided_slice %264 {offsets = [98, 0], sizes = [48, 1], strides = [1, 1]} : vector<218x1xf32> to vector<48x1xf32>
    %294 = vector.extract_strided_slice %264 {offsets = [99, 0], sizes = [48, 1], strides = [1, 1]} : vector<218x1xf32> to vector<48x1xf32>
    %295 = vector.extract_strided_slice %264 {offsets = [100, 0], sizes = [48, 1], strides = [1, 1]} : vector<218x1xf32> to vector<48x1xf32>
    %296 = vector.extract_strided_slice %264 {offsets = [101, 0], sizes = [48, 1], strides = [1, 1]} : vector<218x1xf32> to vector<48x1xf32>
    %297 = vector.extract_strided_slice %264 {offsets = [102, 0], sizes = [48, 1], strides = [1, 1]} : vector<218x1xf32> to vector<48x1xf32>
    %298 = vector.extract_strided_slice %264 {offsets = [103, 0], sizes = [48, 1], strides = [1, 1]} : vector<218x1xf32> to vector<48x1xf32>
    %299 = vector.extract_strided_slice %264 {offsets = [104, 0], sizes = [48, 1], strides = [1, 1]} : vector<218x1xf32> to vector<48x1xf32>
    %300 = vector.extract_strided_slice %264 {offsets = [114, 0], sizes = [48, 1], strides = [1, 1]} : vector<218x1xf32> to vector<48x1xf32>
    %301 = vector.extract_strided_slice %264 {offsets = [115, 0], sizes = [48, 1], strides = [1, 1]} : vector<218x1xf32> to vector<48x1xf32>
    %302 = vector.extract_strided_slice %264 {offsets = [116, 0], sizes = [48, 1], strides = [1, 1]} : vector<218x1xf32> to vector<48x1xf32>
    %303 = vector.extract_strided_slice %264 {offsets = [117, 0], sizes = [48, 1], strides = [1, 1]} : vector<218x1xf32> to vector<48x1xf32>
    %304 = vector.extract_strided_slice %264 {offsets = [118, 0], sizes = [48, 1], strides = [1, 1]} : vector<218x1xf32> to vector<48x1xf32>
    %305 = vector.extract_strided_slice %264 {offsets = [119, 0], sizes = [48, 1], strides = [1, 1]} : vector<218x1xf32> to vector<48x1xf32>
    %306 = vector.extract_strided_slice %264 {offsets = [120, 0], sizes = [48, 1], strides = [1, 1]} : vector<218x1xf32> to vector<48x1xf32>
    %307 = vector.extract_strided_slice %264 {offsets = [130, 0], sizes = [48, 1], strides = [1, 1]} : vector<218x1xf32> to vector<48x1xf32>
    %308 = vector.extract_strided_slice %264 {offsets = [131, 0], sizes = [48, 1], strides = [1, 1]} : vector<218x1xf32> to vector<48x1xf32>
    %309 = vector.extract_strided_slice %264 {offsets = [132, 0], sizes = [48, 1], strides = [1, 1]} : vector<218x1xf32> to vector<48x1xf32>
    %310 = vector.extract_strided_slice %264 {offsets = [133, 0], sizes = [48, 1], strides = [1, 1]} : vector<218x1xf32> to vector<48x1xf32>
    %311 = vector.extract_strided_slice %264 {offsets = [134, 0], sizes = [48, 1], strides = [1, 1]} : vector<218x1xf32> to vector<48x1xf32>
    %312 = vector.extract_strided_slice %264 {offsets = [135, 0], sizes = [48, 1], strides = [1, 1]} : vector<218x1xf32> to vector<48x1xf32>
    %313 = vector.extract_strided_slice %264 {offsets = [136, 0], sizes = [48, 1], strides = [1, 1]} : vector<218x1xf32> to vector<48x1xf32>
    %cst_32 = arith.constant 0.000000e+00 : f32
    %314 = vector.broadcast %cst_32 : f32 to vector<48x15xf32>
    %315 = tpu.concatenate %265, %266, %267, %268, %269, %270, %271, %272, %273, %274, %275, %276, %277, %278, %279, %280 in 1 : vector<48x1xf32>, vector<48x1xf32>, vector<48x1xf32>, vector<48x1xf32>, vector<48x1xf32>, vector<48x1xf32>, vector<48x1xf32>, vector<48x1xf32>, vector<48x1xf32>, vector<48x1xf32>, vector<48x1xf32>, vector<48x1xf32>, vector<48x1xf32>, vector<48x1xf32>, vector<48x1xf32>, vector<48x1xf32> -> vector<48x16xf32>
    %316 = tpu.concatenate %281, %282, %283, %284, %285, %286, %287, %288, %289, %290, %291, %292, %293, %294, %295, %296 in 1 : vector<48x1xf32>, vector<48x1xf32>, vector<48x1xf32>, vector<48x1xf32>, vector<48x1xf32>, vector<48x1xf32>, vector<48x1xf32>, vector<48x1xf32>, vector<48x1xf32>, vector<48x1xf32>, vector<48x1xf32>, vector<48x1xf32>, vector<48x1xf32>, vector<48x1xf32>, vector<48x1xf32>, vector<48x1xf32> -> vector<48x16xf32>
    %317 = tpu.concatenate %297, %298, %299, %300, %301, %302, %303, %304, %305, %306, %307, %308, %309, %310, %311, %312 in 1 : vector<48x1xf32>, vector<48x1xf32>, vector<48x1xf32>, vector<48x1xf32>, vector<48x1xf32>, vector<48x1xf32>, vector<48x1xf32>, vector<48x1xf32>, vector<48x1xf32>, vector<48x1xf32>, vector<48x1xf32>, vector<48x1xf32>, vector<48x1xf32>, vector<48x1xf32>, vector<48x1xf32>, vector<48x1xf32> -> vector<48x16xf32>
    %318 = tpu.concatenate %313, %314 in 1 : vector<48x1xf32>, vector<48x15xf32> -> vector<48x16xf32>
    %319 = tpu.concatenate %315, %316, %317, %318 in 1 : vector<48x16xf32>, vector<48x16xf32>, vector<48x16xf32>, vector<48x16xf32> -> vector<48x64xf32>
    %320 = vector.shape_cast %319 : vector<48x64xf32> to vector<3x16x64xf32>
    %321 = tpu.concatenate %149, %320 in 2 : vector<3x16x64xf32>, vector<3x16x64xf32> -> vector<3x16x128xf32>
    %322 = vector.shape_cast %92 : vector<48x640xf32> to vector<3x16x640xf32>
    %323 = vector.extract_strided_slice %322 {offsets = [0, 0, 0], sizes = [3, 16, 64], strides = [1, 1, 1]} : vector<3x16x640xf32> to vector<3x16x64xf32>
    %cst_33 = arith.constant dense<0xFF800000> : vector<3x16xf32>
    %324 = vector.multi_reduction <maximumf>, %323, %cst_33 [2] : vector<3x16x64xf32> to vector<3x16xf32>
    %325 = vector.shape_cast %324 : vector<3x16xf32> to vector<3x16x1xf32>
    %326 = vector.broadcast %325 : vector<3x16x1xf32> to vector<3x16x64xf32>
    %327 = arith.subf %323, %326 : vector<3x16x64xf32>
    %328 = math.exp %327 : vector<3x16x64xf32>
    %cst_34 = arith.constant dense<0.000000e+00> : vector<3x16xf32>
    %329 = vector.multi_reduction <add>, %328, %cst_34 [2] : vector<3x16x64xf32> to vector<3x16xf32>
    %330 = vector.shape_cast %329 : vector<3x16xf32> to vector<3x16x1xf32>
    %331 = tpu.reciprocal %330 {approx = true} : vector<3x16x1xf32> -> vector<3x16x1xf32>
    %332 = vector.broadcast %331 : vector<3x16x1xf32> to vector<3x16x64xf32>
    %333 = arith.mulf %328, %332 : vector<3x16x64xf32>
    %334 = arith.mulf %333, %263 : vector<3x16x64xf32>
    %cst_35 = arith.constant dense<0.000000e+00> : vector<3x16xf32>
    %335 = vector.multi_reduction <add>, %334, %cst_35 [2] : vector<3x16x64xf32> to vector<3x16xf32>
    %336 = vector.extract_strided_slice %322 {offsets = [0, 0, 64], sizes = [3, 16, 64], strides = [1, 1, 1]} : vector<3x16x640xf32> to vector<3x16x64xf32>
    %cst_36 = arith.constant dense<0xFF800000> : vector<3x16xf32>
    %337 = vector.multi_reduction <maximumf>, %336, %cst_36 [2] : vector<3x16x64xf32> to vector<3x16xf32>
    %338 = vector.shape_cast %337 : vector<3x16xf32> to vector<3x16x1xf32>
    %339 = vector.broadcast %338 : vector<3x16x1xf32> to vector<3x16x64xf32>
    %340 = arith.subf %336, %339 : vector<3x16x64xf32>
    %341 = math.exp %340 : vector<3x16x64xf32>
    %cst_37 = arith.constant dense<0.000000e+00> : vector<3x16xf32>
    %342 = vector.multi_reduction <add>, %341, %cst_37 [2] : vector<3x16x64xf32> to vector<3x16xf32>
    %343 = vector.shape_cast %342 : vector<3x16xf32> to vector<3x16x1xf32>
    %344 = tpu.reciprocal %343 {approx = true} : vector<3x16x1xf32> -> vector<3x16x1xf32>
    %345 = vector.broadcast %344 : vector<3x16x1xf32> to vector<3x16x64xf32>
    %346 = arith.mulf %341, %345 : vector<3x16x64xf32>
    %347 = arith.mulf %346, %263 : vector<3x16x64xf32>
    %cst_38 = arith.constant dense<0.000000e+00> : vector<3x16xf32>
    %348 = vector.multi_reduction <add>, %347, %cst_38 [2] : vector<3x16x64xf32> to vector<3x16xf32>
    %349 = vector.extract_strided_slice %322 {offsets = [0, 0, 128], sizes = [3, 16, 64], strides = [1, 1, 1]} : vector<3x16x640xf32> to vector<3x16x64xf32>
    %cst_39 = arith.constant dense<0xFF800000> : vector<3x16xf32>
    %350 = vector.multi_reduction <maximumf>, %349, %cst_39 [2] : vector<3x16x64xf32> to vector<3x16xf32>
    %351 = vector.shape_cast %350 : vector<3x16xf32> to vector<3x16x1xf32>
    %352 = vector.broadcast %351 : vector<3x16x1xf32> to vector<3x16x64xf32>
    %353 = arith.subf %349, %352 : vector<3x16x64xf32>
    %354 = math.exp %353 : vector<3x16x64xf32>
    %cst_40 = arith.constant dense<0.000000e+00> : vector<3x16xf32>
    %355 = vector.multi_reduction <add>, %354, %cst_40 [2] : vector<3x16x64xf32> to vector<3x16xf32>
    %356 = vector.shape_cast %355 : vector<3x16xf32> to vector<3x16x1xf32>
    %357 = tpu.reciprocal %356 {approx = true} : vector<3x16x1xf32> -> vector<3x16x1xf32>
    %358 = vector.broadcast %357 : vector<3x16x1xf32> to vector<3x16x64xf32>
    %359 = arith.mulf %354, %358 : vector<3x16x64xf32>
    %360 = arith.mulf %359, %263 : vector<3x16x64xf32>
    %cst_41 = arith.constant dense<0.000000e+00> : vector<3x16xf32>
    %361 = vector.multi_reduction <add>, %360, %cst_41 [2] : vector<3x16x64xf32> to vector<3x16xf32>
    %362 = vector.extract_strided_slice %322 {offsets = [0, 0, 192], sizes = [3, 16, 64], strides = [1, 1, 1]} : vector<3x16x640xf32> to vector<3x16x64xf32>
    %cst_42 = arith.constant dense<0xFF800000> : vector<3x16xf32>
    %363 = vector.multi_reduction <maximumf>, %362, %cst_42 [2] : vector<3x16x64xf32> to vector<3x16xf32>
    %364 = vector.shape_cast %363 : vector<3x16xf32> to vector<3x16x1xf32>
    %365 = vector.broadcast %364 : vector<3x16x1xf32> to vector<3x16x64xf32>
    %366 = arith.subf %362, %365 : vector<3x16x64xf32>
    %367 = math.exp %366 : vector<3x16x64xf32>
    %cst_43 = arith.constant dense<0.000000e+00> : vector<3x16xf32>
    %368 = vector.multi_reduction <add>, %367, %cst_43 [2] : vector<3x16x64xf32> to vector<3x16xf32>
    %369 = vector.shape_cast %368 : vector<3x16xf32> to vector<3x16x1xf32>
    %370 = tpu.reciprocal %369 {approx = true} : vector<3x16x1xf32> -> vector<3x16x1xf32>
    %371 = vector.broadcast %370 : vector<3x16x1xf32> to vector<3x16x64xf32>
    %372 = arith.mulf %367, %371 : vector<3x16x64xf32>
    %373 = arith.mulf %372, %206 : vector<3x16x64xf32>
    %cst_44 = arith.constant dense<0.000000e+00> : vector<3x16xf32>
    %374 = vector.multi_reduction <add>, %373, %cst_44 [2] : vector<3x16x64xf32> to vector<3x16xf32>
    %375 = vector.extract_strided_slice %322 {offsets = [0, 0, 256], sizes = [3, 16, 64], strides = [1, 1, 1]} : vector<3x16x640xf32> to vector<3x16x64xf32>
    %cst_45 = arith.constant dense<0xFF800000> : vector<3x16xf32>
    %376 = vector.multi_reduction <maximumf>, %375, %cst_45 [2] : vector<3x16x64xf32> to vector<3x16xf32>
    %377 = vector.shape_cast %376 : vector<3x16xf32> to vector<3x16x1xf32>
    %378 = vector.broadcast %377 : vector<3x16x1xf32> to vector<3x16x64xf32>
    %379 = arith.subf %375, %378 : vector<3x16x64xf32>
    %380 = math.exp %379 : vector<3x16x64xf32>
    %cst_46 = arith.constant dense<0.000000e+00> : vector<3x16xf32>
    %381 = vector.multi_reduction <add>, %380, %cst_46 [2] : vector<3x16x64xf32> to vector<3x16xf32>
    %382 = vector.shape_cast %381 : vector<3x16xf32> to vector<3x16x1xf32>
    %383 = tpu.reciprocal %382 {approx = true} : vector<3x16x1xf32> -> vector<3x16x1xf32>
    %384 = vector.broadcast %383 : vector<3x16x1xf32> to vector<3x16x64xf32>
    %385 = arith.mulf %380, %384 : vector<3x16x64xf32>
    %386 = arith.mulf %385, %206 : vector<3x16x64xf32>
    %cst_47 = arith.constant dense<0.000000e+00> : vector<3x16xf32>
    %387 = vector.multi_reduction <add>, %386, %cst_47 [2] : vector<3x16x64xf32> to vector<3x16xf32>
    %388 = vector.extract_strided_slice %322 {offsets = [0, 0, 320], sizes = [3, 16, 64], strides = [1, 1, 1]} : vector<3x16x640xf32> to vector<3x16x64xf32>
    %cst_48 = arith.constant dense<0xFF800000> : vector<3x16xf32>
    %389 = vector.multi_reduction <maximumf>, %388, %cst_48 [2] : vector<3x16x64xf32> to vector<3x16xf32>
    %390 = vector.shape_cast %389 : vector<3x16xf32> to vector<3x16x1xf32>
    %391 = vector.broadcast %390 : vector<3x16x1xf32> to vector<3x16x64xf32>
    %392 = arith.subf %388, %391 : vector<3x16x64xf32>
    %393 = math.exp %392 : vector<3x16x64xf32>
    %cst_49 = arith.constant dense<0.000000e+00> : vector<3x16xf32>
    %394 = vector.multi_reduction <add>, %393, %cst_49 [2] : vector<3x16x64xf32> to vector<3x16xf32>
    %395 = vector.shape_cast %394 : vector<3x16xf32> to vector<3x16x1xf32>
    %396 = tpu.reciprocal %395 {approx = true} : vector<3x16x1xf32> -> vector<3x16x1xf32>
    %397 = vector.broadcast %396 : vector<3x16x1xf32> to vector<3x16x64xf32>
    %398 = arith.mulf %393, %397 : vector<3x16x64xf32>
    %399 = arith.mulf %398, %206 : vector<3x16x64xf32>
    %cst_50 = arith.constant dense<0.000000e+00> : vector<3x16xf32>
    %400 = vector.multi_reduction <add>, %399, %cst_50 [2] : vector<3x16x64xf32> to vector<3x16xf32>
    %401 = vector.extract_strided_slice %322 {offsets = [0, 0, 384], sizes = [3, 16, 128], strides = [1, 1, 1]} : vector<3x16x640xf32> to vector<3x16x128xf32>
    %cst_51 = arith.constant dense<0xFF800000> : vector<3x16xf32>
    %402 = vector.multi_reduction <maximumf>, %401, %cst_51 [2] : vector<3x16x128xf32> to vector<3x16xf32>
    %403 = vector.shape_cast %402 : vector<3x16xf32> to vector<3x16x1xf32>
    %404 = vector.broadcast %403 : vector<3x16x1xf32> to vector<3x16x128xf32>
    %405 = arith.subf %401, %404 : vector<3x16x128xf32>
    %406 = math.exp %405 : vector<3x16x128xf32>
    %cst_52 = arith.constant dense<0.000000e+00> : vector<3x16xf32>
    %407 = vector.multi_reduction <add>, %406, %cst_52 [2] : vector<3x16x128xf32> to vector<3x16xf32>
    %408 = vector.shape_cast %407 : vector<3x16xf32> to vector<3x16x1xf32>
    %409 = tpu.reciprocal %408 {approx = true} : vector<3x16x1xf32> -> vector<3x16x1xf32>
    %410 = vector.broadcast %409 : vector<3x16x1xf32> to vector<3x16x128xf32>
    %411 = arith.mulf %406, %410 : vector<3x16x128xf32>
    %412 = arith.mulf %411, %321 : vector<3x16x128xf32>
    %cst_53 = arith.constant dense<0.000000e+00> : vector<3x16xf32>
    %413 = vector.multi_reduction <add>, %412, %cst_53 [2] : vector<3x16x128xf32> to vector<3x16xf32>
    %414 = vector.extract_strided_slice %322 {offsets = [0, 0, 512], sizes = [3, 16, 128], strides = [1, 1, 1]} : vector<3x16x640xf32> to vector<3x16x128xf32>
    %cst_54 = arith.constant dense<0xFF800000> : vector<3x16xf32>
    %415 = vector.multi_reduction <maximumf>, %414, %cst_54 [2] : vector<3x16x128xf32> to vector<3x16xf32>
    %416 = vector.shape_cast %415 : vector<3x16xf32> to vector<3x16x1xf32>
    %417 = vector.broadcast %416 : vector<3x16x1xf32> to vector<3x16x128xf32>
    %418 = arith.subf %414, %417 : vector<3x16x128xf32>
    %419 = math.exp %418 : vector<3x16x128xf32>
    %cst_55 = arith.constant dense<0.000000e+00> : vector<3x16xf32>
    %420 = vector.multi_reduction <add>, %419, %cst_55 [2] : vector<3x16x128xf32> to vector<3x16xf32>
    %421 = vector.shape_cast %420 : vector<3x16xf32> to vector<3x16x1xf32>
    %422 = tpu.reciprocal %421 {approx = true} : vector<3x16x1xf32> -> vector<3x16x1xf32>
    %423 = vector.broadcast %422 : vector<3x16x1xf32> to vector<3x16x128xf32>
    %424 = arith.mulf %419, %423 : vector<3x16x128xf32>
    %425 = arith.mulf %424, %321 : vector<3x16x128xf32>
    %cst_56 = arith.constant dense<0.000000e+00> : vector<3x16xf32>
    %426 = vector.multi_reduction <add>, %425, %cst_56 [2] : vector<3x16x128xf32> to vector<3x16xf32>
    %427 = vector.shape_cast %335 : vector<3x16xf32> to vector<3x1x16xf32>
    %428 = vector.shape_cast %348 : vector<3x16xf32> to vector<3x1x16xf32>
    %429 = vector.shape_cast %361 : vector<3x16xf32> to vector<3x1x16xf32>
    %430 = vector.shape_cast %374 : vector<3x16xf32> to vector<3x1x16xf32>
    %431 = vector.shape_cast %387 : vector<3x16xf32> to vector<3x1x16xf32>
    %432 = vector.shape_cast %400 : vector<3x16xf32> to vector<3x1x16xf32>
    %433 = vector.shape_cast %413 : vector<3x16xf32> to vector<3x1x16xf32>
    %434 = vector.shape_cast %426 : vector<3x16xf32> to vector<3x1x16xf32>
    %435 = tpu.concatenate %427, %428, %429, %430, %431, %432, %433, %434 in 1 : vector<3x1x16xf32>, vector<3x1x16xf32>, vector<3x1x16xf32>, vector<3x1x16xf32>, vector<3x1x16xf32>, vector<3x1x16xf32>, vector<3x1x16xf32>, vector<3x1x16xf32> -> vector<3x8x16xf32>
    %c0_57 = arith.constant 0 : index
    %c0_58 = arith.constant 0 : index
    %c0_59 = arith.constant 0 : index
    %c0_60 = arith.constant 0 : index
    %436 = vector.load %arg13[%c0_57, %c0_58, %c0_59, %c0_60] : memref<1x3x8x16xf32, #tpu.memory_space<vmem>>, vector<1x3x8x16xf32>
    %437 = vector.shape_cast %436 : vector<1x3x8x16xf32> to vector<3x8x16xf32>
    %438 = vector.shape_cast %435 : vector<3x8x16xf32> to vector<1x3x8x16xf32>
    tpu.vector_store %arg13[%c0_57, %c0_58, %c0_59, %c0_60], %438 {strides = array<i32>} : memref<1x3x8x16xf32, #tpu.memory_space<vmem>>, vector<1x3x8x16xf32>,
    return
  }
  func.func @transform_0(%arg0: i32, %arg1: i32) -> (i32, i32, i32) {
    %c0_i32 = arith.constant 0 : i32
    %c0_i32_0 = arith.constant 0 : i32
    %c0_i32_1 = arith.constant 0 : i32
    return %arg0, %c0_i32, %c0_i32_0 : i32, i32, i32
  }
  func.func @transform_1(%arg0: i32, %arg1: i32) -> (i32, i32) {
    %c0_i32 = arith.constant 0 : i32
    %c0_i32_0 = arith.constant 0 : i32
    %c0_i32_1 = arith.constant 0 : i32
    return %c0_i32, %c0_i32_0 : i32, i32
  }
  func.func @transform_2(%arg0: i32, %arg1: i32) -> (i32, i32) {
    %c0_i32 = arith.constant 0 : i32
    %c0_i32_0 = arith.constant 0 : i32
    %c0_i32_1 = arith.constant 0 : i32
    return %c0_i32, %c0_i32_0 : i32, i32
  }
  func.func @transform_3(%arg0: i32, %arg1: i32) -> (i32, i32) {
    %c0_i32 = arith.constant 0 : i32
    %c0_i32_0 = arith.constant 0 : i32
    %c0_i32_1 = arith.constant 0 : i32
    return %c0_i32, %c0_i32_0 : i32, i32
  }
  func.func @transform_4(%arg0: i32, %arg1: i32) -> (i32, i32) {
    %c0_i32 = arith.constant 0 : i32
    %c0_i32_0 = arith.constant 0 : i32
    %c0_i32_1 = arith.constant 0 : i32
    return %c0_i32, %c0_i32_0 : i32, i32
  }
  func.func @transform_5(%arg0: i32, %arg1: i32) -> (i32, i32) {
    %c0_i32 = arith.constant 0 : i32
    %c0_i32_0 = arith.constant 0 : i32
    %c0_i32_1 = arith.constant 0 : i32
    return %c0_i32, %c0_i32_0 : i32, i32
  }
  func.func @transform_6(%arg0: i32, %arg1: i32) -> (i32, i32) {
    %c0_i32 = arith.constant 0 : i32
    %c0_i32_0 = arith.constant 0 : i32
    %c0_i32_1 = arith.constant 0 : i32
    return %c0_i32, %c0_i32_0 : i32, i32
  }
  func.func @transform_7(%arg0: i32, %arg1: i32) -> (i32, i32) {
    %c0_i32 = arith.constant 0 : i32
    %c0_i32_0 = arith.constant 0 : i32
    %c0_i32_1 = arith.constant 0 : i32
    return %c0_i32, %c0_i32_0 : i32, i32
  }
  func.func @transform_8(%arg0: i32, %arg1: i32) -> (i32, i32) {
    %c0_i32 = arith.constant 0 : i32
    %c0_i32_0 = arith.constant 0 : i32
    %c0_i32_1 = arith.constant 0 : i32
    return %c0_i32, %c0_i32_0 : i32, i32
  }
  func.func @transform_9(%arg0: i32, %arg1: i32) -> (i32, i32) {
    %c0_i32 = arith.constant 0 : i32
    %c0_i32_0 = arith.constant 0 : i32
    %c0_i32_1 = arith.constant 0 : i32
    return %c0_i32, %c0_i32_0 : i32, i32
  }
  func.func @transform_10(%arg0: i32, %arg1: i32) -> (i32, i32) {
    %c0_i32 = arith.constant 0 : i32
    %c0_i32_0 = arith.constant 0 : i32
    %c0_i32_1 = arith.constant 0 : i32
    return %c0_i32, %c0_i32_0 : i32, i32
  }
  func.func @transform_11(%arg0: i32, %arg1: i32) -> (i32, i32, i32, i32) {
    %c0_i32 = arith.constant 0 : i32
    %c0_i32_0 = arith.constant 0 : i32
    %c0_i32_1 = arith.constant 0 : i32
    return %arg0, %arg1, %c0_i32, %c0_i32_0 : i32, i32, i32, i32
  }
}

</mosaic_0001>

<llo_original>
// kernel: _lambda_.1
$region0: #{_lambda_.1}
  #allocation0 [shape = 'u32[]', space=smem, size = 0x4, offset = 0x4, fixed_abs, tag = 'smem constant byte address 0x4 - core index']
  #allocation1 [shape = 'u32[72,128]{1,0:T(1,128)}', space=vmem, size = 0x9000, scoped, tag = 'internal scratch']
  %s0 = inlined_call_operand.vmem [shape: f32[2,266,4], index: 0, kind: input, shape index: {}]
  %s1 = inlined_call_operand.vmem [shape: bf16[36,64], index: 1, kind: input, shape index: {}]
  %s2 = inlined_call_operand.vmem [shape: f32[1,64], index: 2, kind: input, shape index: {}]
  %s3 = inlined_call_operand.vmem [shape: bf16[576,64], index: 3, kind: input, shape index: {}]
  %s4 = inlined_call_operand.vmem [shape: f32[1,64], index: 4, kind: input, shape index: {}]
  %s5 = inlined_call_operand.vmem [shape: bf16[576,64], index: 5, kind: input, shape index: {}]
  %s6 = inlined_call_operand.vmem [shape: f32[1,64], index: 6, kind: input, shape index: {}]
  %s7 = inlined_call_operand.vmem [shape: bf16[576,64], index: 7, kind: input, shape index: {}]
  %s8 = inlined_call_operand.vmem [shape: f32[1,64], index: 8, kind: input, shape index: {}]
  %s9 = inlined_call_operand.vmem [shape: bf16[576,640], index: 9, kind: input, shape index: {}]
  %s10 = inlined_call_operand.vmem [shape: f32[1,640], index: 10, kind: input, shape index: {}]
  %s11 = inlined_call_operand.vmem [shape: f32[2,6,8,16], index: 11, kind: output, shape index: {}]
  %s12 = sld [smem:[#allocation0]]
  $region77: #{_lambda_.1} parent=0
    _
  %s14 = ssub.s32 1, %s12
  %s15 = scalar_select 0, %s14, %s12
  loop: start=0, step=1, limit=6
  $region2: #{_lambda_.1} parent=0 // loop_pre_header
    _
  $region3: #{_lambda_.1} parent=0 // loop_header
    %s17 = sphi 0, %s21
    %p18 = scmp.ge.s32.totalorder %s17, 6
    %s24 = sphi 0, %s36
    %s25 = sphi 0, %s32
    %s26 = sphi 0, %s24
    %s27 = sphi 0, %s25
    %s28 = sphi 0, %s26
    %s29 = sphi 0, %s27
    %s39 = sphi 0, %s41
    %s42 = sphi 0, %s39
    %s43 = sphi 0, %s42
    %s59 = sphi 0, %s43
    %s63 = sphi 0, %s63
    %s65 = sphi 0, %s63
    %s66 = sphi 0, %s65
    %s80 = sphi 0, %s66
    %s84 = sphi 0, %s84
    %s86 = sphi 0, %s84
    %s87 = sphi 0, %s86
    %s101 = sphi 0, %s87
    %s105 = sphi 0, %s105
    %s107 = sphi 0, %s105
    %s108 = sphi 0, %s107
    %s122 = sphi 0, %s108
    %s126 = sphi 0, %s126
    %s128 = sphi 0, %s126
    %s129 = sphi 0, %s128
    %s143 = sphi 0, %s129
    %s147 = sphi 0, %s147
    %s149 = sphi 0, %s147
    %s150 = sphi 0, %s149
    %s164 = sphi 0, %s150
    %s168 = sphi 0, %s168
    %s170 = sphi 0, %s168
    %s171 = sphi 0, %s170
    %s185 = sphi 0, %s171
    %s189 = sphi 0, %s189
    %s191 = sphi 0, %s189
    %s192 = sphi 0, %s191
    %s206 = sphi 0, %s192
    %s210 = sphi 0, %s210
    %s212 = sphi 0, %s210
    %s213 = sphi 0, %s212
    %s227 = sphi 0, %s213
    %s231 = sphi 0, %s231
    %s233 = sphi 0, %s231
    %s234 = sphi 0, %s233
    %s248 = sphi 0, %s234
    %s252 = sphi 0, %s252
    %s254 = sphi 0, %s252
    %s255 = sphi 0, %s254
    %s269 = sphi 0, %s255
    %s277 = sphi 0, %s279
    %s280 = sphi 0, %s277
    %s281 = sphi 0, %s280
    %s297 = sphi 0, %s281
  $region4: #{_lambda_.1} parent=0 // loop_header_branch
    %20 = sbr.rel (%p18) target = $region8
  $region5: #{_lambda_.1} parent=0 // loop_body
    %s22 = ssub.s32 %s17, 1
    %s23 = ssub.s32 %s17, 2
    %s30 = sadd.s32 1, %s25
    %p31 = scmp.ge.s32.totalorder %s30, 2
    %s32 = scalar_select %p31, 0, %s30
    %s33 = sadd.s32 1, %s24
    %s34 = scalar_select %p31, %s33, %s24
    %p35 = scmp.ge.s32.totalorder %s34, 2
    %s36 = scalar_select %p35, 0, %s34
    %s37 = ssub.s32 %s24, %s36
    %p38 = scmp.eq.s32.totalorder %s37, 0
    %s40 = sadd.s32 %s39, 1
    %s41 = scalar_select %p38, %s39, %s40
    %p44 = pneg %p38
    %p45 = scmp.eq.s32.totalorder %s17, 3
    %p46 = por %p44, %p45
    %p47 = scmp.ne.s32.totalorder %s39, %s42
    %p48 = scmp.eq.s32.totalorder %s17, 0
    %p49 = por %p47, %p48
    %p50 = scmp.ne.s32.totalorder %s39, %s42
    %p51 = scmp.eq.s32.totalorder %s22, 3
    %p52 = por %p50, %p51
    %p53 = scmp.ne.s32.totalorder %s42, %s43
    %p54 = scmp.eq.s32.totalorder %s22, 0
    %p55 = por %p53, %p54
    %p56 = scmp.ne.s32.totalorder %s42, %s43
    %p57 = scmp.eq.s32.totalorder %s23, 3
    %p58 = por %p56, %p57
    %p60 = scmp.ne.s32.totalorder %s43, %s59
    %p61 = scmp.eq.s32.totalorder %s23, 0
    %p62 = por %p60, %p61
    %s64 = sadd.s32 %s63, 1
    %p67 = scmp.eq.s32.totalorder %s17, 3
    %p68 = scmp.ne.s32.totalorder %s63, %s65
    %p69 = scmp.eq.s32.totalorder %s17, 0
    %p70 = por %p68, %p69
    %p71 = scmp.ne.s32.totalorder %s63, %s65
    %p72 = scmp.eq.s32.totalorder %s22, 3
    %p73 = por %p71, %p72
    %p74 = scmp.ne.s32.totalorder %s65, %s66
    %p75 = scmp.eq.s32.totalorder %s22, 0
    %p76 = por %p74, %p75
    %p77 = scmp.ne.s32.totalorder %s65, %s66
    %p78 = scmp.eq.s32.totalorder %s23, 3
    %p79 = por %p77, %p78
    %p81 = scmp.ne.s32.totalorder %s66, %s80
    %p82 = scmp.eq.s32.totalorder %s23, 0
    %p83 = por %p81, %p82
    %s85 = sadd.s32 %s84, 1
    %p88 = scmp.eq.s32.totalorder %s17, 3
    %p89 = scmp.ne.s32.totalorder %s84, %s86
    %p90 = scmp.eq.s32.totalorder %s17, 0
    %p91 = por %p89, %p90
    %p92 = scmp.ne.s32.totalorder %s84, %s86
    %p93 = scmp.eq.s32.totalorder %s22, 3
    %p94 = por %p92, %p93
    %p95 = scmp.ne.s32.totalorder %s86, %s87
    %p96 = scmp.eq.s32.totalorder %s22, 0
    %p97 = por %p95, %p96
    %p98 = scmp.ne.s32.totalorder %s86, %s87
    %p99 = scmp.eq.s32.totalorder %s23, 3
    %p100 = por %p98, %p99
    %p102 = scmp.ne.s32.totalorder %s87, %s101
    %p103 = scmp.eq.s32.totalorder %s23, 0
    %p104 = por %p102, %p103
    %s106 = sadd.s32 %s105, 1
    %p109 = scmp.eq.s32.totalorder %s17, 3
    %p110 = scmp.ne.s32.totalorder %s105, %s107
    %p111 = scmp.eq.s32.totalorder %s17, 0
    %p112 = por %p110, %p111
    %p113 = scmp.ne.s32.totalorder %s105, %s107
    %p114 = scmp.eq.s32.totalorder %s22, 3
    %p115 = por %p113, %p114
    %p116 = scmp.ne.s32.totalorder %s107, %s108
    %p117 = scmp.eq.s32.totalorder %s22, 0
    %p118 = por %p116, %p117
    %p119 = scmp.ne.s32.totalorder %s107, %s108
    %p120 = scmp.eq.s32.totalorder %s23, 3
    %p121 = por %p119, %p120
    %p123 = scmp.ne.s32.totalorder %s108, %s122
    %p124 = scmp.eq.s32.totalorder %s23, 0
    %p125 = por %p123, %p124
    %s127 = sadd.s32 %s126, 1
    %p130 = scmp.eq.s32.totalorder %s17, 3
    %p131 = scmp.ne.s32.totalorder %s126, %s128
    %p132 = scmp.eq.s32.totalorder %s17, 0
    %p133 = por %p131, %p132
    %p134 = scmp.ne.s32.totalorder %s126, %s128
    %p135 = scmp.eq.s32.totalorder %s22, 3
    %p136 = por %p134, %p135
    %p137 = scmp.ne.s32.totalorder %s128, %s129
    %p138 = scmp.eq.s32.totalorder %s22, 0
    %p139 = por %p137, %p138
    %p140 = scmp.ne.s32.totalorder %s128, %s129
    %p141 = scmp.eq.s32.totalorder %s23, 3
    %p142 = por %p140, %p141
    %p144 = scmp.ne.s32.totalorder %s129, %s143
    %p145 = scmp.eq.s32.totalorder %s23, 0
    %p146 = por %p144, %p145
    %s148 = sadd.s32 %s147, 1
    %p151 = scmp.eq.s32.totalorder %s17, 3
    %p152 = scmp.ne.s32.totalorder %s147, %s149
    %p153 = scmp.eq.s32.totalorder %s17, 0
    %p154 = por %p152, %p153
    %p155 = scmp.ne.s32.totalorder %s147, %s149
    %p156 = scmp.eq.s32.totalorder %s22, 3
    %p157 = por %p155, %p156
    %p158 = scmp.ne.s32.totalorder %s149, %s150
    %p159 = scmp.eq.s32.totalorder %s22, 0
    %p160 = por %p158, %p159
    %p161 = scmp.ne.s32.totalorder %s149, %s150
    %p162 = scmp.eq.s32.totalorder %s23, 3
    %p163 = por %p161, %p162
    %p165 = scmp.ne.s32.totalorder %s150, %s164
    %p166 = scmp.eq.s32.totalorder %s23, 0
    %p167 = por %p165, %p166
    %s169 = sadd.s32 %s168, 1
    %p172 = scmp.eq.s32.totalorder %s17, 3
    %p173 = scmp.ne.s32.totalorder %s168, %s170
    %p174 = scmp.eq.s32.totalorder %s17, 0
    %p175 = por %p173, %p174
    %p176 = scmp.ne.s32.totalorder %s168, %s170
    %p177 = scmp.eq.s32.totalorder %s22, 3
    %p178 = por %p176, %p177
    %p179 = scmp.ne.s32.totalorder %s170, %s171
    %p180 = scmp.eq.s32.totalorder %s22, 0
    %p181 = por %p179, %p180
    %p182 = scmp.ne.s32.totalorder %s170, %s171
    %p183 = scmp.eq.s32.totalorder %s23, 3
    %p184 = por %p182, %p183
    %p186 = scmp.ne.s32.totalorder %s171, %s185
    %p187 = scmp.eq.s32.totalorder %s23, 0
    %p188 = por %p186, %p187
    %s190 = sadd.s32 %s189, 1
    %p193 = scmp.eq.s32.totalorder %s17, 3
    %p194 = scmp.ne.s32.totalorder %s189, %s191
    %p195 = scmp.eq.s32.totalorder %s17, 0
    %p196 = por %p194, %p195
    %p197 = scmp.ne.s32.totalorder %s189, %s191
    %p198 = scmp.eq.s32.totalorder %s22, 3
    %p199 = por %p197, %p198
    %p200 = scmp.ne.s32.totalorder %s191, %s192
    %p201 = scmp.eq.s32.totalorder %s22, 0
    %p202 = por %p200, %p201
    %p203 = scmp.ne.s32.totalorder %s191, %s192
    %p204 = scmp.eq.s32.totalorder %s23, 3
    %p205 = por %p203, %p204
    %p207 = scmp.ne.s32.totalorder %s192, %s206
    %p208 = scmp.eq.s32.totalorder %s23, 0
    %p209 = por %p207, %p208
    %s211 = sadd.s32 %s210, 1
    %p214 = scmp.eq.s32.totalorder %s17, 3
    %p215 = scmp.ne.s32.totalorder %s210, %s212
    %p216 = scmp.eq.s32.totalorder %s17, 0
    %p217 = por %p215, %p216
    %p218 = scmp.ne.s32.totalorder %s210, %s212
    %p219 = scmp.eq.s32.totalorder %s22, 3
    %p220 = por %p218, %p219
    %p221 = scmp.ne.s32.totalorder %s212, %s213
    %p222 = scmp.eq.s32.totalorder %s22, 0
    %p223 = por %p221, %p222
    %p224 = scmp.ne.s32.totalorder %s212, %s213
    %p225 = scmp.eq.s32.totalorder %s23, 3
    %p226 = por %p224, %p225
    %p228 = scmp.ne.s32.totalorder %s213, %s227
    %p229 = scmp.eq.s32.totalorder %s23, 0
    %p230 = por %p228, %p229
    %s232 = sadd.s32 %s231, 1
    %p235 = scmp.eq.s32.totalorder %s17, 3
    %p236 = scmp.ne.s32.totalorder %s231, %s233
    %p237 = scmp.eq.s32.totalorder %s17, 0
    %p238 = por %p236, %p237
    %p239 = scmp.ne.s32.totalorder %s231, %s233
    %p240 = scmp.eq.s32.totalorder %s22, 3
    %p241 = por %p239, %p240
    %p242 = scmp.ne.s32.totalorder %s233, %s234
    %p243 = scmp.eq.s32.totalorder %s22, 0
    %p244 = por %p242, %p243
    %p245 = scmp.ne.s32.totalorder %s233, %s234
    %p246 = scmp.eq.s32.totalorder %s23, 3
    %p247 = por %p245, %p246
    %p249 = scmp.ne.s32.totalorder %s234, %s248
    %p250 = scmp.eq.s32.totalorder %s23, 0
    %p251 = por %p249, %p250
    %s253 = sadd.s32 %s252, 1
    %p256 = scmp.eq.s32.totalorder %s17, 3
    %p257 = scmp.ne.s32.totalorder %s252, %s254
    %p258 = scmp.eq.s32.totalorder %s17, 0
    %p259 = por %p257, %p258
    %p260 = scmp.ne.s32.totalorder %s252, %s254
    %p261 = scmp.eq.s32.totalorder %s22, 3
    %p262 = por %p260, %p261
    %p263 = scmp.ne.s32.totalorder %s254, %s255
    %p264 = scmp.eq.s32.totalorder %s22, 0
    %p265 = por %p263, %p264
    %p266 = scmp.ne.s32.totalorder %s254, %s255
    %p267 = scmp.eq.s32.totalorder %s23, 3
    %p268 = por %p266, %p267
    %p270 = scmp.ne.s32.totalorder %s255, %s269
    %p271 = scmp.eq.s32.totalorder %s23, 0
    %p272 = por %p270, %p271
    %s273 = ssub.s32 %s24, %s36
    %s274 = ssub.s32 %s25, %s32
    %s275 = sor.u32 %s273, %s274
    %p276 = scmp.eq.s32.totalorder %s275, 0
    %s278 = sadd.s32 %s277, 1
    %s279 = scalar_select %p276, %s277, %s278
    %p282 = pneg %p276
    %p283 = scmp.eq.s32.totalorder %s17, 3
    %p284 = por %p282, %p283
    %p285 = scmp.ne.s32.totalorder %s277, %s280
    %p286 = scmp.eq.s32.totalorder %s17, 0
    %p287 = por %p285, %p286
    %p288 = scmp.ne.s32.totalorder %s277, %s280
    %p289 = scmp.eq.s32.totalorder %s22, 3
    %p290 = por %p288, %p289
    %p291 = scmp.ne.s32.totalorder %s280, %s281
    %p292 = scmp.eq.s32.totalorder %s22, 0
    %p293 = por %p291, %p292
    %p294 = scmp.ne.s32.totalorder %s280, %s281
    %p295 = scmp.eq.s32.totalorder %s23, 3
    %p296 = por %p294, %p295
    %p298 = scmp.ne.s32.totalorder %s281, %s297
    %p299 = scmp.eq.s32.totalorder %s23, 0
    %p300 = por %p298, %p299
    %p301 = scmp.le.s32.totalorder 1, %s17
    %p302 = scmp.lt.s32.totalorder %s17, 5
    %p303 = pnand %p301, %p302
    %p304 = pneg %p303
    // Predicated region
    $region9: #{_lambda_.1} parent=5 // pred_check
      _
    $region10: #{_lambda_.1} parent=5 // pred_check_branch
      %306 = sbr.rel (%p303) target = $region12
    $region11: #{_lambda_.1} parent=5 // pred_region
      %s307 = ssub.s32 %s17, 1
      // Predicated region
      $region13: #{_lambda_.1} parent=11 // pred_check
        %p308 = pneg %p76
      $region14: #{_lambda_.1} parent=11 // pred_check_branch
        %310 = sbr.rel (%p308) target = $region16
      $region15: #{_lambda_.1} parent=11 // pred_region
        _
      $region16: #{_lambda_.1} parent=11 // pred_fallthru
        _
      // Predicated region
      $region17: #{_lambda_.1} parent=11 // pred_check
        %p311 = pneg %p97
      $region18: #{_lambda_.1} parent=11 // pred_check_branch
        %313 = sbr.rel (%p311) target = $region20
      $region19: #{_lambda_.1} parent=11 // pred_region
        _
      $region20: #{_lambda_.1} parent=11 // pred_fallthru
        _
      // Predicated region
      $region21: #{_lambda_.1} parent=11 // pred_check
        %p314 = pneg %p118
      $region22: #{_lambda_.1} parent=11 // pred_check_branch
        %316 = sbr.rel (%p314) target = $region24
      $region23: #{_lambda_.1} parent=11 // pred_region
        _
      $region24: #{_lambda_.1} parent=11 // pred_fallthru
        _
      // Predicated region
      $region25: #{_lambda_.1} parent=11 // pred_check
        %p317 = pneg %p139
      $region26: #{_lambda_.1} parent=11 // pred_check_branch
        %319 = sbr.rel (%p317) target = $region28
      $region27: #{_lambda_.1} parent=11 // pred_region
        _
      $region28: #{_lambda_.1} parent=11 // pred_fallthru
        _
      // Predicated region
      $region29: #{_lambda_.1} parent=11 // pred_check
        %p320 = pneg %p160
      $region30: #{_lambda_.1} parent=11 // pred_check_branch
        %322 = sbr.rel (%p320) target = $region32
      $region31: #{_lambda_.1} parent=11 // pred_region
        _
      $region32: #{_lambda_.1} parent=11 // pred_fallthru
        _
      // Predicated region
      $region33: #{_lambda_.1} parent=11 // pred_check
        %p323 = pneg %p181
      $region34: #{_lambda_.1} parent=11 // pred_check_branch
        %325 = sbr.rel (%p323) target = $region36
      $region35: #{_lambda_.1} parent=11 // pred_region
        _
      $region36: #{_lambda_.1} parent=11 // pred_fallthru
        _
      // Predicated region
      $region37: #{_lambda_.1} parent=11 // pred_check
        %p326 = pneg %p202
      $region38: #{_lambda_.1} parent=11 // pred_check_branch
        %328 = sbr.rel (%p326) target = $region40
      $region39: #{_lambda_.1} parent=11 // pred_region
        _
      $region40: #{_lambda_.1} parent=11 // pred_fallthru
        _
      // Predicated region
      $region41: #{_lambda_.1} parent=11 // pred_check
        %p329 = pneg %p223
      $region42: #{_lambda_.1} parent=11 // pred_check_branch
        %331 = sbr.rel (%p329) target = $region44
      $region43: #{_lambda_.1} parent=11 // pred_region
        _
      $region44: #{_lambda_.1} parent=11 // pred_fallthru
        _
      // Predicated region
      $region45: #{_lambda_.1} parent=11 // pred_check
        %p332 = pneg %p244
      $region46: #{_lambda_.1} parent=11 // pred_check_branch
        %334 = sbr.rel (%p332) target = $region48
      $region47: #{_lambda_.1} parent=11 // pred_region
        _
      $region48: #{_lambda_.1} parent=11 // pred_fallthru
        _
      // Predicated region
      $region49: #{_lambda_.1} parent=11 // pred_check
        %p335 = pneg %p265
      $region50: #{_lambda_.1} parent=11 // pred_check_branch
        %337 = sbr.rel (%p335) target = $region52
      $region51: #{_lambda_.1} parent=11 // pred_region
        _
      $region52: #{_lambda_.1} parent=11 // pred_fallthru
        _
    $region12: #{_lambda_.1} parent=5 // pred_fallthru
      _
    %p338 = scmp.lt.s32.totalorder %s17, 4
    // Predicated region
    $region53: #{_lambda_.1} parent=5 // pred_check
      %p339 = pneg %p338
    $region54: #{_lambda_.1} parent=5 // pred_check_branch
      %341 = sbr.rel (%p339) target = $region56
    $region55: #{_lambda_.1} parent=5 // pred_region
      // Predicated region
      $region57: #{_lambda_.1} parent=55 // pred_check
        %p342 = pneg %p49
      $region58: #{_lambda_.1} parent=55 // pred_check_branch
        %344 = sbr.rel (%p342) target = $region60
      $region59: #{_lambda_.1} parent=55 // pred_region
        %p345 = scmp.lt.s32.totalorder %s24, 1
        %s346 = scalar_select %p345, %s24, 1
        %s347 = smul.addr %s346, 34
        %s348 = smul.addr %s347, 8
        %s349 = scalar_lea.vmem %s0, %s348
      $region60: #{_lambda_.1} parent=55 // pred_fallthru
        _
    $region56: #{_lambda_.1} parent=5 // pred_fallthru
      _
    %p350 = scmp.le.s32.totalorder 1, %s17
    %p351 = scmp.lt.s32.totalorder %s17, 5
    %p352 = pnand %p350, %p351
    %p353 = pneg %p352
    // Predicated region
    $region61: #{_lambda_.1} parent=5 // pred_check
      _
    $region62: #{_lambda_.1} parent=5 // pred_check_branch
      %355 = sbr.rel (%p352) target = $region64
    $region63: #{_lambda_.1} parent=5 // pred_region
      %s356 = ssub.s32 %s17, 1
      %p357 = scmp.lt.s32.totalorder %s26, 1
      %s358 = scalar_select %p357, %s26, 1
      %s359 = smul.addr %s358, 34
      %s360 = smul.addr %s359, 8
      %s361 = scalar_lea.vmem %s0, %s360
      %p362 = pneg %p55
      %p363 = pneg %p52
      %p364 = pneg %p76
      %p365 = pneg %p73
      %p366 = pneg %p97
      %p367 = pneg %p94
      %p368 = pneg %p118
      %p369 = pneg %p115
      %p370 = pneg %p139
      %p371 = pneg %p136
      %p372 = pneg %p160
      %p373 = pneg %p157
      %p374 = pneg %p181
      %p375 = pneg %p178
      %p376 = pneg %p202
      %p377 = pneg %p199
      %p378 = pneg %p223
      %p379 = pneg %p220
      %p380 = pneg %p244
      %p381 = pneg %p241
      %p382 = pneg %p265
      %p383 = pneg %p262
      %p384 = pneg %p293
      %p385 = pneg %p290
      %s386 = smul.u32 3, %s27
      %p387 = scmp.lt.s32.totalorder %s26, 1
      %s388 = scalar_select %p387, %s26, 1
      %p389 = scmp.lt.s32.totalorder %s386, 5
      %s390 = scalar_select %p389, %s386, 5
      %s391 = smul.addr %s388, 6
      %s392 = sadd.s32 %s390, %s391
      %s393 = smul.addr %s392, 8
      %s394 = scalar_lea.vmem %s11, %s393
      %p395 = scmp.lt.s32.totalorder %s26, 1
      %s396 = scalar_select %p395, %s26, 1
      %s397 = smul.addr %s396, 34
      %s398 = smul.addr %s397, 8
      %s399 = scalar_lea.vmem %s0, %s398
      %s400 = smul.u32 3, %s27
      %p401 = scmp.lt.s32.totalorder %s26, 1
      %s402 = scalar_select %p401, %s26, 1
      %p403 = scmp.lt.s32.totalorder %s400, 5
      %s404 = scalar_select %p403, %s400, 5
      %s405 = smul.addr %s402, 6
      %s406 = sadd.s32 %s404, %s405
      %s407 = smul.addr %s406, 8
      %s408 = scalar_lea.vmem %s11, %s407
      %s409 = smul.u32 3, %s27
      %s411 = smul.u32 %s27, 48
      %s412 = scalar_lea.vmem %s399, %s411
      %v413 = vld [vmem:[%s412] sm:$0xff]
      %v414 = vld [vmem:[%s412 + $0x8] sm:$0xff]
      %v415 = vld [vmem:[%s412 + $0x10] sm:$0xff]
      %v416 = vld [vmem:[%s412 + $0x18] sm:$0xff]
      %v417 = vld [vmem:[%s412 + $0x20] sm:$0xff]
      %v418 = vld [vmem:[%s412 + $0x28] sm:$0xff]
      %v419 = vld [vmem:[%s412 + $0x30] sm:$0xff]
      %v420 = vld [vmem:[%s412 + $0x38] sm:$0xff]
      %v421 = vld [vmem:[%s412 + $0x40] sm:$0xff]
      %v422 = vld [vmem:[%s412 + $0x48] sm:$0xff]
      %v423 = vld [vmem:[%s412 + $0x50] sm:$0xff]
      %v424 = vld [vmem:[%s412 + $0x58] sm:$0xff]
      %v425 = vld [vmem:[%s412 + $0x60] sm:$0xff]
      %v426 = vld [vmem:[%s412 + $0x68] sm:$0xff]
      %v427 = vld [vmem:[%s412 + $0x70] sm:$0xff]
      %v428 = vld [vmem:[%s412 + $0x78] sm:$0xff]
      %v429 = vld [vmem:[%s412 + $0x80] sm:$0xff]
      %v430 = vld [vmem:[%s412 + $0x88] sm:$0xff]
      %v431 = vld [vmem:[%s412 + $0x90] sm:$0xff]
      %v432 = vld [vmem:[%s412 + $0x98] sm:$0xff]
      %v433 = vld [vmem:[%s412 + $0xa0] sm:$0xff]
      %v434 = vld [vmem:[%s412 + $0xa8] sm:$0xff]
      %v435 = vld [vmem:[%s412 + $0xb0] sm:$0xff]
      %v436 = vld [vmem:[%s412 + $0xb8] sm:$0xff]
      %v437 = vld [vmem:[%s412 + $0xc0] sm:$0xff]
      %v438 = vld [vmem:[%s412 + $0xc8] sm:$0xff]
      %v439 = vld [vmem:[%s412 + $0xd0] sm:$0xff]
      %v440 = vld [vmem:[%s412 + $0xd8] sm:$0x3]
      %v441 = vpack.c.bf16 %v413, %v413
      %v442 = vpack.c.bf16 %v414, %v414
      %v443 = vpack.c.bf16 %v415, %v415
      %v444 = vpack.c.bf16 %v416, %v416
      %v445 = vpack.c.bf16 %v417, %v417
      %v446 = vpack.c.bf16 %v418, %v418
      %v447 = vpack.c.bf16 %v419, %v419
      %v448 = vpack.c.bf16 %v420, %v420
      %v449 = vpack.c.bf16 %v421, %v421
      %v450 = vpack.c.bf16 %v422, %v422
      %v451 = vpack.c.bf16 %v423, %v423
      %v452 = vpack.c.bf16 %v424, %v424
      %v453 = vpack.c.bf16 %v425, %v425
      %v454 = vpack.c.bf16 %v426, %v426
      %v455 = vpack.c.bf16 %v427, %v427
      %v456 = vpack.c.bf16 %v428, %v428
      %v457 = vpack.c.bf16 %v429, %v429
      %v458 = vpack.c.bf16 %v430, %v430
      %v459 = vpack.c.bf16 %v431, %v431
      %v460 = vpack.c.bf16 %v432, %v432
      %v461 = vpack.c.bf16 %v433, %v433
      %v462 = vpack.c.bf16 %v434, %v434
      %v463 = vpack.c.bf16 %v435, %v435
      %v464 = vpack.c.bf16 %v436, %v436
      %v465 = vpack.c.bf16 %v437, %v437
      %v466 = vpack.c.bf16 %v438, %v438
      %v467 = vpack.c.bf16 %v439, %v439
      %v468 = vpack.c.bf16 %v440, %v440
      %v492 = vunpack.c.l.b16 %v441
      %v493 = vunpack.c.l.b16 %v442
      %v494 = vunpack.c.l.b16 %v443
      %v495 = vunpack.c.l.b16 %v444
      %v496 = vunpack.c.l.b16 %v445
      %v497 = vunpack.c.l.b16 %v446
      %v498 = vunpack.c.l.b16 %v447
      %v499 = vunpack.c.l.b16 %v448
      %v500 = vunpack.c.l.b16 %v449
      %v501 = vunpack.c.l.b16 %v450
      %v502 = vunpack.c.l.b16 %v451
      %v503 = vunpack.c.l.b16 %v452
      %v504 = vunpack.c.l.b16 %v453
      %v505 = vunpack.c.l.b16 %v454
      %v506 = vunpack.c.l.b16 %v455
      %v507 = vunpack.c.l.b16 %v456
      %v508 = vunpack.c.l.b16 %v457
      %v509 = vunpack.c.l.b16 %v458
      %v510 = vunpack.c.l.b16 %v459
      %v511 = vunpack.c.l.b16 %v460
      %v512 = vunpack.c.l.b16 %v461
      %v513 = vunpack.c.l.b16 %v462
      %v514 = vunpack.c.l.b16 %v463
      %v515 = vpack.c.b16 %v493, %v492
      %v516 = vpack.c.b16 %v495, %v494
      %v517 = vpack.c.b16 %v497, %v496
      %v518 = vpack.c.b16 %v499, %v498
      %v519 = vpack.c.b16 %v501, %v500
      %v520 = vpack.c.b16 %v503, %v502
      %v521 = vpack.c.b16 %v505, %v504
      %v522 = vpack.c.b16 %v507, %v506
      %v523 = vpack.c.b16 %v509, %v508
      %v524 = vpack.c.b16 %v511, %v510
      %v525 = vpack.c.b16 %v513, %v512
      %v526 = vpack.c.b16 %v514, %v514
      %v528 = vunpack.c.l.b16 %v464
      %v529 = vpack.c.b16 %v528, %v514
      %vm530 = vsmask.f32 7424
      %v532 = vshrl.u32 %v515, 16
      %v534 = vshll.u32 %v515, 16
      %v536 = vrot.slane %v534, 1
      %v537 = vor.u32 %v532, %v536
      %v539 = vshll.u32 %v516, 16
      %v541 = vrot.slane %v539, 1
      %v542 = vsel %vm530, %v537, %v541
      %v543 = vshrl.u32 %v516, 16
      %v545 = vor.u32 %v543, %v541
      %v547 = vshll.u32 %v517, 16
      %v549 = vrot.slane %v547, 1
      %v550 = vsel %vm530, %v545, %v549
      %v551 = vshrl.u32 %v517, 16
      %v553 = vor.u32 %v551, %v549
      %v555 = vshll.u32 %v518, 16
      %v557 = vrot.slane %v555, 1
      %v558 = vsel %vm530, %v553, %v557
      %v559 = vshrl.u32 %v518, 16
      %v561 = vor.u32 %v559, %v557
      %v563 = vshll.u32 %v519, 16
      %v565 = vrot.slane %v563, 1
      %v566 = vsel %vm530, %v561, %v565
      %v567 = vshrl.u32 %v519, 16
      %v569 = vor.u32 %v567, %v565
      %v571 = vshll.u32 %v520, 16
      %v573 = vrot.slane %v571, 1
      %v574 = vsel %vm530, %v569, %v573
      %v575 = vshrl.u32 %v520, 16
      %v577 = vor.u32 %v575, %v573
      %v579 = vshll.u32 %v521, 16
      %v581 = vrot.slane %v579, 1
      %v582 = vsel %vm530, %v577, %v581
      %v583 = vshrl.u32 %v521, 16
      %v585 = vor.u32 %v583, %v581
      %v587 = vshll.u32 %v522, 16
      %v589 = vrot.slane %v587, 1
      %v590 = vsel %vm530, %v585, %v589
      %v591 = vshrl.u32 %v522, 16
      %v593 = vor.u32 %v591, %v589
      %v595 = vshll.u32 %v523, 16
      %v597 = vrot.slane %v595, 1
      %v598 = vsel %vm530, %v593, %v597
      %v599 = vshrl.u32 %v523, 16
      %v601 = vor.u32 %v599, %v597
      %v603 = vshll.u32 %v524, 16
      %v605 = vrot.slane %v603, 1
      %v606 = vsel %vm530, %v601, %v605
      %v607 = vshrl.u32 %v524, 16
      %v609 = vor.u32 %v607, %v605
      %v611 = vshll.u32 %v525, 16
      %v613 = vrot.slane %v611, 1
      %v614 = vsel %vm530, %v609, %v613
      %v615 = vshrl.u32 %v525, 16
      %v617 = vor.u32 %v615, %v613
      %v619 = vshll.u32 %v529, 16
      %v621 = vrot.slane %v619, 1
      %v622 = vsel %vm530, %v617, %v621
      %v623 = vshrl.u32 %v529, 16
      %v625 = vor.u32 %v623, %v621
      %626 = vrot.lane.b32.xlu0 %v542, 4
      %v627 = vpop.permute.xlu0 %626
      %628 = vrot.lane.b32.xlu0 %v550, 4
      %v629 = vpop.permute.xlu0 %628
      %630 = vrot.lane.b32.xlu0 %v558, 4
      %v631 = vpop.permute.xlu0 %630
      %632 = vrot.lane.b32.xlu0 %v566, 4
      %v633 = vpop.permute.xlu0 %632
      %634 = vrot.lane.b32.xlu0 %v574, 4
      %v635 = vpop.permute.xlu0 %634
      %636 = vrot.lane.b32.xlu0 %v582, 4
      %v637 = vpop.permute.xlu0 %636
      %638 = vrot.lane.b32.xlu0 %v590, 4
      %v639 = vpop.permute.xlu0 %638
      %640 = vrot.lane.b32.xlu0 %v598, 4
      %v641 = vpop.permute.xlu0 %640
      %642 = vrot.lane.b32.xlu0 %v606, 4
      %v643 = vpop.permute.xlu0 %642
      %644 = vrot.lane.b32.xlu0 %v614, 4
      %v645 = vpop.permute.xlu0 %644
      %646 = vrot.lane.b32.xlu0 %v622, 4
      %v647 = vpop.permute.xlu0 %646
      %648 = vrot.lane.b32.xlu0 %v625, 4
      %v649 = vpop.permute.xlu0 %648
      %vm650 = vcmask 1046528
      %v651 = vrot.slane %v515, 1
      %v652 = vrot.slane %v516, 1
      %v653 = vsel %vm650, %v651, %v652
      %v654 = vrot.slane %v517, 1
      %v655 = vsel %vm650, %v652, %v654
      %v656 = vrot.slane %v518, 1
      %v657 = vsel %vm650, %v654, %v656
      %v658 = vrot.slane %v519, 1
      %v659 = vsel %vm650, %v656, %v658
      %v660 = vrot.slane %v520, 1
      %v661 = vsel %vm650, %v658, %v660
      %v662 = vrot.slane %v521, 1
      %v663 = vsel %vm650, %v660, %v662
      %v664 = vrot.slane %v522, 1
      %v665 = vsel %vm650, %v662, %v664
      %v666 = vrot.slane %v523, 1
      %v667 = vsel %vm650, %v664, %v666
      %v668 = vrot.slane %v524, 1
      %v669 = vsel %vm650, %v666, %v668
      %v670 = vrot.slane %v525, 1
      %v671 = vsel %vm650, %v668, %v670
      %v672 = vrot.slane %v529, 1
      %v673 = vsel %vm650, %v670, %v672
      %674 = vrot.lane.b32.xlu0 %v653, 8
      %v675 = vpop.permute.xlu0 %674
      %676 = vrot.lane.b32.xlu0 %v655, 8
      %v677 = vpop.permute.xlu0 %676
      %678 = vrot.lane.b32.xlu0 %v657, 8
      %v679 = vpop.permute.xlu0 %678
      %680 = vrot.lane.b32.xlu0 %v659, 8
      %v681 = vpop.permute.xlu0 %680
      %682 = vrot.lane.b32.xlu0 %v661, 8
      %v683 = vpop.permute.xlu0 %682
      %684 = vrot.lane.b32.xlu0 %v663, 8
      %v685 = vpop.permute.xlu0 %684
      %686 = vrot.lane.b32.xlu0 %v665, 8
      %v687 = vpop.permute.xlu0 %686
      %688 = vrot.lane.b32.xlu0 %v667, 8
      %v689 = vpop.permute.xlu0 %688
      %690 = vrot.lane.b32.xlu0 %v669, 8
      %v691 = vpop.permute.xlu0 %690
      %692 = vrot.lane.b32.xlu0 %v671, 8
      %v693 = vpop.permute.xlu0 %692
      %694 = vrot.lane.b32.xlu0 %v673, 8
      %v695 = vpop.permute.xlu0 %694
      %696 = vrot.lane.b32.xlu0 %v672, 8
      %v697 = vpop.permute.xlu0 %696
      %v699 = vunpack.c.l.b16 %v465
      %v700 = vpack.c.b16 %v699, %v699
      %701 = vrot.lane.b32.xlu0 %v516, 12
      %v702 = vpop.permute.xlu0 %701
      %703 = vrot.lane.b32.xlu0 %v517, 12
      %v704 = vpop.permute.xlu0 %703
      %705 = vrot.lane.b32.xlu0 %v518, 12
      %v706 = vpop.permute.xlu0 %705
      %707 = vrot.lane.b32.xlu0 %v519, 12
      %v708 = vpop.permute.xlu0 %707
      %709 = vrot.lane.b32.xlu0 %v520, 12
      %v710 = vpop.permute.xlu0 %709
      %711 = vrot.lane.b32.xlu0 %v521, 12
      %v712 = vpop.permute.xlu0 %711
      %713 = vrot.lane.b32.xlu0 %v522, 12
      %v714 = vpop.permute.xlu0 %713
      %715 = vrot.lane.b32.xlu0 %v523, 12
      %v716 = vpop.permute.xlu0 %715
      %717 = vrot.lane.b32.xlu0 %v524, 12
      %v718 = vpop.permute.xlu0 %717
      %719 = vrot.lane.b32.xlu0 %v525, 12
      %v720 = vpop.permute.xlu0 %719
      %721 = vrot.lane.b32.xlu0 %v529, 12
      %v722 = vpop.permute.xlu0 %721
      %723 = vrot.lane.b32.xlu0 %v700, 12
      %v724 = vpop.permute.xlu0 %723
      %v726 = vunpack.c.l.b16 %v466
      %v727 = vpack.c.b16 %v726, %v699
      %v729 = vshll.u32 %v727, 16
      %v731 = vrot.slane %v729, 1
      %v732 = vsel %vm530, %v625, %v731
      %v733 = vshrl.u32 %v727, 16
      %v735 = vor.u32 %v733, %v731
      %736 = vrot.lane.b32.xlu0 %v550, 16
      %v737 = vpop.permute.xlu0 %736
      %738 = vrot.lane.b32.xlu0 %v558, 16
      %v739 = vpop.permute.xlu0 %738
      %740 = vrot.lane.b32.xlu0 %v566, 16
      %v741 = vpop.permute.xlu0 %740
      %742 = vrot.lane.b32.xlu0 %v574, 16
      %v743 = vpop.permute.xlu0 %742
      %744 = vrot.lane.b32.xlu0 %v582, 16
      %v745 = vpop.permute.xlu0 %744
      %746 = vrot.lane.b32.xlu0 %v590, 16
      %v747 = vpop.permute.xlu0 %746
      %748 = vrot.lane.b32.xlu0 %v598, 16
      %v749 = vpop.permute.xlu0 %748
      %750 = vrot.lane.b32.xlu0 %v606, 16
      %v751 = vpop.permute.xlu0 %750
      %752 = vrot.lane.b32.xlu0 %v614, 16
      %v753 = vpop.permute.xlu0 %752
      %754 = vrot.lane.b32.xlu0 %v622, 16
      %v755 = vpop.permute.xlu0 %754
      %756 = vrot.lane.b32.xlu0 %v732, 16
      %v757 = vpop.permute.xlu0 %756
      %758 = vrot.lane.b32.xlu0 %v735, 16
      %v759 = vpop.permute.xlu0 %758
      %v760 = vrot.slane %v727, 1
      %v761 = vsel %vm650, %v672, %v760
      %762 = vrot.lane.b32.xlu0 %v655, 20
      %v763 = vpop.permute.xlu0 %762
      %764 = vrot.lane.b32.xlu0 %v657, 20
      %v765 = vpop.permute.xlu0 %764
      %766 = vrot.lane.b32.xlu0 %v659, 20
      %v767 = vpop.permute.xlu0 %766
      %768 = vrot.lane.b32.xlu0 %v661, 20
      %v769 = vpop.permute.xlu0 %768
      %770 = vrot.lane.b32.xlu0 %v663, 20
      %v771 = vpop.permute.xlu0 %770
      %772 = vrot.lane.b32.xlu0 %v665, 20
      %v773 = vpop.permute.xlu0 %772
      %774 = vrot.lane.b32.xlu0 %v667, 20
      %v775 = vpop.permute.xlu0 %774
      %776 = vrot.lane.b32.xlu0 %v669, 20
      %v777 = vpop.permute.xlu0 %776
      %778 = vrot.lane.b32.xlu0 %v671, 20
      %v779 = vpop.permute.xlu0 %778
      %780 = vrot.lane.b32.xlu0 %v673, 20
      %v781 = vpop.permute.xlu0 %780
      %782 = vrot.lane.b32.xlu0 %v761, 20
      %v783 = vpop.permute.xlu0 %782
      %784 = vrot.lane.b32.xlu0 %v760, 20
      %v785 = vpop.permute.xlu0 %784
      %v787 = vunpack.c.l.b16 %v467
      %v788 = vpack.c.b16 %v787, %v787
      %789 = vrot.lane.b32.xlu0 %v517, 24
      %v790 = vpop.permute.xlu0 %789
      %791 = vrot.lane.b32.xlu0 %v518, 24
      %v792 = vpop.permute.xlu0 %791
      %793 = vrot.lane.b32.xlu0 %v519, 24
      %v794 = vpop.permute.xlu0 %793
      %795 = vrot.lane.b32.xlu0 %v520, 24
      %v796 = vpop.permute.xlu0 %795
      %797 = vrot.lane.b32.xlu0 %v521, 24
      %v798 = vpop.permute.xlu0 %797
      %799 = vrot.lane.b32.xlu0 %v522, 24
      %v800 = vpop.permute.xlu0 %799
      %801 = vrot.lane.b32.xlu0 %v523, 24
      %v802 = vpop.permute.xlu0 %801
      %803 = vrot.lane.b32.xlu0 %v524, 24
      %v804 = vpop.permute.xlu0 %803
      %805 = vrot.lane.b32.xlu0 %v525, 24
      %v806 = vpop.permute.xlu0 %805
      %807 = vrot.lane.b32.xlu0 %v529, 24
      %v808 = vpop.permute.xlu0 %807
      %809 = vrot.lane.b32.xlu0 %v727, 24
      %v810 = vpop.permute.xlu0 %809
      %811 = vrot.lane.b32.xlu0 %v788, 24
      %v812 = vpop.permute.xlu0 %811
      %v814 = vunpack.c.l.b16 %v468
      %v815 = vpack.c.b16 %v814, %v787
      %v817 = vshll.u32 %v815, 16
      %v819 = vrot.slane %v817, 1
      %v820 = vsel %vm530, %v735, %v819
      %v821 = vshrl.u32 %v815, 16
      %v823 = vor.u32 %v821, %v819
      %824 = vrot.lane.b32.xlu0 %v558, 28
      %v825 = vpop.permute.xlu0 %824
      %826 = vrot.lane.b32.xlu0 %v566, 28
      %v827 = vpop.permute.xlu0 %826
      %828 = vrot.lane.b32.xlu0 %v574, 28
      %v829 = vpop.permute.xlu0 %828
      %830 = vrot.lane.b32.xlu0 %v582, 28
      %v831 = vpop.permute.xlu0 %830
      %832 = vrot.lane.b32.xlu0 %v590, 28
      %v833 = vpop.permute.xlu0 %832
      %834 = vrot.lane.b32.xlu0 %v598, 28
      %v835 = vpop.permute.xlu0 %834
      %836 = vrot.lane.b32.xlu0 %v606, 28
      %v837 = vpop.permute.xlu0 %836
      %838 = vrot.lane.b32.xlu0 %v614, 28
      %v839 = vpop.permute.xlu0 %838
      %840 = vrot.lane.b32.xlu0 %v622, 28
      %v841 = vpop.permute.xlu0 %840
      %842 = vrot.lane.b32.xlu0 %v732, 28
      %v843 = vpop.permute.xlu0 %842
      %844 = vrot.lane.b32.xlu0 %v820, 28
      %v845 = vpop.permute.xlu0 %844
      %846 = vrot.lane.b32.xlu0 %v823, 28
      %v847 = vpop.permute.xlu0 %846
      %v848 = vrot.slane %v815, 1
      %v849 = vsel %vm650, %v760, %v848
      %850 = vrot.lane.b32.xlu0 %v657, 32
      %v851 = vpop.permute.xlu0 %850
      %852 = vrot.lane.b32.xlu0 %v659, 32
      %v853 = vpop.permute.xlu0 %852
      %854 = vrot.lane.b32.xlu0 %v661, 32
      %v855 = vpop.permute.xlu0 %854
      %856 = vrot.lane.b32.xlu0 %v663, 32
      %v857 = vpop.permute.xlu0 %856
      %858 = vrot.lane.b32.xlu0 %v665, 32
      %v859 = vpop.permute.xlu0 %858
      %860 = vrot.lane.b32.xlu0 %v667, 32
      %v861 = vpop.permute.xlu0 %860
      %862 = vrot.lane.b32.xlu0 %v669, 32
      %v863 = vpop.permute.xlu0 %862
      %864 = vrot.lane.b32.xlu0 %v671, 32
      %v865 = vpop.permute.xlu0 %864
      %866 = vrot.lane.b32.xlu0 %v673, 32
      %v867 = vpop.permute.xlu0 %866
      %868 = vrot.lane.b32.xlu0 %v761, 32
      %v869 = vpop.permute.xlu0 %868
      %870 = vrot.lane.b32.xlu0 %v849, 32
      %v871 = vpop.permute.xlu0 %870
      %872 = vrot.lane.b32.xlu0 %v848, 32
      %v873 = vpop.permute.xlu0 %872
      %vm874 = vcmask 31744
      %v876 = vsel %vm874, %v515, %v627
      %v878 = vsel %vm874, %v516, %v629
      %v880 = vsel %vm874, %v517, %v631
      %v882 = vsel %vm874, %v518, %v633
      %v884 = vsel %vm874, %v519, %v635
      %v886 = vsel %vm874, %v520, %v637
      %v888 = vsel %vm874, %v521, %v639
      %v890 = vsel %vm874, %v522, %v641
      %v892 = vsel %vm874, %v523, %v643
      %v894 = vsel %vm874, %v524, %v645
      %v896 = vsel %vm874, %v525, %v647
      %v899 = vsel %vm874, %v526, %v649
      %vm900 = vcmask 64512
      %v902 = vsel %vm900, %v876, %v675
      %v904 = vsel %vm900, %v878, %v677
      %v906 = vsel %vm900, %v880, %v679
      %v908 = vsel %vm900, %v882, %v681
      %v910 = vsel %vm900, %v884, %v683
      %v912 = vsel %vm900, %v886, %v685
      %v914 = vsel %vm900, %v888, %v687
      %v916 = vsel %vm900, %v890, %v689
      %v918 = vsel %vm900, %v892, %v691
      %v920 = vsel %vm900, %v894, %v693
      %v922 = vsel %vm900, %v896, %v695
      %v924 = vsel %vm900, %v899, %v697
      %vm925 = vcmask 97280
      %v927 = vsel %vm925, %v902, %v702
      %v929 = vsel %vm925, %v904, %v704
      %v931 = vsel %vm925, %v906, %v706
      %v933 = vsel %vm925, %v908, %v708
      %v935 = vsel %vm925, %v910, %v710
      %v937 = vsel %vm925, %v912, %v712
      %v939 = vsel %vm925, %v914, %v714
      %v941 = vsel %vm925, %v916, %v716
      %v943 = vsel %vm925, %v918, %v718
      %v945 = vsel %vm925, %v920, %v720
      %v947 = vsel %vm925, %v922, %v722
      %v949 = vsel %vm925, %v924, %v724
      %vm950 = vcmask 130048
      %v952 = vsel %vm950, %v927, %v737
      %v954 = vsel %vm950, %v929, %v739
      %v956 = vsel %vm950, %v931, %v741
      %v958 = vsel %vm950, %v933, %v743
      %v960 = vsel %vm950, %v935, %v745
      %v962 = vsel %vm950, %v937, %v747
      %v964 = vsel %vm950, %v939, %v749
      %v966 = vsel %vm950, %v941, %v751
      %v968 = vsel %vm950, %v943, %v753
      %v970 = vsel %vm950, %v945, %v755
      %v972 = vsel %vm950, %v947, %v757
      %v974 = vsel %vm950, %v949, %v759
      %vm975 = vcmask 162816
      %v977 = vsel %vm975, %v952, %v763
      %v979 = vsel %vm975, %v954, %v765
      %v981 = vsel %vm975, %v956, %v767
      %v983 = vsel %vm975, %v958, %v769
      %v985 = vsel %vm975, %v960, %v771
      %v987 = vsel %vm975, %v962, %v773
      %v989 = vsel %vm975, %v964, %v775
      %v991 = vsel %vm975, %v966, %v777
      %v993 = vsel %vm975, %v968, %v779
      %v995 = vsel %vm975, %v970, %v781
      %v997 = vsel %vm975, %v972, %v783
      %v999 = vsel %vm975, %v974, %v785
      %vm1000 = vcmask 195584
      %v1002 = vsel %vm1000, %v977, %v790
      %v1004 = vsel %vm1000, %v979, %v792
      %v1006 = vsel %vm1000, %v981, %v794
      %v1008 = vsel %vm1000, %v983, %v796
      %v1010 = vsel %vm1000, %v985, %v798
      %v1012 = vsel %vm1000, %v987, %v800
      %v1014 = vsel %vm1000, %v989, %v802
      %v1016 = vsel %vm1000, %v991, %v804
      %v1018 = vsel %vm1000, %v993, %v806
      %v1020 = vsel %vm1000, %v995, %v808
      %v1022 = vsel %vm1000, %v997, %v810
      %v1024 = vsel %vm1000, %v999, %v812
      %vm1025 = vcmask 228352
      %v1027 = vsel %vm1025, %v1002, %v825
      %v1029 = vsel %vm1025, %v1004, %v827
      %v1031 = vsel %vm1025, %v1006, %v829
      %v1033 = vsel %vm1025, %v1008, %v831
      %v1035 = vsel %vm1025, %v1010, %v833
      %v1037 = vsel %vm1025, %v1012, %v835
      %v1039 = vsel %vm1025, %v1014, %v837
      %v1041 = vsel %vm1025, %v1016, %v839
      %v1043 = vsel %vm1025, %v1018, %v841
      %v1045 = vsel %vm1025, %v1020, %v843
      %v1047 = vsel %vm1025, %v1022, %v845
      %v1049 = vsel %vm1025, %v1024, %v847
      %vm1050 = vcmask 261120
      %v1052 = vsel %vm1050, %v1027, %v851
      %v1054 = vsel %vm1050, %v1029, %v853
      %v1056 = vsel %vm1050, %v1031, %v855
      %v1058 = vsel %vm1050, %v1033, %v857
      %v1060 = vsel %vm1050, %v1035, %v859
      %v1062 = vsel %vm1050, %v1037, %v861
      %v1064 = vsel %vm1050, %v1039, %v863
      %v1066 = vsel %vm1050, %v1041, %v865
      %v1068 = vsel %vm1050, %v1043, %v867
      %v1070 = vsel %vm1050, %v1045, %v869
      %v1072 = vsel %vm1050, %v1047, %v871
      %v1074 = vsel %vm1050, %v1049, %v873
      %v1075 = vld [vmem:[%s1] sm:$0xf]
      %v1076 = vld [vmem:[%s1 + $0x4] sm:$0xf]
      %v1077 = vld [vmem:[%s1 + $0x8] sm:$0xf]
      %v1078 = vld [vmem:[%s1 + $0xc] sm:$0xf]
      %v1079 = vld [vmem:[%s1 + $0x10] sm:$0x3]
      %v1080 = vld [vmem:[%s2] sm:$0x1]
      %v1082 = vperm.slane %v1080, 0
      %v1089 = vunpack.c.l.b16 %v1075
      %v1090 = vunpack.c.l.b16 %v1076
      %v1091 = vunpack.c.l.b16 %v1077
      %v1092 = vunpack.c.l.b16 %v1078
      %v1093 = vunpack.c.l.b16 %v1079
      %v1094 = vpack.c.b16 %v1090, %v1089
      %v1095 = vpack.c.b16 %v1092, %v1091
      %v1096 = vpack.c.b16 %v1093, %v1093
      %vm1099 = vcmask 293888
      %v1100 = vsel %vm1099, %v1052, 0
      %v1102 = vsel %vm1099, %v1054, 0
      %v1104 = vsel %vm1099, %v1056, 0
      %v1106 = vsel %vm1099, %v1058, 0
      %v1108 = vsel %vm1099, %v1060, 0
      %v1110 = vsel %vm1099, %v1062, 0
      %v1112 = vsel %vm1099, %v1064, 0
      %v1114 = vsel %vm1099, %v1066, 0
      %v1116 = vsel %vm1099, %v1068, 0
      %v1118 = vsel %vm1099, %v1070, 0
      %v1120 = vsel %vm1099, %v1072, 0
      %v1122 = vsel %vm1099, %v1074, 0
      %vm1124 = vcmask 1041408
      %v1126 = vsel %vm1124, %v1096, 0
      %1128 = vmatpush.bf16.msra.mxu0 0
      %1129 = vmatpush.bf16.msra.mxu0 0
      %1130 = vmatpush.bf16.msra.mxu0 0
      %1131 = vmatpush.bf16.msra.mxu0 0
      %1132 = vmatpush.bf16.msra.mxu0 0
      %1133 = vmatpush.bf16.msra.mxu0 %v1126
      %1134 = vmatpush.bf16.msra.mxu0 %v1095
      %1135 = vmatpush.bf16.msra.mxu0 %v1094
      %1136 = vmatmul.bf16.gmra.mxu0 %v1100
      %v1137 = vpop.f32.mrf.mxu0
      %v1138 = vadd.f32 %v1082, %v1137
      %v1139 = vpop.f32.mrf.mxu0
      %v1140 = vadd.f32 %v1082, %v1139
      %1141 = vmatmul.bf16.gmra.mxu0 %v1102
      %v1142 = vpop.f32.mrf.mxu0
      %v1143 = vadd.f32 %v1082, %v1142
      %v1144 = vpop.f32.mrf.mxu0
      %v1145 = vadd.f32 %v1082, %v1144
      %1146 = vmatmul.bf16.gmra.mxu0 %v1104
      %v1147 = vpop.f32.mrf.mxu0
      %v1148 = vadd.f32 %v1082, %v1147
      %v1149 = vpop.f32.mrf.mxu0
      %v1150 = vadd.f32 %v1082, %v1149
      %1151 = vmatmul.bf16.gmra.mxu0 %v1106
      %v1152 = vpop.f32.mrf.mxu0
      %v1153 = vadd.f32 %v1082, %v1152
      %v1154 = vpop.f32.mrf.mxu0
      %v1155 = vadd.f32 %v1082, %v1154
      %1156 = vmatmul.bf16.gmra.mxu0 %v1108
      %v1157 = vpop.f32.mrf.mxu0
      %v1158 = vadd.f32 %v1082, %v1157
      %v1159 = vpop.f32.mrf.mxu0
      %v1160 = vadd.f32 %v1082, %v1159
      %1161 = vmatmul.bf16.gmra.mxu0 %v1110
      %v1162 = vpop.f32.mrf.mxu0
      %v1163 = vadd.f32 %v1082, %v1162
      %v1164 = vpop.f32.mrf.mxu0
      %v1165 = vadd.f32 %v1082, %v1164
      %1166 = vmatmul.bf16.gmra.mxu0 %v1112
      %v1167 = vpop.f32.mrf.mxu0
      %v1168 = vadd.f32 %v1082, %v1167
      %v1169 = vpop.f32.mrf.mxu0
      %v1170 = vadd.f32 %v1082, %v1169
      %1171 = vmatmul.bf16.gmra.mxu0 %v1114
      %v1172 = vpop.f32.mrf.mxu0
      %v1173 = vadd.f32 %v1082, %v1172
      %v1174 = vpop.f32.mrf.mxu0
      %v1175 = vadd.f32 %v1082, %v1174
      %1176 = vmatmul.bf16.gmra.mxu0 %v1116
      %v1177 = vpop.f32.mrf.mxu0
      %v1178 = vadd.f32 %v1082, %v1177
      %v1179 = vpop.f32.mrf.mxu0
      %v1180 = vadd.f32 %v1082, %v1179
      %1181 = vmatmul.bf16.gmra.mxu0 %v1118
      %v1182 = vpop.f32.mrf.mxu0
      %v1183 = vadd.f32 %v1082, %v1182
      %v1184 = vpop.f32.mrf.mxu0
      %v1185 = vadd.f32 %v1082, %v1184
      %1186 = vmatmul.bf16.gmra.mxu0 %v1120
      %v1187 = vpop.f32.mrf.mxu0
      %v1188 = vadd.f32 %v1082, %v1187
      %v1189 = vpop.f32.mrf.mxu0
      %v1190 = vadd.f32 %v1082, %v1189
      %1191 = vmatmul.bf16.gmra.mxu0 %v1122
      %v1192 = vpop.f32.mrf.mxu0
      %v1193 = vadd.f32 %v1082, %v1192
      %v1194 = vpop.f32.mrf.mxu0
      %1195 = vdwg.mxu0
      %v1196 = vmax.f32 %v1138, 0.0
      %v1197 = vmax.f32 %v1140, 0.0
      %v1198 = vmax.f32 %v1143, 0.0
      %v1199 = vmax.f32 %v1145, 0.0
      %v1200 = vmax.f32 %v1148, 0.0
      %v1201 = vmax.f32 %v1150, 0.0
      %v1202 = vmax.f32 %v1153, 0.0
      %v1203 = vmax.f32 %v1155, 0.0
      %v1204 = vmax.f32 %v1158, 0.0
      %v1205 = vmax.f32 %v1160, 0.0
      %v1206 = vmax.f32 %v1163, 0.0
      %v1207 = vmax.f32 %v1165, 0.0
      %v1208 = vmax.f32 %v1168, 0.0
      %v1209 = vmax.f32 %v1170, 0.0
      %v1210 = vmax.f32 %v1173, 0.0
      %v1211 = vmax.f32 %v1175, 0.0
      %v1212 = vmax.f32 %v1178, 0.0
      %v1213 = vmax.f32 %v1180, 0.0
      %v1214 = vmax.f32 %v1183, 0.0
      %v1215 = vmax.f32 %v1185, 0.0
      %v1216 = vmax.f32 %v1188, 0.0
      %v1217 = vmax.f32 %v1190, 0.0
      %v1218 = vmax.f32 %v1193, 0.0
      %v1219 = vpack.c.bf16 %v1196, %v1196
      %v1220 = vpack.c.bf16 %v1197, %v1197
      %v1221 = vpack.c.bf16 %v1198, %v1198
      %v1222 = vpack.c.bf16 %v1199, %v1199
      %v1223 = vpack.c.bf16 %v1200, %v1200
      %v1224 = vpack.c.bf16 %v1201, %v1201
      %v1225 = vpack.c.bf16 %v1202, %v1202
      %v1226 = vpack.c.bf16 %v1203, %v1203
      %v1227 = vpack.c.bf16 %v1204, %v1204
      %v1228 = vpack.c.bf16 %v1205, %v1205
      %v1229 = vpack.c.bf16 %v1206, %v1206
      %v1230 = vpack.c.bf16 %v1207, %v1207
      %v1231 = vpack.c.bf16 %v1208, %v1208
      %v1232 = vpack.c.bf16 %v1209, %v1209
      %v1233 = vpack.c.bf16 %v1210, %v1210
      %v1234 = vpack.c.bf16 %v1211, %v1211
      %v1235 = vpack.c.bf16 %v1212, %v1212
      %v1236 = vpack.c.bf16 %v1213, %v1213
      %v1237 = vpack.c.bf16 %v1214, %v1214
      %v1238 = vpack.c.bf16 %v1215, %v1215
      %v1239 = vpack.c.bf16 %v1216, %v1216
      %v1240 = vpack.c.bf16 %v1217, %v1217
      %v1241 = vpack.c.bf16 %v1218, %v1218
      %v1261 = vunpack.c.l.b16 %v1219
      %v1262 = vunpack.c.l.b16 %v1220
      %v1263 = vunpack.c.l.b16 %v1221
      %v1264 = vunpack.c.l.b16 %v1222
      %v1265 = vunpack.c.l.b16 %v1223
      %v1266 = vunpack.c.l.b16 %v1224
      %v1267 = vunpack.c.l.b16 %v1225
      %v1268 = vunpack.c.l.b16 %v1226
      %v1269 = vunpack.c.l.b16 %v1227
      %v1270 = vunpack.c.l.b16 %v1228
      %v1271 = vunpack.c.l.b16 %v1229
      %v1272 = vunpack.c.l.b16 %v1230
      %v1273 = vunpack.c.l.b16 %v1231
      %v1274 = vunpack.c.l.b16 %v1232
      %v1275 = vunpack.c.l.b16 %v1233
      %v1276 = vunpack.c.l.b16 %v1234
      %v1277 = vunpack.c.l.b16 %v1235
      %v1278 = vunpack.c.l.b16 %v1236
      %v1279 = vunpack.c.l.b16 %v1237
      %v1280 = vpack.c.b16 %v1262, %v1261
      %v1281 = vpack.c.b16 %v1264, %v1263
      %v1282 = vpack.c.b16 %v1266, %v1265
      %v1283 = vpack.c.b16 %v1268, %v1267
      %v1284 = vpack.c.b16 %v1270, %v1269
      %v1285 = vpack.c.b16 %v1272, %v1271
      %v1286 = vpack.c.b16 %v1274, %v1273
      %v1287 = vpack.c.b16 %v1276, %v1275
      %v1288 = vpack.c.b16 %v1278, %v1277
      %v1289 = vpack.c.b16 %v1279, %v1279
      %v1291 = vshrl.u32 %v1280, 16
      %v1293 = vshll.u32 %v1280, 16
      %v1295 = vrot.slane %v1293, 1
      %v1296 = vor.u32 %v1291, %v1295
      %v1298 = vshll.u32 %v1281, 16
      %v1300 = vrot.slane %v1298, 1
      %v1301 = vsel %vm530, %v1296, %v1300
      %v1302 = vshrl.u32 %v1281, 16
      %v1304 = vor.u32 %v1302, %v1300
      %v1306 = vshll.u32 %v1282, 16
      %v1308 = vrot.slane %v1306, 1
      %v1309 = vsel %vm530, %v1304, %v1308
      %v1310 = vshrl.u32 %v1282, 16
      %v1312 = vor.u32 %v1310, %v1308
      %v1314 = vshll.u32 %v1283, 16
      %v1316 = vrot.slane %v1314, 1
      %v1317 = vsel %vm530, %v1312, %v1316
      %v1318 = vshrl.u32 %v1283, 16
      %v1320 = vor.u32 %v1318, %v1316
      %v1322 = vshll.u32 %v1284, 16
      %v1324 = vrot.slane %v1322, 1
      %v1325 = vsel %vm530, %v1320, %v1324
      %v1326 = vshrl.u32 %v1284, 16
      %v1328 = vor.u32 %v1326, %v1324
      %v1330 = vshll.u32 %v1285, 16
      %v1332 = vrot.slane %v1330, 1
      %v1333 = vsel %vm530, %v1328, %v1332
      %v1334 = vshrl.u32 %v1285, 16
      %v1336 = vor.u32 %v1334, %v1332
      %v1338 = vshll.u32 %v1286, 16
      %v1340 = vrot.slane %v1338, 1
      %v1341 = vsel %vm530, %v1336, %v1340
      %v1342 = vshrl.u32 %v1286, 16
      %v1344 = vor.u32 %v1342, %v1340
      %v1346 = vshll.u32 %v1287, 16
      %v1348 = vrot.slane %v1346, 1
      %v1349 = vsel %vm530, %v1344, %v1348
      %v1350 = vshrl.u32 %v1287, 16
      %v1352 = vor.u32 %v1350, %v1348
      %v1354 = vshll.u32 %v1288, 16
      %v1356 = vrot.slane %v1354, 1
      %v1357 = vsel %vm530, %v1352, %v1356
      %v1358 = vshrl.u32 %v1288, 16
      %v1360 = vor.u32 %v1358, %v1356
      %v1362 = vshll.u32 %v1289, 16
      %v1364 = vrot.slane %v1362, 1
      %v1365 = vsel %vm530, %v1360, %v1364
      %v1366 = vshrl.u32 %v1289, 16
      %v1368 = vor.u32 %v1366, %v1364
      %1369 = vrot.lane.b32.xlu0 %v1301, 64
      %v1370 = vpop.permute.xlu0 %1369
      %1371 = vrot.lane.b32.xlu0 %v1309, 64
      %v1372 = vpop.permute.xlu0 %1371
      %1373 = vrot.lane.b32.xlu0 %v1317, 64
      %v1374 = vpop.permute.xlu0 %1373
      %1375 = vrot.lane.b32.xlu0 %v1325, 64
      %v1376 = vpop.permute.xlu0 %1375
      %1377 = vrot.lane.b32.xlu0 %v1333, 64
      %v1378 = vpop.permute.xlu0 %1377
      %1379 = vrot.lane.b32.xlu0 %v1341, 64
      %v1380 = vpop.permute.xlu0 %1379
      %1381 = vrot.lane.b32.xlu0 %v1349, 64
      %v1382 = vpop.permute.xlu0 %1381
      %1383 = vrot.lane.b32.xlu0 %v1357, 64
      %v1384 = vpop.permute.xlu0 %1383
      %1385 = vrot.lane.b32.xlu0 %v1365, 64
      %v1386 = vpop.permute.xlu0 %1385
      %1387 = vrot.lane.b32.xlu0 %v1368, 64
      %v1388 = vpop.permute.xlu0 %1387
      %v1389 = vrot.slane %v1280, 1
      %v1390 = vrot.slane %v1281, 1
      %v1391 = vsel %vm650, %v1389, %v1390
      %v1392 = vrot.slane %v1282, 1
      %v1393 = vsel %vm650, %v1390, %v1392
      %v1394 = vrot.slane %v1283, 1
      %v1395 = vsel %vm650, %v1392, %v1394
      %v1396 = vrot.slane %v1284, 1
      %v1397 = vsel %vm650, %v1394, %v1396
      %v1398 = vrot.slane %v1285, 1
      %v1399 = vsel %vm650, %v1396, %v1398
      %v1400 = vrot.slane %v1286, 1
      %v1401 = vsel %vm650, %v1398, %v1400
      %v1402 = vrot.slane %v1287, 1
      %v1403 = vsel %vm650, %v1400, %v1402
      %v1404 = vrot.slane %v1288, 1
      %v1405 = vsel %vm650, %v1402, %v1404
      %v1406 = vrot.slane %v1289, 1
      %v1407 = vsel %vm650, %v1404, %v1406
      %v1410 = vunpack.c.l.b16 %v1238
      %v1411 = vunpack.c.l.b16 %v1239
      %v1412 = vpack.c.b16 %v1410, %v1279
      %v1413 = vpack.c.b16 %v1411, %v1411
      %1414 = vrot.lane.b32.xlu0 %v1281, 64
      %v1415 = vpop.permute.xlu0 %1414
      %1416 = vrot.lane.b32.xlu0 %v1282, 64
      %v1417 = vpop.permute.xlu0 %1416
      %1418 = vrot.lane.b32.xlu0 %v1283, 64
      %v1419 = vpop.permute.xlu0 %1418
      %1420 = vrot.lane.b32.xlu0 %v1284, 64
      %v1421 = vpop.permute.xlu0 %1420
      %1422 = vrot.lane.b32.xlu0 %v1285, 64
      %v1423 = vpop.permute.xlu0 %1422
      %1424 = vrot.lane.b32.xlu0 %v1286, 64
      %v1425 = vpop.permute.xlu0 %1424
      %1426 = vrot.lane.b32.xlu0 %v1287, 64
      %v1427 = vpop.permute.xlu0 %1426
      %1428 = vrot.lane.b32.xlu0 %v1288, 64
      %v1429 = vpop.permute.xlu0 %1428
      %1430 = vrot.lane.b32.xlu0 %v1412, 64
      %v1431 = vpop.permute.xlu0 %1430
      %1432 = vrot.lane.b32.xlu0 %v1413, 64
      %v1433 = vpop.permute.xlu0 %1432
      %v1435 = vshll.u32 %v1412, 16
      %v1437 = vrot.slane %v1435, 1
      %v1438 = vsel %vm530, %v1360, %v1437
      %v1439 = vshrl.u32 %v1412, 16
      %v1441 = vor.u32 %v1439, %v1437
      %v1443 = vshll.u32 %v1413, 16
      %v1445 = vrot.slane %v1443, 1
      %v1446 = vsel %vm530, %v1441, %v1445
      %v1447 = vshrl.u32 %v1413, 16
      %v1449 = vor.u32 %v1447, %v1445
      %v1450 = vrot.slane %v1412, 1
      %v1451 = vsel %vm650, %v1404, %v1450
      %v1452 = vrot.slane %v1413, 1
      %v1453 = vsel %vm650, %v1450, %v1452
      %1454 = vrot.lane.b32.xlu0 %v1393, 64
      %v1455 = vpop.permute.xlu0 %1454
      %1456 = vrot.lane.b32.xlu0 %v1395, 64
      %v1457 = vpop.permute.xlu0 %1456
      %1458 = vrot.lane.b32.xlu0 %v1397, 64
      %v1459 = vpop.permute.xlu0 %1458
      %1460 = vrot.lane.b32.xlu0 %v1399, 64
      %v1461 = vpop.permute.xlu0 %1460
      %1462 = vrot.lane.b32.xlu0 %v1401, 64
      %v1463 = vpop.permute.xlu0 %1462
      %1464 = vrot.lane.b32.xlu0 %v1403, 64
      %v1465 = vpop.permute.xlu0 %1464
      %1466 = vrot.lane.b32.xlu0 %v1405, 64
      %v1467 = vpop.permute.xlu0 %1466
      %1468 = vrot.lane.b32.xlu0 %v1451, 64
      %v1469 = vpop.permute.xlu0 %1468
      %1470 = vrot.lane.b32.xlu0 %v1453, 64
      %v1471 = vpop.permute.xlu0 %1470
      %1472 = vrot.lane.b32.xlu0 %v1452, 64
      %v1473 = vpop.permute.xlu0 %1472
      %v1476 = vunpack.c.l.b16 %v1240
      %v1477 = vunpack.c.l.b16 %v1241
      %v1478 = vpack.c.b16 %v1476, %v1411
      %v1479 = vpack.c.b16 %v1477, %v1477
      %v1481 = vshll.u32 %v1478, 16
      %v1483 = vrot.slane %v1481, 1
      %v1484 = vsel %vm530, %v1441, %v1483
      %v1485 = vshrl.u32 %v1478, 16
      %v1487 = vor.u32 %v1485, %v1483
      %v1489 = vshll.u32 %v1479, 16
      %v1491 = vrot.slane %v1489, 1
      %v1492 = vsel %vm530, %v1487, %v1491
      %v1493 = vshrl.u32 %v1479, 16
      %v1495 = vor.u32 %v1493, %v1491
      %1496 = vrot.lane.b32.xlu0 %v1438, 64
      %v1497 = vpop.permute.xlu0 %1496
      %1498 = vrot.lane.b32.xlu0 %v1484, 64
      %v1499 = vpop.permute.xlu0 %1498
      %1500 = vrot.lane.b32.xlu0 %v1492, 64
      %v1501 = vpop.permute.xlu0 %1500
      %1502 = vrot.lane.b32.xlu0 %v1495, 64
      %v1503 = vpop.permute.xlu0 %1502
      %v1504 = vrot.slane %v1478, 1
      %v1505 = vsel %vm650, %v1450, %v1504
      %v1506 = vrot.slane %v1479, 1
      %v1507 = vsel %vm650, %v1504, %v1506
      %vm1508 = vcmask 523264
      %v1510 = vsel %vm1508, %v1280, %v1370
      %v1513 = vsel %vm1508, %v1281, %v1372
      %v1516 = vsel %vm1508, %v1282, %v1374
      %v1519 = vsel %vm1508, %v1283, %v1376
      %v1522 = vsel %vm1508, %v1284, %v1378
      %v1525 = vsel %vm1508, %v1285, %v1380
      %v1528 = vsel %vm1508, %v1286, %v1382
      %v1531 = vsel %vm1508, %v1287, %v1384
      %v1534 = vsel %vm1508, %v1288, %v1386
      %v1537 = vsel %vm1508, %v1289, %v1388
      %v1541 = vsel %vm1508, %v1391, %v1415
      %v1545 = vsel %vm1508, %v1393, %v1417
      %v1549 = vsel %vm1508, %v1395, %v1419
      %v1553 = vsel %vm1508, %v1397, %v1421
      %v1557 = vsel %vm1508, %v1399, %v1423
      %v1561 = vsel %vm1508, %v1401, %v1425
      %v1565 = vsel %vm1508, %v1403, %v1427
      %v1569 = vsel %vm1508, %v1405, %v1429
      %v1573 = vsel %vm1508, %v1407, %v1431
      %v1577 = vsel %vm1508, %v1406, %v1433
      %v1581 = vsel %vm1508, %v1309, %v1455
      %v1585 = vsel %vm1508, %v1317, %v1457
      %v1589 = vsel %vm1508, %v1325, %v1459
      %v1593 = vsel %vm1508, %v1333, %v1461
      %v1597 = vsel %vm1508, %v1341, %v1463
      %v1601 = vsel %vm1508, %v1349, %v1465
      %v1605 = vsel %vm1508, %v1357, %v1467
      %v1609 = vsel %vm1508, %v1438, %v1469
      %v1613 = vsel %vm1508, %v1446, %v1471
      %v1617 = vsel %vm1508, %v1449, %v1473
      %v1620 = vsel %vm1508, %v1288, %v1497
      %v1623 = vsel %vm1508, %v1412, %v1499
      %v1626 = vsel %vm1508, %v1478, %v1501
      %v1629 = vsel %vm1508, %v1479, %v1503
      %v1631 = vld [vmem:[%s3] sm:$0xf]
      %v1632 = vld [vmem:[%s3 + $0x4] sm:$0xf]
      %v1633 = vld [vmem:[%s3 + $0x8] sm:$0xf]
      %v1634 = vld [vmem:[%s3 + $0xc] sm:$0xf]
      %v1635 = vld [vmem:[%s3 + $0x10] sm:$0xf]
      %v1636 = vld [vmem:[%s3 + $0x14] sm:$0xf]
      %v1637 = vld [vmem:[%s3 + $0x18] sm:$0xf]
      %v1638 = vld [vmem:[%s3 + $0x1c] sm:$0xf]
      %v1639 = vld [vmem:[%s3 + $0x20] sm:$0xf]
      %v1640 = vld [vmem:[%s3 + $0x24] sm:$0xf]
      %v1641 = vld [vmem:[%s3 + $0x28] sm:$0xf]
      %v1642 = vld [vmem:[%s3 + $0x2c] sm:$0xf]
      %v1643 = vld [vmem:[%s3 + $0x30] sm:$0xf]
      %v1644 = vld [vmem:[%s3 + $0x34] sm:$0xf]
      %v1645 = vld [vmem:[%s3 + $0x38] sm:$0xf]
      %v1646 = vld [vmem:[%s3 + $0x3c] sm:$0xf]
      %v1647 = vld [vmem:[%s3 + $0x40] sm:$0xf]
      %v1648 = vld [vmem:[%s3 + $0x44] sm:$0xf]
      %v1649 = vld [vmem:[%s3 + $0x48] sm:$0xf]
      %v1650 = vld [vmem:[%s3 + $0x4c] sm:$0xf]
      %v1651 = vld [vmem:[%s3 + $0x50] sm:$0xf]
      %v1652 = vld [vmem:[%s3 + $0x54] sm:$0xf]
      %v1653 = vld [vmem:[%s3 + $0x58] sm:$0xf]
      %v1654 = vld [vmem:[%s3 + $0x5c] sm:$0xf]
      %v1655 = vld [vmem:[%s3 + $0x60] sm:$0xf]
      %v1656 = vld [vmem:[%s3 + $0x64] sm:$0xf]
      %v1657 = vld [vmem:[%s3 + $0x68] sm:$0xf]
      %v1658 = vld [vmem:[%s3 + $0x6c] sm:$0xf]
      %v1659 = vld [vmem:[%s3 + $0x70] sm:$0xf]
      %v1660 = vld [vmem:[%s3 + $0x74] sm:$0xf]
      %v1661 = vld [vmem:[%s3 + $0x78] sm:$0xf]
      %v1662 = vld [vmem:[%s3 + $0x7c] sm:$0xf]
      %v1663 = vld [vmem:[%s3 + $0x80] sm:$0xf]
      %v1664 = vld [vmem:[%s3 + $0x84] sm:$0xf]
      %v1665 = vld [vmem:[%s3 + $0x88] sm:$0xf]
      %v1666 = vld [vmem:[%s3 + $0x8c] sm:$0xf]
      %v1667 = vld [vmem:[%s3 + $0x90] sm:$0xf]
      %v1668 = vld [vmem:[%s3 + $0x94] sm:$0xf]
      %v1669 = vld [vmem:[%s3 + $0x98] sm:$0xf]
      %v1670 = vld [vmem:[%s3 + $0x9c] sm:$0xf]
      %v1671 = vld [vmem:[%s3 + $0xa0] sm:$0xf]
      %v1672 = vld [vmem:[%s3 + $0xa4] sm:$0xf]
      %v1673 = vld [vmem:[%s3 + $0xa8] sm:$0xf]
      %v1674 = vld [vmem:[%s3 + $0xac] sm:$0xf]
      %v1675 = vld [vmem:[%s3 + $0xb0] sm:$0xf]
      %v1676 = vld [vmem:[%s3 + $0xb4] sm:$0xf]
      %v1677 = vld [vmem:[%s3 + $0xb8] sm:$0xf]
      %v1678 = vld [vmem:[%s3 + $0xbc] sm:$0xf]
      %v1679 = vld [vmem:[%s3 + $0xc0] sm:$0xf]
      %v1680 = vld [vmem:[%s3 + $0xc4] sm:$0xf]
      %v1681 = vld [vmem:[%s3 + $0xc8] sm:$0xf]
      %v1682 = vld [vmem:[%s3 + $0xcc] sm:$0xf]
      %v1683 = vld [vmem:[%s3 + $0xd0] sm:$0xf]
      %v1684 = vld [vmem:[%s3 + $0xd4] sm:$0xf]
      %v1685 = vld [vmem:[%s3 + $0xd8] sm:$0xf]
      %v1686 = vld [vmem:[%s3 + $0xdc] sm:$0xf]
      %v1687 = vld [vmem:[%s3 + $0xe0] sm:$0xf]
      %v1688 = vld [vmem:[%s3 + $0xe4] sm:$0xf]
      %v1689 = vld [vmem:[%s3 + $0xe8] sm:$0xf]
      %v1690 = vld [vmem:[%s3 + $0xec] sm:$0xf]
      %v1691 = vld [vmem:[%s3 + $0xf0] sm:$0xf]
      %v1692 = vld [vmem:[%s3 + $0xf4] sm:$0xf]
      %v1693 = vld [vmem:[%s3 + $0xf8] sm:$0xf]
      %v1694 = vld [vmem:[%s3 + $0xfc] sm:$0xf]
      %v1695 = vld [vmem:[%s3 + $0x100] sm:$0xf]
      %v1696 = vld [vmem:[%s3 + $0x104] sm:$0xf]
      %v1697 = vld [vmem:[%s3 + $0x108] sm:$0xf]
      %v1698 = vld [vmem:[%s3 + $0x10c] sm:$0xf]
      %v1699 = vld [vmem:[%s3 + $0x110] sm:$0xf]
      %v1700 = vld [vmem:[%s3 + $0x114] sm:$0xf]
      %v1701 = vld [vmem:[%s3 + $0x118] sm:$0xf]
      %v1702 = vld [vmem:[%s3 + $0x11c] sm:$0xf]
      %v1703 = vld [vmem:[%s4] sm:$0x1]
      %v1705 = vperm.slane %v1703, 0
      %v1779 = vunpack.c.l.b16 %v1631
      %v1780 = vunpack.c.l.b16 %v1632
      %v1781 = vunpack.c.l.b16 %v1633
      %v1782 = vunpack.c.l.b16 %v1634
      %v1783 = vunpack.c.l.b16 %v1635
      %v1784 = vunpack.c.l.b16 %v1636
      %v1785 = vunpack.c.l.b16 %v1637
      %v1786 = vunpack.c.l.b16 %v1638
      %v1787 = vunpack.c.l.b16 %v1639
      %v1788 = vunpack.c.l.b16 %v1640
      %v1789 = vunpack.c.l.b16 %v1641
      %v1790 = vunpack.c.l.b16 %v1642
      %v1791 = vunpack.c.l.b16 %v1643
      %v1792 = vunpack.c.l.b16 %v1644
      %v1793 = vunpack.c.l.b16 %v1645
      %v1794 = vunpack.c.l.b16 %v1646
      %v1795 = vunpack.c.l.b16 %v1647
      %v1796 = vunpack.c.l.b16 %v1648
      %v1797 = vunpack.c.l.b16 %v1649
      %v1798 = vunpack.c.l.b16 %v1650
      %v1799 = vunpack.c.l.b16 %v1651
      %v1800 = vunpack.c.l.b16 %v1652
      %v1801 = vunpack.c.l.b16 %v1653
      %v1802 = vunpack.c.l.b16 %v1654
      %v1803 = vunpack.c.l.b16 %v1655
      %v1804 = vunpack.c.l.b16 %v1656
      %v1805 = vunpack.c.l.b16 %v1657
      %v1806 = vunpack.c.l.b16 %v1658
      %v1807 = vunpack.c.l.b16 %v1659
      %v1808 = vunpack.c.l.b16 %v1660
      %v1809 = vunpack.c.l.b16 %v1661
      %v1810 = vunpack.c.l.b16 %v1662
      %v1811 = vunpack.c.l.b16 %v1663
      %v1812 = vunpack.c.l.b16 %v1664
      %v1813 = vunpack.c.l.b16 %v1665
      %v1814 = vunpack.c.l.b16 %v1666
      %v1815 = vunpack.c.l.b16 %v1667
      %v1816 = vunpack.c.l.b16 %v1668
      %v1817 = vunpack.c.l.b16 %v1669
      %v1818 = vunpack.c.l.b16 %v1670
      %v1819 = vunpack.c.l.b16 %v1671
      %v1820 = vunpack.c.l.b16 %v1672
      %v1821 = vunpack.c.l.b16 %v1673
      %v1822 = vunpack.c.l.b16 %v1674
      %v1823 = vunpack.c.l.b16 %v1675
      %v1824 = vunpack.c.l.b16 %v1676
      %v1825 = vunpack.c.l.b16 %v1677
      %v1826 = vunpack.c.l.b16 %v1678
      %v1827 = vunpack.c.l.b16 %v1679
      %v1828 = vunpack.c.l.b16 %v1680
      %v1829 = vunpack.c.l.b16 %v1681
      %v1830 = vunpack.c.l.b16 %v1682
      %v1831 = vunpack.c.l.b16 %v1683
      %v1832 = vunpack.c.l.b16 %v1684
      %v1833 = vunpack.c.l.b16 %v1685
      %v1834 = vunpack.c.l.b16 %v1686
      %v1835 = vunpack.c.l.b16 %v1687
      %v1836 = vunpack.c.l.b16 %v1688
      %v1837 = vunpack.c.l.b16 %v1689
      %v1838 = vunpack.c.l.b16 %v1690
      %v1839 = vunpack.c.l.b16 %v1691
      %v1840 = vunpack.c.l.b16 %v1692
      %v1841 = vunpack.c.l.b16 %v1693
      %v1842 = vunpack.c.l.b16 %v1694
      %v1843 = vunpack.c.l.b16 %v1695
      %v1844 = vunpack.c.l.b16 %v1696
      %v1845 = vunpack.c.l.b16 %v1697
      %v1846 = vunpack.c.l.b16 %v1698
      %v1847 = vunpack.c.l.b16 %v1699
      %v1848 = vunpack.c.l.b16 %v1700
      %v1849 = vunpack.c.l.b16 %v1701
      %v1850 = vunpack.c.l.b16 %v1702
      %v1851 = vpack.c.b16 %v1780, %v1779
      %v1852 = vpack.c.b16 %v1782, %v1781
      %v1853 = vpack.c.b16 %v1784, %v1783
      %v1854 = vpack.c.b16 %v1786, %v1785
      %v1855 = vpack.c.b16 %v1788, %v1787
      %v1856 = vpack.c.b16 %v1790, %v1789
      %v1857 = vpack.c.b16 %v1792, %v1791
      %v1858 = vpack.c.b16 %v1794, %v1793
      %v1859 = vpack.c.b16 %v1796, %v1795
      %v1860 = vpack.c.b16 %v1798, %v1797
      %v1861 = vpack.c.b16 %v1800, %v1799
      %v1862 = vpack.c.b16 %v1802, %v1801
      %v1863 = vpack.c.b16 %v1804, %v1803
      %v1864 = vpack.c.b16 %v1806, %v1805
      %v1865 = vpack.c.b16 %v1808, %v1807
      %v1866 = vpack.c.b16 %v1810, %v1809
      %v1867 = vpack.c.b16 %v1812, %v1811
      %v1868 = vpack.c.b16 %v1814, %v1813
      %v1869 = vpack.c.b16 %v1816, %v1815
      %v1870 = vpack.c.b16 %v1818, %v1817
      %v1871 = vpack.c.b16 %v1820, %v1819
      %v1872 = vpack.c.b16 %v1822, %v1821
      %v1873 = vpack.c.b16 %v1824, %v1823
      %v1874 = vpack.c.b16 %v1826, %v1825
      %v1875 = vpack.c.b16 %v1828, %v1827
      %v1876 = vpack.c.b16 %v1830, %v1829
      %v1877 = vpack.c.b16 %v1832, %v1831
      %v1878 = vpack.c.b16 %v1834, %v1833
      %v1879 = vpack.c.b16 %v1836, %v1835
      %v1880 = vpack.c.b16 %v1838, %v1837
      %v1881 = vpack.c.b16 %v1840, %v1839
      %v1882 = vpack.c.b16 %v1842, %v1841
      %v1883 = vpack.c.b16 %v1844, %v1843
      %v1884 = vpack.c.b16 %v1846, %v1845
      %v1885 = vpack.c.b16 %v1848, %v1847
      %v1886 = vpack.c.b16 %v1850, %v1849
      %v1923 = vsel %vm1508, %v1395, 0
      %v1925 = vsel %vm1508, %v1397, 0
      %v1927 = vsel %vm1508, %v1399, 0
      %v1929 = vsel %vm1508, %v1401, 0
      %v1931 = vsel %vm1508, %v1403, 0
      %v1933 = vsel %vm1508, %v1405, 0
      %v1936 = vsel %vm1508, %v1451, 0
      %v1939 = vsel %vm1508, %v1505, 0
      %v1942 = vsel %vm1508, %v1507, 0
      %v1945 = vsel %vm1508, %v1506, 0
      %1947 = vmatpush.bf16.msra.mxu0 %v1858
      %1948 = vmatpush.bf16.msra.mxu0 %v1857
      %1949 = vmatpush.bf16.msra.mxu0 %v1856
      %1950 = vmatpush.bf16.msra.mxu0 %v1855
      %1951 = vmatpush.bf16.msra.mxu0 %v1854
      %1952 = vmatpush.bf16.msra.mxu0 %v1853
      %1953 = vmatpush.bf16.msra.mxu0 %v1852
      %1954 = vmatpush.bf16.msra.mxu0 %v1851
      %1955 = vmatmul.bf16.gmra.mxu0 %v1510
      %v1956 = vpop.f32.mrf.mxu0
      %v1957 = vadd.f32 %v1705, %v1956
      %v1958 = vpop.f32.mrf.mxu0
      %v1959 = vadd.f32 %v1705, %v1958
      %1960 = vmatmul.bf16.gmra.mxu0 %v1513
      %v1961 = vpop.f32.mrf.mxu0
      %v1962 = vadd.f32 %v1705, %v1961
      %v1963 = vpop.f32.mrf.mxu0
      %v1964 = vadd.f32 %v1705, %v1963
      %1965 = vmatmul.bf16.gmra.mxu0 %v1516
      %v1966 = vpop.f32.mrf.mxu0
      %v1967 = vadd.f32 %v1705, %v1966
      %v1968 = vpop.f32.mrf.mxu0
      %v1969 = vadd.f32 %v1705, %v1968
      %1970 = vmatmul.bf16.gmra.mxu0 %v1519
      %v1971 = vpop.f32.mrf.mxu0
      %v1972 = vadd.f32 %v1705, %v1971
      %v1973 = vpop.f32.mrf.mxu0
      %v1974 = vadd.f32 %v1705, %v1973
      %1975 = vmatmul.bf16.gmra.mxu0 %v1522
      %v1976 = vpop.f32.mrf.mxu0
      %v1977 = vadd.f32 %v1705, %v1976
      %v1978 = vpop.f32.mrf.mxu0
      %v1979 = vadd.f32 %v1705, %v1978
      %1980 = vmatmul.bf16.gmra.mxu0 %v1525
      %v1981 = vpop.f32.mrf.mxu0
      %v1982 = vadd.f32 %v1705, %v1981
      %v1983 = vpop.f32.mrf.mxu0
      %v1984 = vadd.f32 %v1705, %v1983
      %1985 = vmatmul.bf16.gmra.mxu0 %v1528
      %v1986 = vpop.f32.mrf.mxu0
      %v1987 = vadd.f32 %v1705, %v1986
      %v1988 = vpop.f32.mrf.mxu0
      %v1989 = vadd.f32 %v1705, %v1988
      %1990 = vmatmul.bf16.gmra.mxu0 %v1531
      %v1991 = vpop.f32.mrf.mxu0
      %v1992 = vadd.f32 %v1705, %v1991
      %v1993 = vpop.f32.mrf.mxu0
      %v1994 = vadd.f32 %v1705, %v1993
      %1995 = vmatmul.bf16.gmra.mxu0 %v1534
      %v1996 = vpop.f32.mrf.mxu0
      %v1997 = vadd.f32 %v1705, %v1996
      %v1998 = vpop.f32.mrf.mxu0
      %v1999 = vadd.f32 %v1705, %v1998
      %2000 = vmatmul.bf16.gmra.mxu0 %v1537
      %v2001 = vpop.f32.mrf.mxu0
      %v2002 = vadd.f32 %v1705, %v2001
      %v2003 = vpop.f32.mrf.mxu0
      %2004 = vdwg.mxu0
      %2005 = vmatpush.bf16.msra.mxu0 %v1866
      %2006 = vmatpush.bf16.msra.mxu0 %v1865
      %2007 = vmatpush.bf16.msra.mxu0 %v1864
      %2008 = vmatpush.bf16.msra.mxu0 %v1863
      %2009 = vmatpush.bf16.msra.mxu0 %v1862
      %2010 = vmatpush.bf16.msra.mxu0 %v1861
      %2011 = vmatpush.bf16.msra.mxu0 %v1860
      %2012 = vmatpush.bf16.msra.mxu0 %v1859
      %2013 = vmatmul.bf16.gmra.mxu0 %v1541
      %v2014 = vpop.f32.mrf.mxu0
      %v2015 = vadd.f32 %v1957, %v2014
      %v2016 = vpop.f32.mrf.mxu0
      %v2017 = vadd.f32 %v1959, %v2016
      %2018 = vmatmul.bf16.gmra.mxu0 %v1545
      %v2019 = vpop.f32.mrf.mxu0
      %v2020 = vadd.f32 %v1962, %v2019
      %v2021 = vpop.f32.mrf.mxu0
      %v2022 = vadd.f32 %v1964, %v2021
      %2023 = vmatmul.bf16.gmra.mxu0 %v1549
      %v2024 = vpop.f32.mrf.mxu0
      %v2025 = vadd.f32 %v1967, %v2024
      %v2026 = vpop.f32.mrf.mxu0
      %v2027 = vadd.f32 %v1969, %v2026
      %2028 = vmatmul.bf16.gmra.mxu0 %v1553
      %v2029 = vpop.f32.mrf.mxu0
      %v2030 = vadd.f32 %v1972, %v2029
      %v2031 = vpop.f32.mrf.mxu0
      %v2032 = vadd.f32 %v1974, %v2031
      %2033 = vmatmul.bf16.gmra.mxu0 %v1557
      %v2034 = vpop.f32.mrf.mxu0
      %v2035 = vadd.f32 %v1977, %v2034
      %v2036 = vpop.f32.mrf.mxu0
      %v2037 = vadd.f32 %v1979, %v2036
      %2038 = vmatmul.bf16.gmra.mxu0 %v1561
      %v2039 = vpop.f32.mrf.mxu0
      %v2040 = vadd.f32 %v1982, %v2039
      %v2041 = vpop.f32.mrf.mxu0
      %v2042 = vadd.f32 %v1984, %v2041
      %2043 = vmatmul.bf16.gmra.mxu0 %v1565
      %v2044 = vpop.f32.mrf.mxu0
      %v2045 = vadd.f32 %v1987, %v2044
      %v2046 = vpop.f32.mrf.mxu0
      %v2047 = vadd.f32 %v1989, %v2046
      %2048 = vmatmul.bf16.gmra.mxu0 %v1569
      %v2049 = vpop.f32.mrf.mxu0
      %v2050 = vadd.f32 %v1992, %v2049
      %v2051 = vpop.f32.mrf.mxu0
      %v2052 = vadd.f32 %v1994, %v2051
      %2053 = vmatmul.bf16.gmra.mxu0 %v1573
      %v2054 = vpop.f32.mrf.mxu0
      %v2055 = vadd.f32 %v1997, %v2054
      %v2056 = vpop.f32.mrf.mxu0
      %v2057 = vadd.f32 %v1999, %v2056
      %2058 = vmatmul.bf16.gmra.mxu0 %v1577
      %v2059 = vpop.f32.mrf.mxu0
      %v2060 = vadd.f32 %v2002, %v2059
      %v2061 = vpop.f32.mrf.mxu0
      %2062 = vdwg.mxu0
      %2063 = vmatpush.bf16.msra.mxu0 %v1874
      %2064 = vmatpush.bf16.msra.mxu0 %v1873
      %2065 = vmatpush.bf16.msra.mxu0 %v1872
      %2066 = vmatpush.bf16.msra.mxu0 %v1871
      %2067 = vmatpush.bf16.msra.mxu0 %v1870
      %2068 = vmatpush.bf16.msra.mxu0 %v1869
      %2069 = vmatpush.bf16.msra.mxu0 %v1868
      %2070 = vmatpush.bf16.msra.mxu0 %v1867
      %2071 = vmatmul.bf16.gmra.mxu0 %v1581
      %v2072 = vpop.f32.mrf.mxu0
      %v2073 = vadd.f32 %v2015, %v2072
      %v2074 = vpop.f32.mrf.mxu0
      %v2075 = vadd.f32 %v2017, %v2074
      %2076 = vmatmul.bf16.gmra.mxu0 %v1585
      %v2077 = vpop.f32.mrf.mxu0
      %v2078 = vadd.f32 %v2020, %v2077
      %v2079 = vpop.f32.mrf.mxu0
      %v2080 = vadd.f32 %v2022, %v2079
      %2081 = vmatmul.bf16.gmra.mxu0 %v1589
      %v2082 = vpop.f32.mrf.mxu0
      %v2083 = vadd.f32 %v2025, %v2082
      %v2084 = vpop.f32.mrf.mxu0
      %v2085 = vadd.f32 %v2027, %v2084
      %2086 = vmatmul.bf16.gmra.mxu0 %v1593
      %v2087 = vpop.f32.mrf.mxu0
      %v2088 = vadd.f32 %v2030, %v2087
      %v2089 = vpop.f32.mrf.mxu0
      %v2090 = vadd.f32 %v2032, %v2089
      %2091 = vmatmul.bf16.gmra.mxu0 %v1597
      %v2092 = vpop.f32.mrf.mxu0
      %v2093 = vadd.f32 %v2035, %v2092
      %v2094 = vpop.f32.mrf.mxu0
      %v2095 = vadd.f32 %v2037, %v2094
      %2096 = vmatmul.bf16.gmra.mxu0 %v1601
      %v2097 = vpop.f32.mrf.mxu0
      %v2098 = vadd.f32 %v2040, %v2097
      %v2099 = vpop.f32.mrf.mxu0
      %v2100 = vadd.f32 %v2042, %v2099
      %2101 = vmatmul.bf16.gmra.mxu0 %v1605
      %v2102 = vpop.f32.mrf.mxu0
      %v2103 = vadd.f32 %v2045, %v2102
      %v2104 = vpop.f32.mrf.mxu0
      %v2105 = vadd.f32 %v2047, %v2104
      %2106 = vmatmul.bf16.gmra.mxu0 %v1609
      %v2107 = vpop.f32.mrf.mxu0
      %v2108 = vadd.f32 %v2050, %v2107
      %v2109 = vpop.f32.mrf.mxu0
      %v2110 = vadd.f32 %v2052, %v2109
      %2111 = vmatmul.bf16.gmra.mxu0 %v1613
      %v2112 = vpop.f32.mrf.mxu0
      %v2113 = vadd.f32 %v2055, %v2112
      %v2114 = vpop.f32.mrf.mxu0
      %v2115 = vadd.f32 %v2057, %v2114
      %2116 = vmatmul.bf16.gmra.mxu0 %v1617
      %v2117 = vpop.f32.mrf.mxu0
      %v2118 = vadd.f32 %v2060, %v2117
      %v2119 = vpop.f32.mrf.mxu0
      %2120 = vdwg.mxu0
      %2121 = vmatpush.bf16.msra.mxu0 %v1882
      %2122 = vmatpush.bf16.msra.mxu0 %v1881
      %2123 = vmatpush.bf16.msra.mxu0 %v1880
      %2124 = vmatpush.bf16.msra.mxu0 %v1879
      %2125 = vmatpush.bf16.msra.mxu0 %v1878
      %2126 = vmatpush.bf16.msra.mxu0 %v1877
      %2127 = vmatpush.bf16.msra.mxu0 %v1876
      %2128 = vmatpush.bf16.msra.mxu0 %v1875
      %2129 = vmatmul.bf16.gmra.mxu0 %v1516
      %v2130 = vpop.f32.mrf.mxu0
      %v2131 = vadd.f32 %v2073, %v2130
      %v2132 = vpop.f32.mrf.mxu0
      %v2133 = vadd.f32 %v2075, %v2132
      %2134 = vmatmul.bf16.gmra.mxu0 %v1519
      %v2135 = vpop.f32.mrf.mxu0
      %v2136 = vadd.f32 %v2078, %v2135
      %v2137 = vpop.f32.mrf.mxu0
      %v2138 = vadd.f32 %v2080, %v2137
      %2139 = vmatmul.bf16.gmra.mxu0 %v1522
      %v2140 = vpop.f32.mrf.mxu0
      %v2141 = vadd.f32 %v2083, %v2140
      %v2142 = vpop.f32.mrf.mxu0
      %v2143 = vadd.f32 %v2085, %v2142
      %2144 = vmatmul.bf16.gmra.mxu0 %v1525
      %v2145 = vpop.f32.mrf.mxu0
      %v2146 = vadd.f32 %v2088, %v2145
      %v2147 = vpop.f32.mrf.mxu0
      %v2148 = vadd.f32 %v2090, %v2147
      %2149 = vmatmul.bf16.gmra.mxu0 %v1528
      %v2150 = vpop.f32.mrf.mxu0
      %v2151 = vadd.f32 %v2093, %v2150
      %v2152 = vpop.f32.mrf.mxu0
      %v2153 = vadd.f32 %v2095, %v2152
      %2154 = vmatmul.bf16.gmra.mxu0 %v1531
      %v2155 = vpop.f32.mrf.mxu0
      %v2156 = vadd.f32 %v2098, %v2155
      %v2157 = vpop.f32.mrf.mxu0
      %v2158 = vadd.f32 %v2100, %v2157
      %2159 = vmatmul.bf16.gmra.mxu0 %v1620
      %v2160 = vpop.f32.mrf.mxu0
      %v2161 = vadd.f32 %v2103, %v2160
      %v2162 = vpop.f32.mrf.mxu0
      %v2163 = vadd.f32 %v2105, %v2162
      %2164 = vmatmul.bf16.gmra.mxu0 %v1623
      %v2165 = vpop.f32.mrf.mxu0
      %v2166 = vadd.f32 %v2108, %v2165
      %v2167 = vpop.f32.mrf.mxu0
      %v2168 = vadd.f32 %v2110, %v2167
      %2169 = vmatmul.bf16.gmra.mxu0 %v1626
      %v2170 = vpop.f32.mrf.mxu0
      %v2171 = vadd.f32 %v2113, %v2170
      %v2172 = vpop.f32.mrf.mxu0
      %v2173 = vadd.f32 %v2115, %v2172
      %2174 = vmatmul.bf16.gmra.mxu0 %v1629
      %v2175 = vpop.f32.mrf.mxu0
      %v2176 = vadd.f32 %v2118, %v2175
      %v2177 = vpop.f32.mrf.mxu0
      %2178 = vdwg.mxu0
      %2179 = vmatpush.bf16.msra.mxu0 0
      %2180 = vmatpush.bf16.msra.mxu0 0
      %2181 = vmatpush.bf16.msra.mxu0 0
      %2182 = vmatpush.bf16.msra.mxu0 0
      %2183 = vmatpush.bf16.msra.mxu0 %v1886
      %2184 = vmatpush.bf16.msra.mxu0 %v1885
      %2185 = vmatpush.bf16.msra.mxu0 %v1884
      %2186 = vmatpush.bf16.msra.mxu0 %v1883
      %2187 = vmatmul.bf16.gmra.mxu0 %v1923
      %v2188 = vpop.f32.mrf.mxu0
      %v2189 = vadd.f32 %v2131, %v2188
      %v2190 = vpop.f32.mrf.mxu0
      %v2191 = vadd.f32 %v2133, %v2190
      %2192 = vmatmul.bf16.gmra.mxu0 %v1925
      %v2193 = vpop.f32.mrf.mxu0
      %v2194 = vadd.f32 %v2136, %v2193
      %v2195 = vpop.f32.mrf.mxu0
      %v2196 = vadd.f32 %v2138, %v2195
      %2197 = vmatmul.bf16.gmra.mxu0 %v1927
      %v2198 = vpop.f32.mrf.mxu0
      %v2199 = vadd.f32 %v2141, %v2198
      %v2200 = vpop.f32.mrf.mxu0
      %v2201 = vadd.f32 %v2143, %v2200
      %2202 = vmatmul.bf16.gmra.mxu0 %v1929
      %v2203 = vpop.f32.mrf.mxu0
      %v2204 = vadd.f32 %v2146, %v2203
      %v2205 = vpop.f32.mrf.mxu0
      %v2206 = vadd.f32 %v2148, %v2205
      %2207 = vmatmul.bf16.gmra.mxu0 %v1931
      %v2208 = vpop.f32.mrf.mxu0
      %v2209 = vadd.f32 %v2151, %v2208
      %v2210 = vpop.f32.mrf.mxu0
      %v2211 = vadd.f32 %v2153, %v2210
      %2212 = vmatmul.bf16.gmra.mxu0 %v1933
      %v2213 = vpop.f32.mrf.mxu0
      %v2214 = vadd.f32 %v2156, %v2213
      %v2215 = vpop.f32.mrf.mxu0
      %v2216 = vadd.f32 %v2158, %v2215
      %2217 = vmatmul.bf16.gmra.mxu0 %v1936
      %v2218 = vpop.f32.mrf.mxu0
      %v2219 = vadd.f32 %v2161, %v2218
      %v2220 = vpop.f32.mrf.mxu0
      %v2221 = vadd.f32 %v2163, %v2220
      %2222 = vmatmul.bf16.gmra.mxu0 %v1939
      %v2223 = vpop.f32.mrf.mxu0
      %v2224 = vadd.f32 %v2166, %v2223
      %v2225 = vpop.f32.mrf.mxu0
      %v2226 = vadd.f32 %v2168, %v2225
      %2227 = vmatmul.bf16.gmra.mxu0 %v1942
      %v2228 = vpop.f32.mrf.mxu0
      %v2229 = vadd.f32 %v2171, %v2228
      %v2230 = vpop.f32.mrf.mxu0
      %v2231 = vadd.f32 %v2173, %v2230
      %2232 = vmatmul.bf16.gmra.mxu0 %v1945
      %v2233 = vpop.f32.mrf.mxu0
      %v2234 = vadd.f32 %v2176, %v2233
      %v2235 = vpop.f32.mrf.mxu0
      %2236 = vdwg.mxu0
      %v2237 = vmax.f32 %v2189, 0.0
      %v2238 = vmax.f32 %v2191, 0.0
      %v2239 = vmax.f32 %v2194, 0.0
      %v2240 = vmax.f32 %v2196, 0.0
      %v2241 = vmax.f32 %v2199, 0.0
      %v2242 = vmax.f32 %v2201, 0.0
      %v2243 = vmax.f32 %v2204, 0.0
      %v2244 = vmax.f32 %v2206, 0.0
      %v2245 = vmax.f32 %v2209, 0.0
      %v2246 = vmax.f32 %v2211, 0.0
      %v2247 = vmax.f32 %v2214, 0.0
      %v2248 = vmax.f32 %v2216, 0.0
      %v2249 = vmax.f32 %v2219, 0.0
      %v2250 = vmax.f32 %v2221, 0.0
      %v2251 = vmax.f32 %v2224, 0.0
      %v2252 = vmax.f32 %v2226, 0.0
      %v2253 = vmax.f32 %v2229, 0.0
      %v2254 = vmax.f32 %v2231, 0.0
      %v2255 = vmax.f32 %v2234, 0.0
      %v2256 = vpack.c.bf16 %v2237, %v2237
      %v2257 = vpack.c.bf16 %v2238, %v2238
      %v2258 = vpack.c.bf16 %v2239, %v2239
      %v2259 = vpack.c.bf16 %v2240, %v2240
      %v2260 = vpack.c.bf16 %v2241, %v2241
      %v2261 = vpack.c.bf16 %v2242, %v2242
      %v2262 = vpack.c.bf16 %v2243, %v2243
      %v2263 = vpack.c.bf16 %v2244, %v2244
      %v2264 = vpack.c.bf16 %v2245, %v2245
      %v2265 = vpack.c.bf16 %v2246, %v2246
      %v2266 = vpack.c.bf16 %v2247, %v2247
      %v2267 = vpack.c.bf16 %v2248, %v2248
      %v2268 = vpack.c.bf16 %v2249, %v2249
      %v2269 = vpack.c.bf16 %v2250, %v2250
      %v2270 = vpack.c.bf16 %v2251, %v2251
      %v2271 = vpack.c.bf16 %v2252, %v2252
      %v2272 = vpack.c.bf16 %v2253, %v2253
      %v2273 = vpack.c.bf16 %v2254, %v2254
      %v2274 = vpack.c.bf16 %v2255, %v2255
      %v2290 = vunpack.c.l.b16 %v2256
      %v2291 = vunpack.c.l.b16 %v2257
      %v2292 = vunpack.c.l.b16 %v2258
      %v2293 = vunpack.c.l.b16 %v2259
      %v2294 = vunpack.c.l.b16 %v2260
      %v2295 = vunpack.c.l.b16 %v2261
      %v2296 = vunpack.c.l.b16 %v2262
      %v2297 = vunpack.c.l.b16 %v2263
      %v2298 = vunpack.c.l.b16 %v2264
      %v2299 = vunpack.c.l.b16 %v2265
      %v2300 = vunpack.c.l.b16 %v2266
      %v2301 = vunpack.c.l.b16 %v2267
      %v2302 = vunpack.c.l.b16 %v2268
      %v2303 = vunpack.c.l.b16 %v2269
      %v2304 = vunpack.c.l.b16 %v2270
      %v2305 = vpack.c.b16 %v2291, %v2290
      %v2306 = vpack.c.b16 %v2293, %v2292
      %v2307 = vpack.c.b16 %v2295, %v2294
      %v2308 = vpack.c.b16 %v2297, %v2296
      %v2309 = vpack.c.b16 %v2299, %v2298
      %v2310 = vpack.c.b16 %v2301, %v2300
      %v2311 = vpack.c.b16 %v2303, %v2302
      %v2312 = vpack.c.b16 %v2304, %v2304
      %v2314 = vshrl.u32 %v2305, 16
      %v2316 = vshll.u32 %v2305, 16
      %v2318 = vrot.slane %v2316, 1
      %v2319 = vor.u32 %v2314, %v2318
      %v2321 = vshll.u32 %v2306, 16
      %v2323 = vrot.slane %v2321, 1
      %v2324 = vsel %vm530, %v2319, %v2323
      %v2325 = vshrl.u32 %v2306, 16
      %v2327 = vor.u32 %v2325, %v2323
      %v2329 = vshll.u32 %v2307, 16
      %v2331 = vrot.slane %v2329, 1
      %v2332 = vsel %vm530, %v2327, %v2331
      %v2333 = vshrl.u32 %v2307, 16
      %v2335 = vor.u32 %v2333, %v2331
      %v2337 = vshll.u32 %v2308, 16
      %v2339 = vrot.slane %v2337, 1
      %v2340 = vsel %vm530, %v2335, %v2339
      %v2341 = vshrl.u32 %v2308, 16
      %v2343 = vor.u32 %v2341, %v2339
      %v2345 = vshll.u32 %v2309, 16
      %v2347 = vrot.slane %v2345, 1
      %v2348 = vsel %vm530, %v2343, %v2347
      %v2349 = vshrl.u32 %v2309, 16
      %v2351 = vor.u32 %v2349, %v2347
      %v2353 = vshll.u32 %v2310, 16
      %v2355 = vrot.slane %v2353, 1
      %v2356 = vsel %vm530, %v2351, %v2355
      %v2357 = vshrl.u32 %v2310, 16
      %v2359 = vor.u32 %v2357, %v2355
      %v2361 = vshll.u32 %v2311, 16
      %v2363 = vrot.slane %v2361, 1
      %v2364 = vsel %vm530, %v2359, %v2363
      %v2365 = vshrl.u32 %v2311, 16
      %v2367 = vor.u32 %v2365, %v2363
      %v2369 = vshll.u32 %v2312, 16
      %v2371 = vrot.slane %v2369, 1
      %v2372 = vsel %vm530, %v2367, %v2371
      %v2373 = vshrl.u32 %v2312, 16
      %v2375 = vor.u32 %v2373, %v2371
      %2376 = vrot.lane.b32.xlu0 %v2324, 64
      %v2377 = vpop.permute.xlu0 %2376
      %2378 = vrot.lane.b32.xlu0 %v2332, 64
      %v2379 = vpop.permute.xlu0 %2378
      %2380 = vrot.lane.b32.xlu0 %v2340, 64
      %v2381 = vpop.permute.xlu0 %2380
      %2382 = vrot.lane.b32.xlu0 %v2348, 64
      %v2383 = vpop.permute.xlu0 %2382
      %2384 = vrot.lane.b32.xlu0 %v2356, 64
      %v2385 = vpop.permute.xlu0 %2384
      %2386 = vrot.lane.b32.xlu0 %v2364, 64
      %v2387 = vpop.permute.xlu0 %2386
      %2388 = vrot.lane.b32.xlu0 %v2372, 64
      %v2389 = vpop.permute.xlu0 %2388
      %2390 = vrot.lane.b32.xlu0 %v2375, 64
      %v2391 = vpop.permute.xlu0 %2390
      %v2392 = vrot.slane %v2305, 1
      %v2393 = vrot.slane %v2306, 1
      %v2394 = vsel %vm650, %v2392, %v2393
      %v2395 = vrot.slane %v2307, 1
      %v2396 = vsel %vm650, %v2393, %v2395
      %v2397 = vrot.slane %v2308, 1
      %v2398 = vsel %vm650, %v2395, %v2397
      %v2399 = vrot.slane %v2309, 1
      %v2400 = vsel %vm650, %v2397, %v2399
      %v2401 = vrot.slane %v2310, 1
      %v2402 = vsel %vm650, %v2399, %v2401
      %v2403 = vrot.slane %v2311, 1
      %v2404 = vsel %vm650, %v2401, %v2403
      %v2405 = vrot.slane %v2312, 1
      %v2406 = vsel %vm650, %v2403, %v2405
      %v2409 = vunpack.c.l.b16 %v2271
      %v2410 = vunpack.c.l.b16 %v2272
      %v2411 = vpack.c.b16 %v2409, %v2304
      %v2412 = vpack.c.b16 %v2410, %v2410
      %2413 = vrot.lane.b32.xlu0 %v2306, 64
      %v2414 = vpop.permute.xlu0 %2413
      %2415 = vrot.lane.b32.xlu0 %v2307, 64
      %v2416 = vpop.permute.xlu0 %2415
      %2417 = vrot.lane.b32.xlu0 %v2308, 64
      %v2418 = vpop.permute.xlu0 %2417
      %2419 = vrot.lane.b32.xlu0 %v2309, 64
      %v2420 = vpop.permute.xlu0 %2419
      %2421 = vrot.lane.b32.xlu0 %v2310, 64
      %v2422 = vpop.permute.xlu0 %2421
      %2423 = vrot.lane.b32.xlu0 %v2311, 64
      %v2424 = vpop.permute.xlu0 %2423
      %2425 = vrot.lane.b32.xlu0 %v2411, 64
      %v2426 = vpop.permute.xlu0 %2425
      %2427 = vrot.lane.b32.xlu0 %v2412, 64
      %v2428 = vpop.permute.xlu0 %2427
      %v2430 = vshll.u32 %v2411, 16
      %v2432 = vrot.slane %v2430, 1
      %v2433 = vsel %vm530, %v2367, %v2432
      %v2434 = vshrl.u32 %v2411, 16
      %v2436 = vor.u32 %v2434, %v2432
      %v2438 = vshll.u32 %v2412, 16
      %v2440 = vrot.slane %v2438, 1
      %v2441 = vsel %vm530, %v2436, %v2440
      %v2442 = vshrl.u32 %v2412, 16
      %v2444 = vor.u32 %v2442, %v2440
      %v2445 = vrot.slane %v2411, 1
      %v2446 = vsel %vm650, %v2403, %v2445
      %v2447 = vrot.slane %v2412, 1
      %v2448 = vsel %vm650, %v2445, %v2447
      %2449 = vrot.lane.b32.xlu0 %v2396, 64
      %v2450 = vpop.permute.xlu0 %2449
      %2451 = vrot.lane.b32.xlu0 %v2398, 64
      %v2452 = vpop.permute.xlu0 %2451
      %2453 = vrot.lane.b32.xlu0 %v2400, 64
      %v2454 = vpop.permute.xlu0 %2453
      %2455 = vrot.lane.b32.xlu0 %v2402, 64
      %v2456 = vpop.permute.xlu0 %2455
      %2457 = vrot.lane.b32.xlu0 %v2404, 64
      %v2458 = vpop.permute.xlu0 %2457
      %2459 = vrot.lane.b32.xlu0 %v2446, 64
      %v2460 = vpop.permute.xlu0 %2459
      %2461 = vrot.lane.b32.xlu0 %v2448, 64
      %v2462 = vpop.permute.xlu0 %2461
      %2463 = vrot.lane.b32.xlu0 %v2447, 64
      %v2464 = vpop.permute.xlu0 %2463
      %v2467 = vunpack.c.l.b16 %v2273
      %v2468 = vunpack.c.l.b16 %v2274
      %v2469 = vpack.c.b16 %v2467, %v2410
      %v2470 = vpack.c.b16 %v2468, %v2468
      %v2472 = vshll.u32 %v2469, 16
      %v2474 = vrot.slane %v2472, 1
      %v2475 = vsel %vm530, %v2436, %v2474
      %v2476 = vshrl.u32 %v2469, 16
      %v2478 = vor.u32 %v2476, %v2474
      %v2480 = vshll.u32 %v2470, 16
      %v2482 = vrot.slane %v2480, 1
      %v2483 = vsel %vm530, %v2478, %v2482
      %v2484 = vshrl.u32 %v2470, 16
      %v2486 = vor.u32 %v2484, %v2482
      %2487 = vrot.lane.b32.xlu0 %v2433, 64
      %v2488 = vpop.permute.xlu0 %2487
      %2489 = vrot.lane.b32.xlu0 %v2475, 64
      %v2490 = vpop.permute.xlu0 %2489
      %2491 = vrot.lane.b32.xlu0 %v2483, 64
      %v2492 = vpop.permute.xlu0 %2491
      %2493 = vrot.lane.b32.xlu0 %v2486, 64
      %v2494 = vpop.permute.xlu0 %2493
      %v2495 = vrot.slane %v2469, 1
      %v2496 = vsel %vm650, %v2445, %v2495
      %v2497 = vrot.slane %v2470, 1
      %v2498 = vsel %vm650, %v2495, %v2497
      %v2500 = vsel %vm1508, %v2305, %v2377
      %v2503 = vsel %vm1508, %v2306, %v2379
      %v2506 = vsel %vm1508, %v2307, %v2381
      %v2509 = vsel %vm1508, %v2308, %v2383
      %v2512 = vsel %vm1508, %v2309, %v2385
      %v2515 = vsel %vm1508, %v2310, %v2387
      %v2518 = vsel %vm1508, %v2311, %v2389
      %v2521 = vsel %vm1508, %v2312, %v2391
      %v2525 = vsel %vm1508, %v2394, %v2414
      %v2529 = vsel %vm1508, %v2396, %v2416
      %v2533 = vsel %vm1508, %v2398, %v2418
      %v2537 = vsel %vm1508, %v2400, %v2420
      %v2541 = vsel %vm1508, %v2402, %v2422
      %v2545 = vsel %vm1508, %v2404, %v2424
      %v2549 = vsel %vm1508, %v2406, %v2426
      %v2553 = vsel %vm1508, %v2405, %v2428
      %v2557 = vsel %vm1508, %v2332, %v2450
      %v2561 = vsel %vm1508, %v2340, %v2452
      %v2565 = vsel %vm1508, %v2348, %v2454
      %v2569 = vsel %vm1508, %v2356, %v2456
      %v2573 = vsel %vm1508, %v2364, %v2458
      %v2577 = vsel %vm1508, %v2433, %v2460
      %v2581 = vsel %vm1508, %v2441, %v2462
      %v2585 = vsel %vm1508, %v2444, %v2464
      %v2588 = vsel %vm1508, %v2311, %v2488
      %v2591 = vsel %vm1508, %v2411, %v2490
      %v2594 = vsel %vm1508, %v2469, %v2492
      %v2597 = vsel %vm1508, %v2470, %v2494
      %v2599 = vld [vmem:[%s5] sm:$0xf]
      %v2600 = vld [vmem:[%s5 + $0x4] sm:$0xf]
      %v2601 = vld [vmem:[%s5 + $0x8] sm:$0xf]
      %v2602 = vld [vmem:[%s5 + $0xc] sm:$0xf]
      %v2603 = vld [vmem:[%s5 + $0x10] sm:$0xf]
      %v2604 = vld [vmem:[%s5 + $0x14] sm:$0xf]
      %v2605 = vld [vmem:[%s5 + $0x18] sm:$0xf]
      %v2606 = vld [vmem:[%s5 + $0x1c] sm:$0xf]
      %v2607 = vld [vmem:[%s5 + $0x20] sm:$0xf]
      %v2608 = vld [vmem:[%s5 + $0x24] sm:$0xf]
      %v2609 = vld [vmem:[%s5 + $0x28] sm:$0xf]
      %v2610 = vld [vmem:[%s5 + $0x2c] sm:$0xf]
      %v2611 = vld [vmem:[%s5 + $0x30] sm:$0xf]
      %v2612 = vld [vmem:[%s5 + $0x34] sm:$0xf]
      %v2613 = vld [vmem:[%s5 + $0x38] sm:$0xf]
      %v2614 = vld [vmem:[%s5 + $0x3c] sm:$0xf]
      %v2615 = vld [vmem:[%s5 + $0x40] sm:$0xf]
      %v2616 = vld [vmem:[%s5 + $0x44] sm:$0xf]
      %v2617 = vld [vmem:[%s5 + $0x48] sm:$0xf]
      %v2618 = vld [vmem:[%s5 + $0x4c] sm:$0xf]
      %v2619 = vld [vmem:[%s5 + $0x50] sm:$0xf]
      %v2620 = vld [vmem:[%s5 + $0x54] sm:$0xf]
      %v2621 = vld [vmem:[%s5 + $0x58] sm:$0xf]
      %v2622 = vld [vmem:[%s5 + $0x5c] sm:$0xf]
      %v2623 = vld [vmem:[%s5 + $0x60] sm:$0xf]
      %v2624 = vld [vmem:[%s5 + $0x64] sm:$0xf]
      %v2625 = vld [vmem:[%s5 + $0x68] sm:$0xf]
      %v2626 = vld [vmem:[%s5 + $0x6c] sm:$0xf]
      %v2627 = vld [vmem:[%s5 + $0x70] sm:$0xf]
      %v2628 = vld [vmem:[%s5 + $0x74] sm:$0xf]
      %v2629 = vld [vmem:[%s5 + $0x78] sm:$0xf]
      %v2630 = vld [vmem:[%s5 + $0x7c] sm:$0xf]
      %v2631 = vld [vmem:[%s5 + $0x80] sm:$0xf]
      %v2632 = vld [vmem:[%s5 + $0x84] sm:$0xf]
      %v2633 = vld [vmem:[%s5 + $0x88] sm:$0xf]
      %v2634 = vld [vmem:[%s5 + $0x8c] sm:$0xf]
      %v2635 = vld [vmem:[%s5 + $0x90] sm:$0xf]
      %v2636 = vld [vmem:[%s5 + $0x94] sm:$0xf]
      %v2637 = vld [vmem:[%s5 + $0x98] sm:$0xf]
      %v2638 = vld [vmem:[%s5 + $0x9c] sm:$0xf]
      %v2639 = vld [vmem:[%s5 + $0xa0] sm:$0xf]
      %v2640 = vld [vmem:[%s5 + $0xa4] sm:$0xf]
      %v2641 = vld [vmem:[%s5 + $0xa8] sm:$0xf]
      %v2642 = vld [vmem:[%s5 + $0xac] sm:$0xf]
      %v2643 = vld [vmem:[%s5 + $0xb0] sm:$0xf]
      %v2644 = vld [vmem:[%s5 + $0xb4] sm:$0xf]
      %v2645 = vld [vmem:[%s5 + $0xb8] sm:$0xf]
      %v2646 = vld [vmem:[%s5 + $0xbc] sm:$0xf]
      %v2647 = vld [vmem:[%s5 + $0xc0] sm:$0xf]
      %v2648 = vld [vmem:[%s5 + $0xc4] sm:$0xf]
      %v2649 = vld [vmem:[%s5 + $0xc8] sm:$0xf]
      %v2650 = vld [vmem:[%s5 + $0xcc] sm:$0xf]
      %v2651 = vld [vmem:[%s5 + $0xd0] sm:$0xf]
      %v2652 = vld [vmem:[%s5 + $0xd4] sm:$0xf]
      %v2653 = vld [vmem:[%s5 + $0xd8] sm:$0xf]
      %v2654 = vld [vmem:[%s5 + $0xdc] sm:$0xf]
      %v2655 = vld [vmem:[%s5 + $0xe0] sm:$0xf]
      %v2656 = vld [vmem:[%s5 + $0xe4] sm:$0xf]
      %v2657 = vld [vmem:[%s5 + $0xe8] sm:$0xf]
      %v2658 = vld [vmem:[%s5 + $0xec] sm:$0xf]
      %v2659 = vld [vmem:[%s5 + $0xf0] sm:$0xf]
      %v2660 = vld [vmem:[%s5 + $0xf4] sm:$0xf]
      %v2661 = vld [vmem:[%s5 + $0xf8] sm:$0xf]
      %v2662 = vld [vmem:[%s5 + $0xfc] sm:$0xf]
      %v2663 = vld [vmem:[%s5 + $0x100] sm:$0xf]
      %v2664 = vld [vmem:[%s5 + $0x104] sm:$0xf]
      %v2665 = vld [vmem:[%s5 + $0x108] sm:$0xf]
      %v2666 = vld [vmem:[%s5 + $0x10c] sm:$0xf]
      %v2667 = vld [vmem:[%s5 + $0x110] sm:$0xf]
      %v2668 = vld [vmem:[%s5 + $0x114] sm:$0xf]
      %v2669 = vld [vmem:[%s5 + $0x118] sm:$0xf]
      %v2670 = vld [vmem:[%s5 + $0x11c] sm:$0xf]
      %v2671 = vld [vmem:[%s6] sm:$0x1]
      %v2673 = vperm.slane %v2671, 0
      %v2747 = vunpack.c.l.b16 %v2599
      %v2748 = vunpack.c.l.b16 %v2600
      %v2749 = vunpack.c.l.b16 %v2601
      %v2750 = vunpack.c.l.b16 %v2602
      %v2751 = vunpack.c.l.b16 %v2603
      %v2752 = vunpack.c.l.b16 %v2604
      %v2753 = vunpack.c.l.b16 %v2605
      %v2754 = vunpack.c.l.b16 %v2606
      %v2755 = vunpack.c.l.b16 %v2607
      %v2756 = vunpack.c.l.b16 %v2608
      %v2757 = vunpack.c.l.b16 %v2609
      %v2758 = vunpack.c.l.b16 %v2610
      %v2759 = vunpack.c.l.b16 %v2611
      %v2760 = vunpack.c.l.b16 %v2612
      %v2761 = vunpack.c.l.b16 %v2613
      %v2762 = vunpack.c.l.b16 %v2614
      %v2763 = vunpack.c.l.b16 %v2615
      %v2764 = vunpack.c.l.b16 %v2616
      %v2765 = vunpack.c.l.b16 %v2617
      %v2766 = vunpack.c.l.b16 %v2618
      %v2767 = vunpack.c.l.b16 %v2619
      %v2768 = vunpack.c.l.b16 %v2620
      %v2769 = vunpack.c.l.b16 %v2621
      %v2770 = vunpack.c.l.b16 %v2622
      %v2771 = vunpack.c.l.b16 %v2623
      %v2772 = vunpack.c.l.b16 %v2624
      %v2773 = vunpack.c.l.b16 %v2625
      %v2774 = vunpack.c.l.b16 %v2626
      %v2775 = vunpack.c.l.b16 %v2627
      %v2776 = vunpack.c.l.b16 %v2628
      %v2777 = vunpack.c.l.b16 %v2629
      %v2778 = vunpack.c.l.b16 %v2630
      %v2779 = vunpack.c.l.b16 %v2631
      %v2780 = vunpack.c.l.b16 %v2632
      %v2781 = vunpack.c.l.b16 %v2633
      %v2782 = vunpack.c.l.b16 %v2634
      %v2783 = vunpack.c.l.b16 %v2635
      %v2784 = vunpack.c.l.b16 %v2636
      %v2785 = vunpack.c.l.b16 %v2637
      %v2786 = vunpack.c.l.b16 %v2638
      %v2787 = vunpack.c.l.b16 %v2639
      %v2788 = vunpack.c.l.b16 %v2640
      %v2789 = vunpack.c.l.b16 %v2641
      %v2790 = vunpack.c.l.b16 %v2642
      %v2791 = vunpack.c.l.b16 %v2643
      %v2792 = vunpack.c.l.b16 %v2644
      %v2793 = vunpack.c.l.b16 %v2645
      %v2794 = vunpack.c.l.b16 %v2646
      %v2795 = vunpack.c.l.b16 %v2647
      %v2796 = vunpack.c.l.b16 %v2648
      %v2797 = vunpack.c.l.b16 %v2649
      %v2798 = vunpack.c.l.b16 %v2650
      %v2799 = vunpack.c.l.b16 %v2651
      %v2800 = vunpack.c.l.b16 %v2652
      %v2801 = vunpack.c.l.b16 %v2653
      %v2802 = vunpack.c.l.b16 %v2654
      %v2803 = vunpack.c.l.b16 %v2655
      %v2804 = vunpack.c.l.b16 %v2656
      %v2805 = vunpack.c.l.b16 %v2657
      %v2806 = vunpack.c.l.b16 %v2658
      %v2807 = vunpack.c.l.b16 %v2659
      %v2808 = vunpack.c.l.b16 %v2660
      %v2809 = vunpack.c.l.b16 %v2661
      %v2810 = vunpack.c.l.b16 %v2662
      %v2811 = vunpack.c.l.b16 %v2663
      %v2812 = vunpack.c.l.b16 %v2664
      %v2813 = vunpack.c.l.b16 %v2665
      %v2814 = vunpack.c.l.b16 %v2666
      %v2815 = vunpack.c.l.b16 %v2667
      %v2816 = vunpack.c.l.b16 %v2668
      %v2817 = vunpack.c.l.b16 %v2669
      %v2818 = vunpack.c.l.b16 %v2670
      %v2819 = vpack.c.b16 %v2748, %v2747
      %v2820 = vpack.c.b16 %v2750, %v2749
      %v2821 = vpack.c.b16 %v2752, %v2751
      %v2822 = vpack.c.b16 %v2754, %v2753
      %v2823 = vpack.c.b16 %v2756, %v2755
      %v2824 = vpack.c.b16 %v2758, %v2757
      %v2825 = vpack.c.b16 %v2760, %v2759
      %v2826 = vpack.c.b16 %v2762, %v2761
      %v2827 = vpack.c.b16 %v2764, %v2763
      %v2828 = vpack.c.b16 %v2766, %v2765
      %v2829 = vpack.c.b16 %v2768, %v2767
      %v2830 = vpack.c.b16 %v2770, %v2769
      %v2831 = vpack.c.b16 %v2772, %v2771
      %v2832 = vpack.c.b16 %v2774, %v2773
      %v2833 = vpack.c.b16 %v2776, %v2775
      %v2834 = vpack.c.b16 %v2778, %v2777
      %v2835 = vpack.c.b16 %v2780, %v2779
      %v2836 = vpack.c.b16 %v2782, %v2781
      %v2837 = vpack.c.b16 %v2784, %v2783
      %v2838 = vpack.c.b16 %v2786, %v2785
      %v2839 = vpack.c.b16 %v2788, %v2787
      %v2840 = vpack.c.b16 %v2790, %v2789
      %v2841 = vpack.c.b16 %v2792, %v2791
      %v2842 = vpack.c.b16 %v2794, %v2793
      %v2843 = vpack.c.b16 %v2796, %v2795
      %v2844 = vpack.c.b16 %v2798, %v2797
      %v2845 = vpack.c.b16 %v2800, %v2799
      %v2846 = vpack.c.b16 %v2802, %v2801
      %v2847 = vpack.c.b16 %v2804, %v2803
      %v2848 = vpack.c.b16 %v2806, %v2805
      %v2849 = vpack.c.b16 %v2808, %v2807
      %v2850 = vpack.c.b16 %v2810, %v2809
      %v2851 = vpack.c.b16 %v2812, %v2811
      %v2852 = vpack.c.b16 %v2814, %v2813
      %v2853 = vpack.c.b16 %v2816, %v2815
      %v2854 = vpack.c.b16 %v2818, %v2817
      %v2891 = vsel %vm1508, %v2398, 0
      %v2893 = vsel %vm1508, %v2400, 0
      %v2895 = vsel %vm1508, %v2402, 0
      %v2897 = vsel %vm1508, %v2404, 0
      %v2900 = vsel %vm1508, %v2446, 0
      %v2903 = vsel %vm1508, %v2496, 0
      %v2906 = vsel %vm1508, %v2498, 0
      %v2909 = vsel %vm1508, %v2497, 0
      %2911 = vmatpush.bf16.msra.mxu0 %v2826
      %2912 = vmatpush.bf16.msra.mxu0 %v2825
      %2913 = vmatpush.bf16.msra.mxu0 %v2824
      %2914 = vmatpush.bf16.msra.mxu0 %v2823
      %2915 = vmatpush.bf16.msra.mxu0 %v2822
      %2916 = vmatpush.bf16.msra.mxu0 %v2821
      %2917 = vmatpush.bf16.msra.mxu0 %v2820
      %2918 = vmatpush.bf16.msra.mxu0 %v2819
      %2919 = vmatmul.bf16.gmra.mxu0 %v2500
      %v2920 = vpop.f32.mrf.mxu0
      %v2921 = vadd.f32 %v2673, %v2920
      %v2922 = vpop.f32.mrf.mxu0
      %v2923 = vadd.f32 %v2673, %v2922
      %2924 = vmatmul.bf16.gmra.mxu0 %v2503
      %v2925 = vpop.f32.mrf.mxu0
      %v2926 = vadd.f32 %v2673, %v2925
      %v2927 = vpop.f32.mrf.mxu0
      %v2928 = vadd.f32 %v2673, %v2927
      %2929 = vmatmul.bf16.gmra.mxu0 %v2506
      %v2930 = vpop.f32.mrf.mxu0
      %v2931 = vadd.f32 %v2673, %v2930
      %v2932 = vpop.f32.mrf.mxu0
      %v2933 = vadd.f32 %v2673, %v2932
      %2934 = vmatmul.bf16.gmra.mxu0 %v2509
      %v2935 = vpop.f32.mrf.mxu0
      %v2936 = vadd.f32 %v2673, %v2935
      %v2937 = vpop.f32.mrf.mxu0
      %v2938 = vadd.f32 %v2673, %v2937
      %2939 = vmatmul.bf16.gmra.mxu0 %v2512
      %v2940 = vpop.f32.mrf.mxu0
      %v2941 = vadd.f32 %v2673, %v2940
      %v2942 = vpop.f32.mrf.mxu0
      %v2943 = vadd.f32 %v2673, %v2942
      %2944 = vmatmul.bf16.gmra.mxu0 %v2515
      %v2945 = vpop.f32.mrf.mxu0
      %v2946 = vadd.f32 %v2673, %v2945
      %v2947 = vpop.f32.mrf.mxu0
      %v2948 = vadd.f32 %v2673, %v2947
      %2949 = vmatmul.bf16.gmra.mxu0 %v2518
      %v2950 = vpop.f32.mrf.mxu0
      %v2951 = vadd.f32 %v2673, %v2950
      %v2952 = vpop.f32.mrf.mxu0
      %v2953 = vadd.f32 %v2673, %v2952
      %2954 = vmatmul.bf16.gmra.mxu0 %v2521
      %v2955 = vpop.f32.mrf.mxu0
      %v2956 = vadd.f32 %v2673, %v2955
      %v2957 = vpop.f32.mrf.mxu0
      %2958 = vdwg.mxu0
      %2959 = vmatpush.bf16.msra.mxu0 %v2834
      %2960 = vmatpush.bf16.msra.mxu0 %v2833
      %2961 = vmatpush.bf16.msra.mxu0 %v2832
      %2962 = vmatpush.bf16.msra.mxu0 %v2831
      %2963 = vmatpush.bf16.msra.mxu0 %v2830
      %2964 = vmatpush.bf16.msra.mxu0 %v2829
      %2965 = vmatpush.bf16.msra.mxu0 %v2828
      %2966 = vmatpush.bf16.msra.mxu0 %v2827
      %2967 = vmatmul.bf16.gmra.mxu0 %v2525
      %v2968 = vpop.f32.mrf.mxu0
      %v2969 = vadd.f32 %v2921, %v2968
      %v2970 = vpop.f32.mrf.mxu0
      %v2971 = vadd.f32 %v2923, %v2970
      %2972 = vmatmul.bf16.gmra.mxu0 %v2529
      %v2973 = vpop.f32.mrf.mxu0
      %v2974 = vadd.f32 %v2926, %v2973
      %v2975 = vpop.f32.mrf.mxu0
      %v2976 = vadd.f32 %v2928, %v2975
      %2977 = vmatmul.bf16.gmra.mxu0 %v2533
      %v2978 = vpop.f32.mrf.mxu0
      %v2979 = vadd.f32 %v2931, %v2978
      %v2980 = vpop.f32.mrf.mxu0
      %v2981 = vadd.f32 %v2933, %v2980
      %2982 = vmatmul.bf16.gmra.mxu0 %v2537
      %v2983 = vpop.f32.mrf.mxu0
      %v2984 = vadd.f32 %v2936, %v2983
      %v2985 = vpop.f32.mrf.mxu0
      %v2986 = vadd.f32 %v2938, %v2985
      %2987 = vmatmul.bf16.gmra.mxu0 %v2541
      %v2988 = vpop.f32.mrf.mxu0
      %v2989 = vadd.f32 %v2941, %v2988
      %v2990 = vpop.f32.mrf.mxu0
      %v2991 = vadd.f32 %v2943, %v2990
      %2992 = vmatmul.bf16.gmra.mxu0 %v2545
      %v2993 = vpop.f32.mrf.mxu0
      %v2994 = vadd.f32 %v2946, %v2993
      %v2995 = vpop.f32.mrf.mxu0
      %v2996 = vadd.f32 %v2948, %v2995
      %2997 = vmatmul.bf16.gmra.mxu0 %v2549
      %v2998 = vpop.f32.mrf.mxu0
      %v2999 = vadd.f32 %v2951, %v2998
      %v3000 = vpop.f32.mrf.mxu0
      %v3001 = vadd.f32 %v2953, %v3000
      %3002 = vmatmul.bf16.gmra.mxu0 %v2553
      %v3003 = vpop.f32.mrf.mxu0
      %v3004 = vadd.f32 %v2956, %v3003
      %v3005 = vpop.f32.mrf.mxu0
      %3006 = vdwg.mxu0
      %3007 = vmatpush.bf16.msra.mxu0 %v2842
      %3008 = vmatpush.bf16.msra.mxu0 %v2841
      %3009 = vmatpush.bf16.msra.mxu0 %v2840
      %3010 = vmatpush.bf16.msra.mxu0 %v2839
      %3011 = vmatpush.bf16.msra.mxu0 %v2838
      %3012 = vmatpush.bf16.msra.mxu0 %v2837
      %3013 = vmatpush.bf16.msra.mxu0 %v2836
      %3014 = vmatpush.bf16.msra.mxu0 %v2835
      %3015 = vmatmul.bf16.gmra.mxu0 %v2557
      %v3016 = vpop.f32.mrf.mxu0
      %v3017 = vadd.f32 %v2969, %v3016
      %v3018 = vpop.f32.mrf.mxu0
      %v3019 = vadd.f32 %v2971, %v3018
      %3020 = vmatmul.bf16.gmra.mxu0 %v2561
      %v3021 = vpop.f32.mrf.mxu0
      %v3022 = vadd.f32 %v2974, %v3021
      %v3023 = vpop.f32.mrf.mxu0
      %v3024 = vadd.f32 %v2976, %v3023
      %3025 = vmatmul.bf16.gmra.mxu0 %v2565
      %v3026 = vpop.f32.mrf.mxu0
      %v3027 = vadd.f32 %v2979, %v3026
      %v3028 = vpop.f32.mrf.mxu0
      %v3029 = vadd.f32 %v2981, %v3028
      %3030 = vmatmul.bf16.gmra.mxu0 %v2569
      %v3031 = vpop.f32.mrf.mxu0
      %v3032 = vadd.f32 %v2984, %v3031
      %v3033 = vpop.f32.mrf.mxu0
      %v3034 = vadd.f32 %v2986, %v3033
      %3035 = vmatmul.bf16.gmra.mxu0 %v2573
      %v3036 = vpop.f32.mrf.mxu0
      %v3037 = vadd.f32 %v2989, %v3036
      %v3038 = vpop.f32.mrf.mxu0
      %v3039 = vadd.f32 %v2991, %v3038
      %3040 = vmatmul.bf16.gmra.mxu0 %v2577
      %v3041 = vpop.f32.mrf.mxu0
      %v3042 = vadd.f32 %v2994, %v3041
      %v3043 = vpop.f32.mrf.mxu0
      %v3044 = vadd.f32 %v2996, %v3043
      %3045 = vmatmul.bf16.gmra.mxu0 %v2581
      %v3046 = vpop.f32.mrf.mxu0
      %v3047 = vadd.f32 %v2999, %v3046
      %v3048 = vpop.f32.mrf.mxu0
      %v3049 = vadd.f32 %v3001, %v3048
      %3050 = vmatmul.bf16.gmra.mxu0 %v2585
      %v3051 = vpop.f32.mrf.mxu0
      %v3052 = vadd.f32 %v3004, %v3051
      %v3053 = vpop.f32.mrf.mxu0
      %3054 = vdwg.mxu0
      %3055 = vmatpush.bf16.msra.mxu0 %v2850
      %3056 = vmatpush.bf16.msra.mxu0 %v2849
      %3057 = vmatpush.bf16.msra.mxu0 %v2848
      %3058 = vmatpush.bf16.msra.mxu0 %v2847
      %3059 = vmatpush.bf16.msra.mxu0 %v2846
      %3060 = vmatpush.bf16.msra.mxu0 %v2845
      %3061 = vmatpush.bf16.msra.mxu0 %v2844
      %3062 = vmatpush.bf16.msra.mxu0 %v2843
      %3063 = vmatmul.bf16.gmra.mxu0 %v2506
      %v3064 = vpop.f32.mrf.mxu0
      %v3065 = vadd.f32 %v3017, %v3064
      %v3066 = vpop.f32.mrf.mxu0
      %v3067 = vadd.f32 %v3019, %v3066
      %3068 = vmatmul.bf16.gmra.mxu0 %v2509
      %v3069 = vpop.f32.mrf.mxu0
      %v3070 = vadd.f32 %v3022, %v3069
      %v3071 = vpop.f32.mrf.mxu0
      %v3072 = vadd.f32 %v3024, %v3071
      %3073 = vmatmul.bf16.gmra.mxu0 %v2512
      %v3074 = vpop.f32.mrf.mxu0
      %v3075 = vadd.f32 %v3027, %v3074
      %v3076 = vpop.f32.mrf.mxu0
      %v3077 = vadd.f32 %v3029, %v3076
      %3078 = vmatmul.bf16.gmra.mxu0 %v2515
      %v3079 = vpop.f32.mrf.mxu0
      %v3080 = vadd.f32 %v3032, %v3079
      %v3081 = vpop.f32.mrf.mxu0
      %v3082 = vadd.f32 %v3034, %v3081
      %3083 = vmatmul.bf16.gmra.mxu0 %v2588
      %v3084 = vpop.f32.mrf.mxu0
      %v3085 = vadd.f32 %v3037, %v3084
      %v3086 = vpop.f32.mrf.mxu0
      %v3087 = vadd.f32 %v3039, %v3086
      %3088 = vmatmul.bf16.gmra.mxu0 %v2591
      %v3089 = vpop.f32.mrf.mxu0
      %v3090 = vadd.f32 %v3042, %v3089
      %v3091 = vpop.f32.mrf.mxu0
      %v3092 = vadd.f32 %v3044, %v3091
      %3093 = vmatmul.bf16.gmra.mxu0 %v2594
      %v3094 = vpop.f32.mrf.mxu0
      %v3095 = vadd.f32 %v3047, %v3094
      %v3096 = vpop.f32.mrf.mxu0
      %v3097 = vadd.f32 %v3049, %v3096
      %3098 = vmatmul.bf16.gmra.mxu0 %v2597
      %v3099 = vpop.f32.mrf.mxu0
      %v3100 = vadd.f32 %v3052, %v3099
      %v3101 = vpop.f32.mrf.mxu0
      %3102 = vdwg.mxu0
      %3103 = vmatpush.bf16.msra.mxu0 0
      %3104 = vmatpush.bf16.msra.mxu0 0
      %3105 = vmatpush.bf16.msra.mxu0 0
      %3106 = vmatpush.bf16.msra.mxu0 0
      %3107 = vmatpush.bf16.msra.mxu0 %v2854
      %3108 = vmatpush.bf16.msra.mxu0 %v2853
      %3109 = vmatpush.bf16.msra.mxu0 %v2852
      %3110 = vmatpush.bf16.msra.mxu0 %v2851
      %3111 = vmatmul.bf16.gmra.mxu0 %v2891
      %v3112 = vpop.f32.mrf.mxu0
      %v3113 = vadd.f32 %v3065, %v3112
      %v3114 = vpop.f32.mrf.mxu0
      %v3115 = vadd.f32 %v3067, %v3114
      %3116 = vmatmul.bf16.gmra.mxu0 %v2893
      %v3117 = vpop.f32.mrf.mxu0
      %v3118 = vadd.f32 %v3070, %v3117
      %v3119 = vpop.f32.mrf.mxu0
      %v3120 = vadd.f32 %v3072, %v3119
      %3121 = vmatmul.bf16.gmra.mxu0 %v2895
      %v3122 = vpop.f32.mrf.mxu0
      %v3123 = vadd.f32 %v3075, %v3122
      %v3124 = vpop.f32.mrf.mxu0
      %v3125 = vadd.f32 %v3077, %v3124
      %3126 = vmatmul.bf16.gmra.mxu0 %v2897
      %v3127 = vpop.f32.mrf.mxu0
      %v3128 = vadd.f32 %v3080, %v3127
      %v3129 = vpop.f32.mrf.mxu0
      %v3130 = vadd.f32 %v3082, %v3129
      %3131 = vmatmul.bf16.gmra.mxu0 %v2900
      %v3132 = vpop.f32.mrf.mxu0
      %v3133 = vadd.f32 %v3085, %v3132
      %v3134 = vpop.f32.mrf.mxu0
      %v3135 = vadd.f32 %v3087, %v3134
      %3136 = vmatmul.bf16.gmra.mxu0 %v2903
      %v3137 = vpop.f32.mrf.mxu0
      %v3138 = vadd.f32 %v3090, %v3137
      %v3139 = vpop.f32.mrf.mxu0
      %v3140 = vadd.f32 %v3092, %v3139
      %3141 = vmatmul.bf16.gmra.mxu0 %v2906
      %v3142 = vpop.f32.mrf.mxu0
      %v3143 = vadd.f32 %v3095, %v3142
      %v3144 = vpop.f32.mrf.mxu0
      %v3145 = vadd.f32 %v3097, %v3144
      %3146 = vmatmul.bf16.gmra.mxu0 %v2909
      %v3147 = vpop.f32.mrf.mxu0
      %v3148 = vadd.f32 %v3100, %v3147
      %v3149 = vpop.f32.mrf.mxu0
      %3150 = vdwg.mxu0
      %v3151 = vmax.f32 %v3113, 0.0
      %v3152 = vmax.f32 %v3115, 0.0
      %v3153 = vmax.f32 %v3118, 0.0
      %v3154 = vmax.f32 %v3120, 0.0
      %v3155 = vmax.f32 %v3123, 0.0
      %v3156 = vmax.f32 %v3125, 0.0
      %v3157 = vmax.f32 %v3128, 0.0
      %v3158 = vmax.f32 %v3130, 0.0
      %v3159 = vmax.f32 %v3133, 0.0
      %v3160 = vmax.f32 %v3135, 0.0
      %v3161 = vmax.f32 %v3138, 0.0
      %v3162 = vmax.f32 %v3140, 0.0
      %v3163 = vmax.f32 %v3143, 0.0
      %v3164 = vmax.f32 %v3145, 0.0
      %v3165 = vmax.f32 %v3148, 0.0
      %v3166 = vpack.c.bf16 %v3151, %v3151
      %v3167 = vpack.c.bf16 %v3152, %v3152
      %v3168 = vpack.c.bf16 %v3153, %v3153
      %v3169 = vpack.c.bf16 %v3154, %v3154
      %v3170 = vpack.c.bf16 %v3155, %v3155
      %v3171 = vpack.c.bf16 %v3156, %v3156
      %v3172 = vpack.c.bf16 %v3157, %v3157
      %v3173 = vpack.c.bf16 %v3158, %v3158
      %v3174 = vpack.c.bf16 %v3159, %v3159
      %v3175 = vpack.c.bf16 %v3160, %v3160
      %v3176 = vpack.c.bf16 %v3161, %v3161
      %v3177 = vpack.c.bf16 %v3162, %v3162
      %v3178 = vpack.c.bf16 %v3163, %v3163
      %v3179 = vpack.c.bf16 %v3164, %v3164
      %v3180 = vpack.c.bf16 %v3165, %v3165
      %v3192 = vunpack.c.l.b16 %v3166
      %v3193 = vunpack.c.l.b16 %v3167
      %v3194 = vunpack.c.l.b16 %v3168
      %v3195 = vunpack.c.l.b16 %v3169
      %v3196 = vunpack.c.l.b16 %v3170
      %v3197 = vunpack.c.l.b16 %v3171
      %v3198 = vunpack.c.l.b16 %v3172
      %v3199 = vunpack.c.l.b16 %v3173
      %v3200 = vunpack.c.l.b16 %v3174
      %v3201 = vunpack.c.l.b16 %v3175
      %v3202 = vunpack.c.l.b16 %v3176
      %v3203 = vpack.c.b16 %v3193, %v3192
      %v3204 = vpack.c.b16 %v3195, %v3194
      %v3205 = vpack.c.b16 %v3197, %v3196
      %v3206 = vpack.c.b16 %v3199, %v3198
      %v3207 = vpack.c.b16 %v3201, %v3200
      %v3208 = vpack.c.b16 %v3202, %v3202
      %v3210 = vshrl.u32 %v3203, 16
      %v3212 = vshll.u32 %v3203, 16
      %v3214 = vrot.slane %v3212, 1
      %v3215 = vor.u32 %v3210, %v3214
      %v3217 = vshll.u32 %v3204, 16
      %v3219 = vrot.slane %v3217, 1
      %v3220 = vsel %vm530, %v3215, %v3219
      %v3221 = vshrl.u32 %v3204, 16
      %v3223 = vor.u32 %v3221, %v3219
      %v3225 = vshll.u32 %v3205, 16
      %v3227 = vrot.slane %v3225, 1
      %v3228 = vsel %vm530, %v3223, %v3227
      %v3229 = vshrl.u32 %v3205, 16
      %v3231 = vor.u32 %v3229, %v3227
      %v3233 = vshll.u32 %v3206, 16
      %v3235 = vrot.slane %v3233, 1
      %v3236 = vsel %vm530, %v3231, %v3235
      %v3237 = vshrl.u32 %v3206, 16
      %v3239 = vor.u32 %v3237, %v3235
      %v3241 = vshll.u32 %v3207, 16
      %v3243 = vrot.slane %v3241, 1
      %v3244 = vsel %vm530, %v3239, %v3243
      %v3245 = vshrl.u32 %v3207, 16
      %v3247 = vor.u32 %v3245, %v3243
      %v3249 = vshll.u32 %v3208, 16
      %v3251 = vrot.slane %v3249, 1
      %v3252 = vsel %vm530, %v3247, %v3251
      %v3253 = vshrl.u32 %v3208, 16
      %v3255 = vor.u32 %v3253, %v3251
      %3256 = vrot.lane.b32.xlu0 %v3220, 64
      %v3257 = vpop.permute.xlu0 %3256
      %3258 = vrot.lane.b32.xlu0 %v3228, 64
      %v3259 = vpop.permute.xlu0 %3258
      %3260 = vrot.lane.b32.xlu0 %v3236, 64
      %v3261 = vpop.permute.xlu0 %3260
      %3262 = vrot.lane.b32.xlu0 %v3244, 64
      %v3263 = vpop.permute.xlu0 %3262
      %3264 = vrot.lane.b32.xlu0 %v3252, 64
      %v3265 = vpop.permute.xlu0 %3264
      %3266 = vrot.lane.b32.xlu0 %v3255, 64
      %v3267 = vpop.permute.xlu0 %3266
      %v3268 = vrot.slane %v3203, 1
      %v3269 = vrot.slane %v3204, 1
      %v3270 = vsel %vm650, %v3268, %v3269
      %v3271 = vrot.slane %v3205, 1
      %v3272 = vsel %vm650, %v3269, %v3271
      %v3273 = vrot.slane %v3206, 1
      %v3274 = vsel %vm650, %v3271, %v3273
      %v3275 = vrot.slane %v3207, 1
      %v3276 = vsel %vm650, %v3273, %v3275
      %v3277 = vrot.slane %v3208, 1
      %v3278 = vsel %vm650, %v3275, %v3277
      %v3281 = vunpack.c.l.b16 %v3177
      %v3282 = vunpack.c.l.b16 %v3178
      %v3283 = vpack.c.b16 %v3281, %v3202
      %v3284 = vpack.c.b16 %v3282, %v3282
      %3285 = vrot.lane.b32.xlu0 %v3204, 64
      %v3286 = vpop.permute.xlu0 %3285
      %3287 = vrot.lane.b32.xlu0 %v3205, 64
      %v3288 = vpop.permute.xlu0 %3287
      %3289 = vrot.lane.b32.xlu0 %v3206, 64
      %v3290 = vpop.permute.xlu0 %3289
      %3291 = vrot.lane.b32.xlu0 %v3207, 64
      %v3292 = vpop.permute.xlu0 %3291
      %3293 = vrot.lane.b32.xlu0 %v3283, 64
      %v3294 = vpop.permute.xlu0 %3293
      %3295 = vrot.lane.b32.xlu0 %v3284, 64
      %v3296 = vpop.permute.xlu0 %3295
      %v3298 = vshll.u32 %v3283, 16
      %v3300 = vrot.slane %v3298, 1
      %v3301 = vsel %vm530, %v3247, %v3300
      %v3302 = vshrl.u32 %v3283, 16
      %v3304 = vor.u32 %v3302, %v3300
      %v3306 = vshll.u32 %v3284, 16
      %v3308 = vrot.slane %v3306, 1
      %v3309 = vsel %vm530, %v3304, %v3308
      %v3310 = vshrl.u32 %v3284, 16
      %v3312 = vor.u32 %v3310, %v3308
      %v3313 = vrot.slane %v3283, 1
      %v3314 = vsel %vm650, %v3275, %v3313
      %v3315 = vrot.slane %v3284, 1
      %v3316 = vsel %vm650, %v3313, %v3315
      %3317 = vrot.lane.b32.xlu0 %v3272, 64
      %v3318 = vpop.permute.xlu0 %3317
      %3319 = vrot.lane.b32.xlu0 %v3274, 64
      %v3320 = vpop.permute.xlu0 %3319
      %3321 = vrot.lane.b32.xlu0 %v3276, 64
      %v3322 = vpop.permute.xlu0 %3321
      %3323 = vrot.lane.b32.xlu0 %v3314, 64
      %v3324 = vpop.permute.xlu0 %3323
      %3325 = vrot.lane.b32.xlu0 %v3316, 64
      %v3326 = vpop.permute.xlu0 %3325
      %3327 = vrot.lane.b32.xlu0 %v3315, 64
      %v3328 = vpop.permute.xlu0 %3327
      %v3331 = vunpack.c.l.b16 %v3179
      %v3332 = vunpack.c.l.b16 %v3180
      %v3333 = vpack.c.b16 %v3331, %v3282
      %v3334 = vpack.c.b16 %v3332, %v3332
      %v3336 = vshll.u32 %v3333, 16
      %v3338 = vrot.slane %v3336, 1
      %v3339 = vsel %vm530, %v3304, %v3338
      %v3340 = vshrl.u32 %v3333, 16
      %v3342 = vor.u32 %v3340, %v3338
      %v3344 = vshll.u32 %v3334, 16
      %v3346 = vrot.slane %v3344, 1
      %v3347 = vsel %vm530, %v3342, %v3346
      %v3348 = vshrl.u32 %v3334, 16
      %v3350 = vor.u32 %v3348, %v3346
      %3351 = vrot.lane.b32.xlu0 %v3301, 64
      %v3352 = vpop.permute.xlu0 %3351
      %3353 = vrot.lane.b32.xlu0 %v3339, 64
      %v3354 = vpop.permute.xlu0 %3353
      %3355 = vrot.lane.b32.xlu0 %v3347, 64
      %v3356 = vpop.permute.xlu0 %3355
      %3357 = vrot.lane.b32.xlu0 %v3350, 64
      %v3358 = vpop.permute.xlu0 %3357
      %v3359 = vrot.slane %v3333, 1
      %v3360 = vsel %vm650, %v3313, %v3359
      %v3361 = vrot.slane %v3334, 1
      %v3362 = vsel %vm650, %v3359, %v3361
      %v3364 = vsel %vm1508, %v3203, %v3257
      %v3367 = vsel %vm1508, %v3204, %v3259
      %v3370 = vsel %vm1508, %v3205, %v3261
      %v3373 = vsel %vm1508, %v3206, %v3263
      %v3376 = vsel %vm1508, %v3207, %v3265
      %v3379 = vsel %vm1508, %v3208, %v3267
      %v3383 = vsel %vm1508, %v3270, %v3286
      %v3387 = vsel %vm1508, %v3272, %v3288
      %v3391 = vsel %vm1508, %v3274, %v3290
      %v3395 = vsel %vm1508, %v3276, %v3292
      %v3399 = vsel %vm1508, %v3278, %v3294
      %v3403 = vsel %vm1508, %v3277, %v3296
      %v3407 = vsel %vm1508, %v3228, %v3318
      %v3411 = vsel %vm1508, %v3236, %v3320
      %v3415 = vsel %vm1508, %v3244, %v3322
      %v3419 = vsel %vm1508, %v3301, %v3324
      %v3423 = vsel %vm1508, %v3309, %v3326
      %v3427 = vsel %vm1508, %v3312, %v3328
      %v3430 = vsel %vm1508, %v3207, %v3352
      %v3433 = vsel %vm1508, %v3283, %v3354
      %v3436 = vsel %vm1508, %v3333, %v3356
      %v3439 = vsel %vm1508, %v3334, %v3358
      %v3441 = vld [vmem:[%s7] sm:$0xf]
      %v3442 = vld [vmem:[%s7 + $0x4] sm:$0xf]
      %v3443 = vld [vmem:[%s7 + $0x8] sm:$0xf]
      %v3444 = vld [vmem:[%s7 + $0xc] sm:$0xf]
      %v3445 = vld [vmem:[%s7 + $0x10] sm:$0xf]
      %v3446 = vld [vmem:[%s7 + $0x14] sm:$0xf]
      %v3447 = vld [vmem:[%s7 + $0x18] sm:$0xf]
      %v3448 = vld [vmem:[%s7 + $0x1c] sm:$0xf]
      %v3449 = vld [vmem:[%s7 + $0x20] sm:$0xf]
      %v3450 = vld [vmem:[%s7 + $0x24] sm:$0xf]
      %v3451 = vld [vmem:[%s7 + $0x28] sm:$0xf]
      %v3452 = vld [vmem:[%s7 + $0x2c] sm:$0xf]
      %v3453 = vld [vmem:[%s7 + $0x30] sm:$0xf]
      %v3454 = vld [vmem:[%s7 + $0x34] sm:$0xf]
      %v3455 = vld [vmem:[%s7 + $0x38] sm:$0xf]
      %v3456 = vld [vmem:[%s7 + $0x3c] sm:$0xf]
      %v3457 = vld [vmem:[%s7 + $0x40] sm:$0xf]
      %v3458 = vld [vmem:[%s7 + $0x44] sm:$0xf]
      %v3459 = vld [vmem:[%s7 + $0x48] sm:$0xf]
      %v3460 = vld [vmem:[%s7 + $0x4c] sm:$0xf]
      %v3461 = vld [vmem:[%s7 + $0x50] sm:$0xf]
      %v3462 = vld [vmem:[%s7 + $0x54] sm:$0xf]
      %v3463 = vld [vmem:[%s7 + $0x58] sm:$0xf]
      %v3464 = vld [vmem:[%s7 + $0x5c] sm:$0xf]
      %v3465 = vld [vmem:[%s7 + $0x60] sm:$0xf]
      %v3466 = vld [vmem:[%s7 + $0x64] sm:$0xf]
      %v3467 = vld [vmem:[%s7 + $0x68] sm:$0xf]
      %v3468 = vld [vmem:[%s7 + $0x6c] sm:$0xf]
      %v3469 = vld [vmem:[%s7 + $0x70] sm:$0xf]
      %v3470 = vld [vmem:[%s7 + $0x74] sm:$0xf]
      %v3471 = vld [vmem:[%s7 + $0x78] sm:$0xf]
      %v3472 = vld [vmem:[%s7 + $0x7c] sm:$0xf]
      %v3473 = vld [vmem:[%s7 + $0x80] sm:$0xf]
      %v3474 = vld [vmem:[%s7 + $0x84] sm:$0xf]
      %v3475 = vld [vmem:[%s7 + $0x88] sm:$0xf]
      %v3476 = vld [vmem:[%s7 + $0x8c] sm:$0xf]
      %v3477 = vld [vmem:[%s7 + $0x90] sm:$0xf]
      %v3478 = vld [vmem:[%s7 + $0x94] sm:$0xf]
      %v3479 = vld [vmem:[%s7 + $0x98] sm:$0xf]
      %v3480 = vld [vmem:[%s7 + $0x9c] sm:$0xf]
      %v3481 = vld [vmem:[%s7 + $0xa0] sm:$0xf]
      %v3482 = vld [vmem:[%s7 + $0xa4] sm:$0xf]
      %v3483 = vld [vmem:[%s7 + $0xa8] sm:$0xf]
      %v3484 = vld [vmem:[%s7 + $0xac] sm:$0xf]
      %v3485 = vld [vmem:[%s7 + $0xb0] sm:$0xf]
      %v3486 = vld [vmem:[%s7 + $0xb4] sm:$0xf]
      %v3487 = vld [vmem:[%s7 + $0xb8] sm:$0xf]
      %v3488 = vld [vmem:[%s7 + $0xbc] sm:$0xf]
      %v3489 = vld [vmem:[%s7 + $0xc0] sm:$0xf]
      %v3490 = vld [vmem:[%s7 + $0xc4] sm:$0xf]
      %v3491 = vld [vmem:[%s7 + $0xc8] sm:$0xf]
      %v3492 = vld [vmem:[%s7 + $0xcc] sm:$0xf]
      %v3493 = vld [vmem:[%s7 + $0xd0] sm:$0xf]
      %v3494 = vld [vmem:[%s7 + $0xd4] sm:$0xf]
      %v3495 = vld [vmem:[%s7 + $0xd8] sm:$0xf]
      %v3496 = vld [vmem:[%s7 + $0xdc] sm:$0xf]
      %v3497 = vld [vmem:[%s7 + $0xe0] sm:$0xf]
      %v3498 = vld [vmem:[%s7 + $0xe4] sm:$0xf]
      %v3499 = vld [vmem:[%s7 + $0xe8] sm:$0xf]
      %v3500 = vld [vmem:[%s7 + $0xec] sm:$0xf]
      %v3501 = vld [vmem:[%s7 + $0xf0] sm:$0xf]
      %v3502 = vld [vmem:[%s7 + $0xf4] sm:$0xf]
      %v3503 = vld [vmem:[%s7 + $0xf8] sm:$0xf]
      %v3504 = vld [vmem:[%s7 + $0xfc] sm:$0xf]
      %v3505 = vld [vmem:[%s7 + $0x100] sm:$0xf]
      %v3506 = vld [vmem:[%s7 + $0x104] sm:$0xf]
      %v3507 = vld [vmem:[%s7 + $0x108] sm:$0xf]
      %v3508 = vld [vmem:[%s7 + $0x10c] sm:$0xf]
      %v3509 = vld [vmem:[%s7 + $0x110] sm:$0xf]
      %v3510 = vld [vmem:[%s7 + $0x114] sm:$0xf]
      %v3511 = vld [vmem:[%s7 + $0x118] sm:$0xf]
      %v3512 = vld [vmem:[%s7 + $0x11c] sm:$0xf]
      %v3513 = vld [vmem:[%s8] sm:$0x1]
      %v3515 = vperm.slane %v3513, 0
      %v3589 = vunpack.c.l.b16 %v3441
      %v3590 = vunpack.c.l.b16 %v3442
      %v3591 = vunpack.c.l.b16 %v3443
      %v3592 = vunpack.c.l.b16 %v3444
      %v3593 = vunpack.c.l.b16 %v3445
      %v3594 = vunpack.c.l.b16 %v3446
      %v3595 = vunpack.c.l.b16 %v3447
      %v3596 = vunpack.c.l.b16 %v3448
      %v3597 = vunpack.c.l.b16 %v3449
      %v3598 = vunpack.c.l.b16 %v3450
      %v3599 = vunpack.c.l.b16 %v3451
      %v3600 = vunpack.c.l.b16 %v3452
      %v3601 = vunpack.c.l.b16 %v3453
      %v3602 = vunpack.c.l.b16 %v3454
      %v3603 = vunpack.c.l.b16 %v3455
      %v3604 = vunpack.c.l.b16 %v3456
      %v3605 = vunpack.c.l.b16 %v3457
      %v3606 = vunpack.c.l.b16 %v3458
      %v3607 = vunpack.c.l.b16 %v3459
      %v3608 = vunpack.c.l.b16 %v3460
      %v3609 = vunpack.c.l.b16 %v3461
      %v3610 = vunpack.c.l.b16 %v3462
      %v3611 = vunpack.c.l.b16 %v3463
      %v3612 = vunpack.c.l.b16 %v3464
      %v3613 = vunpack.c.l.b16 %v3465
      %v3614 = vunpack.c.l.b16 %v3466
      %v3615 = vunpack.c.l.b16 %v3467
      %v3616 = vunpack.c.l.b16 %v3468
      %v3617 = vunpack.c.l.b16 %v3469
      %v3618 = vunpack.c.l.b16 %v3470
      %v3619 = vunpack.c.l.b16 %v3471
      %v3620 = vunpack.c.l.b16 %v3472
      %v3621 = vunpack.c.l.b16 %v3473
      %v3622 = vunpack.c.l.b16 %v3474
      %v3623 = vunpack.c.l.b16 %v3475
      %v3624 = vunpack.c.l.b16 %v3476
      %v3625 = vunpack.c.l.b16 %v3477
      %v3626 = vunpack.c.l.b16 %v3478
      %v3627 = vunpack.c.l.b16 %v3479
      %v3628 = vunpack.c.l.b16 %v3480
      %v3629 = vunpack.c.l.b16 %v3481
      %v3630 = vunpack.c.l.b16 %v3482
      %v3631 = vunpack.c.l.b16 %v3483
      %v3632 = vunpack.c.l.b16 %v3484
      %v3633 = vunpack.c.l.b16 %v3485
      %v3634 = vunpack.c.l.b16 %v3486
      %v3635 = vunpack.c.l.b16 %v3487
      %v3636 = vunpack.c.l.b16 %v3488
      %v3637 = vunpack.c.l.b16 %v3489
      %v3638 = vunpack.c.l.b16 %v3490
      %v3639 = vunpack.c.l.b16 %v3491
      %v3640 = vunpack.c.l.b16 %v3492
      %v3641 = vunpack.c.l.b16 %v3493
      %v3642 = vunpack.c.l.b16 %v3494
      %v3643 = vunpack.c.l.b16 %v3495
      %v3644 = vunpack.c.l.b16 %v3496
      %v3645 = vunpack.c.l.b16 %v3497
      %v3646 = vunpack.c.l.b16 %v3498
      %v3647 = vunpack.c.l.b16 %v3499
      %v3648 = vunpack.c.l.b16 %v3500
      %v3649 = vunpack.c.l.b16 %v3501
      %v3650 = vunpack.c.l.b16 %v3502
      %v3651 = vunpack.c.l.b16 %v3503
      %v3652 = vunpack.c.l.b16 %v3504
      %v3653 = vunpack.c.l.b16 %v3505
      %v3654 = vunpack.c.l.b16 %v3506
      %v3655 = vunpack.c.l.b16 %v3507
      %v3656 = vunpack.c.l.b16 %v3508
      %v3657 = vunpack.c.l.b16 %v3509
      %v3658 = vunpack.c.l.b16 %v3510
      %v3659 = vunpack.c.l.b16 %v3511
      %v3660 = vunpack.c.l.b16 %v3512
      %v3661 = vpack.c.b16 %v3590, %v3589
      %v3662 = vpack.c.b16 %v3592, %v3591
      %v3663 = vpack.c.b16 %v3594, %v3593
      %v3664 = vpack.c.b16 %v3596, %v3595
      %v3665 = vpack.c.b16 %v3598, %v3597
      %v3666 = vpack.c.b16 %v3600, %v3599
      %v3667 = vpack.c.b16 %v3602, %v3601
      %v3668 = vpack.c.b16 %v3604, %v3603
      %v3669 = vpack.c.b16 %v3606, %v3605
      %v3670 = vpack.c.b16 %v3608, %v3607
      %v3671 = vpack.c.b16 %v3610, %v3609
      %v3672 = vpack.c.b16 %v3612, %v3611
      %v3673 = vpack.c.b16 %v3614, %v3613
      %v3674 = vpack.c.b16 %v3616, %v3615
      %v3675 = vpack.c.b16 %v3618, %v3617
      %v3676 = vpack.c.b16 %v3620, %v3619
      %v3677 = vpack.c.b16 %v3622, %v3621
      %v3678 = vpack.c.b16 %v3624, %v3623
      %v3679 = vpack.c.b16 %v3626, %v3625
      %v3680 = vpack.c.b16 %v3628, %v3627
      %v3681 = vpack.c.b16 %v3630, %v3629
      %v3682 = vpack.c.b16 %v3632, %v3631
      %v3683 = vpack.c.b16 %v3634, %v3633
      %v3684 = vpack.c.b16 %v3636, %v3635
      %v3685 = vpack.c.b16 %v3638, %v3637
      %v3686 = vpack.c.b16 %v3640, %v3639
      %v3687 = vpack.c.b16 %v3642, %v3641
      %v3688 = vpack.c.b16 %v3644, %v3643
      %v3689 = vpack.c.b16 %v3646, %v3645
      %v3690 = vpack.c.b16 %v3648, %v3647
      %v3691 = vpack.c.b16 %v3650, %v3649
      %v3692 = vpack.c.b16 %v3652, %v3651
      %v3693 = vpack.c.b16 %v3654, %v3653
      %v3694 = vpack.c.b16 %v3656, %v3655
      %v3695 = vpack.c.b16 %v3658, %v3657
      %v3696 = vpack.c.b16 %v3660, %v3659
      %v3733 = vsel %vm1508, %v3274, 0
      %v3735 = vsel %vm1508, %v3276, 0
      %v3738 = vsel %vm1508, %v3314, 0
      %v3741 = vsel %vm1508, %v3360, 0
      %v3744 = vsel %vm1508, %v3362, 0
      %v3747 = vsel %vm1508, %v3361, 0
      %3749 = vmatpush.bf16.msra.mxu0 %v3668
      %3750 = vmatpush.bf16.msra.mxu0 %v3667
      %3751 = vmatpush.bf16.msra.mxu0 %v3666
      %3752 = vmatpush.bf16.msra.mxu0 %v3665
      %3753 = vmatpush.bf16.msra.mxu0 %v3664
      %3754 = vmatpush.bf16.msra.mxu0 %v3663
      %3755 = vmatpush.bf16.msra.mxu0 %v3662
      %3756 = vmatpush.bf16.msra.mxu0 %v3661
      %3757 = vmatmul.bf16.gmra.mxu0 %v3364
      %v3758 = vpop.f32.mrf.mxu0
      %v3759 = vadd.f32 %v3515, %v3758
      %v3760 = vpop.f32.mrf.mxu0
      %v3761 = vadd.f32 %v3515, %v3760
      %3762 = vmatmul.bf16.gmra.mxu0 %v3367
      %v3763 = vpop.f32.mrf.mxu0
      %v3764 = vadd.f32 %v3515, %v3763
      %v3765 = vpop.f32.mrf.mxu0
      %v3766 = vadd.f32 %v3515, %v3765
      %3767 = vmatmul.bf16.gmra.mxu0 %v3370
      %v3768 = vpop.f32.mrf.mxu0
      %v3769 = vadd.f32 %v3515, %v3768
      %v3770 = vpop.f32.mrf.mxu0
      %v3771 = vadd.f32 %v3515, %v3770
      %3772 = vmatmul.bf16.gmra.mxu0 %v3373
      %v3773 = vpop.f32.mrf.mxu0
      %v3774 = vadd.f32 %v3515, %v3773
      %v3775 = vpop.f32.mrf.mxu0
      %v3776 = vadd.f32 %v3515, %v3775
      %3777 = vmatmul.bf16.gmra.mxu0 %v3376
      %v3778 = vpop.f32.mrf.mxu0
      %v3779 = vadd.f32 %v3515, %v3778
      %v3780 = vpop.f32.mrf.mxu0
      %v3781 = vadd.f32 %v3515, %v3780
      %3782 = vmatmul.bf16.gmra.mxu0 %v3379
      %v3783 = vpop.f32.mrf.mxu0
      %v3784 = vadd.f32 %v3515, %v3783
      %v3785 = vpop.f32.mrf.mxu0
      %3786 = vdwg.mxu0
      %3787 = vmatpush.bf16.msra.mxu0 %v3676
      %3788 = vmatpush.bf16.msra.mxu0 %v3675
      %3789 = vmatpush.bf16.msra.mxu0 %v3674
      %3790 = vmatpush.bf16.msra.mxu0 %v3673
      %3791 = vmatpush.bf16.msra.mxu0 %v3672
      %3792 = vmatpush.bf16.msra.mxu0 %v3671
      %3793 = vmatpush.bf16.msra.mxu0 %v3670
      %3794 = vmatpush.bf16.msra.mxu0 %v3669
      %3795 = vmatmul.bf16.gmra.mxu0 %v3383
      %v3796 = vpop.f32.mrf.mxu0
      %v3797 = vadd.f32 %v3759, %v3796
      %v3798 = vpop.f32.mrf.mxu0
      %v3799 = vadd.f32 %v3761, %v3798
      %3800 = vmatmul.bf16.gmra.mxu0 %v3387
      %v3801 = vpop.f32.mrf.mxu0
      %v3802 = vadd.f32 %v3764, %v3801
      %v3803 = vpop.f32.mrf.mxu0
      %v3804 = vadd.f32 %v3766, %v3803
      %3805 = vmatmul.bf16.gmra.mxu0 %v3391
      %v3806 = vpop.f32.mrf.mxu0
      %v3807 = vadd.f32 %v3769, %v3806
      %v3808 = vpop.f32.mrf.mxu0
      %v3809 = vadd.f32 %v3771, %v3808
      %3810 = vmatmul.bf16.gmra.mxu0 %v3395
      %v3811 = vpop.f32.mrf.mxu0
      %v3812 = vadd.f32 %v3774, %v3811
      %v3813 = vpop.f32.mrf.mxu0
      %v3814 = vadd.f32 %v3776, %v3813
      %3815 = vmatmul.bf16.gmra.mxu0 %v3399
      %v3816 = vpop.f32.mrf.mxu0
      %v3817 = vadd.f32 %v3779, %v3816
      %v3818 = vpop.f32.mrf.mxu0
      %v3819 = vadd.f32 %v3781, %v3818
      %3820 = vmatmul.bf16.gmra.mxu0 %v3403
      %v3821 = vpop.f32.mrf.mxu0
      %v3822 = vadd.f32 %v3784, %v3821
      %v3823 = vpop.f32.mrf.mxu0
      %3824 = vdwg.mxu0
      %3825 = vmatpush.bf16.msra.mxu0 %v3684
      %3826 = vmatpush.bf16.msra.mxu0 %v3683
      %3827 = vmatpush.bf16.msra.mxu0 %v3682
      %3828 = vmatpush.bf16.msra.mxu0 %v3681
      %3829 = vmatpush.bf16.msra.mxu0 %v3680
      %3830 = vmatpush.bf16.msra.mxu0 %v3679
      %3831 = vmatpush.bf16.msra.mxu0 %v3678
      %3832 = vmatpush.bf16.msra.mxu0 %v3677
      %3833 = vmatmul.bf16.gmra.mxu0 %v3407
      %v3834 = vpop.f32.mrf.mxu0
      %v3835 = vadd.f32 %v3797, %v3834
      %v3836 = vpop.f32.mrf.mxu0
      %v3837 = vadd.f32 %v3799, %v3836
      %3838 = vmatmul.bf16.gmra.mxu0 %v3411
      %v3839 = vpop.f32.mrf.mxu0
      %v3840 = vadd.f32 %v3802, %v3839
      %v3841 = vpop.f32.mrf.mxu0
      %v3842 = vadd.f32 %v3804, %v3841
      %3843 = vmatmul.bf16.gmra.mxu0 %v3415
      %v3844 = vpop.f32.mrf.mxu0
      %v3845 = vadd.f32 %v3807, %v3844
      %v3846 = vpop.f32.mrf.mxu0
      %v3847 = vadd.f32 %v3809, %v3846
      %3848 = vmatmul.bf16.gmra.mxu0 %v3419
      %v3849 = vpop.f32.mrf.mxu0
      %v3850 = vadd.f32 %v3812, %v3849
      %v3851 = vpop.f32.mrf.mxu0
      %v3852 = vadd.f32 %v3814, %v3851
      %3853 = vmatmul.bf16.gmra.mxu0 %v3423
      %v3854 = vpop.f32.mrf.mxu0
      %v3855 = vadd.f32 %v3817, %v3854
      %v3856 = vpop.f32.mrf.mxu0
      %v3857 = vadd.f32 %v3819, %v3856
      %3858 = vmatmul.bf16.gmra.mxu0 %v3427
      %v3859 = vpop.f32.mrf.mxu0
      %v3860 = vadd.f32 %v3822, %v3859
      %v3861 = vpop.f32.mrf.mxu0
      %3862 = vdwg.mxu0
      %3863 = vmatpush.bf16.msra.mxu0 %v3692
      %3864 = vmatpush.bf16.msra.mxu0 %v3691
      %3865 = vmatpush.bf16.msra.mxu0 %v3690
      %3866 = vmatpush.bf16.msra.mxu0 %v3689
      %3867 = vmatpush.bf16.msra.mxu0 %v3688
      %3868 = vmatpush.bf16.msra.mxu0 %v3687
      %3869 = vmatpush.bf16.msra.mxu0 %v3686
      %3870 = vmatpush.bf16.msra.mxu0 %v3685
      %3871 = vmatmul.bf16.gmra.mxu0 %v3370
      %v3872 = vpop.f32.mrf.mxu0
      %v3873 = vadd.f32 %v3835, %v3872
      %v3874 = vpop.f32.mrf.mxu0
      %v3875 = vadd.f32 %v3837, %v3874
      %3876 = vmatmul.bf16.gmra.mxu0 %v3373
      %v3877 = vpop.f32.mrf.mxu0
      %v3878 = vadd.f32 %v3840, %v3877
      %v3879 = vpop.f32.mrf.mxu0
      %v3880 = vadd.f32 %v3842, %v3879
      %3881 = vmatmul.bf16.gmra.mxu0 %v3430
      %v3882 = vpop.f32.mrf.mxu0
      %v3883 = vadd.f32 %v3845, %v3882
      %v3884 = vpop.f32.mrf.mxu0
      %v3885 = vadd.f32 %v3847, %v3884
      %3886 = vmatmul.bf16.gmra.mxu0 %v3433
      %v3887 = vpop.f32.mrf.mxu0
      %v3888 = vadd.f32 %v3850, %v3887
      %v3889 = vpop.f32.mrf.mxu0
      %v3890 = vadd.f32 %v3852, %v3889
      %3891 = vmatmul.bf16.gmra.mxu0 %v3436
      %v3892 = vpop.f32.mrf.mxu0
      %v3893 = vadd.f32 %v3855, %v3892
      %v3894 = vpop.f32.mrf.mxu0
      %v3895 = vadd.f32 %v3857, %v3894
      %3896 = vmatmul.bf16.gmra.mxu0 %v3439
      %v3897 = vpop.f32.mrf.mxu0
      %v3898 = vadd.f32 %v3860, %v3897
      %v3899 = vpop.f32.mrf.mxu0
      %3900 = vdwg.mxu0
      %3901 = vmatpush.bf16.msra.mxu0 0
      %3902 = vmatpush.bf16.msra.mxu0 0
      %3903 = vmatpush.bf16.msra.mxu0 0
      %3904 = vmatpush.bf16.msra.mxu0 0
      %3905 = vmatpush.bf16.msra.mxu0 %v3696
      %3906 = vmatpush.bf16.msra.mxu0 %v3695
      %3907 = vmatpush.bf16.msra.mxu0 %v3694
      %3908 = vmatpush.bf16.msra.mxu0 %v3693
      %3909 = vmatmul.bf16.gmra.mxu0 %v3733
      %v3910 = vpop.f32.mrf.mxu0
      %v3911 = vadd.f32 %v3873, %v3910
      %v3912 = vpop.f32.mrf.mxu0
      %v3913 = vadd.f32 %v3875, %v3912
      %3914 = vmatmul.bf16.gmra.mxu0 %v3735
      %v3915 = vpop.f32.mrf.mxu0
      %v3916 = vadd.f32 %v3878, %v3915
      %v3917 = vpop.f32.mrf.mxu0
      %v3918 = vadd.f32 %v3880, %v3917
      %3919 = vmatmul.bf16.gmra.mxu0 %v3738
      %v3920 = vpop.f32.mrf.mxu0
      %v3921 = vadd.f32 %v3883, %v3920
      %v3922 = vpop.f32.mrf.mxu0
      %v3923 = vadd.f32 %v3885, %v3922
      %3924 = vmatmul.bf16.gmra.mxu0 %v3741
      %v3925 = vpop.f32.mrf.mxu0
      %v3926 = vadd.f32 %v3888, %v3925
      %v3927 = vpop.f32.mrf.mxu0
      %v3928 = vadd.f32 %v3890, %v3927
      %3929 = vmatmul.bf16.gmra.mxu0 %v3744
      %v3930 = vpop.f32.mrf.mxu0
      %v3931 = vadd.f32 %v3893, %v3930
      %v3932 = vpop.f32.mrf.mxu0
      %v3933 = vadd.f32 %v3895, %v3932
      %3934 = vmatmul.bf16.gmra.mxu0 %v3747
      %v3935 = vpop.f32.mrf.mxu0
      %v3936 = vadd.f32 %v3898, %v3935
      %v3937 = vpop.f32.mrf.mxu0
      %3938 = vdwg.mxu0
      %v3939 = vmax.f32 %v3911, 0.0
      %v3940 = vmax.f32 %v3913, 0.0
      %v3941 = vmax.f32 %v3916, 0.0
      %v3942 = vmax.f32 %v3918, 0.0
      %v3943 = vmax.f32 %v3921, 0.0
      %v3944 = vmax.f32 %v3923, 0.0
      %v3945 = vmax.f32 %v3926, 0.0
      %v3946 = vmax.f32 %v3928, 0.0
      %v3947 = vmax.f32 %v3931, 0.0
      %v3948 = vmax.f32 %v3933, 0.0
      %v3949 = vmax.f32 %v3936, 0.0
      %v3950 = vpack.c.bf16 %v3939, %v3939
      %v3951 = vpack.c.bf16 %v3940, %v3940
      %v3952 = vpack.c.bf16 %v3941, %v3941
      %v3953 = vpack.c.bf16 %v3942, %v3942
      %v3954 = vpack.c.bf16 %v3943, %v3943
      %v3955 = vpack.c.bf16 %v3944, %v3944
      %v3956 = vpack.c.bf16 %v3945, %v3945
      %v3957 = vpack.c.bf16 %v3946, %v3946
      %v3958 = vpack.c.bf16 %v3947, %v3947
      %v3959 = vpack.c.bf16 %v3948, %v3948
      %v3960 = vpack.c.bf16 %v3949, %v3949
      %v3967 = vunpack.c.l.b16 %v3950
      %v3968 = vunpack.c.l.b16 %v3951
      %v3969 = vunpack.c.l.b16 %v3952
      %v3970 = vunpack.c.l.b16 %v3953
      %v3971 = vunpack.c.l.b16 %v3954
      %v3972 = vunpack.c.l.b16 %v3955
      %v3973 = vpack.c.b16 %v3968, %v3967
      %v3974 = vpack.c.b16 %v3970, %v3969
      %v3975 = vpack.c.b16 %v3972, %v3971
      %v3977 = vunpack.c.l.b16 %v3956
      %v3978 = vpack.c.b16 %v3977, %v3977
      %v3980 = vshrl.u32 %v3973, 16
      %v3982 = vshll.u32 %v3973, 16
      %v3984 = vrot.slane %v3982, 1
      %v3985 = vor.u32 %v3980, %v3984
      %v3987 = vshll.u32 %v3974, 16
      %v3989 = vrot.slane %v3987, 1
      %v3990 = vsel %vm530, %v3985, %v3989
      %v3991 = vshrl.u32 %v3974, 16
      %v3993 = vor.u32 %v3991, %v3989
      %v3995 = vshll.u32 %v3975, 16
      %v3997 = vrot.slane %v3995, 1
      %v3998 = vsel %vm530, %v3993, %v3997
      %v3999 = vshrl.u32 %v3975, 16
      %v4001 = vor.u32 %v3999, %v3997
      %v4003 = vshll.u32 %v3978, 16
      %v4005 = vrot.slane %v4003, 1
      %v4006 = vsel %vm530, %v4001, %v4005
      %4007 = vrot.lane.b32.xlu0 %v3990, 64
      %v4008 = vpop.permute.xlu0 %4007
      %4009 = vrot.lane.b32.xlu0 %v3998, 64
      %v4010 = vpop.permute.xlu0 %4009
      %4011 = vrot.lane.b32.xlu0 %v4006, 64
      %v4012 = vpop.permute.xlu0 %4011
      %v4013 = vrot.slane %v3973, 1
      %v4014 = vrot.slane %v3974, 1
      %v4015 = vsel %vm650, %v4013, %v4014
      %v4016 = vrot.slane %v3975, 1
      %v4017 = vsel %vm650, %v4014, %v4016
      %v4018 = vrot.slane %v3978, 1
      %v4019 = vsel %vm650, %v4016, %v4018
      %v4021 = vunpack.c.l.b16 %v3957
      %v4022 = vpack.c.b16 %v4021, %v3977
      %4023 = vrot.lane.b32.xlu0 %v3974, 64
      %v4024 = vpop.permute.xlu0 %4023
      %4025 = vrot.lane.b32.xlu0 %v3975, 64
      %v4026 = vpop.permute.xlu0 %4025
      %4027 = vrot.lane.b32.xlu0 %v4022, 64
      %v4028 = vpop.permute.xlu0 %4027
      %v4030 = vunpack.c.l.b16 %v3958
      %v4031 = vpack.c.b16 %v4030, %v4030
      %v4033 = vshll.u32 %v4022, 16
      %v4035 = vrot.slane %v4033, 1
      %v4036 = vsel %vm530, %v4001, %v4035
      %v4037 = vshrl.u32 %v4022, 16
      %v4039 = vor.u32 %v4037, %v4035
      %v4041 = vshll.u32 %v4031, 16
      %v4043 = vrot.slane %v4041, 1
      %v4044 = vsel %vm530, %v4039, %v4043
      %v4045 = vrot.slane %v4022, 1
      %v4046 = vsel %vm650, %v4016, %v4045
      %v4047 = vrot.slane %v4031, 1
      %v4048 = vsel %vm650, %v4045, %v4047
      %4049 = vrot.lane.b32.xlu0 %v4017, 64
      %v4050 = vpop.permute.xlu0 %4049
      %4051 = vrot.lane.b32.xlu0 %v4046, 64
      %v4052 = vpop.permute.xlu0 %4051
      %4053 = vrot.lane.b32.xlu0 %v4048, 64
      %v4054 = vpop.permute.xlu0 %4053
      %v4056 = vunpack.c.l.b16 %v3959
      %v4057 = vpack.c.b16 %v4056, %v4030
      %v4059 = vunpack.c.l.b16 %v3960
      %v4060 = vpack.c.b16 %v4059, %v4059
      %v4062 = vshll.u32 %v4057, 16
      %v4064 = vrot.slane %v4062, 1
      %v4065 = vsel %vm530, %v4039, %v4064
      %v4066 = vshrl.u32 %v4057, 16
      %v4068 = vor.u32 %v4066, %v4064
      %v4070 = vshll.u32 %v4060, 16
      %v4072 = vrot.slane %v4070, 1
      %v4073 = vsel %vm530, %v4068, %v4072
      %4074 = vrot.lane.b32.xlu0 %v4036, 64
      %v4075 = vpop.permute.xlu0 %4074
      %4076 = vrot.lane.b32.xlu0 %v4065, 64
      %v4077 = vpop.permute.xlu0 %4076
      %4078 = vrot.lane.b32.xlu0 %v4073, 64
      %v4079 = vpop.permute.xlu0 %4078
      %v4080 = vrot.slane %v4057, 1
      %v4081 = vsel %vm650, %v4045, %v4080
      %v4082 = vrot.slane %v4060, 1
      %v4083 = vsel %vm650, %v4080, %v4082
      %v4085 = vsel %vm1508, %v3973, %v4008
      %v4088 = vsel %vm1508, %v3974, %v4010
      %v4091 = vsel %vm1508, %v3975, %v4012
      %v4095 = vsel %vm1508, %v4015, %v4024
      %v4099 = vsel %vm1508, %v4017, %v4026
      %v4103 = vsel %vm1508, %v4019, %v4028
      %v4107 = vsel %vm1508, %v3998, %v4050
      %v4111 = vsel %vm1508, %v4036, %v4052
      %v4115 = vsel %vm1508, %v4044, %v4054
      %v4118 = vsel %vm1508, %v3975, %v4075
      %v4121 = vsel %vm1508, %v4022, %v4077
      %v4124 = vsel %vm1508, %v4057, %v4079
      %v4126 = vld [vmem:[%s9] sm:$0xff]
      %v4127 = vld [vmem:[%s9 + $0x8] sm:$0xff]
      %v4128 = vld [vmem:[%s9 + $0x10] sm:$0xf]
      %v4129 = vld [vmem:[%s9 + $0x14] sm:$0xff]
      %v4130 = vld [vmem:[%s9 + $0x1c] sm:$0xff]
      %v4131 = vld [vmem:[%s9 + $0x24] sm:$0xf]
      %v4132 = vld [vmem:[%s9 + $0x28] sm:$0xff]
      %v4133 = vld [vmem:[%s9 + $0x30] sm:$0xff]
      %v4134 = vld [vmem:[%s9 + $0x38] sm:$0xf]
      %v4135 = vld [vmem:[%s9 + $0x3c] sm:$0xff]
      %v4136 = vld [vmem:[%s9 + $0x44] sm:$0xff]
      %v4137 = vld [vmem:[%s9 + $0x4c] sm:$0xf]
      %v4138 = vld [vmem:[%s9 + $0x50] sm:$0xff]
      %v4139 = vld [vmem:[%s9 + $0x58] sm:$0xff]
      %v4140 = vld [vmem:[%s9 + $0x60] sm:$0xf]
      %v4141 = vld [vmem:[%s9 + $0x64] sm:$0xff]
      %v4142 = vld [vmem:[%s9 + $0x6c] sm:$0xff]
      %v4143 = vld [vmem:[%s9 + $0x74] sm:$0xf]
      %v4144 = vld [vmem:[%s9 + $0x78] sm:$0xff]
      %v4145 = vld [vmem:[%s9 + $0x80] sm:$0xff]
      %v4146 = vld [vmem:[%s9 + $0x88] sm:$0xf]
      %v4147 = vld [vmem:[%s9 + $0x8c] sm:$0xff]
      %v4148 = vld [vmem:[%s9 + $0x94] sm:$0xff]
      %v4149 = vld [vmem:[%s9 + $0x9c] sm:$0xf]
      %v4150 = vld [vmem:[%s9 + $0xa0] sm:$0xff]
      %v4151 = vld [vmem:[%s9 + $0xa8] sm:$0xff]
      %v4152 = vld [vmem:[%s9 + $0xb0] sm:$0xf]
      %v4153 = vld [vmem:[%s9 + $0xb4] sm:$0xff]
      %v4154 = vld [vmem:[%s9 + $0xbc] sm:$0xff]
      %v4155 = vld [vmem:[%s9 + $0xc4] sm:$0xf]
      %v4156 = vld [vmem:[%s9 + $0xc8] sm:$0xff]
      %v4157 = vld [vmem:[%s9 + $0xd0] sm:$0xff]
      %v4158 = vld [vmem:[%s9 + $0xd8] sm:$0xf]
      %v4159 = vld [vmem:[%s9 + $0xdc] sm:$0xff]
      %v4160 = vld [vmem:[%s9 + $0xe4] sm:$0xff]
      %v4161 = vld [vmem:[%s9 + $0xec] sm:$0xf]
      %v4162 = vld [vmem:[%s9 + $0xf0] sm:$0xff]
      %v4163 = vld [vmem:[%s9 + $0xf8] sm:$0xff]
      %v4164 = vld [vmem:[%s9 + $0x100] sm:$0xf]
      %v4165 = vld [vmem:[%s9 + $0x104] sm:$0xff]
      %v4166 = vld [vmem:[%s9 + $0x10c] sm:$0xff]
      %v4167 = vld [vmem:[%s9 + $0x114] sm:$0xf]
      %v4168 = vld [vmem:[%s9 + $0x118] sm:$0xff]
      %v4169 = vld [vmem:[%s9 + $0x120] sm:$0xff]
      %v4170 = vld [vmem:[%s9 + $0x128] sm:$0xf]
      %v4171 = vld [vmem:[%s9 + $0x12c] sm:$0xff]
      %v4172 = vld [vmem:[%s9 + $0x134] sm:$0xff]
      %v4173 = vld [vmem:[%s9 + $0x13c] sm:$0xf]
      %v4174 = vld [vmem:[%s9 + $0x140] sm:$0xff]
      %v4175 = vld [vmem:[%s9 + $0x148] sm:$0xff]
      %v4176 = vld [vmem:[%s9 + $0x150] sm:$0xf]
      %v4177 = vld [vmem:[%s9 + $0x154] sm:$0xff]
      %v4178 = vld [vmem:[%s9 + $0x15c] sm:$0xff]
      %v4179 = vld [vmem:[%s9 + $0x164] sm:$0xf]
      %v4180 = vld [vmem:[%s9 + $0x168] sm:$0xff]
      %v4181 = vld [vmem:[%s9 + $0x170] sm:$0xff]
      %v4182 = vld [vmem:[%s9 + $0x178] sm:$0xf]
      %v4183 = vld [vmem:[%s9 + $0x17c] sm:$0xff]
      %v4184 = vld [vmem:[%s9 + $0x184] sm:$0xff]
      %v4185 = vld [vmem:[%s9 + $0x18c] sm:$0xf]
      %v4186 = vld [vmem:[%s9 + $0x190] sm:$0xff]
      %v4187 = vld [vmem:[%s9 + $0x198] sm:$0xff]
      %v4188 = vld [vmem:[%s9 + $0x1a0] sm:$0xf]
      %v4189 = vld [vmem:[%s9 + $0x1a4] sm:$0xff]
      %v4190 = vld [vmem:[%s9 + $0x1ac] sm:$0xff]
      %v4191 = vld [vmem:[%s9 + $0x1b4] sm:$0xf]
      %v4192 = vld [vmem:[%s9 + $0x1b8] sm:$0xff]
      %v4193 = vld [vmem:[%s9 + $0x1c0] sm:$0xff]
      %v4194 = vld [vmem:[%s9 + $0x1c8] sm:$0xf]
      %v4195 = vld [vmem:[%s9 + $0x1cc] sm:$0xff]
      %v4196 = vld [vmem:[%s9 + $0x1d4] sm:$0xff]
      %v4197 = vld [vmem:[%s9 + $0x1dc] sm:$0xf]
      %v4198 = vld [vmem:[%s9 + $0x1e0] sm:$0xff]
      %v4199 = vld [vmem:[%s9 + $0x1e8] sm:$0xff]
      %v4200 = vld [vmem:[%s9 + $0x1f0] sm:$0xf]
      %v4201 = vld [vmem:[%s9 + $0x1f4] sm:$0xff]
      %v4202 = vld [vmem:[%s9 + $0x1fc] sm:$0xff]
      %v4203 = vld [vmem:[%s9 + $0x204] sm:$0xf]
      %v4204 = vld [vmem:[%s9 + $0x208] sm:$0xff]
      %v4205 = vld [vmem:[%s9 + $0x210] sm:$0xff]
      %v4206 = vld [vmem:[%s9 + $0x218] sm:$0xf]
      %v4207 = vld [vmem:[%s9 + $0x21c] sm:$0xff]
      %v4208 = vld [vmem:[%s9 + $0x224] sm:$0xff]
      %v4209 = vld [vmem:[%s9 + $0x22c] sm:$0xf]
      %v4210 = vld [vmem:[%s9 + $0x230] sm:$0xff]
      %v4211 = vld [vmem:[%s9 + $0x238] sm:$0xff]
      %v4212 = vld [vmem:[%s9 + $0x240] sm:$0xf]
      %v4213 = vld [vmem:[%s9 + $0x244] sm:$0xff]
      %v4214 = vld [vmem:[%s9 + $0x24c] sm:$0xff]
      %v4215 = vld [vmem:[%s9 + $0x254] sm:$0xf]
      %v4216 = vld [vmem:[%s9 + $0x258] sm:$0xff]
      %v4217 = vld [vmem:[%s9 + $0x260] sm:$0xff]
      %v4218 = vld [vmem:[%s9 + $0x268] sm:$0xf]
      %v4219 = vld [vmem:[%s9 + $0x26c] sm:$0xff]
      %v4220 = vld [vmem:[%s9 + $0x274] sm:$0xff]
      %v4221 = vld [vmem:[%s9 + $0x27c] sm:$0xf]
      %v4222 = vld [vmem:[%s9 + $0x280] sm:$0xff]
      %v4223 = vld [vmem:[%s9 + $0x288] sm:$0xff]
      %v4224 = vld [vmem:[%s9 + $0x290] sm:$0xf]
      %v4225 = vld [vmem:[%s9 + $0x294] sm:$0xff]
      %v4226 = vld [vmem:[%s9 + $0x29c] sm:$0xff]
      %v4227 = vld [vmem:[%s9 + $0x2a4] sm:$0xf]
      %v4228 = vld [vmem:[%s9 + $0x2a8] sm:$0xff]
      %v4229 = vld [vmem:[%s9 + $0x2b0] sm:$0xff]
      %v4230 = vld [vmem:[%s9 + $0x2b8] sm:$0xf]
      %v4231 = vld [vmem:[%s9 + $0x2bc] sm:$0xff]
      %v4232 = vld [vmem:[%s9 + $0x2c4] sm:$0xff]
      %v4233 = vld [vmem:[%s9 + $0x2cc] sm:$0xf]
      %v4234 = vld [vmem:[%s9 + $0x2d0] sm:$0xff]
      %v4235 = vld [vmem:[%s9 + $0x2d8] sm:$0xff]
      %v4236 = vld [vmem:[%s9 + $0x2e0] sm:$0xf]
      %v4237 = vld [vmem:[%s9 + $0x2e4] sm:$0xff]
      %v4238 = vld [vmem:[%s9 + $0x2ec] sm:$0xff]
      %v4239 = vld [vmem:[%s9 + $0x2f4] sm:$0xf]
      %v4240 = vld [vmem:[%s9 + $0x2f8] sm:$0xff]
      %v4241 = vld [vmem:[%s9 + $0x300] sm:$0xff]
      %v4242 = vld [vmem:[%s9 + $0x308] sm:$0xf]
      %v4243 = vld [vmem:[%s9 + $0x30c] sm:$0xff]
      %v4244 = vld [vmem:[%s9 + $0x314] sm:$0xff]
      %v4245 = vld [vmem:[%s9 + $0x31c] sm:$0xf]
      %v4246 = vld [vmem:[%s9 + $0x320] sm:$0xff]
      %v4247 = vld [vmem:[%s9 + $0x328] sm:$0xff]
      %v4248 = vld [vmem:[%s9 + $0x330] sm:$0xf]
      %v4249 = vld [vmem:[%s9 + $0x334] sm:$0xff]
      %v4250 = vld [vmem:[%s9 + $0x33c] sm:$0xff]
      %v4251 = vld [vmem:[%s9 + $0x344] sm:$0xf]
      %v4252 = vld [vmem:[%s9 + $0x348] sm:$0xff]
      %v4253 = vld [vmem:[%s9 + $0x350] sm:$0xff]
      %v4254 = vld [vmem:[%s9 + $0x358] sm:$0xf]
      %v4255 = vld [vmem:[%s9 + $0x35c] sm:$0xff]
      %v4256 = vld [vmem:[%s9 + $0x364] sm:$0xff]
      %v4257 = vld [vmem:[%s9 + $0x36c] sm:$0xf]
      %v4258 = vld [vmem:[%s9 + $0x370] sm:$0xff]
      %v4259 = vld [vmem:[%s9 + $0x378] sm:$0xff]
      %v4260 = vld [vmem:[%s9 + $0x380] sm:$0xf]
      %v4261 = vld [vmem:[%s9 + $0x384] sm:$0xff]
      %v4262 = vld [vmem:[%s9 + $0x38c] sm:$0xff]
      %v4263 = vld [vmem:[%s9 + $0x394] sm:$0xf]
      %v4264 = vld [vmem:[%s9 + $0x398] sm:$0xff]
      %v4265 = vld [vmem:[%s9 + $0x3a0] sm:$0xff]
      %v4266 = vld [vmem:[%s9 + $0x3a8] sm:$0xf]
      %v4267 = vld [vmem:[%s9 + $0x3ac] sm:$0xff]
      %v4268 = vld [vmem:[%s9 + $0x3b4] sm:$0xff]
      %v4269 = vld [vmem:[%s9 + $0x3bc] sm:$0xf]
      %v4270 = vld [vmem:[%s9 + $0x3c0] sm:$0xff]
      %v4271 = vld [vmem:[%s9 + $0x3c8] sm:$0xff]
      %v4272 = vld [vmem:[%s9 + $0x3d0] sm:$0xf]
      %v4273 = vld [vmem:[%s9 + $0x3d4] sm:$0xff]
      %v4274 = vld [vmem:[%s9 + $0x3dc] sm:$0xff]
      %v4275 = vld [vmem:[%s9 + $0x3e4] sm:$0xf]
      %v4276 = vld [vmem:[%s9 + $0x3e8] sm:$0xff]
      %v4277 = vld [vmem:[%s9 + $0x3f0] sm:$0xff]
      %v4278 = vld [vmem:[%s9 + $0x3f8] sm:$0xf]
      %v4279 = vld [vmem:[%s9 + $0x3fc] sm:$0xff]
      %v4280 = vld [vmem:[%s9 + $0x404] sm:$0xff]
      %v4281 = vld [vmem:[%s9 + $0x40c] sm:$0xf]
      %v4282 = vld [vmem:[%s9 + $0x410] sm:$0xff]
      %v4283 = vld [vmem:[%s9 + $0x418] sm:$0xff]
      %v4284 = vld [vmem:[%s9 + $0x420] sm:$0xf]
      %v4285 = vld [vmem:[%s9 + $0x424] sm:$0xff]
      %v4286 = vld [vmem:[%s9 + $0x42c] sm:$0xff]
      %v4287 = vld [vmem:[%s9 + $0x434] sm:$0xf]
      %v4288 = vld [vmem:[%s9 + $0x438] sm:$0xff]
      %v4289 = vld [vmem:[%s9 + $0x440] sm:$0xff]
      %v4290 = vld [vmem:[%s9 + $0x448] sm:$0xf]
      %v4291 = vld [vmem:[%s9 + $0x44c] sm:$0xff]
      %v4292 = vld [vmem:[%s9 + $0x454] sm:$0xff]
      %v4293 = vld [vmem:[%s9 + $0x45c] sm:$0xf]
      %v4294 = vld [vmem:[%s9 + $0x460] sm:$0xff]
      %v4295 = vld [vmem:[%s9 + $0x468] sm:$0xff]
      %v4296 = vld [vmem:[%s9 + $0x470] sm:$0xf]
      %v4297 = vld [vmem:[%s9 + $0x474] sm:$0xff]
      %v4298 = vld [vmem:[%s9 + $0x47c] sm:$0xff]
      %v4299 = vld [vmem:[%s9 + $0x484] sm:$0xf]
      %v4300 = vld [vmem:[%s9 + $0x488] sm:$0xff]
      %v4301 = vld [vmem:[%s9 + $0x490] sm:$0xff]
      %v4302 = vld [vmem:[%s9 + $0x498] sm:$0xf]
      %v4303 = vld [vmem:[%s9 + $0x49c] sm:$0xff]
      %v4304 = vld [vmem:[%s9 + $0x4a4] sm:$0xff]
      %v4305 = vld [vmem:[%s9 + $0x4ac] sm:$0xf]
      %v4306 = vld [vmem:[%s9 + $0x4b0] sm:$0xff]
      %v4307 = vld [vmem:[%s9 + $0x4b8] sm:$0xff]
      %v4308 = vld [vmem:[%s9 + $0x4c0] sm:$0xf]
      %v4309 = vld [vmem:[%s9 + $0x4c4] sm:$0xff]
      %v4310 = vld [vmem:[%s9 + $0x4cc] sm:$0xff]
      %v4311 = vld [vmem:[%s9 + $0x4d4] sm:$0xf]
      %v4312 = vld [vmem:[%s9 + $0x4d8] sm:$0xff]
      %v4313 = vld [vmem:[%s9 + $0x4e0] sm:$0xff]
      %v4314 = vld [vmem:[%s9 + $0x4e8] sm:$0xf]
      %v4315 = vld [vmem:[%s9 + $0x4ec] sm:$0xff]
      %v4316 = vld [vmem:[%s9 + $0x4f4] sm:$0xff]
      %v4317 = vld [vmem:[%s9 + $0x4fc] sm:$0xf]
      %v4318 = vld [vmem:[%s9 + $0x500] sm:$0xff]
      %v4319 = vld [vmem:[%s9 + $0x508] sm:$0xff]
      %v4320 = vld [vmem:[%s9 + $0x510] sm:$0xf]
      %v4321 = vld [vmem:[%s9 + $0x514] sm:$0xff]
      %v4322 = vld [vmem:[%s9 + $0x51c] sm:$0xff]
      %v4323 = vld [vmem:[%s9 + $0x524] sm:$0xf]
      %v4324 = vld [vmem:[%s9 + $0x528] sm:$0xff]
      %v4325 = vld [vmem:[%s9 + $0x530] sm:$0xff]
      %v4326 = vld [vmem:[%s9 + $0x538] sm:$0xf]
      %v4327 = vld [vmem:[%s9 + $0x53c] sm:$0xff]
      %v4328 = vld [vmem:[%s9 + $0x544] sm:$0xff]
      %v4329 = vld [vmem:[%s9 + $0x54c] sm:$0xf]
      %v4330 = vld [vmem:[%s9 + $0x550] sm:$0xff]
      %v4331 = vld [vmem:[%s9 + $0x558] sm:$0xff]
      %v4332 = vld [vmem:[%s9 + $0x560] sm:$0xf]
      %v4333 = vld [vmem:[%s9 + $0x564] sm:$0xff]
      %v4334 = vld [vmem:[%s9 + $0x56c] sm:$0xff]
      %v4335 = vld [vmem:[%s9 + $0x574] sm:$0xf]
      %v4336 = vld [vmem:[%s9 + $0x578] sm:$0xff]
      %v4337 = vld [vmem:[%s9 + $0x580] sm:$0xff]
      %v4338 = vld [vmem:[%s9 + $0x588] sm:$0xf]
      %v4339 = vld [vmem:[%s9 + $0x58c] sm:$0xff]
      %v4340 = vld [vmem:[%s9 + $0x594] sm:$0xff]
      %v4341 = vld [vmem:[%s9 + $0x59c] sm:$0xf]
      %v4342 = vld [vmem:[%s10] sm:$0x1f]
      %v4344 = vperm.slane %v4342, 0
      %v4345 = vperm.slane %v4342, 1
      %v4346 = vperm.slane %v4342, 2
      %v4347 = vperm.slane %v4342, 3
      %v4348 = vperm.slane %v4342, 4
      %v4570 = vunpack.c.l.b16 %v4126
      %v4571 = vunpack.c.h.b16 %v4126
      %v4572 = vunpack.c.l.b16 %v4127
      %v4573 = vunpack.c.h.b16 %v4127
      %v4574 = vunpack.c.l.b16 %v4128
      %v4575 = vunpack.c.l.b16 %v4129
      %v4576 = vunpack.c.h.b16 %v4129
      %v4577 = vunpack.c.l.b16 %v4130
      %v4578 = vunpack.c.h.b16 %v4130
      %v4579 = vunpack.c.l.b16 %v4131
      %v4580 = vunpack.c.l.b16 %v4132
      %v4581 = vunpack.c.h.b16 %v4132
      %v4582 = vunpack.c.l.b16 %v4133
      %v4583 = vunpack.c.h.b16 %v4133
      %v4584 = vunpack.c.l.b16 %v4134
      %v4585 = vunpack.c.l.b16 %v4135
      %v4586 = vunpack.c.h.b16 %v4135
      %v4587 = vunpack.c.l.b16 %v4136
      %v4588 = vunpack.c.h.b16 %v4136
      %v4589 = vunpack.c.l.b16 %v4137
      %v4590 = vunpack.c.l.b16 %v4138
      %v4591 = vunpack.c.h.b16 %v4138
      %v4592 = vunpack.c.l.b16 %v4139
      %v4593 = vunpack.c.h.b16 %v4139
      %v4594 = vunpack.c.l.b16 %v4140
      %v4595 = vunpack.c.l.b16 %v4141
      %v4596 = vunpack.c.h.b16 %v4141
      %v4597 = vunpack.c.l.b16 %v4142
      %v4598 = vunpack.c.h.b16 %v4142
      %v4599 = vunpack.c.l.b16 %v4143
      %v4600 = vunpack.c.l.b16 %v4144
      %v4601 = vunpack.c.h.b16 %v4144
      %v4602 = vunpack.c.l.b16 %v4145
      %v4603 = vunpack.c.h.b16 %v4145
      %v4604 = vunpack.c.l.b16 %v4146
      %v4605 = vunpack.c.l.b16 %v4147
      %v4606 = vunpack.c.h.b16 %v4147
      %v4607 = vunpack.c.l.b16 %v4148
      %v4608 = vunpack.c.h.b16 %v4148
      %v4609 = vunpack.c.l.b16 %v4149
      %v4610 = vunpack.c.l.b16 %v4150
      %v4611 = vunpack.c.h.b16 %v4150
      %v4612 = vunpack.c.l.b16 %v4151
      %v4613 = vunpack.c.h.b16 %v4151
      %v4614 = vunpack.c.l.b16 %v4152
      %v4615 = vunpack.c.l.b16 %v4153
      %v4616 = vunpack.c.h.b16 %v4153
      %v4617 = vunpack.c.l.b16 %v4154
      %v4618 = vunpack.c.h.b16 %v4154
      %v4619 = vunpack.c.l.b16 %v4155
      %v4620 = vunpack.c.l.b16 %v4156
      %v4621 = vunpack.c.h.b16 %v4156
      %v4622 = vunpack.c.l.b16 %v4157
      %v4623 = vunpack.c.h.b16 %v4157
      %v4624 = vunpack.c.l.b16 %v4158
      %v4625 = vunpack.c.l.b16 %v4159
      %v4626 = vunpack.c.h.b16 %v4159
      %v4627 = vunpack.c.l.b16 %v4160
      %v4628 = vunpack.c.h.b16 %v4160
      %v4629 = vunpack.c.l.b16 %v4161
      %v4630 = vunpack.c.l.b16 %v4162
      %v4631 = vunpack.c.h.b16 %v4162
      %v4632 = vunpack.c.l.b16 %v4163
      %v4633 = vunpack.c.h.b16 %v4163
      %v4634 = vunpack.c.l.b16 %v4164
      %v4635 = vunpack.c.l.b16 %v4165
      %v4636 = vunpack.c.h.b16 %v4165
      %v4637 = vunpack.c.l.b16 %v4166
      %v4638 = vunpack.c.h.b16 %v4166
      %v4639 = vunpack.c.l.b16 %v4167
      %v4640 = vunpack.c.l.b16 %v4168
      %v4641 = vunpack.c.h.b16 %v4168
      %v4642 = vunpack.c.l.b16 %v4169
      %v4643 = vunpack.c.h.b16 %v4169
      %v4644 = vunpack.c.l.b16 %v4170
      %v4645 = vunpack.c.l.b16 %v4171
      %v4646 = vunpack.c.h.b16 %v4171
      %v4647 = vunpack.c.l.b16 %v4172
      %v4648 = vunpack.c.h.b16 %v4172
      %v4649 = vunpack.c.l.b16 %v4173
      %v4650 = vunpack.c.l.b16 %v4174
      %v4651 = vunpack.c.h.b16 %v4174
      %v4652 = vunpack.c.l.b16 %v4175
      %v4653 = vunpack.c.h.b16 %v4175
      %v4654 = vunpack.c.l.b16 %v4176
      %v4655 = vunpack.c.l.b16 %v4177
      %v4656 = vunpack.c.h.b16 %v4177
      %v4657 = vunpack.c.l.b16 %v4178
      %v4658 = vunpack.c.h.b16 %v4178
      %v4659 = vunpack.c.l.b16 %v4179
      %v4660 = vunpack.c.l.b16 %v4180
      %v4661 = vunpack.c.h.b16 %v4180
      %v4662 = vunpack.c.l.b16 %v4181
      %v4663 = vunpack.c.h.b16 %v4181
      %v4664 = vunpack.c.l.b16 %v4182
      %v4665 = vunpack.c.l.b16 %v4183
      %v4666 = vunpack.c.h.b16 %v4183
      %v4667 = vunpack.c.l.b16 %v4184
      %v4668 = vunpack.c.h.b16 %v4184
      %v4669 = vunpack.c.l.b16 %v4185
      %v4670 = vunpack.c.l.b16 %v4186
      %v4671 = vunpack.c.h.b16 %v4186
      %v4672 = vunpack.c.l.b16 %v4187
      %v4673 = vunpack.c.h.b16 %v4187
      %v4674 = vunpack.c.l.b16 %v4188
      %v4675 = vunpack.c.l.b16 %v4189
      %v4676 = vunpack.c.h.b16 %v4189
      %v4677 = vunpack.c.l.b16 %v4190
      %v4678 = vunpack.c.h.b16 %v4190
      %v4679 = vunpack.c.l.b16 %v4191
      %v4680 = vunpack.c.l.b16 %v4192
      %v4681 = vunpack.c.h.b16 %v4192
      %v4682 = vunpack.c.l.b16 %v4193
      %v4683 = vunpack.c.h.b16 %v4193
      %v4684 = vunpack.c.l.b16 %v4194
      %v4685 = vunpack.c.l.b16 %v4195
      %v4686 = vunpack.c.h.b16 %v4195
      %v4687 = vunpack.c.l.b16 %v4196
      %v4688 = vunpack.c.h.b16 %v4196
      %v4689 = vunpack.c.l.b16 %v4197
      %v4690 = vunpack.c.l.b16 %v4198
      %v4691 = vunpack.c.h.b16 %v4198
      %v4692 = vunpack.c.l.b16 %v4199
      %v4693 = vunpack.c.h.b16 %v4199
      %v4694 = vunpack.c.l.b16 %v4200
      %v4695 = vunpack.c.l.b16 %v4201
      %v4696 = vunpack.c.h.b16 %v4201
      %v4697 = vunpack.c.l.b16 %v4202
      %v4698 = vunpack.c.h.b16 %v4202
      %v4699 = vunpack.c.l.b16 %v4203
      %v4700 = vunpack.c.l.b16 %v4204
      %v4701 = vunpack.c.h.b16 %v4204
      %v4702 = vunpack.c.l.b16 %v4205
      %v4703 = vunpack.c.h.b16 %v4205
      %v4704 = vunpack.c.l.b16 %v4206
      %v4705 = vunpack.c.l.b16 %v4207
      %v4706 = vunpack.c.h.b16 %v4207
      %v4707 = vunpack.c.l.b16 %v4208
      %v4708 = vunpack.c.h.b16 %v4208
      %v4709 = vunpack.c.l.b16 %v4209
      %v4710 = vunpack.c.l.b16 %v4210
      %v4711 = vunpack.c.h.b16 %v4210
      %v4712 = vunpack.c.l.b16 %v4211
      %v4713 = vunpack.c.h.b16 %v4211
      %v4714 = vunpack.c.l.b16 %v4212
      %v4715 = vunpack.c.l.b16 %v4213
      %v4716 = vunpack.c.h.b16 %v4213
      %v4717 = vunpack.c.l.b16 %v4214
      %v4718 = vunpack.c.h.b16 %v4214
      %v4719 = vunpack.c.l.b16 %v4215
      %v4720 = vunpack.c.l.b16 %v4216
      %v4721 = vunpack.c.h.b16 %v4216
      %v4722 = vunpack.c.l.b16 %v4217
      %v4723 = vunpack.c.h.b16 %v4217
      %v4724 = vunpack.c.l.b16 %v4218
      %v4725 = vunpack.c.l.b16 %v4219
      %v4726 = vunpack.c.h.b16 %v4219
      %v4727 = vunpack.c.l.b16 %v4220
      %v4728 = vunpack.c.h.b16 %v4220
      %v4729 = vunpack.c.l.b16 %v4221
      %v4730 = vunpack.c.l.b16 %v4222
      %v4731 = vunpack.c.h.b16 %v4222
      %v4732 = vunpack.c.l.b16 %v4223
      %v4733 = vunpack.c.h.b16 %v4223
      %v4734 = vunpack.c.l.b16 %v4224
      %v4735 = vunpack.c.l.b16 %v4225
      %v4736 = vunpack.c.h.b16 %v4225
      %v4737 = vunpack.c.l.b16 %v4226
      %v4738 = vunpack.c.h.b16 %v4226
      %v4739 = vunpack.c.l.b16 %v4227
      %v4740 = vunpack.c.l.b16 %v4228
      %v4741 = vunpack.c.h.b16 %v4228
      %v4742 = vunpack.c.l.b16 %v4229
      %v4743 = vunpack.c.h.b16 %v4229
      %v4744 = vunpack.c.l.b16 %v4230
      %v4745 = vunpack.c.l.b16 %v4231
      %v4746 = vunpack.c.h.b16 %v4231
      %v4747 = vunpack.c.l.b16 %v4232
      %v4748 = vunpack.c.h.b16 %v4232
      %v4749 = vunpack.c.l.b16 %v4233
      %v4750 = vunpack.c.l.b16 %v4234
      %v4751 = vunpack.c.h.b16 %v4234
      %v4752 = vunpack.c.l.b16 %v4235
      %v4753 = vunpack.c.h.b16 %v4235
      %v4754 = vunpack.c.l.b16 %v4236
      %v4755 = vunpack.c.l.b16 %v4237
      %v4756 = vunpack.c.h.b16 %v4237
      %v4757 = vunpack.c.l.b16 %v4238
      %v4758 = vunpack.c.h.b16 %v4238
      %v4759 = vunpack.c.l.b16 %v4239
      %v4760 = vunpack.c.l.b16 %v4240
      %v4761 = vunpack.c.h.b16 %v4240
      %v4762 = vunpack.c.l.b16 %v4241
      %v4763 = vunpack.c.h.b16 %v4241
      %v4764 = vunpack.c.l.b16 %v4242
      %v4765 = vunpack.c.l.b16 %v4243
      %v4766 = vunpack.c.h.b16 %v4243
      %v4767 = vunpack.c.l.b16 %v4244
      %v4768 = vunpack.c.h.b16 %v4244
      %v4769 = vunpack.c.l.b16 %v4245
      %v4770 = vunpack.c.l.b16 %v4246
      %v4771 = vunpack.c.h.b16 %v4246
      %v4772 = vunpack.c.l.b16 %v4247
      %v4773 = vunpack.c.h.b16 %v4247
      %v4774 = vunpack.c.l.b16 %v4248
      %v4775 = vunpack.c.l.b16 %v4249
      %v4776 = vunpack.c.h.b16 %v4249
      %v4777 = vunpack.c.l.b16 %v4250
      %v4778 = vunpack.c.h.b16 %v4250
      %v4779 = vunpack.c.l.b16 %v4251
      %v4780 = vunpack.c.l.b16 %v4252
      %v4781 = vunpack.c.h.b16 %v4252
      %v4782 = vunpack.c.l.b16 %v4253
      %v4783 = vunpack.c.h.b16 %v4253
      %v4784 = vunpack.c.l.b16 %v4254
      %v4785 = vunpack.c.l.b16 %v4255
      %v4786 = vunpack.c.h.b16 %v4255
      %v4787 = vunpack.c.l.b16 %v4256
      %v4788 = vunpack.c.h.b16 %v4256
      %v4789 = vunpack.c.l.b16 %v4257
      %v4790 = vunpack.c.l.b16 %v4258
      %v4791 = vunpack.c.h.b16 %v4258
      %v4792 = vunpack.c.l.b16 %v4259
      %v4793 = vunpack.c.h.b16 %v4259
      %v4794 = vunpack.c.l.b16 %v4260
      %v4795 = vunpack.c.l.b16 %v4261
      %v4796 = vunpack.c.h.b16 %v4261
      %v4797 = vunpack.c.l.b16 %v4262
      %v4798 = vunpack.c.h.b16 %v4262
      %v4799 = vunpack.c.l.b16 %v4263
      %v4800 = vunpack.c.l.b16 %v4264
      %v4801 = vunpack.c.h.b16 %v4264
      %v4802 = vunpack.c.l.b16 %v4265
      %v4803 = vunpack.c.h.b16 %v4265
      %v4804 = vunpack.c.l.b16 %v4266
      %v4805 = vunpack.c.l.b16 %v4267
      %v4806 = vunpack.c.h.b16 %v4267
      %v4807 = vunpack.c.l.b16 %v4268
      %v4808 = vunpack.c.h.b16 %v4268
      %v4809 = vunpack.c.l.b16 %v4269
      %v4810 = vunpack.c.l.b16 %v4270
      %v4811 = vunpack.c.h.b16 %v4270
      %v4812 = vunpack.c.l.b16 %v4271
      %v4813 = vunpack.c.h.b16 %v4271
      %v4814 = vunpack.c.l.b16 %v4272
      %v4815 = vunpack.c.l.b16 %v4273
      %v4816 = vunpack.c.h.b16 %v4273
      %v4817 = vunpack.c.l.b16 %v4274
      %v4818 = vunpack.c.h.b16 %v4274
      %v4819 = vunpack.c.l.b16 %v4275
      %v4820 = vunpack.c.l.b16 %v4276
      %v4821 = vunpack.c.h.b16 %v4276
      %v4822 = vunpack.c.l.b16 %v4277
      %v4823 = vunpack.c.h.b16 %v4277
      %v4824 = vunpack.c.l.b16 %v4278
      %v4825 = vunpack.c.l.b16 %v4279
      %v4826 = vunpack.c.h.b16 %v4279
      %v4827 = vunpack.c.l.b16 %v4280
      %v4828 = vunpack.c.h.b16 %v4280
      %v4829 = vunpack.c.l.b16 %v4281
      %v4830 = vunpack.c.l.b16 %v4282
      %v4831 = vunpack.c.h.b16 %v4282
      %v4832 = vunpack.c.l.b16 %v4283
      %v4833 = vunpack.c.h.b16 %v4283
      %v4834 = vunpack.c.l.b16 %v4284
      %v4835 = vunpack.c.l.b16 %v4285
      %v4836 = vunpack.c.h.b16 %v4285
      %v4837 = vunpack.c.l.b16 %v4286
      %v4838 = vunpack.c.h.b16 %v4286
      %v4839 = vunpack.c.l.b16 %v4287
      %v4840 = vunpack.c.l.b16 %v4288
      %v4841 = vunpack.c.h.b16 %v4288
      %v4842 = vunpack.c.l.b16 %v4289
      %v4843 = vunpack.c.h.b16 %v4289
      %v4844 = vunpack.c.l.b16 %v4290
      %v4845 = vunpack.c.l.b16 %v4291
      %v4846 = vunpack.c.h.b16 %v4291
      %v4847 = vunpack.c.l.b16 %v4292
      %v4848 = vunpack.c.h.b16 %v4292
      %v4849 = vunpack.c.l.b16 %v4293
      %v4850 = vunpack.c.l.b16 %v4294
      %v4851 = vunpack.c.h.b16 %v4294
      %v4852 = vunpack.c.l.b16 %v4295
      %v4853 = vunpack.c.h.b16 %v4295
      %v4854 = vunpack.c.l.b16 %v4296
      %v4855 = vunpack.c.l.b16 %v4297
      %v4856 = vunpack.c.h.b16 %v4297
      %v4857 = vunpack.c.l.b16 %v4298
      %v4858 = vunpack.c.h.b16 %v4298
      %v4859 = vunpack.c.l.b16 %v4299
      %v4860 = vunpack.c.l.b16 %v4300
      %v4861 = vunpack.c.h.b16 %v4300
      %v4862 = vunpack.c.l.b16 %v4301
      %v4863 = vunpack.c.h.b16 %v4301
      %v4864 = vunpack.c.l.b16 %v4302
      %v4865 = vunpack.c.l.b16 %v4303
      %v4866 = vunpack.c.h.b16 %v4303
      %v4867 = vunpack.c.l.b16 %v4304
      %v4868 = vunpack.c.h.b16 %v4304
      %v4869 = vunpack.c.l.b16 %v4305
      %v4870 = vunpack.c.l.b16 %v4306
      %v4871 = vunpack.c.h.b16 %v4306
      %v4872 = vunpack.c.l.b16 %v4307
      %v4873 = vunpack.c.h.b16 %v4307
      %v4874 = vunpack.c.l.b16 %v4308
      %v4875 = vunpack.c.l.b16 %v4309
      %v4876 = vunpack.c.h.b16 %v4309
      %v4877 = vunpack.c.l.b16 %v4310
      %v4878 = vunpack.c.h.b16 %v4310
      %v4879 = vunpack.c.l.b16 %v4311
      %v4880 = vunpack.c.l.b16 %v4312
      %v4881 = vunpack.c.h.b16 %v4312
      %v4882 = vunpack.c.l.b16 %v4313
      %v4883 = vunpack.c.h.b16 %v4313
      %v4884 = vunpack.c.l.b16 %v4314
      %v4885 = vunpack.c.l.b16 %v4315
      %v4886 = vunpack.c.h.b16 %v4315
      %v4887 = vunpack.c.l.b16 %v4316
      %v4888 = vunpack.c.h.b16 %v4316
      %v4889 = vunpack.c.l.b16 %v4317
      %v4890 = vunpack.c.l.b16 %v4318
      %v4891 = vunpack.c.h.b16 %v4318
      %v4892 = vunpack.c.l.b16 %v4319
      %v4893 = vunpack.c.h.b16 %v4319
      %v4894 = vunpack.c.l.b16 %v4320
      %v4895 = vunpack.c.l.b16 %v4321
      %v4896 = vunpack.c.h.b16 %v4321
      %v4897 = vunpack.c.l.b16 %v4322
      %v4898 = vunpack.c.h.b16 %v4322
      %v4899 = vunpack.c.l.b16 %v4323
      %v4900 = vunpack.c.l.b16 %v4324
      %v4901 = vunpack.c.h.b16 %v4324
      %v4902 = vunpack.c.l.b16 %v4325
      %v4903 = vunpack.c.h.b16 %v4325
      %v4904 = vunpack.c.l.b16 %v4326
      %v4905 = vunpack.c.l.b16 %v4327
      %v4906 = vunpack.c.h.b16 %v4327
      %v4907 = vunpack.c.l.b16 %v4328
      %v4908 = vunpack.c.h.b16 %v4328
      %v4909 = vunpack.c.l.b16 %v4329
      %v4910 = vunpack.c.l.b16 %v4330
      %v4911 = vunpack.c.h.b16 %v4330
      %v4912 = vunpack.c.l.b16 %v4331
      %v4913 = vunpack.c.h.b16 %v4331
      %v4914 = vunpack.c.l.b16 %v4332
      %v4915 = vunpack.c.l.b16 %v4333
      %v4916 = vunpack.c.h.b16 %v4333
      %v4917 = vunpack.c.l.b16 %v4334
      %v4918 = vunpack.c.h.b16 %v4334
      %v4919 = vunpack.c.l.b16 %v4335
      %v4920 = vunpack.c.l.b16 %v4336
      %v4921 = vunpack.c.h.b16 %v4336
      %v4922 = vunpack.c.l.b16 %v4337
      %v4923 = vunpack.c.h.b16 %v4337
      %v4924 = vunpack.c.l.b16 %v4338
      %v4925 = vunpack.c.l.b16 %v4339
      %v4926 = vunpack.c.h.b16 %v4339
      %v4927 = vunpack.c.l.b16 %v4340
      %v4928 = vunpack.c.h.b16 %v4340
      %v4929 = vunpack.c.l.b16 %v4341
      %v4930 = vpack.c.b16 %v4575, %v4570
      %v4931 = vpack.c.b16 %v4576, %v4571
      %v4932 = vpack.c.b16 %v4577, %v4572
      %v4933 = vpack.c.b16 %v4578, %v4573
      %v4934 = vpack.c.b16 %v4579, %v4574
      %v4935 = vpack.c.b16 %v4585, %v4580
      %v4936 = vpack.c.b16 %v4586, %v4581
      %v4937 = vpack.c.b16 %v4587, %v4582
      %v4938 = vpack.c.b16 %v4588, %v4583
      %v4939 = vpack.c.b16 %v4589, %v4584
      %v4940 = vpack.c.b16 %v4595, %v4590
      %v4941 = vpack.c.b16 %v4596, %v4591
      %v4942 = vpack.c.b16 %v4597, %v4592
      %v4943 = vpack.c.b16 %v4598, %v4593
      %v4944 = vpack.c.b16 %v4599, %v4594
      %v4945 = vpack.c.b16 %v4605, %v4600
      %v4946 = vpack.c.b16 %v4606, %v4601
      %v4947 = vpack.c.b16 %v4607, %v4602
      %v4948 = vpack.c.b16 %v4608, %v4603
      %v4949 = vpack.c.b16 %v4609, %v4604
      %v4950 = vpack.c.b16 %v4615, %v4610
      %v4951 = vpack.c.b16 %v4616, %v4611
      %v4952 = vpack.c.b16 %v4617, %v4612
      %v4953 = vpack.c.b16 %v4618, %v4613
      %v4954 = vpack.c.b16 %v4619, %v4614
      %v4955 = vpack.c.b16 %v4625, %v4620
      %v4956 = vpack.c.b16 %v4626, %v4621
      %v4957 = vpack.c.b16 %v4627, %v4622
      %v4958 = vpack.c.b16 %v4628, %v4623
      %v4959 = vpack.c.b16 %v4629, %v4624
      %v4960 = vpack.c.b16 %v4635, %v4630
      %v4961 = vpack.c.b16 %v4636, %v4631
      %v4962 = vpack.c.b16 %v4637, %v4632
      %v4963 = vpack.c.b16 %v4638, %v4633
      %v4964 = vpack.c.b16 %v4639, %v4634
      %v4965 = vpack.c.b16 %v4645, %v4640
      %v4966 = vpack.c.b16 %v4646, %v4641
      %v4967 = vpack.c.b16 %v4647, %v4642
      %v4968 = vpack.c.b16 %v4648, %v4643
      %v4969 = vpack.c.b16 %v4649, %v4644
      %v4970 = vpack.c.b16 %v4655, %v4650
      %v4971 = vpack.c.b16 %v4656, %v4651
      %v4972 = vpack.c.b16 %v4657, %v4652
      %v4973 = vpack.c.b16 %v4658, %v4653
      %v4974 = vpack.c.b16 %v4659, %v4654
      %v4975 = vpack.c.b16 %v4665, %v4660
      %v4976 = vpack.c.b16 %v4666, %v4661
      %v4977 = vpack.c.b16 %v4667, %v4662
      %v4978 = vpack.c.b16 %v4668, %v4663
      %v4979 = vpack.c.b16 %v4669, %v4664
      %v4980 = vpack.c.b16 %v4675, %v4670
      %v4981 = vpack.c.b16 %v4676, %v4671
      %v4982 = vpack.c.b16 %v4677, %v4672
      %v4983 = vpack.c.b16 %v4678, %v4673
      %v4984 = vpack.c.b16 %v4679, %v4674
      %v4985 = vpack.c.b16 %v4685, %v4680
      %v4986 = vpack.c.b16 %v4686, %v4681
      %v4987 = vpack.c.b16 %v4687, %v4682
      %v4988 = vpack.c.b16 %v4688, %v4683
      %v4989 = vpack.c.b16 %v4689, %v4684
      %v4990 = vpack.c.b16 %v4695, %v4690
      %v4991 = vpack.c.b16 %v4696, %v4691
      %v4992 = vpack.c.b16 %v4697, %v4692
      %v4993 = vpack.c.b16 %v4698, %v4693
      %v4994 = vpack.c.b16 %v4699, %v4694
      %v4995 = vpack.c.b16 %v4705, %v4700
      %v4996 = vpack.c.b16 %v4706, %v4701
      %v4997 = vpack.c.b16 %v4707, %v4702
      %v4998 = vpack.c.b16 %v4708, %v4703
      %v4999 = vpack.c.b16 %v4709, %v4704
      %v5000 = vpack.c.b16 %v4715, %v4710
      %v5001 = vpack.c.b16 %v4716, %v4711
      %v5002 = vpack.c.b16 %v4717, %v4712
      %v5003 = vpack.c.b16 %v4718, %v4713
      %v5004 = vpack.c.b16 %v4719, %v4714
      %v5005 = vpack.c.b16 %v4725, %v4720
      %v5006 = vpack.c.b16 %v4726, %v4721
      %v5007 = vpack.c.b16 %v4727, %v4722
      %v5008 = vpack.c.b16 %v4728, %v4723
      %v5009 = vpack.c.b16 %v4729, %v4724
      %v5010 = vpack.c.b16 %v4735, %v4730
      %v5011 = vpack.c.b16 %v4736, %v4731
      %v5012 = vpack.c.b16 %v4737, %v4732
      %v5013 = vpack.c.b16 %v4738, %v4733
      %v5014 = vpack.c.b16 %v4739, %v4734
      %v5015 = vpack.c.b16 %v4745, %v4740
      %v5016 = vpack.c.b16 %v4746, %v4741
      %v5017 = vpack.c.b16 %v4747, %v4742
      %v5018 = vpack.c.b16 %v4748, %v4743
      %v5019 = vpack.c.b16 %v4749, %v4744
      %v5020 = vpack.c.b16 %v4755, %v4750
      %v5021 = vpack.c.b16 %v4756, %v4751
      %v5022 = vpack.c.b16 %v4757, %v4752
      %v5023 = vpack.c.b16 %v4758, %v4753
      %v5024 = vpack.c.b16 %v4759, %v4754
      %v5025 = vpack.c.b16 %v4765, %v4760
      %v5026 = vpack.c.b16 %v4766, %v4761
      %v5027 = vpack.c.b16 %v4767, %v4762
      %v5028 = vpack.c.b16 %v4768, %v4763
      %v5029 = vpack.c.b16 %v4769, %v4764
      %v5030 = vpack.c.b16 %v4775, %v4770
      %v5031 = vpack.c.b16 %v4776, %v4771
      %v5032 = vpack.c.b16 %v4777, %v4772
      %v5033 = vpack.c.b16 %v4778, %v4773
      %v5034 = vpack.c.b16 %v4779, %v4774
      %v5035 = vpack.c.b16 %v4785, %v4780
      %v5036 = vpack.c.b16 %v4786, %v4781
      %v5037 = vpack.c.b16 %v4787, %v4782
      %v5038 = vpack.c.b16 %v4788, %v4783
      %v5039 = vpack.c.b16 %v4789, %v4784
      %v5040 = vpack.c.b16 %v4795, %v4790
      %v5041 = vpack.c.b16 %v4796, %v4791
      %v5042 = vpack.c.b16 %v4797, %v4792
      %v5043 = vpack.c.b16 %v4798, %v4793
      %v5044 = vpack.c.b16 %v4799, %v4794
      %v5045 = vpack.c.b16 %v4805, %v4800
      %v5046 = vpack.c.b16 %v4806, %v4801
      %v5047 = vpack.c.b16 %v4807, %v4802
      %v5048 = vpack.c.b16 %v4808, %v4803
      %v5049 = vpack.c.b16 %v4809, %v4804
      %v5050 = vpack.c.b16 %v4815, %v4810
      %v5051 = vpack.c.b16 %v4816, %v4811
      %v5052 = vpack.c.b16 %v4817, %v4812
      %v5053 = vpack.c.b16 %v4818, %v4813
      %v5054 = vpack.c.b16 %v4819, %v4814
      %v5055 = vpack.c.b16 %v4825, %v4820
      %v5056 = vpack.c.b16 %v4826, %v4821
      %v5057 = vpack.c.b16 %v4827, %v4822
      %v5058 = vpack.c.b16 %v4828, %v4823
      %v5059 = vpack.c.b16 %v4829, %v4824
      %v5060 = vpack.c.b16 %v4835, %v4830
      %v5061 = vpack.c.b16 %v4836, %v4831
      %v5062 = vpack.c.b16 %v4837, %v4832
      %v5063 = vpack.c.b16 %v4838, %v4833
      %v5064 = vpack.c.b16 %v4839, %v4834
      %v5065 = vpack.c.b16 %v4845, %v4840
      %v5066 = vpack.c.b16 %v4846, %v4841
      %v5067 = vpack.c.b16 %v4847, %v4842
      %v5068 = vpack.c.b16 %v4848, %v4843
      %v5069 = vpack.c.b16 %v4849, %v4844
      %v5070 = vpack.c.b16 %v4855, %v4850
      %v5071 = vpack.c.b16 %v4856, %v4851
      %v5072 = vpack.c.b16 %v4857, %v4852
      %v5073 = vpack.c.b16 %v4858, %v4853
      %v5074 = vpack.c.b16 %v4859, %v4854
      %v5075 = vpack.c.b16 %v4865, %v4860
      %v5076 = vpack.c.b16 %v4866, %v4861
      %v5077 = vpack.c.b16 %v4867, %v4862
      %v5078 = vpack.c.b16 %v4868, %v4863
      %v5079 = vpack.c.b16 %v4869, %v4864
      %v5080 = vpack.c.b16 %v4875, %v4870
      %v5081 = vpack.c.b16 %v4876, %v4871
      %v5082 = vpack.c.b16 %v4877, %v4872
      %v5083 = vpack.c.b16 %v4878, %v4873
      %v5084 = vpack.c.b16 %v4879, %v4874
      %v5085 = vpack.c.b16 %v4885, %v4880
      %v5086 = vpack.c.b16 %v4886, %v4881
      %v5087 = vpack.c.b16 %v4887, %v4882
      %v5088 = vpack.c.b16 %v4888, %v4883
      %v5089 = vpack.c.b16 %v4889, %v4884
      %v5090 = vpack.c.b16 %v4895, %v4890
      %v5091 = vpack.c.b16 %v4896, %v4891
      %v5092 = vpack.c.b16 %v4897, %v4892
      %v5093 = vpack.c.b16 %v4898, %v4893
      %v5094 = vpack.c.b16 %v4899, %v4894
      %v5095 = vpack.c.b16 %v4905, %v4900
      %v5096 = vpack.c.b16 %v4906, %v4901
      %v5097 = vpack.c.b16 %v4907, %v4902
      %v5098 = vpack.c.b16 %v4908, %v4903
      %v5099 = vpack.c.b16 %v4909, %v4904
      %v5100 = vpack.c.b16 %v4915, %v4910
      %v5101 = vpack.c.b16 %v4916, %v4911
      %v5102 = vpack.c.b16 %v4917, %v4912
      %v5103 = vpack.c.b16 %v4918, %v4913
      %v5104 = vpack.c.b16 %v4919, %v4914
      %v5105 = vpack.c.b16 %v4925, %v4920
      %v5106 = vpack.c.b16 %v4926, %v4921
      %v5107 = vpack.c.b16 %v4927, %v4922
      %v5108 = vpack.c.b16 %v4928, %v4923
      %v5109 = vpack.c.b16 %v4929, %v4924
      %v5291 = vsel %vm1508, %v4046, 0
      %v5294 = vsel %vm1508, %v4081, 0
      %v5297 = vsel %vm1508, %v4083, 0
      %5299 = vmatpush.bf16.msra.mxu0 %v4965
      %5300 = vmatpush.bf16.msra.mxu0 %v4960
      %5301 = vmatpush.bf16.msra.mxu0 %v4955
      %5302 = vmatpush.bf16.msra.mxu0 %v4950
      %5303 = vmatpush.bf16.msra.mxu0 %v4945
      %5304 = vmatpush.bf16.msra.mxu0 %v4940
      %5305 = vmatpush.bf16.msra.mxu0 %v4935
      %5306 = vmatpush.bf16.msra.mxu0 %v4930
      %5307 = vmatmul.bf16.gmra.mxu0 %v4085
      %v5308 = vpop.f32.mrf.mxu0
      %v5309 = vadd.f32 %v4344, %v5308
      %v5310 = vpop.f32.mrf.mxu0
      %v5311 = vadd.f32 %v4344, %v5310
      %5312 = vmatmul.bf16.gmra.mxu0 %v4088
      %v5313 = vpop.f32.mrf.mxu0
      %v5314 = vadd.f32 %v4344, %v5313
      %v5315 = vpop.f32.mrf.mxu0
      %v5316 = vadd.f32 %v4344, %v5315
      %5317 = vmatmul.bf16.gmra.mxu0 %v4091
      %v5318 = vpop.f32.mrf.mxu0
      %v5319 = vadd.f32 %v4344, %v5318
      %v5320 = vpop.f32.mrf.mxu0
      %v5321 = vadd.f32 %v4344, %v5320
      %5322 = vdwg.mxu0
      %5323 = vmatpush.bf16.msra.mxu0 %v5005
      %5324 = vmatpush.bf16.msra.mxu0 %v5000
      %5325 = vmatpush.bf16.msra.mxu0 %v4995
      %5326 = vmatpush.bf16.msra.mxu0 %v4990
      %5327 = vmatpush.bf16.msra.mxu0 %v4985
      %5328 = vmatpush.bf16.msra.mxu0 %v4980
      %5329 = vmatpush.bf16.msra.mxu0 %v4975
      %5330 = vmatpush.bf16.msra.mxu0 %v4970
      %5331 = vmatmul.bf16.gmra.mxu0 %v4095
      %v5332 = vpop.f32.mrf.mxu0
      %v5333 = vadd.f32 %v5309, %v5332
      %v5334 = vpop.f32.mrf.mxu0
      %v5335 = vadd.f32 %v5311, %v5334
      %5336 = vmatmul.bf16.gmra.mxu0 %v4099
      %v5337 = vpop.f32.mrf.mxu0
      %v5338 = vadd.f32 %v5314, %v5337
      %v5339 = vpop.f32.mrf.mxu0
      %v5340 = vadd.f32 %v5316, %v5339
      %5341 = vmatmul.bf16.gmra.mxu0 %v4103
      %v5342 = vpop.f32.mrf.mxu0
      %v5343 = vadd.f32 %v5319, %v5342
      %v5344 = vpop.f32.mrf.mxu0
      %v5345 = vadd.f32 %v5321, %v5344
      %5346 = vdwg.mxu0
      %5347 = vmatpush.bf16.msra.mxu0 %v5045
      %5348 = vmatpush.bf16.msra.mxu0 %v5040
      %5349 = vmatpush.bf16.msra.mxu0 %v5035
      %5350 = vmatpush.bf16.msra.mxu0 %v5030
      %5351 = vmatpush.bf16.msra.mxu0 %v5025
      %5352 = vmatpush.bf16.msra.mxu0 %v5020
      %5353 = vmatpush.bf16.msra.mxu0 %v5015
      %5354 = vmatpush.bf16.msra.mxu0 %v5010
      %5355 = vmatmul.bf16.gmra.mxu0 %v4107
      %v5356 = vpop.f32.mrf.mxu0
      %v5357 = vadd.f32 %v5333, %v5356
      %v5358 = vpop.f32.mrf.mxu0
      %v5359 = vadd.f32 %v5335, %v5358
      %5360 = vmatmul.bf16.gmra.mxu0 %v4111
      %v5361 = vpop.f32.mrf.mxu0
      %v5362 = vadd.f32 %v5338, %v5361
      %v5363 = vpop.f32.mrf.mxu0
      %v5364 = vadd.f32 %v5340, %v5363
      %5365 = vmatmul.bf16.gmra.mxu0 %v4115
      %v5366 = vpop.f32.mrf.mxu0
      %v5367 = vadd.f32 %v5343, %v5366
      %v5368 = vpop.f32.mrf.mxu0
      %v5369 = vadd.f32 %v5345, %v5368
      %5370 = vdwg.mxu0
      %5371 = vmatpush.bf16.msra.mxu0 %v5085
      %5372 = vmatpush.bf16.msra.mxu0 %v5080
      %5373 = vmatpush.bf16.msra.mxu0 %v5075
      %5374 = vmatpush.bf16.msra.mxu0 %v5070
      %5375 = vmatpush.bf16.msra.mxu0 %v5065
      %5376 = vmatpush.bf16.msra.mxu0 %v5060
      %5377 = vmatpush.bf16.msra.mxu0 %v5055
      %5378 = vmatpush.bf16.msra.mxu0 %v5050
      %5379 = vmatmul.bf16.gmra.mxu0 %v4118
      %v5380 = vpop.f32.mrf.mxu0
      %v5381 = vadd.f32 %v5357, %v5380
      %v5382 = vpop.f32.mrf.mxu0
      %v5383 = vadd.f32 %v5359, %v5382
      %5384 = vmatmul.bf16.gmra.mxu0 %v4121
      %v5385 = vpop.f32.mrf.mxu0
      %v5386 = vadd.f32 %v5362, %v5385
      %v5387 = vpop.f32.mrf.mxu0
      %v5388 = vadd.f32 %v5364, %v5387
      %5389 = vmatmul.bf16.gmra.mxu0 %v4124
      %v5390 = vpop.f32.mrf.mxu0
      %v5391 = vadd.f32 %v5367, %v5390
      %v5392 = vpop.f32.mrf.mxu0
      %v5393 = vadd.f32 %v5369, %v5392
      %5394 = vdwg.mxu0
      %5395 = vmatpush.bf16.msra.mxu0 0
      %5396 = vmatpush.bf16.msra.mxu0 0
      %5397 = vmatpush.bf16.msra.mxu0 0
      %5398 = vmatpush.bf16.msra.mxu0 0
      %5399 = vmatpush.bf16.msra.mxu0 %v5105
      %5400 = vmatpush.bf16.msra.mxu0 %v5100
      %5401 = vmatpush.bf16.msra.mxu0 %v5095
      %5402 = vmatpush.bf16.msra.mxu0 %v5090
      %5403 = vmatmul.bf16.gmra.mxu0 %v5291
      %v5404 = vpop.f32.mrf.mxu0
      %v5405 = vadd.f32 %v5381, %v5404
      %v5406 = vpop.f32.mrf.mxu0
      %v5407 = vadd.f32 %v5383, %v5406
      %5408 = vmatmul.bf16.gmra.mxu0 %v5294
      %v5409 = vpop.f32.mrf.mxu0
      %v5410 = vadd.f32 %v5386, %v5409
      %v5411 = vpop.f32.mrf.mxu0
      %v5412 = vadd.f32 %v5388, %v5411
      %5413 = vmatmul.bf16.gmra.mxu0 %v5297
      %v5414 = vpop.f32.mrf.mxu0
      %v5415 = vadd.f32 %v5391, %v5414
      %v5416 = vpop.f32.mrf.mxu0
      %v5417 = vadd.f32 %v5393, %v5416
      %5418 = vdwg.mxu0
      %5419 = vmatpush.bf16.msra.mxu0 %v4966
      %5420 = vmatpush.bf16.msra.mxu0 %v4961
      %5421 = vmatpush.bf16.msra.mxu0 %v4956
      %5422 = vmatpush.bf16.msra.mxu0 %v4951
      %5423 = vmatpush.bf16.msra.mxu0 %v4946
      %5424 = vmatpush.bf16.msra.mxu0 %v4941
      %5425 = vmatpush.bf16.msra.mxu0 %v4936
      %5426 = vmatpush.bf16.msra.mxu0 %v4931
      %5427 = vmatmul.bf16.gmra.mxu0 %v4085
      %v5428 = vpop.f32.mrf.mxu0
      %v5429 = vadd.f32 %v4345, %v5428
      %v5430 = vpop.f32.mrf.mxu0
      %v5431 = vadd.f32 %v4345, %v5430
      %5432 = vmatmul.bf16.gmra.mxu0 %v4088
      %v5433 = vpop.f32.mrf.mxu0
      %v5434 = vadd.f32 %v4345, %v5433
      %v5435 = vpop.f32.mrf.mxu0
      %v5436 = vadd.f32 %v4345, %v5435
      %5437 = vmatmul.bf16.gmra.mxu0 %v4091
      %v5438 = vpop.f32.mrf.mxu0
      %v5439 = vadd.f32 %v4345, %v5438
      %v5440 = vpop.f32.mrf.mxu0
      %v5441 = vadd.f32 %v4345, %v5440
      %5442 = vdwg.mxu0
      %5443 = vmatpush.bf16.msra.mxu0 %v5006
      %5444 = vmatpush.bf16.msra.mxu0 %v5001
      %5445 = vmatpush.bf16.msra.mxu0 %v4996
      %5446 = vmatpush.bf16.msra.mxu0 %v4991
      %5447 = vmatpush.bf16.msra.mxu0 %v4986
      %5448 = vmatpush.bf16.msra.mxu0 %v4981
      %5449 = vmatpush.bf16.msra.mxu0 %v4976
      %5450 = vmatpush.bf16.msra.mxu0 %v4971
      %5451 = vmatmul.bf16.gmra.mxu0 %v4095
      %v5452 = vpop.f32.mrf.mxu0
      %v5453 = vadd.f32 %v5429, %v5452
      %v5454 = vpop.f32.mrf.mxu0
      %v5455 = vadd.f32 %v5431, %v5454
      %5456 = vmatmul.bf16.gmra.mxu0 %v4099
      %v5457 = vpop.f32.mrf.mxu0
      %v5458 = vadd.f32 %v5434, %v5457
      %v5459 = vpop.f32.mrf.mxu0
      %v5460 = vadd.f32 %v5436, %v5459
      %5461 = vmatmul.bf16.gmra.mxu0 %v4103
      %v5462 = vpop.f32.mrf.mxu0
      %v5463 = vadd.f32 %v5439, %v5462
      %v5464 = vpop.f32.mrf.mxu0
      %v5465 = vadd.f32 %v5441, %v5464
      %5466 = vdwg.mxu0
      %5467 = vmatpush.bf16.msra.mxu0 %v5046
      %5468 = vmatpush.bf16.msra.mxu0 %v5041
      %5469 = vmatpush.bf16.msra.mxu0 %v5036
      %5470 = vmatpush.bf16.msra.mxu0 %v5031
      %5471 = vmatpush.bf16.msra.mxu0 %v5026
      %5472 = vmatpush.bf16.msra.mxu0 %v5021
      %5473 = vmatpush.bf16.msra.mxu0 %v5016
      %5474 = vmatpush.bf16.msra.mxu0 %v5011
      %5475 = vmatmul.bf16.gmra.mxu0 %v4107
      %v5476 = vpop.f32.mrf.mxu0
      %v5477 = vadd.f32 %v5453, %v5476
      %v5478 = vpop.f32.mrf.mxu0
      %v5479 = vadd.f32 %v5455, %v5478
      %5480 = vmatmul.bf16.gmra.mxu0 %v4111
      %v5481 = vpop.f32.mrf.mxu0
      %v5482 = vadd.f32 %v5458, %v5481
      %v5483 = vpop.f32.mrf.mxu0
      %v5484 = vadd.f32 %v5460, %v5483
      %5485 = vmatmul.bf16.gmra.mxu0 %v4115
      %v5486 = vpop.f32.mrf.mxu0
      %v5487 = vadd.f32 %v5463, %v5486
      %v5488 = vpop.f32.mrf.mxu0
      %v5489 = vadd.f32 %v5465, %v5488
      %5490 = vdwg.mxu0
      %5491 = vmatpush.bf16.msra.mxu0 %v5086
      %5492 = vmatpush.bf16.msra.mxu0 %v5081
      %5493 = vmatpush.bf16.msra.mxu0 %v5076
      %5494 = vmatpush.bf16.msra.mxu0 %v5071
      %5495 = vmatpush.bf16.msra.mxu0 %v5066
      %5496 = vmatpush.bf16.msra.mxu0 %v5061
      %5497 = vmatpush.bf16.msra.mxu0 %v5056
      %5498 = vmatpush.bf16.msra.mxu0 %v5051
      %5499 = vmatmul.bf16.gmra.mxu0 %v4118
      %v5500 = vpop.f32.mrf.mxu0
      %v5501 = vadd.f32 %v5477, %v5500
      %v5502 = vpop.f32.mrf.mxu0
      %v5503 = vadd.f32 %v5479, %v5502
      %5504 = vmatmul.bf16.gmra.mxu0 %v4121
      %v5505 = vpop.f32.mrf.mxu0
      %v5506 = vadd.f32 %v5482, %v5505
      %v5507 = vpop.f32.mrf.mxu0
      %v5508 = vadd.f32 %v5484, %v5507
      %5509 = vmatmul.bf16.gmra.mxu0 %v4124
      %v5510 = vpop.f32.mrf.mxu0
      %v5511 = vadd.f32 %v5487, %v5510
      %v5512 = vpop.f32.mrf.mxu0
      %v5513 = vadd.f32 %v5489, %v5512
      %5514 = vdwg.mxu0
      %5515 = vmatpush.bf16.msra.mxu0 0
      %5516 = vmatpush.bf16.msra.mxu0 0
      %5517 = vmatpush.bf16.msra.mxu0 0
      %5518 = vmatpush.bf16.msra.mxu0 0
      %5519 = vmatpush.bf16.msra.mxu0 %v5106
      %5520 = vmatpush.bf16.msra.mxu0 %v5101
      %5521 = vmatpush.bf16.msra.mxu0 %v5096
      %5522 = vmatpush.bf16.msra.mxu0 %v5091
      %5523 = vmatmul.bf16.gmra.mxu0 %v5291
      %v5524 = vpop.f32.mrf.mxu0
      %v5525 = vadd.f32 %v5501, %v5524
      %v5526 = vpop.f32.mrf.mxu0
      %v5527 = vadd.f32 %v5503, %v5526
      %5528 = vmatmul.bf16.gmra.mxu0 %v5294
      %v5529 = vpop.f32.mrf.mxu0
      %v5530 = vadd.f32 %v5506, %v5529
      %v5531 = vpop.f32.mrf.mxu0
      %v5532 = vadd.f32 %v5508, %v5531
      %5533 = vmatmul.bf16.gmra.mxu0 %v5297
      %v5534 = vpop.f32.mrf.mxu0
      %v5535 = vadd.f32 %v5511, %v5534
      %v5536 = vpop.f32.mrf.mxu0
      %v5537 = vadd.f32 %v5513, %v5536
      %5538 = vdwg.mxu0
      %5539 = vmatpush.bf16.msra.mxu0 %v4967
      %5540 = vmatpush.bf16.msra.mxu0 %v4962
      %5541 = vmatpush.bf16.msra.mxu0 %v4957
      %5542 = vmatpush.bf16.msra.mxu0 %v4952
      %5543 = vmatpush.bf16.msra.mxu0 %v4947
      %5544 = vmatpush.bf16.msra.mxu0 %v4942
      %5545 = vmatpush.bf16.msra.mxu0 %v4937
      %5546 = vmatpush.bf16.msra.mxu0 %v4932
      %5547 = vmatmul.bf16.gmra.mxu0 %v4085
      %v5548 = vpop.f32.mrf.mxu0
      %v5549 = vadd.f32 %v4346, %v5548
      %v5550 = vpop.f32.mrf.mxu0
      %v5551 = vadd.f32 %v4346, %v5550
      %5552 = vmatmul.bf16.gmra.mxu0 %v4088
      %v5553 = vpop.f32.mrf.mxu0
      %v5554 = vadd.f32 %v4346, %v5553
      %v5555 = vpop.f32.mrf.mxu0
      %v5556 = vadd.f32 %v4346, %v5555
      %5557 = vmatmul.bf16.gmra.mxu0 %v4091
      %v5558 = vpop.f32.mrf.mxu0
      %v5559 = vadd.f32 %v4346, %v5558
      %v5560 = vpop.f32.mrf.mxu0
      %v5561 = vadd.f32 %v4346, %v5560
      %5562 = vdwg.mxu0
      %5563 = vmatpush.bf16.msra.mxu0 %v5007
      %5564 = vmatpush.bf16.msra.mxu0 %v5002
      %5565 = vmatpush.bf16.msra.mxu0 %v4997
      %5566 = vmatpush.bf16.msra.mxu0 %v4992
      %5567 = vmatpush.bf16.msra.mxu0 %v4987
      %5568 = vmatpush.bf16.msra.mxu0 %v4982
      %5569 = vmatpush.bf16.msra.mxu0 %v4977
      %5570 = vmatpush.bf16.msra.mxu0 %v4972
      %5571 = vmatmul.bf16.gmra.mxu0 %v4095
      %v5572 = vpop.f32.mrf.mxu0
      %v5573 = vadd.f32 %v5549, %v5572
      %v5574 = vpop.f32.mrf.mxu0
      %v5575 = vadd.f32 %v5551, %v5574
      %5576 = vmatmul.bf16.gmra.mxu0 %v4099
      %v5577 = vpop.f32.mrf.mxu0
      %v5578 = vadd.f32 %v5554, %v5577
      %v5579 = vpop.f32.mrf.mxu0
      %v5580 = vadd.f32 %v5556, %v5579
      %5581 = vmatmul.bf16.gmra.mxu0 %v4103
      %v5582 = vpop.f32.mrf.mxu0
      %v5583 = vadd.f32 %v5559, %v5582
      %v5584 = vpop.f32.mrf.mxu0
      %v5585 = vadd.f32 %v5561, %v5584
      %5586 = vdwg.mxu0
      %5587 = vmatpush.bf16.msra.mxu0 %v5047
      %5588 = vmatpush.bf16.msra.mxu0 %v5042
      %5589 = vmatpush.bf16.msra.mxu0 %v5037
      %5590 = vmatpush.bf16.msra.mxu0 %v5032
      %5591 = vmatpush.bf16.msra.mxu0 %v5027
      %5592 = vmatpush.bf16.msra.mxu0 %v5022
      %5593 = vmatpush.bf16.msra.mxu0 %v5017
      %5594 = vmatpush.bf16.msra.mxu0 %v5012
      %5595 = vmatmul.bf16.gmra.mxu0 %v4107
      %v5596 = vpop.f32.mrf.mxu0
      %v5597 = vadd.f32 %v5573, %v5596
      %v5598 = vpop.f32.mrf.mxu0
      %v5599 = vadd.f32 %v5575, %v5598
      %5600 = vmatmul.bf16.gmra.mxu0 %v4111
      %v5601 = vpop.f32.mrf.mxu0
      %v5602 = vadd.f32 %v5578, %v5601
      %v5603 = vpop.f32.mrf.mxu0
      %v5604 = vadd.f32 %v5580, %v5603
      %5605 = vmatmul.bf16.gmra.mxu0 %v4115
      %v5606 = vpop.f32.mrf.mxu0
      %v5607 = vadd.f32 %v5583, %v5606
      %v5608 = vpop.f32.mrf.mxu0
      %v5609 = vadd.f32 %v5585, %v5608
      %5610 = vdwg.mxu0
      %5611 = vmatpush.bf16.msra.mxu0 %v5087
      %5612 = vmatpush.bf16.msra.mxu0 %v5082
      %5613 = vmatpush.bf16.msra.mxu0 %v5077
      %5614 = vmatpush.bf16.msra.mxu0 %v5072
      %5615 = vmatpush.bf16.msra.mxu0 %v5067
      %5616 = vmatpush.bf16.msra.mxu0 %v5062
      %5617 = vmatpush.bf16.msra.mxu0 %v5057
      %5618 = vmatpush.bf16.msra.mxu0 %v5052
      %5619 = vmatmul.bf16.gmra.mxu0 %v4118
      %v5620 = vpop.f32.mrf.mxu0
      %v5621 = vadd.f32 %v5597, %v5620
      %v5622 = vpop.f32.mrf.mxu0
      %v5623 = vadd.f32 %v5599, %v5622
      %5624 = vmatmul.bf16.gmra.mxu0 %v4121
      %v5625 = vpop.f32.mrf.mxu0
      %v5626 = vadd.f32 %v5602, %v5625
      %v5627 = vpop.f32.mrf.mxu0
      %v5628 = vadd.f32 %v5604, %v5627
      %5629 = vmatmul.bf16.gmra.mxu0 %v4124
      %v5630 = vpop.f32.mrf.mxu0
      %v5631 = vadd.f32 %v5607, %v5630
      %v5632 = vpop.f32.mrf.mxu0
      %v5633 = vadd.f32 %v5609, %v5632
      %5634 = vdwg.mxu0
      %5635 = vmatpush.bf16.msra.mxu0 0
      %5636 = vmatpush.bf16.msra.mxu0 0
      %5637 = vmatpush.bf16.msra.mxu0 0
      %5638 = vmatpush.bf16.msra.mxu0 0
      %5639 = vmatpush.bf16.msra.mxu0 %v5107
      %5640 = vmatpush.bf16.msra.mxu0 %v5102
      %5641 = vmatpush.bf16.msra.mxu0 %v5097
      %5642 = vmatpush.bf16.msra.mxu0 %v5092
      %5643 = vmatmul.bf16.gmra.mxu0 %v5291
      %v5644 = vpop.f32.mrf.mxu0
      %v5645 = vadd.f32 %v5621, %v5644
      %v5646 = vpop.f32.mrf.mxu0
      %v5647 = vadd.f32 %v5623, %v5646
      %5648 = vmatmul.bf16.gmra.mxu0 %v5294
      %v5649 = vpop.f32.mrf.mxu0
      %v5650 = vadd.f32 %v5626, %v5649
      %v5651 = vpop.f32.mrf.mxu0
      %v5652 = vadd.f32 %v5628, %v5651
      %5653 = vmatmul.bf16.gmra.mxu0 %v5297
      %v5654 = vpop.f32.mrf.mxu0
      %v5655 = vadd.f32 %v5631, %v5654
      %v5656 = vpop.f32.mrf.mxu0
      %v5657 = vadd.f32 %v5633, %v5656
      %5658 = vdwg.mxu0
      %5659 = vmatpush.bf16.msra.mxu0 %v4968
      %5660 = vmatpush.bf16.msra.mxu0 %v4963
      %5661 = vmatpush.bf16.msra.mxu0 %v4958
      %5662 = vmatpush.bf16.msra.mxu0 %v4953
      %5663 = vmatpush.bf16.msra.mxu0 %v4948
      %5664 = vmatpush.bf16.msra.mxu0 %v4943
      %5665 = vmatpush.bf16.msra.mxu0 %v4938
      %5666 = vmatpush.bf16.msra.mxu0 %v4933
      %5667 = vmatmul.bf16.gmra.mxu0 %v4085
      %v5668 = vpop.f32.mrf.mxu0
      %v5669 = vadd.f32 %v4347, %v5668
      %v5670 = vpop.f32.mrf.mxu0
      %v5671 = vadd.f32 %v4347, %v5670
      %5672 = vmatmul.bf16.gmra.mxu0 %v4088
      %v5673 = vpop.f32.mrf.mxu0
      %v5674 = vadd.f32 %v4347, %v5673
      %v5675 = vpop.f32.mrf.mxu0
      %v5676 = vadd.f32 %v4347, %v5675
      %5677 = vmatmul.bf16.gmra.mxu0 %v4091
      %v5678 = vpop.f32.mrf.mxu0
      %v5679 = vadd.f32 %v4347, %v5678
      %v5680 = vpop.f32.mrf.mxu0
      %v5681 = vadd.f32 %v4347, %v5680
      %5682 = vdwg.mxu0
      %5683 = vmatpush.bf16.msra.mxu0 %v5008
      %5684 = vmatpush.bf16.msra.mxu0 %v5003
      %5685 = vmatpush.bf16.msra.mxu0 %v4998
      %5686 = vmatpush.bf16.msra.mxu0 %v4993
      %5687 = vmatpush.bf16.msra.mxu0 %v4988
      %5688 = vmatpush.bf16.msra.mxu0 %v4983
      %5689 = vmatpush.bf16.msra.mxu0 %v4978
      %5690 = vmatpush.bf16.msra.mxu0 %v4973
      %5691 = vmatmul.bf16.gmra.mxu0 %v4095
      %v5692 = vpop.f32.mrf.mxu0
      %v5693 = vadd.f32 %v5669, %v5692
      %v5694 = vpop.f32.mrf.mxu0
      %v5695 = vadd.f32 %v5671, %v5694
      %5696 = vmatmul.bf16.gmra.mxu0 %v4099
      %v5697 = vpop.f32.mrf.mxu0
      %v5698 = vadd.f32 %v5674, %v5697
      %v5699 = vpop.f32.mrf.mxu0
      %v5700 = vadd.f32 %v5676, %v5699
      %5701 = vmatmul.bf16.gmra.mxu0 %v4103
      %v5702 = vpop.f32.mrf.mxu0
      %v5703 = vadd.f32 %v5679, %v5702
      %v5704 = vpop.f32.mrf.mxu0
      %v5705 = vadd.f32 %v5681, %v5704
      %5706 = vdwg.mxu0
      %5707 = vmatpush.bf16.msra.mxu0 %v5048
      %5708 = vmatpush.bf16.msra.mxu0 %v5043
      %5709 = vmatpush.bf16.msra.mxu0 %v5038
      %5710 = vmatpush.bf16.msra.mxu0 %v5033
      %5711 = vmatpush.bf16.msra.mxu0 %v5028
      %5712 = vmatpush.bf16.msra.mxu0 %v5023
      %5713 = vmatpush.bf16.msra.mxu0 %v5018
      %5714 = vmatpush.bf16.msra.mxu0 %v5013
      %5715 = vmatmul.bf16.gmra.mxu0 %v4107
      %v5716 = vpop.f32.mrf.mxu0
      %v5717 = vadd.f32 %v5693, %v5716
      %v5718 = vpop.f32.mrf.mxu0
      %v5719 = vadd.f32 %v5695, %v5718
      %5720 = vmatmul.bf16.gmra.mxu0 %v4111
      %v5721 = vpop.f32.mrf.mxu0
      %v5722 = vadd.f32 %v5698, %v5721
      %v5723 = vpop.f32.mrf.mxu0
      %v5724 = vadd.f32 %v5700, %v5723
      %5725 = vmatmul.bf16.gmra.mxu0 %v4115
      %v5726 = vpop.f32.mrf.mxu0
      %v5727 = vadd.f32 %v5703, %v5726
      %v5728 = vpop.f32.mrf.mxu0
      %v5729 = vadd.f32 %v5705, %v5728
      %5730 = vdwg.mxu0
      %5731 = vmatpush.bf16.msra.mxu0 %v5088
      %5732 = vmatpush.bf16.msra.mxu0 %v5083
      %5733 = vmatpush.bf16.msra.mxu0 %v5078
      %5734 = vmatpush.bf16.msra.mxu0 %v5073
      %5735 = vmatpush.bf16.msra.mxu0 %v5068
      %5736 = vmatpush.bf16.msra.mxu0 %v5063
      %5737 = vmatpush.bf16.msra.mxu0 %v5058
      %5738 = vmatpush.bf16.msra.mxu0 %v5053
      %5739 = vmatmul.bf16.gmra.mxu0 %v4118
      %v5740 = vpop.f32.mrf.mxu0
      %v5741 = vadd.f32 %v5717, %v5740
      %v5742 = vpop.f32.mrf.mxu0
      %v5743 = vadd.f32 %v5719, %v5742
      %5744 = vmatmul.bf16.gmra.mxu0 %v4121
      %v5745 = vpop.f32.mrf.mxu0
      %v5746 = vadd.f32 %v5722, %v5745
      %v5747 = vpop.f32.mrf.mxu0
      %v5748 = vadd.f32 %v5724, %v5747
      %5749 = vmatmul.bf16.gmra.mxu0 %v4124
      %v5750 = vpop.f32.mrf.mxu0
      %v5751 = vadd.f32 %v5727, %v5750
      %v5752 = vpop.f32.mrf.mxu0
      %v5753 = vadd.f32 %v5729, %v5752
      %5754 = vdwg.mxu0
      %5755 = vmatpush.bf16.msra.mxu0 0
      %5756 = vmatpush.bf16.msra.mxu0 0
      %5757 = vmatpush.bf16.msra.mxu0 0
      %5758 = vmatpush.bf16.msra.mxu0 0
      %5759 = vmatpush.bf16.msra.mxu0 %v5108
      %5760 = vmatpush.bf16.msra.mxu0 %v5103
      %5761 = vmatpush.bf16.msra.mxu0 %v5098
      %5762 = vmatpush.bf16.msra.mxu0 %v5093
      %5763 = vmatmul.bf16.gmra.mxu0 %v5291
      %v5764 = vpop.f32.mrf.mxu0
      %v5765 = vadd.f32 %v5741, %v5764
      %v5766 = vpop.f32.mrf.mxu0
      %v5767 = vadd.f32 %v5743, %v5766
      %5768 = vmatmul.bf16.gmra.mxu0 %v5294
      %v5769 = vpop.f32.mrf.mxu0
      %v5770 = vadd.f32 %v5746, %v5769
      %v5771 = vpop.f32.mrf.mxu0
      %v5772 = vadd.f32 %v5748, %v5771
      %5773 = vmatmul.bf16.gmra.mxu0 %v5297
      %v5774 = vpop.f32.mrf.mxu0
      %v5775 = vadd.f32 %v5751, %v5774
      %v5776 = vpop.f32.mrf.mxu0
      %v5777 = vadd.f32 %v5753, %v5776
      %5778 = vdwg.mxu0
      %5779 = vmatpush.bf16.msra.mxu0 %v4969
      %5780 = vmatpush.bf16.msra.mxu0 %v4964
      %5781 = vmatpush.bf16.msra.mxu0 %v4959
      %5782 = vmatpush.bf16.msra.mxu0 %v4954
      %5783 = vmatpush.bf16.msra.mxu0 %v4949
      %5784 = vmatpush.bf16.msra.mxu0 %v4944
      %5785 = vmatpush.bf16.msra.mxu0 %v4939
      %5786 = vmatpush.bf16.msra.mxu0 %v4934
      %5787 = vmatmul.bf16.gmra.mxu0 %v4085
      %v5788 = vpop.f32.mrf.mxu0
      %v5789 = vadd.f32 %v4348, %v5788
      %v5790 = vpop.f32.mrf.mxu0
      %v5791 = vadd.f32 %v4348, %v5790
      %5792 = vmatmul.bf16.gmra.mxu0 %v4088
      %v5793 = vpop.f32.mrf.mxu0
      %v5794 = vadd.f32 %v4348, %v5793
      %v5795 = vpop.f32.mrf.mxu0
      %v5796 = vadd.f32 %v4348, %v5795
      %5797 = vmatmul.bf16.gmra.mxu0 %v4091
      %v5798 = vpop.f32.mrf.mxu0
      %v5799 = vadd.f32 %v4348, %v5798
      %v5800 = vpop.f32.mrf.mxu0
      %v5801 = vadd.f32 %v4348, %v5800
      %5802 = vdwg.mxu0
      %5803 = vmatpush.bf16.msra.mxu0 %v5009
      %5804 = vmatpush.bf16.msra.mxu0 %v5004
      %5805 = vmatpush.bf16.msra.mxu0 %v4999
      %5806 = vmatpush.bf16.msra.mxu0 %v4994
      %5807 = vmatpush.bf16.msra.mxu0 %v4989
      %5808 = vmatpush.bf16.msra.mxu0 %v4984
      %5809 = vmatpush.bf16.msra.mxu0 %v4979
      %5810 = vmatpush.bf16.msra.mxu0 %v4974
      %5811 = vmatmul.bf16.gmra.mxu0 %v4095
      %v5812 = vpop.f32.mrf.mxu0
      %v5813 = vadd.f32 %v5789, %v5812
      %v5814 = vpop.f32.mrf.mxu0
      %v5815 = vadd.f32 %v5791, %v5814
      %5816 = vmatmul.bf16.gmra.mxu0 %v4099
      %v5817 = vpop.f32.mrf.mxu0
      %v5818 = vadd.f32 %v5794, %v5817
      %v5819 = vpop.f32.mrf.mxu0
      %v5820 = vadd.f32 %v5796, %v5819
      %5821 = vmatmul.bf16.gmra.mxu0 %v4103
      %v5822 = vpop.f32.mrf.mxu0
      %v5823 = vadd.f32 %v5799, %v5822
      %v5824 = vpop.f32.mrf.mxu0
      %v5825 = vadd.f32 %v5801, %v5824
      %5826 = vdwg.mxu0
      %5827 = vmatpush.bf16.msra.mxu0 %v5049
      %5828 = vmatpush.bf16.msra.mxu0 %v5044
      %5829 = vmatpush.bf16.msra.mxu0 %v5039
      %5830 = vmatpush.bf16.msra.mxu0 %v5034
      %5831 = vmatpush.bf16.msra.mxu0 %v5029
      %5832 = vmatpush.bf16.msra.mxu0 %v5024
      %5833 = vmatpush.bf16.msra.mxu0 %v5019
      %5834 = vmatpush.bf16.msra.mxu0 %v5014
      %5835 = vmatmul.bf16.gmra.mxu0 %v4107
      %v5836 = vpop.f32.mrf.mxu0
      %v5837 = vadd.f32 %v5813, %v5836
      %v5838 = vpop.f32.mrf.mxu0
      %v5839 = vadd.f32 %v5815, %v5838
      %5840 = vmatmul.bf16.gmra.mxu0 %v4111
      %v5841 = vpop.f32.mrf.mxu0
      %v5842 = vadd.f32 %v5818, %v5841
      %v5843 = vpop.f32.mrf.mxu0
      %v5844 = vadd.f32 %v5820, %v5843
      %5845 = vmatmul.bf16.gmra.mxu0 %v4115
      %v5846 = vpop.f32.mrf.mxu0
      %v5847 = vadd.f32 %v5823, %v5846
      %v5848 = vpop.f32.mrf.mxu0
      %v5849 = vadd.f32 %v5825, %v5848
      %5850 = vdwg.mxu0
      %5851 = vmatpush.bf16.msra.mxu0 %v5089
      %5852 = vmatpush.bf16.msra.mxu0 %v5084
      %5853 = vmatpush.bf16.msra.mxu0 %v5079
      %5854 = vmatpush.bf16.msra.mxu0 %v5074
      %5855 = vmatpush.bf16.msra.mxu0 %v5069
      %5856 = vmatpush.bf16.msra.mxu0 %v5064
      %5857 = vmatpush.bf16.msra.mxu0 %v5059
      %5858 = vmatpush.bf16.msra.mxu0 %v5054
      %5859 = vmatmul.bf16.gmra.mxu0 %v4118
      %v5860 = vpop.f32.mrf.mxu0
      %v5861 = vadd.f32 %v5837, %v5860
      %v5862 = vpop.f32.mrf.mxu0
      %v5863 = vadd.f32 %v5839, %v5862
      %5864 = vmatmul.bf16.gmra.mxu0 %v4121
      %v5865 = vpop.f32.mrf.mxu0
      %v5866 = vadd.f32 %v5842, %v5865
      %v5867 = vpop.f32.mrf.mxu0
      %v5868 = vadd.f32 %v5844, %v5867
      %5869 = vmatmul.bf16.gmra.mxu0 %v4124
      %v5870 = vpop.f32.mrf.mxu0
      %v5871 = vadd.f32 %v5847, %v5870
      %v5872 = vpop.f32.mrf.mxu0
      %v5873 = vadd.f32 %v5849, %v5872
      %5874 = vdwg.mxu0
      %5875 = vmatpush.bf16.msra.mxu0 0
      %5876 = vmatpush.bf16.msra.mxu0 0
      %5877 = vmatpush.bf16.msra.mxu0 0
      %5878 = vmatpush.bf16.msra.mxu0 0
      %5879 = vmatpush.bf16.msra.mxu0 %v5109
      %5880 = vmatpush.bf16.msra.mxu0 %v5104
      %5881 = vmatpush.bf16.msra.mxu0 %v5099
      %5882 = vmatpush.bf16.msra.mxu0 %v5094
      %5883 = vmatmul.bf16.gmra.mxu0 %v5291
      %v5884 = vpop.f32.mrf.mxu0
      %v5885 = vadd.f32 %v5861, %v5884
      %v5886 = vpop.f32.mrf.mxu0
      %v5887 = vadd.f32 %v5863, %v5886
      %5888 = vmatmul.bf16.gmra.mxu0 %v5294
      %v5889 = vpop.f32.mrf.mxu0
      %v5890 = vadd.f32 %v5866, %v5889
      %v5891 = vpop.f32.mrf.mxu0
      %v5892 = vadd.f32 %v5868, %v5891
      %5893 = vmatmul.bf16.gmra.mxu0 %v5297
      %v5894 = vpop.f32.mrf.mxu0
      %v5895 = vadd.f32 %v5871, %v5894
      %v5896 = vpop.f32.mrf.mxu0
      %v5897 = vadd.f32 %v5873, %v5896
      %5898 = vdwg.mxu0
      %vm5906 = vcmask 1046528
      %v5907 = vrot.slane %v417, 1
      %v5908 = vrot.slane %v418, 1
      %v5909 = vsel %vm5906, %v5907, %v5908
      %v5910 = vrot.slane %v419, 1
      %v5911 = vsel %vm5906, %v5908, %v5910
      %v5912 = vrot.slane %v420, 1
      %v5913 = vsel %vm5906, %v5910, %v5912
      %v5914 = vrot.slane %v421, 1
      %v5915 = vsel %vm5906, %v5912, %v5914
      %v5916 = vrot.slane %v422, 1
      %v5917 = vsel %vm5906, %v5914, %v5916
      %v5918 = vrot.slane %v423, 1
      %v5919 = vsel %vm5906, %v5916, %v5918
      %5920 = vrot.lane.b32.xlu0 %v5909, 1
      %v5921 = vpop.permute.xlu0 %5920
      %5922 = vrot.lane.b32.xlu0 %v5911, 1
      %v5923 = vpop.permute.xlu0 %5922
      %5924 = vrot.lane.b32.xlu0 %v5913, 1
      %v5925 = vpop.permute.xlu0 %5924
      %5926 = vrot.lane.b32.xlu0 %v5915, 1
      %v5927 = vpop.permute.xlu0 %5926
      %5928 = vrot.lane.b32.xlu0 %v5917, 1
      %v5929 = vpop.permute.xlu0 %5928
      %5930 = vrot.lane.b32.xlu0 %v5919, 1
      %v5931 = vpop.permute.xlu0 %5930
      %5932 = vrot.lane.b32.xlu0 %v5918, 1
      %v5933 = vpop.permute.xlu0 %5932
      %vm5941 = vcmask 1045504
      %v5942 = vrot.slane %v417, 2
      %v5943 = vrot.slane %v418, 2
      %v5944 = vsel %vm5941, %v5942, %v5943
      %v5945 = vrot.slane %v419, 2
      %v5946 = vsel %vm5941, %v5943, %v5945
      %v5947 = vrot.slane %v420, 2
      %v5948 = vsel %vm5941, %v5945, %v5947
      %v5949 = vrot.slane %v421, 2
      %v5950 = vsel %vm5941, %v5947, %v5949
      %v5951 = vrot.slane %v422, 2
      %v5952 = vsel %vm5941, %v5949, %v5951
      %v5953 = vrot.slane %v423, 2
      %v5954 = vsel %vm5941, %v5951, %v5953
      %5955 = vrot.lane.b32.xlu0 %v5944, 2
      %v5956 = vpop.permute.xlu0 %5955
      %5957 = vrot.lane.b32.xlu0 %v5946, 2
      %v5958 = vpop.permute.xlu0 %5957
      %5959 = vrot.lane.b32.xlu0 %v5948, 2
      %v5960 = vpop.permute.xlu0 %5959
      %5961 = vrot.lane.b32.xlu0 %v5950, 2
      %v5962 = vpop.permute.xlu0 %5961
      %5963 = vrot.lane.b32.xlu0 %v5952, 2
      %v5964 = vpop.permute.xlu0 %5963
      %5965 = vrot.lane.b32.xlu0 %v5954, 2
      %v5966 = vpop.permute.xlu0 %5965
      %5967 = vrot.lane.b32.xlu0 %v5953, 2
      %v5968 = vpop.permute.xlu0 %5967
      %vm5976 = vcmask 1044480
      %v5977 = vrot.slane %v417, 3
      %v5978 = vrot.slane %v418, 3
      %v5979 = vsel %vm5976, %v5977, %v5978
      %v5980 = vrot.slane %v419, 3
      %v5981 = vsel %vm5976, %v5978, %v5980
      %v5982 = vrot.slane %v420, 3
      %v5983 = vsel %vm5976, %v5980, %v5982
      %v5984 = vrot.slane %v421, 3
      %v5985 = vsel %vm5976, %v5982, %v5984
      %v5986 = vrot.slane %v422, 3
      %v5987 = vsel %vm5976, %v5984, %v5986
      %v5988 = vrot.slane %v423, 3
      %v5989 = vsel %vm5976, %v5986, %v5988
      %5990 = vrot.lane.b32.xlu0 %v5979, 3
      %v5991 = vpop.permute.xlu0 %5990
      %5992 = vrot.lane.b32.xlu0 %v5981, 3
      %v5993 = vpop.permute.xlu0 %5992
      %5994 = vrot.lane.b32.xlu0 %v5983, 3
      %v5995 = vpop.permute.xlu0 %5994
      %5996 = vrot.lane.b32.xlu0 %v5985, 3
      %v5997 = vpop.permute.xlu0 %5996
      %5998 = vrot.lane.b32.xlu0 %v5987, 3
      %v5999 = vpop.permute.xlu0 %5998
      %6000 = vrot.lane.b32.xlu0 %v5989, 3
      %v6001 = vpop.permute.xlu0 %6000
      %6002 = vrot.lane.b32.xlu0 %v5988, 3
      %v6003 = vpop.permute.xlu0 %6002
      %vm6011 = vcmask 1043456
      %v6012 = vrot.slane %v417, 4
      %v6013 = vrot.slane %v418, 4
      %v6014 = vsel %vm6011, %v6012, %v6013
      %v6015 = vrot.slane %v419, 4
      %v6016 = vsel %vm6011, %v6013, %v6015
      %v6017 = vrot.slane %v420, 4
      %v6018 = vsel %vm6011, %v6015, %v6017
      %v6019 = vrot.slane %v421, 4
      %v6020 = vsel %vm6011, %v6017, %v6019
      %v6021 = vrot.slane %v422, 4
      %v6022 = vsel %vm6011, %v6019, %v6021
      %v6023 = vrot.slane %v423, 4
      %v6024 = vsel %vm6011, %v6021, %v6023
      %6025 = vrot.lane.b32.xlu0 %v6014, 4
      %v6026 = vpop.permute.xlu0 %6025
      %6027 = vrot.lane.b32.xlu0 %v6016, 4
      %v6028 = vpop.permute.xlu0 %6027
      %6029 = vrot.lane.b32.xlu0 %v6018, 4
      %v6030 = vpop.permute.xlu0 %6029
      %6031 = vrot.lane.b32.xlu0 %v6020, 4
      %v6032 = vpop.permute.xlu0 %6031
      %6033 = vrot.lane.b32.xlu0 %v6022, 4
      %v6034 = vpop.permute.xlu0 %6033
      %6035 = vrot.lane.b32.xlu0 %v6024, 4
      %v6036 = vpop.permute.xlu0 %6035
      %6037 = vrot.lane.b32.xlu0 %v6023, 4
      %v6038 = vpop.permute.xlu0 %6037
      %vm6046 = vcmask 1042432
      %v6047 = vrot.slane %v417, 5
      %v6048 = vrot.slane %v418, 5
      %v6049 = vsel %vm6046, %v6047, %v6048
      %v6050 = vrot.slane %v419, 5
      %v6051 = vsel %vm6046, %v6048, %v6050
      %v6052 = vrot.slane %v420, 5
      %v6053 = vsel %vm6046, %v6050, %v6052
      %v6054 = vrot.slane %v421, 5
      %v6055 = vsel %vm6046, %v6052, %v6054
      %v6056 = vrot.slane %v422, 5
      %v6057 = vsel %vm6046, %v6054, %v6056
      %v6058 = vrot.slane %v423, 5
      %v6059 = vsel %vm6046, %v6056, %v6058
      %6060 = vrot.lane.b32.xlu0 %v6049, 5
      %v6061 = vpop.permute.xlu0 %6060
      %6062 = vrot.lane.b32.xlu0 %v6051, 5
      %v6063 = vpop.permute.xlu0 %6062
      %6064 = vrot.lane.b32.xlu0 %v6053, 5
      %v6065 = vpop.permute.xlu0 %6064
      %6066 = vrot.lane.b32.xlu0 %v6055, 5
      %v6067 = vpop.permute.xlu0 %6066
      %6068 = vrot.lane.b32.xlu0 %v6057, 5
      %v6069 = vpop.permute.xlu0 %6068
      %6070 = vrot.lane.b32.xlu0 %v6059, 5
      %v6071 = vpop.permute.xlu0 %6070
      %6072 = vrot.lane.b32.xlu0 %v6058, 5
      %v6073 = vpop.permute.xlu0 %6072
      %v6081 = vrot.slane %v418, 6
      %v6082 = vrot.slane %v419, 6
      %v6083 = vsel %vm1124, %v6081, %v6082
      %v6084 = vrot.slane %v420, 6
      %v6085 = vsel %vm1124, %v6082, %v6084
      %v6086 = vrot.slane %v421, 6
      %v6087 = vsel %vm1124, %v6084, %v6086
      %v6088 = vrot.slane %v422, 6
      %v6089 = vsel %vm1124, %v6086, %v6088
      %v6090 = vrot.slane %v423, 6
      %v6091 = vsel %vm1124, %v6088, %v6090
      %6092 = vrot.lane.b32.xlu0 %v6081, 6
      %v6093 = vpop.permute.xlu0 %6092
      %6094 = vrot.lane.b32.xlu0 %v6083, 6
      %v6095 = vpop.permute.xlu0 %6094
      %6096 = vrot.lane.b32.xlu0 %v6085, 6
      %v6097 = vpop.permute.xlu0 %6096
      %6098 = vrot.lane.b32.xlu0 %v6087, 6
      %v6099 = vpop.permute.xlu0 %6098
      %6100 = vrot.lane.b32.xlu0 %v6089, 6
      %v6101 = vpop.permute.xlu0 %6100
      %6102 = vrot.lane.b32.xlu0 %v6091, 6
      %v6103 = vpop.permute.xlu0 %6102
      %6104 = vrot.lane.b32.xlu0 %v6090, 6
      %v6105 = vpop.permute.xlu0 %6104
      %6115 = vrot.lane.b32.xlu0 %v419, 7
      %v6116 = vpop.permute.xlu0 %6115
      %6117 = vrot.lane.b32.xlu0 %v420, 7
      %v6118 = vpop.permute.xlu0 %6117
      %6119 = vrot.lane.b32.xlu0 %v421, 7
      %v6120 = vpop.permute.xlu0 %6119
      %6121 = vrot.lane.b32.xlu0 %v422, 7
      %v6122 = vpop.permute.xlu0 %6121
      %6123 = vrot.lane.b32.xlu0 %v423, 7
      %v6124 = vpop.permute.xlu0 %6123
      %6125 = vrot.lane.b32.xlu0 %v424, 7
      %v6126 = vpop.permute.xlu0 %6125
      %6127 = vrot.lane.b32.xlu0 %v425, 7
      %v6128 = vpop.permute.xlu0 %6127
      %v6136 = vrot.slane %v424, 1
      %v6137 = vsel %vm5906, %v5918, %v6136
      %v6138 = vrot.slane %v425, 1
      %v6139 = vsel %vm5906, %v6136, %v6138
      %6140 = vrot.lane.b32.xlu0 %v5913, 8
      %v6141 = vpop.permute.xlu0 %6140
      %6142 = vrot.lane.b32.xlu0 %v5915, 8
      %v6143 = vpop.permute.xlu0 %6142
      %6144 = vrot.lane.b32.xlu0 %v5917, 8
      %v6145 = vpop.permute.xlu0 %6144
      %6146 = vrot.lane.b32.xlu0 %v5919, 8
      %v6147 = vpop.permute.xlu0 %6146
      %6148 = vrot.lane.b32.xlu0 %v6137, 8
      %v6149 = vpop.permute.xlu0 %6148
      %6150 = vrot.lane.b32.xlu0 %v6139, 8
      %v6151 = vpop.permute.xlu0 %6150
      %6152 = vrot.lane.b32.xlu0 %v6138, 8
      %v6153 = vpop.permute.xlu0 %6152
      %v6161 = vrot.slane %v424, 2
      %v6162 = vsel %vm5941, %v5953, %v6161
      %v6163 = vrot.slane %v425, 2
      %v6164 = vsel %vm5941, %v6161, %v6163
      %6165 = vrot.lane.b32.xlu0 %v5948, 9
      %v6166 = vpop.permute.xlu0 %6165
      %6167 = vrot.lane.b32.xlu0 %v5950, 9
      %v6168 = vpop.permute.xlu0 %6167
      %6169 = vrot.lane.b32.xlu0 %v5952, 9
      %v6170 = vpop.permute.xlu0 %6169
      %6171 = vrot.lane.b32.xlu0 %v5954, 9
      %v6172 = vpop.permute.xlu0 %6171
      %6173 = vrot.lane.b32.xlu0 %v6162, 9
      %v6174 = vpop.permute.xlu0 %6173
      %6175 = vrot.lane.b32.xlu0 %v6164, 9
      %v6176 = vpop.permute.xlu0 %6175
      %6177 = vrot.lane.b32.xlu0 %v6163, 9
      %v6178 = vpop.permute.xlu0 %6177
      %v6186 = vrot.slane %v424, 3
      %v6187 = vsel %vm5976, %v5988, %v6186
      %v6188 = vrot.slane %v425, 3
      %v6189 = vsel %vm5976, %v6186, %v6188
      %6190 = vrot.lane.b32.xlu0 %v5983, 10
      %v6191 = vpop.permute.xlu0 %6190
      %6192 = vrot.lane.b32.xlu0 %v5985, 10
      %v6193 = vpop.permute.xlu0 %6192
      %6194 = vrot.lane.b32.xlu0 %v5987, 10
      %v6195 = vpop.permute.xlu0 %6194
      %6196 = vrot.lane.b32.xlu0 %v5989, 10
      %v6197 = vpop.permute.xlu0 %6196
      %6198 = vrot.lane.b32.xlu0 %v6187, 10
      %v6199 = vpop.permute.xlu0 %6198
      %6200 = vrot.lane.b32.xlu0 %v6189, 10
      %v6201 = vpop.permute.xlu0 %6200
      %6202 = vrot.lane.b32.xlu0 %v6188, 10
      %v6203 = vpop.permute.xlu0 %6202
      %v6211 = vrot.slane %v424, 4
      %v6212 = vsel %vm6011, %v6023, %v6211
      %v6213 = vrot.slane %v425, 4
      %v6214 = vsel %vm6011, %v6211, %v6213
      %6215 = vrot.lane.b32.xlu0 %v6018, 11
      %v6216 = vpop.permute.xlu0 %6215
      %6217 = vrot.lane.b32.xlu0 %v6020, 11
      %v6218 = vpop.permute.xlu0 %6217
      %6219 = vrot.lane.b32.xlu0 %v6022, 11
      %v6220 = vpop.permute.xlu0 %6219
      %6221 = vrot.lane.b32.xlu0 %v6024, 11
      %v6222 = vpop.permute.xlu0 %6221
      %6223 = vrot.lane.b32.xlu0 %v6212, 11
      %v6224 = vpop.permute.xlu0 %6223
      %6225 = vrot.lane.b32.xlu0 %v6214, 11
      %v6226 = vpop.permute.xlu0 %6225
      %6227 = vrot.lane.b32.xlu0 %v6213, 11
      %v6228 = vpop.permute.xlu0 %6227
      %v6236 = vrot.slane %v424, 5
      %v6237 = vsel %vm6046, %v6058, %v6236
      %v6238 = vrot.slane %v425, 5
      %v6239 = vsel %vm6046, %v6236, %v6238
      %6240 = vrot.lane.b32.xlu0 %v6053, 12
      %v6241 = vpop.permute.xlu0 %6240
      %6242 = vrot.lane.b32.xlu0 %v6055, 12
      %v6243 = vpop.permute.xlu0 %6242
      %6244 = vrot.lane.b32.xlu0 %v6057, 12
      %v6245 = vpop.permute.xlu0 %6244
      %6246 = vrot.lane.b32.xlu0 %v6059, 12
      %v6247 = vpop.permute.xlu0 %6246
      %6248 = vrot.lane.b32.xlu0 %v6237, 12
      %v6249 = vpop.permute.xlu0 %6248
      %6250 = vrot.lane.b32.xlu0 %v6239, 12
      %v6251 = vpop.permute.xlu0 %6250
      %6252 = vrot.lane.b32.xlu0 %v6238, 12
      %v6253 = vpop.permute.xlu0 %6252
      %v6261 = vrot.slane %v424, 6
      %v6262 = vsel %vm1124, %v6090, %v6261
      %v6263 = vrot.slane %v425, 6
      %v6264 = vsel %vm1124, %v6261, %v6263
      %6265 = vrot.lane.b32.xlu0 %v6084, 13
      %v6266 = vpop.permute.xlu0 %6265
      %6267 = vrot.lane.b32.xlu0 %v6087, 13
      %v6268 = vpop.permute.xlu0 %6267
      %6269 = vrot.lane.b32.xlu0 %v6089, 13
      %v6270 = vpop.permute.xlu0 %6269
      %6271 = vrot.lane.b32.xlu0 %v6091, 13
      %v6272 = vpop.permute.xlu0 %6271
      %6273 = vrot.lane.b32.xlu0 %v6262, 13
      %v6274 = vpop.permute.xlu0 %6273
      %6275 = vrot.lane.b32.xlu0 %v6264, 13
      %v6276 = vpop.permute.xlu0 %6275
      %6277 = vrot.lane.b32.xlu0 %v6263, 13
      %v6278 = vpop.permute.xlu0 %6277
      %6288 = vrot.lane.b32.xlu0 %v421, 14
      %v6289 = vpop.permute.xlu0 %6288
      %6290 = vrot.lane.b32.xlu0 %v422, 14
      %v6291 = vpop.permute.xlu0 %6290
      %6292 = vrot.lane.b32.xlu0 %v423, 14
      %v6293 = vpop.permute.xlu0 %6292
      %6294 = vrot.lane.b32.xlu0 %v424, 14
      %v6295 = vpop.permute.xlu0 %6294
      %6296 = vrot.lane.b32.xlu0 %v425, 14
      %v6297 = vpop.permute.xlu0 %6296
      %6298 = vrot.lane.b32.xlu0 %v426, 14
      %v6299 = vpop.permute.xlu0 %6298
      %6300 = vrot.lane.b32.xlu0 %v427, 14
      %v6301 = vpop.permute.xlu0 %6300
      %v6309 = vrot.slane %v426, 1
      %v6310 = vsel %vm5906, %v6138, %v6309
      %v6311 = vrot.slane %v427, 1
      %v6312 = vsel %vm5906, %v6309, %v6311
      %6313 = vrot.lane.b32.xlu0 %v5917, 15
      %v6314 = vpop.permute.xlu0 %6313
      %6315 = vrot.lane.b32.xlu0 %v5919, 15
      %v6316 = vpop.permute.xlu0 %6315
      %6317 = vrot.lane.b32.xlu0 %v6137, 15
      %v6318 = vpop.permute.xlu0 %6317
      %6319 = vrot.lane.b32.xlu0 %v6139, 15
      %v6320 = vpop.permute.xlu0 %6319
      %6321 = vrot.lane.b32.xlu0 %v6310, 15
      %v6322 = vpop.permute.xlu0 %6321
      %6323 = vrot.lane.b32.xlu0 %v6312, 15
      %v6324 = vpop.permute.xlu0 %6323
      %6325 = vrot.lane.b32.xlu0 %v6311, 15
      %v6326 = vpop.permute.xlu0 %6325
      %vm6334 = vcmask 7168
      %v6335 = vsel %vm6334, %v417, %v5921
      %v6336 = vsel %vm6334, %v418, %v5923
      %v6337 = vsel %vm6334, %v419, %v5925
      %v6338 = vsel %vm6334, %v420, %v5927
      %v6339 = vsel %vm6334, %v421, %v5929
      %v6340 = vsel %vm6334, %v422, %v5931
      %v6341 = vsel %vm6334, %v423, %v5933
      %vm6342 = vcmask 15360
      %v6343 = vsel %vm6342, %v6335, %v5956
      %v6344 = vsel %vm6342, %v6336, %v5958
      %v6345 = vsel %vm6342, %v6337, %v5960
      %v6346 = vsel %vm6342, %v6338, %v5962
      %v6347 = vsel %vm6342, %v6339, %v5964
      %v6348 = vsel %vm6342, %v6340, %v5966
      %v6349 = vsel %vm6342, %v6341, %v5968
      %vm6350 = vcmask 23552
      %v6351 = vsel %vm6350, %v6343, %v5991
      %v6352 = vsel %vm6350, %v6344, %v5993
      %v6353 = vsel %vm6350, %v6345, %v5995
      %v6354 = vsel %vm6350, %v6346, %v5997
      %v6355 = vsel %vm6350, %v6347, %v5999
      %v6356 = vsel %vm6350, %v6348, %v6001
      %v6357 = vsel %vm6350, %v6349, %v6003
      %v6358 = vsel %vm874, %v6351, %v6026
      %v6359 = vsel %vm874, %v6352, %v6028
      %v6360 = vsel %vm874, %v6353, %v6030
      %v6361 = vsel %vm874, %v6354, %v6032
      %v6362 = vsel %vm874, %v6355, %v6034
      %v6363 = vsel %vm874, %v6356, %v6036
      %v6364 = vsel %vm874, %v6357, %v6038
      %vm6365 = vcmask 39936
      %v6366 = vsel %vm6365, %v6358, %v6061
      %v6367 = vsel %vm6365, %v6359, %v6063
      %v6368 = vsel %vm6365, %v6360, %v6065
      %v6369 = vsel %vm6365, %v6361, %v6067
      %v6370 = vsel %vm6365, %v6362, %v6069
      %v6371 = vsel %vm6365, %v6363, %v6071
      %v6372 = vsel %vm6365, %v6364, %v6073
      %vm6373 = vcmask 48128
      %v6374 = vsel %vm6373, %v6366, %v6093
      %v6375 = vsel %vm6373, %v6367, %v6095
      %v6376 = vsel %vm6373, %v6368, %v6097
      %v6377 = vsel %vm6373, %v6369, %v6099
      %v6378 = vsel %vm6373, %v6370, %v6101
      %v6379 = vsel %vm6373, %v6371, %v6103
      %v6380 = vsel %vm6373, %v6372, %v6105
      %vm6381 = vcmask 56320
      %v6382 = vsel %vm6381, %v6374, %v6116
      %v6383 = vsel %vm6381, %v6375, %v6118
      %v6384 = vsel %vm6381, %v6376, %v6120
      %v6385 = vsel %vm6381, %v6377, %v6122
      %v6386 = vsel %vm6381, %v6378, %v6124
      %v6387 = vsel %vm6381, %v6379, %v6126
      %v6388 = vsel %vm6381, %v6380, %v6128
      %v6389 = vsel %vm900, %v6382, %v6141
      %v6390 = vsel %vm900, %v6383, %v6143
      %v6391 = vsel %vm900, %v6384, %v6145
      %v6392 = vsel %vm900, %v6385, %v6147
      %v6393 = vsel %vm900, %v6386, %v6149
      %v6394 = vsel %vm900, %v6387, %v6151
      %v6395 = vsel %vm900, %v6388, %v6153
      %vm6396 = vcmask 72704
      %v6397 = vsel %vm6396, %v6389, %v6166
      %v6398 = vsel %vm6396, %v6390, %v6168
      %v6399 = vsel %vm6396, %v6391, %v6170
      %v6400 = vsel %vm6396, %v6392, %v6172
      %v6401 = vsel %vm6396, %v6393, %v6174
      %v6402 = vsel %vm6396, %v6394, %v6176
      %v6403 = vsel %vm6396, %v6395, %v6178
      %vm6404 = vcmask 80896
      %v6405 = vsel %vm6404, %v6397, %v6191
      %v6406 = vsel %vm6404, %v6398, %v6193
      %v6407 = vsel %vm6404, %v6399, %v6195
      %v6408 = vsel %vm6404, %v6400, %v6197
      %v6409 = vsel %vm6404, %v6401, %v6199
      %v6410 = vsel %vm6404, %v6402, %v6201
      %v6411 = vsel %vm6404, %v6403, %v6203
      %vm6412 = vcmask 89088
      %v6413 = vsel %vm6412, %v6405, %v6216
      %v6414 = vsel %vm6412, %v6406, %v6218
      %v6415 = vsel %vm6412, %v6407, %v6220
      %v6416 = vsel %vm6412, %v6408, %v6222
      %v6417 = vsel %vm6412, %v6409, %v6224
      %v6418 = vsel %vm6412, %v6410, %v6226
      %v6419 = vsel %vm6412, %v6411, %v6228
      %v6420 = vsel %vm925, %v6413, %v6241
      %v6421 = vsel %vm925, %v6414, %v6243
      %v6422 = vsel %vm925, %v6415, %v6245
      %v6423 = vsel %vm925, %v6416, %v6247
      %v6424 = vsel %vm925, %v6417, %v6249
      %v6425 = vsel %vm925, %v6418, %v6251
      %v6426 = vsel %vm925, %v6419, %v6253
      %vm6427 = vcmask 105472
      %v6428 = vsel %vm6427, %v6420, %v6266
      %v6429 = vsel %vm6427, %v6421, %v6268
      %v6430 = vsel %vm6427, %v6422, %v6270
      %v6431 = vsel %vm6427, %v6423, %v6272
      %v6432 = vsel %vm6427, %v6424, %v6274
      %v6433 = vsel %vm6427, %v6425, %v6276
      %v6434 = vsel %vm6427, %v6426, %v6278
      %vm6435 = vcmask 113664
      %v6436 = vsel %vm6435, %v6428, %v6289
      %v6437 = vsel %vm6435, %v6429, %v6291
      %v6438 = vsel %vm6435, %v6430, %v6293
      %v6439 = vsel %vm6435, %v6431, %v6295
      %v6440 = vsel %vm6435, %v6432, %v6297
      %v6441 = vsel %vm6435, %v6433, %v6299
      %v6442 = vsel %vm6435, %v6434, %v6301
      %vm6443 = vcmask 121856
      %v6444 = vsel %vm6443, %v6436, %v6314
      %v6445 = vsel %vm6443, %v6437, %v6316
      %v6446 = vsel %vm6443, %v6438, %v6318
      %v6447 = vsel %vm6443, %v6439, %v6320
      %v6448 = vsel %vm6443, %v6440, %v6322
      %v6449 = vsel %vm6443, %v6441, %v6324
      %v6450 = vsel %vm6443, %v6442, %v6326
      %6451 = vrot.lane.b32.xlu0 %v6137, 1
      %v6452 = vpop.permute.xlu0 %6451
      %6453 = vrot.lane.b32.xlu0 %v6139, 1
      %v6454 = vpop.permute.xlu0 %6453
      %6455 = vrot.lane.b32.xlu0 %v6310, 1
      %v6456 = vpop.permute.xlu0 %6455
      %6457 = vrot.lane.b32.xlu0 %v6312, 1
      %v6458 = vpop.permute.xlu0 %6457
      %6459 = vrot.lane.b32.xlu0 %v6311, 1
      %v6460 = vpop.permute.xlu0 %6459
      %v6466 = vrot.slane %v426, 2
      %v6467 = vsel %vm5941, %v6163, %v6466
      %v6468 = vrot.slane %v427, 2
      %v6469 = vsel %vm5941, %v6466, %v6468
      %6470 = vrot.lane.b32.xlu0 %v6162, 2
      %v6471 = vpop.permute.xlu0 %6470
      %6472 = vrot.lane.b32.xlu0 %v6164, 2
      %v6473 = vpop.permute.xlu0 %6472
      %6474 = vrot.lane.b32.xlu0 %v6467, 2
      %v6475 = vpop.permute.xlu0 %6474
      %6476 = vrot.lane.b32.xlu0 %v6469, 2
      %v6477 = vpop.permute.xlu0 %6476
      %6478 = vrot.lane.b32.xlu0 %v6468, 2
      %v6479 = vpop.permute.xlu0 %6478
      %v6485 = vrot.slane %v426, 3
      %v6486 = vsel %vm5976, %v6188, %v6485
      %v6487 = vrot.slane %v427, 3
      %v6488 = vsel %vm5976, %v6485, %v6487
      %6489 = vrot.lane.b32.xlu0 %v6187, 3
      %v6490 = vpop.permute.xlu0 %6489
      %6491 = vrot.lane.b32.xlu0 %v6189, 3
      %v6492 = vpop.permute.xlu0 %6491
      %6493 = vrot.lane.b32.xlu0 %v6486, 3
      %v6494 = vpop.permute.xlu0 %6493
      %6495 = vrot.lane.b32.xlu0 %v6488, 3
      %v6496 = vpop.permute.xlu0 %6495
      %6497 = vrot.lane.b32.xlu0 %v6487, 3
      %v6498 = vpop.permute.xlu0 %6497
      %v6504 = vrot.slane %v426, 4
      %v6505 = vsel %vm6011, %v6213, %v6504
      %v6506 = vrot.slane %v427, 4
      %v6507 = vsel %vm6011, %v6504, %v6506
      %6508 = vrot.lane.b32.xlu0 %v6021, 4
      %v6509 = vpop.permute.xlu0 %6508
      %6510 = vrot.lane.b32.xlu0 %v6212, 4
      %v6511 = vpop.permute.xlu0 %6510
      %6512 = vrot.lane.b32.xlu0 %v6214, 4
      %v6513 = vpop.permute.xlu0 %6512
      %6514 = vrot.lane.b32.xlu0 %v6505, 4
      %v6515 = vpop.permute.xlu0 %6514
      %6516 = vrot.lane.b32.xlu0 %v6507, 4
      %v6517 = vpop.permute.xlu0 %6516
      %6518 = vrot.lane.b32.xlu0 %v6506, 4
      %v6519 = vpop.permute.xlu0 %6518
      %v6528 = vrot.slane %v426, 6
      %v6529 = vsel %vm1124, %v6263, %v6528
      %v6530 = vrot.slane %v427, 6
      %v6531 = vsel %vm1124, %v6528, %v6530
      %v6532 = vrot.slane %v428, 6
      %v6533 = vsel %vm1124, %v6530, %v6532
      %v6534 = vrot.slane %v429, 6
      %v6535 = vsel %vm1124, %v6532, %v6534
      %6536 = vrot.lane.b32.xlu0 %v6090, 5
      %v6537 = vpop.permute.xlu0 %6536
      %6538 = vrot.lane.b32.xlu0 %v6262, 5
      %v6539 = vpop.permute.xlu0 %6538
      %6540 = vrot.lane.b32.xlu0 %v6264, 5
      %v6541 = vpop.permute.xlu0 %6540
      %6542 = vrot.lane.b32.xlu0 %v6529, 5
      %v6543 = vpop.permute.xlu0 %6542
      %6544 = vrot.lane.b32.xlu0 %v6531, 5
      %v6545 = vpop.permute.xlu0 %6544
      %6546 = vrot.lane.b32.xlu0 %v6533, 5
      %v6547 = vpop.permute.xlu0 %6546
      %6548 = vrot.lane.b32.xlu0 %v6535, 5
      %v6549 = vpop.permute.xlu0 %6548
      %vm6557 = vcmask 1040384
      %v6558 = vrot.slane %v423, 7
      %v6559 = vrot.slane %v424, 7
      %v6560 = vsel %vm6557, %v6558, %v6559
      %v6561 = vrot.slane %v425, 7
      %v6562 = vsel %vm6557, %v6559, %v6561
      %v6563 = vrot.slane %v426, 7
      %v6564 = vsel %vm6557, %v6561, %v6563
      %v6565 = vrot.slane %v427, 7
      %v6566 = vsel %vm6557, %v6563, %v6565
      %v6567 = vrot.slane %v428, 7
      %v6568 = vsel %vm6557, %v6565, %v6567
      %v6569 = vrot.slane %v429, 7
      %v6570 = vsel %vm6557, %v6567, %v6569
      %6571 = vrot.lane.b32.xlu0 %v6558, 6
      %v6572 = vpop.permute.xlu0 %6571
      %6573 = vrot.lane.b32.xlu0 %v6560, 6
      %v6574 = vpop.permute.xlu0 %6573
      %6575 = vrot.lane.b32.xlu0 %v6562, 6
      %v6576 = vpop.permute.xlu0 %6575
      %6577 = vrot.lane.b32.xlu0 %v6564, 6
      %v6578 = vpop.permute.xlu0 %6577
      %6579 = vrot.lane.b32.xlu0 %v6566, 6
      %v6580 = vpop.permute.xlu0 %6579
      %6581 = vrot.lane.b32.xlu0 %v6568, 6
      %v6582 = vpop.permute.xlu0 %6581
      %6583 = vrot.lane.b32.xlu0 %v6570, 6
      %v6584 = vpop.permute.xlu0 %6583
      %6592 = vrot.lane.b32.xlu0 %v426, 7
      %v6593 = vpop.permute.xlu0 %6592
      %6594 = vrot.lane.b32.xlu0 %v427, 7
      %v6595 = vpop.permute.xlu0 %6594
      %6596 = vrot.lane.b32.xlu0 %v428, 7
      %v6597 = vpop.permute.xlu0 %6596
      %6598 = vrot.lane.b32.xlu0 %v429, 7
      %v6599 = vpop.permute.xlu0 %6598
      %v6604 = vrot.slane %v428, 1
      %v6605 = vsel %vm5906, %v6311, %v6604
      %v6606 = vrot.slane %v429, 1
      %v6607 = vsel %vm5906, %v6604, %v6606
      %6608 = vrot.lane.b32.xlu0 %v6310, 8
      %v6609 = vpop.permute.xlu0 %6608
      %6610 = vrot.lane.b32.xlu0 %v6312, 8
      %v6611 = vpop.permute.xlu0 %6610
      %6612 = vrot.lane.b32.xlu0 %v6605, 8
      %v6613 = vpop.permute.xlu0 %6612
      %6614 = vrot.lane.b32.xlu0 %v6607, 8
      %v6615 = vpop.permute.xlu0 %6614
      %6616 = vrot.lane.b32.xlu0 %v6606, 8
      %v6617 = vpop.permute.xlu0 %6616
      %v6623 = vrot.slane %v428, 2
      %v6624 = vsel %vm5941, %v6468, %v6623
      %v6625 = vrot.slane %v429, 2
      %v6626 = vsel %vm5941, %v6623, %v6625
      %6627 = vrot.lane.b32.xlu0 %v6467, 9
      %v6628 = vpop.permute.xlu0 %6627
      %6629 = vrot.lane.b32.xlu0 %v6469, 9
      %v6630 = vpop.permute.xlu0 %6629
      %6631 = vrot.lane.b32.xlu0 %v6624, 9
      %v6632 = vpop.permute.xlu0 %6631
      %6633 = vrot.lane.b32.xlu0 %v6626, 9
      %v6634 = vpop.permute.xlu0 %6633
      %6635 = vrot.lane.b32.xlu0 %v6625, 9
      %v6636 = vpop.permute.xlu0 %6635
      %v6642 = vrot.slane %v428, 3
      %v6643 = vsel %vm5976, %v6487, %v6642
      %v6644 = vrot.slane %v429, 3
      %v6645 = vsel %vm5976, %v6642, %v6644
      %6646 = vrot.lane.b32.xlu0 %v6486, 10
      %v6647 = vpop.permute.xlu0 %6646
      %6648 = vrot.lane.b32.xlu0 %v6488, 10
      %v6649 = vpop.permute.xlu0 %6648
      %6650 = vrot.lane.b32.xlu0 %v6643, 10
      %v6651 = vpop.permute.xlu0 %6650
      %6652 = vrot.lane.b32.xlu0 %v6645, 10
      %v6653 = vpop.permute.xlu0 %6652
      %6654 = vrot.lane.b32.xlu0 %v6644, 10
      %v6655 = vpop.permute.xlu0 %6654
      %v6661 = vrot.slane %v428, 4
      %v6662 = vsel %vm6011, %v6506, %v6661
      %v6663 = vrot.slane %v429, 4
      %v6664 = vsel %vm6011, %v6661, %v6663
      %6665 = vrot.lane.b32.xlu0 %v6211, 11
      %v6666 = vpop.permute.xlu0 %6665
      %6667 = vrot.lane.b32.xlu0 %v6505, 11
      %v6668 = vpop.permute.xlu0 %6667
      %6669 = vrot.lane.b32.xlu0 %v6507, 11
      %v6670 = vpop.permute.xlu0 %6669
      %6671 = vrot.lane.b32.xlu0 %v6662, 11
      %v6672 = vpop.permute.xlu0 %6671
      %6673 = vrot.lane.b32.xlu0 %v6664, 11
      %v6674 = vpop.permute.xlu0 %6673
      %6675 = vrot.lane.b32.xlu0 %v6663, 11
      %v6676 = vpop.permute.xlu0 %6675
      %v6685 = vrot.slane %v430, 6
      %v6686 = vsel %vm1124, %v6534, %v6685
      %v6687 = vrot.slane %v431, 6
      %v6688 = vsel %vm1124, %v6685, %v6687
      %6689 = vrot.lane.b32.xlu0 %v6263, 12
      %v6690 = vpop.permute.xlu0 %6689
      %6691 = vrot.lane.b32.xlu0 %v6529, 12
      %v6692 = vpop.permute.xlu0 %6691
      %6693 = vrot.lane.b32.xlu0 %v6531, 12
      %v6694 = vpop.permute.xlu0 %6693
      %6695 = vrot.lane.b32.xlu0 %v6533, 12
      %v6696 = vpop.permute.xlu0 %6695
      %6697 = vrot.lane.b32.xlu0 %v6535, 12
      %v6698 = vpop.permute.xlu0 %6697
      %6699 = vrot.lane.b32.xlu0 %v6686, 12
      %v6700 = vpop.permute.xlu0 %6699
      %6701 = vrot.lane.b32.xlu0 %v6688, 12
      %v6702 = vpop.permute.xlu0 %6701
      %v6710 = vrot.slane %v430, 7
      %v6711 = vsel %vm6557, %v6569, %v6710
      %v6712 = vrot.slane %v431, 7
      %v6713 = vsel %vm6557, %v6710, %v6712
      %6714 = vrot.lane.b32.xlu0 %v6561, 13
      %v6715 = vpop.permute.xlu0 %6714
      %6716 = vrot.lane.b32.xlu0 %v6564, 13
      %v6717 = vpop.permute.xlu0 %6716
      %6718 = vrot.lane.b32.xlu0 %v6566, 13
      %v6719 = vpop.permute.xlu0 %6718
      %6720 = vrot.lane.b32.xlu0 %v6568, 13
      %v6721 = vpop.permute.xlu0 %6720
      %6722 = vrot.lane.b32.xlu0 %v6570, 13
      %v6723 = vpop.permute.xlu0 %6722
      %6724 = vrot.lane.b32.xlu0 %v6711, 13
      %v6725 = vpop.permute.xlu0 %6724
      %6726 = vrot.lane.b32.xlu0 %v6713, 13
      %v6727 = vpop.permute.xlu0 %6726
      %6735 = vrot.lane.b32.xlu0 %v428, 14
      %v6736 = vpop.permute.xlu0 %6735
      %6737 = vrot.lane.b32.xlu0 %v429, 14
      %v6738 = vpop.permute.xlu0 %6737
      %6739 = vrot.lane.b32.xlu0 %v430, 14
      %v6740 = vpop.permute.xlu0 %6739
      %6741 = vrot.lane.b32.xlu0 %v431, 14
      %v6742 = vpop.permute.xlu0 %6741
      %v6747 = vrot.slane %v430, 1
      %v6748 = vsel %vm5906, %v6606, %v6747
      %v6749 = vrot.slane %v431, 1
      %v6750 = vsel %vm5906, %v6747, %v6749
      %6751 = vrot.lane.b32.xlu0 %v6605, 15
      %v6752 = vpop.permute.xlu0 %6751
      %6753 = vrot.lane.b32.xlu0 %v6607, 15
      %v6754 = vpop.permute.xlu0 %6753
      %6755 = vrot.lane.b32.xlu0 %v6748, 15
      %v6756 = vpop.permute.xlu0 %6755
      %6757 = vrot.lane.b32.xlu0 %v6750, 15
      %v6758 = vpop.permute.xlu0 %6757
      %6759 = vrot.lane.b32.xlu0 %v6749, 15
      %v6760 = vpop.permute.xlu0 %6759
      %v6766 = vsel %vm6334, %v423, %v6452
      %v6767 = vsel %vm6334, %v424, %v6454
      %v6768 = vsel %vm6334, %v425, %v6456
      %v6769 = vsel %vm6334, %v426, %v6458
      %v6770 = vsel %vm6334, %v427, %v6460
      %v6771 = vsel %vm6342, %v6766, %v6471
      %v6772 = vsel %vm6342, %v6767, %v6473
      %v6773 = vsel %vm6342, %v6768, %v6475
      %v6774 = vsel %vm6342, %v6769, %v6477
      %v6775 = vsel %vm6342, %v6770, %v6479
      %v6776 = vsel %vm6350, %v6771, %v6490
      %v6777 = vsel %vm6350, %v6772, %v6492
      %v6778 = vsel %vm6350, %v6773, %v6494
      %v6779 = vsel %vm6350, %v6774, %v6496
      %v6780 = vsel %vm6350, %v6775, %v6498
      %v6781 = vsel %vm874, %v6355, %v6509
      %v6782 = vsel %vm874, %v6776, %v6511
      %v6783 = vsel %vm874, %v6777, %v6513
      %v6784 = vsel %vm874, %v6778, %v6515
      %v6785 = vsel %vm874, %v6779, %v6517
      %v6786 = vsel %vm874, %v6780, %v6519
      %v6787 = vsel %vm6365, %v6781, %v6537
      %v6788 = vsel %vm6365, %v6363, %v6539
      %v6789 = vsel %vm6365, %v6782, %v6541
      %v6790 = vsel %vm6365, %v6783, %v6543
      %v6791 = vsel %vm6365, %v6784, %v6545
      %v6792 = vsel %vm6365, %v6785, %v6547
      %v6793 = vsel %vm6365, %v6786, %v6549
      %v6794 = vsel %vm6373, %v6787, %v6572
      %v6795 = vsel %vm6373, %v6788, %v6574
      %v6796 = vsel %vm6373, %v6789, %v6576
      %v6797 = vsel %vm6373, %v6790, %v6578
      %v6798 = vsel %vm6373, %v6791, %v6580
      %v6799 = vsel %vm6373, %v6792, %v6582
      %v6800 = vsel %vm6373, %v6793, %v6584
      %v6801 = vsel %vm6381, %v6794, %v6124
      %v6802 = vsel %vm6381, %v6795, %v6126
      %v6803 = vsel %vm6381, %v6796, %v6128
      %v6804 = vsel %vm6381, %v6797, %v6593
      %v6805 = vsel %vm6381, %v6798, %v6595
      %v6806 = vsel %vm6381, %v6799, %v6597
      %v6807 = vsel %vm6381, %v6800, %v6599
      %v6808 = vsel %vm900, %v6801, %v6149
      %v6809 = vsel %vm900, %v6802, %v6151
      %v6810 = vsel %vm900, %v6803, %v6609
      %v6811 = vsel %vm900, %v6804, %v6611
      %v6812 = vsel %vm900, %v6805, %v6613
      %v6813 = vsel %vm900, %v6806, %v6615
      %v6814 = vsel %vm900, %v6807, %v6617
      %v6815 = vsel %vm6396, %v6808, %v6174
      %v6816 = vsel %vm6396, %v6809, %v6176
      %v6817 = vsel %vm6396, %v6810, %v6628
      %v6818 = vsel %vm6396, %v6811, %v6630
      %v6819 = vsel %vm6396, %v6812, %v6632
      %v6820 = vsel %vm6396, %v6813, %v6634
      %v6821 = vsel %vm6396, %v6814, %v6636
      %v6822 = vsel %vm6404, %v6815, %v6199
      %v6823 = vsel %vm6404, %v6816, %v6201
      %v6824 = vsel %vm6404, %v6817, %v6647
      %v6825 = vsel %vm6404, %v6818, %v6649
      %v6826 = vsel %vm6404, %v6819, %v6651
      %v6827 = vsel %vm6404, %v6820, %v6653
      %v6828 = vsel %vm6404, %v6821, %v6655
      %v6829 = vsel %vm6412, %v6822, %v6666
      %v6830 = vsel %vm6412, %v6823, %v6226
      %v6831 = vsel %vm6412, %v6824, %v6668
      %v6832 = vsel %vm6412, %v6825, %v6670
      %v6833 = vsel %vm6412, %v6826, %v6672
      %v6834 = vsel %vm6412, %v6827, %v6674
      %v6835 = vsel %vm6412, %v6828, %v6676
      %v6836 = vsel %vm925, %v6829, %v6690
      %v6837 = vsel %vm925, %v6830, %v6692
      %v6838 = vsel %vm925, %v6831, %v6694
      %v6839 = vsel %vm925, %v6832, %v6696
      %v6840 = vsel %vm925, %v6833, %v6698
      %v6841 = vsel %vm925, %v6834, %v6700
      %v6842 = vsel %vm925, %v6835, %v6702
      %v6843 = vsel %vm6427, %v6836, %v6715
      %v6844 = vsel %vm6427, %v6837, %v6717
      %v6845 = vsel %vm6427, %v6838, %v6719
      %v6846 = vsel %vm6427, %v6839, %v6721
      %v6847 = vsel %vm6427, %v6840, %v6723
      %v6848 = vsel %vm6427, %v6841, %v6725
      %v6849 = vsel %vm6427, %v6842, %v6727
      %v6850 = vsel %vm6435, %v6843, %v6297
      %v6851 = vsel %vm6435, %v6844, %v6299
      %v6852 = vsel %vm6435, %v6845, %v6301
      %v6853 = vsel %vm6435, %v6846, %v6736
      %v6854 = vsel %vm6435, %v6847, %v6738
      %v6855 = vsel %vm6435, %v6848, %v6740
      %v6856 = vsel %vm6435, %v6849, %v6742
      %v6857 = vsel %vm6443, %v6850, %v6322
      %v6858 = vsel %vm6443, %v6851, %v6324
      %v6859 = vsel %vm6443, %v6852, %v6752
      %v6860 = vsel %vm6443, %v6853, %v6754
      %v6861 = vsel %vm6443, %v6854, %v6756
      %v6862 = vsel %vm6443, %v6855, %v6758
      %v6863 = vsel %vm6443, %v6856, %v6760
      %6864 = vrot.lane.b32.xlu0 %v6605, 1
      %v6865 = vpop.permute.xlu0 %6864
      %6866 = vrot.lane.b32.xlu0 %v6607, 1
      %v6867 = vpop.permute.xlu0 %6866
      %6868 = vrot.lane.b32.xlu0 %v6748, 1
      %v6869 = vpop.permute.xlu0 %6868
      %6870 = vrot.lane.b32.xlu0 %v6750, 1
      %v6871 = vpop.permute.xlu0 %6870
      %6872 = vrot.lane.b32.xlu0 %v6749, 1
      %v6873 = vpop.permute.xlu0 %6872
      %v6879 = vrot.slane %v430, 2
      %v6880 = vsel %vm5941, %v6625, %v6879
      %v6881 = vrot.slane %v431, 2
      %v6882 = vsel %vm5941, %v6879, %v6881
      %6883 = vrot.lane.b32.xlu0 %v6466, 2
      %v6884 = vpop.permute.xlu0 %6883
      %6885 = vrot.lane.b32.xlu0 %v6624, 2
      %v6886 = vpop.permute.xlu0 %6885
      %6887 = vrot.lane.b32.xlu0 %v6626, 2
      %v6888 = vpop.permute.xlu0 %6887
      %6889 = vrot.lane.b32.xlu0 %v6880, 2
      %v6890 = vpop.permute.xlu0 %6889
      %6891 = vrot.lane.b32.xlu0 %v6882, 2
      %v6892 = vpop.permute.xlu0 %6891
      %6893 = vrot.lane.b32.xlu0 %v6881, 2
      %v6894 = vpop.permute.xlu0 %6893
      %v6903 = vrot.slane %v430, 4
      %v6904 = vsel %vm6011, %v6663, %v6903
      %v6905 = vrot.slane %v431, 4
      %v6906 = vsel %vm6011, %v6903, %v6905
      %v6907 = vrot.slane %v432, 4
      %v6908 = vsel %vm6011, %v6905, %v6907
      %v6909 = vrot.slane %v433, 4
      %v6910 = vsel %vm6011, %v6907, %v6909
      %6911 = vrot.lane.b32.xlu0 %v6506, 3
      %v6912 = vpop.permute.xlu0 %6911
      %6913 = vrot.lane.b32.xlu0 %v6662, 3
      %v6914 = vpop.permute.xlu0 %6913
      %6915 = vrot.lane.b32.xlu0 %v6664, 3
      %v6916 = vpop.permute.xlu0 %6915
      %6917 = vrot.lane.b32.xlu0 %v6904, 3
      %v6918 = vpop.permute.xlu0 %6917
      %6919 = vrot.lane.b32.xlu0 %v6906, 3
      %v6920 = vpop.permute.xlu0 %6919
      %6921 = vrot.lane.b32.xlu0 %v6908, 3
      %v6922 = vpop.permute.xlu0 %6921
      %6923 = vrot.lane.b32.xlu0 %v6910, 3
      %v6924 = vpop.permute.xlu0 %6923
      %v6932 = vrot.slane %v427, 5
      %v6933 = vrot.slane %v428, 5
      %v6934 = vsel %vm6046, %v6932, %v6933
      %v6935 = vrot.slane %v429, 5
      %v6936 = vsel %vm6046, %v6933, %v6935
      %v6937 = vrot.slane %v430, 5
      %v6938 = vsel %vm6046, %v6935, %v6937
      %v6939 = vrot.slane %v431, 5
      %v6940 = vsel %vm6046, %v6937, %v6939
      %v6941 = vrot.slane %v432, 5
      %v6942 = vsel %vm6046, %v6939, %v6941
      %v6943 = vrot.slane %v433, 5
      %v6944 = vsel %vm6046, %v6941, %v6943
      %6945 = vrot.lane.b32.xlu0 %v6932, 4
      %v6946 = vpop.permute.xlu0 %6945
      %6947 = vrot.lane.b32.xlu0 %v6934, 4
      %v6948 = vpop.permute.xlu0 %6947
      %6949 = vrot.lane.b32.xlu0 %v6936, 4
      %v6950 = vpop.permute.xlu0 %6949
      %6951 = vrot.lane.b32.xlu0 %v6938, 4
      %v6952 = vpop.permute.xlu0 %6951
      %6953 = vrot.lane.b32.xlu0 %v6940, 4
      %v6954 = vpop.permute.xlu0 %6953
      %6955 = vrot.lane.b32.xlu0 %v6942, 4
      %v6956 = vpop.permute.xlu0 %6955
      %6957 = vrot.lane.b32.xlu0 %v6944, 4
      %v6958 = vpop.permute.xlu0 %6957
      %v6966 = vrot.slane %v432, 6
      %v6967 = vsel %vm1124, %v6687, %v6966
      %v6968 = vrot.slane %v433, 6
      %v6969 = vsel %vm1124, %v6966, %v6968
      %6970 = vrot.lane.b32.xlu0 %v6530, 5
      %v6971 = vpop.permute.xlu0 %6970
      %6972 = vrot.lane.b32.xlu0 %v6686, 5
      %v6973 = vpop.permute.xlu0 %6972
      %6974 = vrot.lane.b32.xlu0 %v6688, 5
      %v6975 = vpop.permute.xlu0 %6974
      %6976 = vrot.lane.b32.xlu0 %v6967, 5
      %v6977 = vpop.permute.xlu0 %6976
      %6978 = vrot.lane.b32.xlu0 %v6969, 5
      %v6979 = vpop.permute.xlu0 %6978
      %v6985 = vrot.slane %v432, 7
      %v6986 = vsel %vm6557, %v6712, %v6985
      %v6987 = vrot.slane %v433, 7
      %v6988 = vsel %vm6557, %v6985, %v6987
      %6989 = vrot.lane.b32.xlu0 %v6565, 6
      %v6990 = vpop.permute.xlu0 %6989
      %6991 = vrot.lane.b32.xlu0 %v6711, 6
      %v6992 = vpop.permute.xlu0 %6991
      %6993 = vrot.lane.b32.xlu0 %v6713, 6
      %v6994 = vpop.permute.xlu0 %6993
      %6995 = vrot.lane.b32.xlu0 %v6986, 6
      %v6996 = vpop.permute.xlu0 %6995
      %6997 = vrot.lane.b32.xlu0 %v6988, 6
      %v6998 = vpop.permute.xlu0 %6997
      %7004 = vrot.lane.b32.xlu0 %v430, 7
      %v7005 = vpop.permute.xlu0 %7004
      %7006 = vrot.lane.b32.xlu0 %v431, 7
      %v7007 = vpop.permute.xlu0 %7006
      %7008 = vrot.lane.b32.xlu0 %v432, 7
      %v7009 = vpop.permute.xlu0 %7008
      %7010 = vrot.lane.b32.xlu0 %v433, 7
      %v7011 = vpop.permute.xlu0 %7010
      %v7016 = vrot.slane %v432, 1
      %v7017 = vsel %vm5906, %v6749, %v7016
      %v7018 = vrot.slane %v433, 1
      %v7019 = vsel %vm5906, %v7016, %v7018
      %7020 = vrot.lane.b32.xlu0 %v6748, 8
      %v7021 = vpop.permute.xlu0 %7020
      %7022 = vrot.lane.b32.xlu0 %v6750, 8
      %v7023 = vpop.permute.xlu0 %7022
      %7024 = vrot.lane.b32.xlu0 %v7017, 8
      %v7025 = vpop.permute.xlu0 %7024
      %7026 = vrot.lane.b32.xlu0 %v7019, 8
      %v7027 = vpop.permute.xlu0 %7026
      %7028 = vrot.lane.b32.xlu0 %v7018, 8
      %v7029 = vpop.permute.xlu0 %7028
      %v7035 = vrot.slane %v432, 2
      %v7036 = vsel %vm5941, %v6881, %v7035
      %v7037 = vrot.slane %v433, 2
      %v7038 = vsel %vm5941, %v7035, %v7037
      %7039 = vrot.lane.b32.xlu0 %v6623, 9
      %v7040 = vpop.permute.xlu0 %7039
      %7041 = vrot.lane.b32.xlu0 %v6880, 9
      %v7042 = vpop.permute.xlu0 %7041
      %7043 = vrot.lane.b32.xlu0 %v6882, 9
      %v7044 = vpop.permute.xlu0 %7043
      %7045 = vrot.lane.b32.xlu0 %v7036, 9
      %v7046 = vpop.permute.xlu0 %7045
      %7047 = vrot.lane.b32.xlu0 %v7038, 9
      %v7048 = vpop.permute.xlu0 %7047
      %7049 = vrot.lane.b32.xlu0 %v7037, 9
      %v7050 = vpop.permute.xlu0 %7049
      %v7059 = vrot.slane %v434, 4
      %v7060 = vsel %vm6011, %v6909, %v7059
      %v7061 = vrot.slane %v435, 4
      %v7062 = vsel %vm6011, %v7059, %v7061
      %7063 = vrot.lane.b32.xlu0 %v6663, 10
      %v7064 = vpop.permute.xlu0 %7063
      %7065 = vrot.lane.b32.xlu0 %v6904, 10
      %v7066 = vpop.permute.xlu0 %7065
      %7067 = vrot.lane.b32.xlu0 %v6906, 10
      %v7068 = vpop.permute.xlu0 %7067
      %7069 = vrot.lane.b32.xlu0 %v6908, 10
      %v7070 = vpop.permute.xlu0 %7069
      %7071 = vrot.lane.b32.xlu0 %v6910, 10
      %v7072 = vpop.permute.xlu0 %7071
      %7073 = vrot.lane.b32.xlu0 %v7060, 10
      %v7074 = vpop.permute.xlu0 %7073
      %7075 = vrot.lane.b32.xlu0 %v7062, 10
      %v7076 = vpop.permute.xlu0 %7075
      %v7084 = vrot.slane %v434, 5
      %v7085 = vsel %vm6046, %v6943, %v7084
      %v7086 = vrot.slane %v435, 5
      %v7087 = vsel %vm6046, %v7084, %v7086
      %7088 = vrot.lane.b32.xlu0 %v6935, 11
      %v7089 = vpop.permute.xlu0 %7088
      %7090 = vrot.lane.b32.xlu0 %v6938, 11
      %v7091 = vpop.permute.xlu0 %7090
      %7092 = vrot.lane.b32.xlu0 %v6940, 11
      %v7093 = vpop.permute.xlu0 %7092
      %7094 = vrot.lane.b32.xlu0 %v6942, 11
      %v7095 = vpop.permute.xlu0 %7094
      %7096 = vrot.lane.b32.xlu0 %v6944, 11
      %v7097 = vpop.permute.xlu0 %7096
      %7098 = vrot.lane.b32.xlu0 %v7085, 11
      %v7099 = vpop.permute.xlu0 %7098
      %7100 = vrot.lane.b32.xlu0 %v7087, 11
      %v7101 = vpop.permute.xlu0 %7100
      %v7109 = vrot.slane %v434, 6
      %v7110 = vsel %vm1124, %v6968, %v7109
      %v7111 = vrot.slane %v435, 6
      %v7112 = vsel %vm1124, %v7109, %v7111
      %7113 = vrot.lane.b32.xlu0 %v6534, 12
      %v7114 = vpop.permute.xlu0 %7113
      %7115 = vrot.lane.b32.xlu0 %v6967, 12
      %v7116 = vpop.permute.xlu0 %7115
      %7117 = vrot.lane.b32.xlu0 %v6969, 12
      %v7118 = vpop.permute.xlu0 %7117
      %7119 = vrot.lane.b32.xlu0 %v7110, 12
      %v7120 = vpop.permute.xlu0 %7119
      %7121 = vrot.lane.b32.xlu0 %v7112, 12
      %v7122 = vpop.permute.xlu0 %7121
      %v7128 = vrot.slane %v434, 7
      %v7129 = vsel %vm6557, %v6987, %v7128
      %v7130 = vrot.slane %v435, 7
      %v7131 = vsel %vm6557, %v7128, %v7130
      %7132 = vrot.lane.b32.xlu0 %v6569, 13
      %v7133 = vpop.permute.xlu0 %7132
      %7134 = vrot.lane.b32.xlu0 %v6986, 13
      %v7135 = vpop.permute.xlu0 %7134
      %7136 = vrot.lane.b32.xlu0 %v6988, 13
      %v7137 = vpop.permute.xlu0 %7136
      %7138 = vrot.lane.b32.xlu0 %v7129, 13
      %v7139 = vpop.permute.xlu0 %7138
      %7140 = vrot.lane.b32.xlu0 %v7131, 13
      %v7141 = vpop.permute.xlu0 %7140
      %7147 = vrot.lane.b32.xlu0 %v432, 14
      %v7148 = vpop.permute.xlu0 %7147
      %7149 = vrot.lane.b32.xlu0 %v433, 14
      %v7150 = vpop.permute.xlu0 %7149
      %7151 = vrot.lane.b32.xlu0 %v434, 14
      %v7152 = vpop.permute.xlu0 %7151
      %7153 = vrot.lane.b32.xlu0 %v435, 14
      %v7154 = vpop.permute.xlu0 %7153
      %v7159 = vrot.slane %v434, 1
      %v7160 = vsel %vm5906, %v7018, %v7159
      %v7161 = vrot.slane %v435, 1
      %v7162 = vsel %vm5906, %v7159, %v7161
      %7163 = vrot.lane.b32.xlu0 %v7017, 15
      %v7164 = vpop.permute.xlu0 %7163
      %7165 = vrot.lane.b32.xlu0 %v7019, 15
      %v7166 = vpop.permute.xlu0 %7165
      %7167 = vrot.lane.b32.xlu0 %v7160, 15
      %v7168 = vpop.permute.xlu0 %7167
      %7169 = vrot.lane.b32.xlu0 %v7162, 15
      %v7170 = vpop.permute.xlu0 %7169
      %7171 = vrot.lane.b32.xlu0 %v7161, 15
      %v7172 = vpop.permute.xlu0 %7171
      %v7178 = vsel %vm6334, %v427, %v6865
      %v7179 = vsel %vm6334, %v428, %v6867
      %v7180 = vsel %vm6334, %v429, %v6869
      %v7181 = vsel %vm6334, %v430, %v6871
      %v7182 = vsel %vm6334, %v431, %v6873
      %v7183 = vsel %vm6342, %v6768, %v6884
      %v7184 = vsel %vm6342, %v7178, %v6886
      %v7185 = vsel %vm6342, %v7179, %v6888
      %v7186 = vsel %vm6342, %v7180, %v6890
      %v7187 = vsel %vm6342, %v7181, %v6892
      %v7188 = vsel %vm6342, %v7182, %v6894
      %v7189 = vsel %vm6350, %v7183, %v6912
      %v7190 = vsel %vm6350, %v6774, %v6914
      %v7191 = vsel %vm6350, %v7184, %v6916
      %v7192 = vsel %vm6350, %v7185, %v6918
      %v7193 = vsel %vm6350, %v7186, %v6920
      %v7194 = vsel %vm6350, %v7187, %v6922
      %v7195 = vsel %vm6350, %v7188, %v6924
      %v7196 = vsel %vm874, %v7189, %v6946
      %v7197 = vsel %vm874, %v7190, %v6948
      %v7198 = vsel %vm874, %v7191, %v6950
      %v7199 = vsel %vm874, %v7192, %v6952
      %v7200 = vsel %vm874, %v7193, %v6954
      %v7201 = vsel %vm874, %v7194, %v6956
      %v7202 = vsel %vm874, %v7195, %v6958
      %v7203 = vsel %vm6365, %v7196, %v6971
      %v7204 = vsel %vm6365, %v7197, %v6547
      %v7205 = vsel %vm6365, %v7198, %v6549
      %v7206 = vsel %vm6365, %v7199, %v6973
      %v7207 = vsel %vm6365, %v7200, %v6975
      %v7208 = vsel %vm6365, %v7201, %v6977
      %v7209 = vsel %vm6365, %v7202, %v6979
      %v7210 = vsel %vm6373, %v7203, %v6990
      %v7211 = vsel %vm6373, %v7204, %v6582
      %v7212 = vsel %vm6373, %v7205, %v6584
      %v7213 = vsel %vm6373, %v7206, %v6992
      %v7214 = vsel %vm6373, %v7207, %v6994
      %v7215 = vsel %vm6373, %v7208, %v6996
      %v7216 = vsel %vm6373, %v7209, %v6998
      %v7217 = vsel %vm6381, %v7210, %v6595
      %v7218 = vsel %vm6381, %v7211, %v6597
      %v7219 = vsel %vm6381, %v7212, %v6599
      %v7220 = vsel %vm6381, %v7213, %v7005
      %v7221 = vsel %vm6381, %v7214, %v7007
      %v7222 = vsel %vm6381, %v7215, %v7009
      %v7223 = vsel %vm6381, %v7216, %v7011
      %v7224 = vsel %vm900, %v7217, %v6613
      %v7225 = vsel %vm900, %v7218, %v6615
      %v7226 = vsel %vm900, %v7219, %v7021
      %v7227 = vsel %vm900, %v7220, %v7023
      %v7228 = vsel %vm900, %v7221, %v7025
      %v7229 = vsel %vm900, %v7222, %v7027
      %v7230 = vsel %vm900, %v7223, %v7029
      %v7231 = vsel %vm6396, %v7224, %v7040
      %v7232 = vsel %vm6396, %v7225, %v6634
      %v7233 = vsel %vm6396, %v7226, %v7042
      %v7234 = vsel %vm6396, %v7227, %v7044
      %v7235 = vsel %vm6396, %v7228, %v7046
      %v7236 = vsel %vm6396, %v7229, %v7048
      %v7237 = vsel %vm6396, %v7230, %v7050
      %v7238 = vsel %vm6404, %v7231, %v7064
      %v7239 = vsel %vm6404, %v7232, %v7066
      %v7240 = vsel %vm6404, %v7233, %v7068
      %v7241 = vsel %vm6404, %v7234, %v7070
      %v7242 = vsel %vm6404, %v7235, %v7072
      %v7243 = vsel %vm6404, %v7236, %v7074
      %v7244 = vsel %vm6404, %v7237, %v7076
      %v7245 = vsel %vm6412, %v7238, %v7089
      %v7246 = vsel %vm6412, %v7239, %v7091
      %v7247 = vsel %vm6412, %v7240, %v7093
      %v7248 = vsel %vm6412, %v7241, %v7095
      %v7249 = vsel %vm6412, %v7242, %v7097
      %v7250 = vsel %vm6412, %v7243, %v7099
      %v7251 = vsel %vm6412, %v7244, %v7101
      %v7252 = vsel %vm925, %v7245, %v7114
      %v7253 = vsel %vm925, %v7246, %v6700
      %v7254 = vsel %vm925, %v7247, %v6702
      %v7255 = vsel %vm925, %v7248, %v7116
      %v7256 = vsel %vm925, %v7249, %v7118
      %v7257 = vsel %vm925, %v7250, %v7120
      %v7258 = vsel %vm925, %v7251, %v7122
      %v7259 = vsel %vm6427, %v7252, %v7133
      %v7260 = vsel %vm6427, %v7253, %v6725
      %v7261 = vsel %vm6427, %v7254, %v6727
      %v7262 = vsel %vm6427, %v7255, %v7135
      %v7263 = vsel %vm6427, %v7256, %v7137
      %v7264 = vsel %vm6427, %v7257, %v7139
      %v7265 = vsel %vm6427, %v7258, %v7141
      %v7266 = vsel %vm6435, %v7259, %v6738
      %v7267 = vsel %vm6435, %v7260, %v6740
      %v7268 = vsel %vm6435, %v7261, %v6742
      %v7269 = vsel %vm6435, %v7262, %v7148
      %v7270 = vsel %vm6435, %v7263, %v7150
      %v7271 = vsel %vm6435, %v7264, %v7152
      %v7272 = vsel %vm6435, %v7265, %v7154
      %v7273 = vsel %vm6443, %v7266, %v6756
      %v7274 = vsel %vm6443, %v7267, %v6758
      %v7275 = vsel %vm6443, %v7268, %v7164
      %v7276 = vsel %vm6443, %v7269, %v7166
      %v7277 = vsel %vm6443, %v7270, %v7168
      %v7278 = vsel %vm6443, %v7271, %v7170
      %v7279 = vsel %vm6443, %v7272, %v7172
      %v7280 = vsel %vm6334, %v430, 0.0
      %v7281 = vsel %vm6334, %v431, 0.0
      %v7282 = vsel %vm6334, %v432, 0.0
      %v7283 = vsel %vm6334, %v433, 0.0
      %v7284 = vsel %vm6334, %v434, 0.0
      %v7285 = vsel %vm6334, %v435, 0.0
      %v7293 = vrot.slane %v6857, 2
      %v7294 = vrot.slane %v6858, 2
      %v7295 = vsel %vm5941, %v7293, %v7294
      %v7296 = vrot.slane %v6859, 2
      %v7297 = vsel %vm5941, %v7294, %v7296
      %v7298 = vrot.slane %v6860, 2
      %v7299 = vsel %vm5941, %v7296, %v7298
      %v7300 = vrot.slane %v6861, 2
      %v7301 = vsel %vm5941, %v7298, %v7300
      %v7302 = vrot.slane %v6862, 2
      %v7303 = vsel %vm5941, %v7300, %v7302
      %v7304 = vrot.slane %v6863, 2
      %v7305 = vsel %vm5941, %v7302, %v7304
      %7306 = vrot.lane.b32.xlu0 %v7295, 16
      %v7307 = vpop.permute.xlu0 %7306
      %7308 = vrot.lane.b32.xlu0 %v7297, 16
      %v7309 = vpop.permute.xlu0 %7308
      %7310 = vrot.lane.b32.xlu0 %v7299, 16
      %v7311 = vpop.permute.xlu0 %7310
      %7312 = vrot.lane.b32.xlu0 %v7301, 16
      %v7313 = vpop.permute.xlu0 %7312
      %7314 = vrot.lane.b32.xlu0 %v7303, 16
      %v7315 = vpop.permute.xlu0 %7314
      %7316 = vrot.lane.b32.xlu0 %v7305, 16
      %v7317 = vpop.permute.xlu0 %7316
      %7318 = vrot.lane.b32.xlu0 %v7304, 16
      %v7319 = vpop.permute.xlu0 %7318
      %v7334 = vrot.slane %v7273, 4
      %v7335 = vrot.slane %v7274, 4
      %v7336 = vsel %vm6011, %v7334, %v7335
      %v7337 = vrot.slane %v7275, 4
      %v7338 = vsel %vm6011, %v7335, %v7337
      %v7339 = vrot.slane %v7276, 4
      %v7340 = vsel %vm6011, %v7337, %v7339
      %v7341 = vrot.slane %v7277, 4
      %v7342 = vsel %vm6011, %v7339, %v7341
      %v7343 = vrot.slane %v7278, 4
      %v7344 = vsel %vm6011, %v7341, %v7343
      %v7345 = vrot.slane %v7279, 4
      %v7346 = vsel %vm6011, %v7343, %v7345
      %7347 = vrot.lane.b32.xlu0 %v7336, 32
      %v7348 = vpop.permute.xlu0 %7347
      %7349 = vrot.lane.b32.xlu0 %v7338, 32
      %v7350 = vpop.permute.xlu0 %7349
      %7351 = vrot.lane.b32.xlu0 %v7340, 32
      %v7352 = vpop.permute.xlu0 %7351
      %7353 = vrot.lane.b32.xlu0 %v7342, 32
      %v7354 = vpop.permute.xlu0 %7353
      %7355 = vrot.lane.b32.xlu0 %v7344, 32
      %v7356 = vpop.permute.xlu0 %7355
      %7357 = vrot.lane.b32.xlu0 %v7346, 32
      %v7358 = vpop.permute.xlu0 %7357
      %7359 = vrot.lane.b32.xlu0 %v7345, 32
      %v7360 = vpop.permute.xlu0 %7359
      %v7374 = vrot.slane %v7280, 6
      %v7375 = vrot.slane %v7281, 6
      %v7376 = vsel %vm1124, %v7374, %v7375
      %v7377 = vrot.slane %v7282, 6
      %v7378 = vsel %vm1124, %v7375, %v7377
      %v7379 = vrot.slane %v7283, 6
      %v7380 = vsel %vm1124, %v7377, %v7379
      %v7381 = vrot.slane %v7284, 6
      %v7382 = vsel %vm1124, %v7379, %v7381
      %v7383 = vrot.slane %v7285, 6
      %v7384 = vsel %vm1124, %v7381, %v7383
      %7385 = vrot.lane.b32.xlu0 %v7374, 48
      %v7386 = vpop.permute.xlu0 %7385
      %7387 = vrot.lane.b32.xlu0 %v7376, 48
      %v7388 = vpop.permute.xlu0 %7387
      %7389 = vrot.lane.b32.xlu0 %v7378, 48
      %v7390 = vpop.permute.xlu0 %7389
      %7391 = vrot.lane.b32.xlu0 %v7380, 48
      %v7392 = vpop.permute.xlu0 %7391
      %7393 = vrot.lane.b32.xlu0 %v7382, 48
      %v7394 = vpop.permute.xlu0 %7393
      %7395 = vrot.lane.b32.xlu0 %v7384, 48
      %v7396 = vpop.permute.xlu0 %7395
      %7397 = vrot.lane.b32.xlu0 %v7383, 48
      %v7398 = vpop.permute.xlu0 %7397
      %v7406 = vsel %vm950, %v6444, %v7307
      %v7407 = vsel %vm950, %v6445, %v7309
      %v7408 = vsel %vm950, %v6446, %v7311
      %v7409 = vsel %vm950, %v6447, %v7313
      %v7410 = vsel %vm950, %v6448, %v7315
      %v7411 = vsel %vm950, %v6449, %v7317
      %v7412 = vsel %vm950, %v6450, %v7319
      %v7413 = vsel %vm1050, %v7406, %v7348
      %v7414 = vsel %vm1050, %v7407, %v7350
      %v7415 = vsel %vm1050, %v7408, %v7352
      %v7416 = vsel %vm1050, %v7409, %v7354
      %v7417 = vsel %vm1050, %v7410, %v7356
      %v7418 = vsel %vm1050, %v7411, %v7358
      %v7419 = vsel %vm1050, %v7412, %v7360
      %vm7420 = vcmask 392192
      %v7421 = vsel %vm7420, %v7413, %v7386
      %v7422 = vsel %vm7420, %v7414, %v7388
      %v7423 = vsel %vm7420, %v7415, %v7390
      %v7424 = vsel %vm7420, %v7416, %v7392
      %v7425 = vsel %vm7420, %v7417, %v7394
      %v7426 = vsel %vm7420, %v7418, %v7396
      %v7427 = vsel %vm7420, %v7419, %v7398
      %v7435 = vrot.slane %v7421, 2
      %v7436 = vrot.slane %v7422, 2
      %v7437 = vsel %vm5941, %v7435, %v7436
      %v7438 = vrot.slane %v7423, 2
      %v7439 = vsel %vm5941, %v7436, %v7438
      %v7440 = vrot.slane %v7424, 2
      %v7441 = vsel %vm5941, %v7438, %v7440
      %v7442 = vrot.slane %v7425, 2
      %v7443 = vsel %vm5941, %v7440, %v7442
      %v7444 = vrot.slane %v7426, 2
      %v7445 = vsel %vm5941, %v7442, %v7444
      %v7446 = vrot.slane %v7427, 2
      %v7447 = vsel %vm5941, %v7444, %v7446
      %7454 = vrot.lane.b32.xlu0 %v417, 127
      %v7455 = vpop.permute.xlu0 %7454
      %7456 = vrot.lane.b32.xlu0 %v418, 127
      %v7457 = vpop.permute.xlu0 %7456
      %7458 = vrot.lane.b32.xlu0 %v419, 127
      %v7459 = vpop.permute.xlu0 %7458
      %7460 = vrot.lane.b32.xlu0 %v420, 127
      %v7461 = vpop.permute.xlu0 %7460
      %7462 = vrot.lane.b32.xlu0 %v421, 127
      %v7463 = vpop.permute.xlu0 %7462
      %7464 = vrot.lane.b32.xlu0 %v422, 127
      %v7465 = vpop.permute.xlu0 %7464
      %7466 = vrot.lane.b32.xlu0 %v423, 127
      %v7467 = vpop.permute.xlu0 %7466
      %7482 = vrot.lane.b32.xlu0 %v5944, 1
      %v7483 = vpop.permute.xlu0 %7482
      %7484 = vrot.lane.b32.xlu0 %v5946, 1
      %v7485 = vpop.permute.xlu0 %7484
      %7486 = vrot.lane.b32.xlu0 %v5948, 1
      %v7487 = vpop.permute.xlu0 %7486
      %7488 = vrot.lane.b32.xlu0 %v5950, 1
      %v7489 = vpop.permute.xlu0 %7488
      %7490 = vrot.lane.b32.xlu0 %v5952, 1
      %v7491 = vpop.permute.xlu0 %7490
      %7492 = vrot.lane.b32.xlu0 %v5954, 1
      %v7493 = vpop.permute.xlu0 %7492
      %7494 = vrot.lane.b32.xlu0 %v5953, 1
      %v7495 = vpop.permute.xlu0 %7494
      %7503 = vrot.lane.b32.xlu0 %v5979, 2
      %v7504 = vpop.permute.xlu0 %7503
      %7505 = vrot.lane.b32.xlu0 %v5981, 2
      %v7506 = vpop.permute.xlu0 %7505
      %7507 = vrot.lane.b32.xlu0 %v5983, 2
      %v7508 = vpop.permute.xlu0 %7507
      %7509 = vrot.lane.b32.xlu0 %v5985, 2
      %v7510 = vpop.permute.xlu0 %7509
      %7511 = vrot.lane.b32.xlu0 %v5987, 2
      %v7512 = vpop.permute.xlu0 %7511
      %7513 = vrot.lane.b32.xlu0 %v5989, 2
      %v7514 = vpop.permute.xlu0 %7513
      %7515 = vrot.lane.b32.xlu0 %v5988, 2
      %v7516 = vpop.permute.xlu0 %7515
      %7524 = vrot.lane.b32.xlu0 %v6014, 3
      %v7525 = vpop.permute.xlu0 %7524
      %7526 = vrot.lane.b32.xlu0 %v6016, 3
      %v7527 = vpop.permute.xlu0 %7526
      %7528 = vrot.lane.b32.xlu0 %v6018, 3
      %v7529 = vpop.permute.xlu0 %7528
      %7530 = vrot.lane.b32.xlu0 %v6020, 3
      %v7531 = vpop.permute.xlu0 %7530
      %7532 = vrot.lane.b32.xlu0 %v6022, 3
      %v7533 = vpop.permute.xlu0 %7532
      %7534 = vrot.lane.b32.xlu0 %v6024, 3
      %v7535 = vpop.permute.xlu0 %7534
      %7536 = vrot.lane.b32.xlu0 %v6023, 3
      %v7537 = vpop.permute.xlu0 %7536
      %7545 = vrot.lane.b32.xlu0 %v6049, 4
      %v7546 = vpop.permute.xlu0 %7545
      %7547 = vrot.lane.b32.xlu0 %v6051, 4
      %v7548 = vpop.permute.xlu0 %7547
      %7549 = vrot.lane.b32.xlu0 %v6053, 4
      %v7550 = vpop.permute.xlu0 %7549
      %7551 = vrot.lane.b32.xlu0 %v6055, 4
      %v7552 = vpop.permute.xlu0 %7551
      %7553 = vrot.lane.b32.xlu0 %v6057, 4
      %v7554 = vpop.permute.xlu0 %7553
      %7555 = vrot.lane.b32.xlu0 %v6059, 4
      %v7556 = vpop.permute.xlu0 %7555
      %7557 = vrot.lane.b32.xlu0 %v6058, 4
      %v7558 = vpop.permute.xlu0 %7557
      %7566 = vrot.lane.b32.xlu0 %v6081, 5
      %v7567 = vpop.permute.xlu0 %7566
      %7568 = vrot.lane.b32.xlu0 %v6083, 5
      %v7569 = vpop.permute.xlu0 %7568
      %7570 = vrot.lane.b32.xlu0 %v6085, 5
      %v7571 = vpop.permute.xlu0 %7570
      %7572 = vrot.lane.b32.xlu0 %v6087, 5
      %v7573 = vpop.permute.xlu0 %7572
      %7574 = vrot.lane.b32.xlu0 %v6089, 5
      %v7575 = vpop.permute.xlu0 %7574
      %7576 = vrot.lane.b32.xlu0 %v6091, 5
      %v7577 = vpop.permute.xlu0 %7576
      %7584 = vrot.lane.b32.xlu0 %v419, 6
      %v7585 = vpop.permute.xlu0 %7584
      %7586 = vrot.lane.b32.xlu0 %v420, 6
      %v7587 = vpop.permute.xlu0 %7586
      %7588 = vrot.lane.b32.xlu0 %v421, 6
      %v7589 = vpop.permute.xlu0 %7588
      %7590 = vrot.lane.b32.xlu0 %v422, 6
      %v7591 = vpop.permute.xlu0 %7590
      %7592 = vrot.lane.b32.xlu0 %v423, 6
      %v7593 = vpop.permute.xlu0 %7592
      %7594 = vrot.lane.b32.xlu0 %v424, 6
      %v7595 = vpop.permute.xlu0 %7594
      %7596 = vrot.lane.b32.xlu0 %v425, 6
      %v7597 = vpop.permute.xlu0 %7596
      %7605 = vrot.lane.b32.xlu0 %v5913, 7
      %v7606 = vpop.permute.xlu0 %7605
      %7607 = vrot.lane.b32.xlu0 %v5915, 7
      %v7608 = vpop.permute.xlu0 %7607
      %7609 = vrot.lane.b32.xlu0 %v5917, 7
      %v7610 = vpop.permute.xlu0 %7609
      %7611 = vrot.lane.b32.xlu0 %v5919, 7
      %v7612 = vpop.permute.xlu0 %7611
      %7613 = vrot.lane.b32.xlu0 %v6137, 7
      %v7614 = vpop.permute.xlu0 %7613
      %7615 = vrot.lane.b32.xlu0 %v6139, 7
      %v7616 = vpop.permute.xlu0 %7615
      %7617 = vrot.lane.b32.xlu0 %v6138, 7
      %v7618 = vpop.permute.xlu0 %7617
      %7626 = vrot.lane.b32.xlu0 %v5948, 8
      %v7627 = vpop.permute.xlu0 %7626
      %7628 = vrot.lane.b32.xlu0 %v5950, 8
      %v7629 = vpop.permute.xlu0 %7628
      %7630 = vrot.lane.b32.xlu0 %v5952, 8
      %v7631 = vpop.permute.xlu0 %7630
      %7632 = vrot.lane.b32.xlu0 %v5954, 8
      %v7633 = vpop.permute.xlu0 %7632
      %7634 = vrot.lane.b32.xlu0 %v6162, 8
      %v7635 = vpop.permute.xlu0 %7634
      %7636 = vrot.lane.b32.xlu0 %v6164, 8
      %v7637 = vpop.permute.xlu0 %7636
      %7638 = vrot.lane.b32.xlu0 %v6163, 8
      %v7639 = vpop.permute.xlu0 %7638
      %7647 = vrot.lane.b32.xlu0 %v5983, 9
      %v7648 = vpop.permute.xlu0 %7647
      %7649 = vrot.lane.b32.xlu0 %v5985, 9
      %v7650 = vpop.permute.xlu0 %7649
      %7651 = vrot.lane.b32.xlu0 %v5987, 9
      %v7652 = vpop.permute.xlu0 %7651
      %7653 = vrot.lane.b32.xlu0 %v5989, 9
      %v7654 = vpop.permute.xlu0 %7653
      %7655 = vrot.lane.b32.xlu0 %v6187, 9
      %v7656 = vpop.permute.xlu0 %7655
      %7657 = vrot.lane.b32.xlu0 %v6189, 9
      %v7658 = vpop.permute.xlu0 %7657
      %7659 = vrot.lane.b32.xlu0 %v6188, 9
      %v7660 = vpop.permute.xlu0 %7659
      %7668 = vrot.lane.b32.xlu0 %v6018, 10
      %v7669 = vpop.permute.xlu0 %7668
      %7670 = vrot.lane.b32.xlu0 %v6020, 10
      %v7671 = vpop.permute.xlu0 %7670
      %7672 = vrot.lane.b32.xlu0 %v6022, 10
      %v7673 = vpop.permute.xlu0 %7672
      %7674 = vrot.lane.b32.xlu0 %v6024, 10
      %v7675 = vpop.permute.xlu0 %7674
      %7676 = vrot.lane.b32.xlu0 %v6212, 10
      %v7677 = vpop.permute.xlu0 %7676
      %7678 = vrot.lane.b32.xlu0 %v6214, 10
      %v7679 = vpop.permute.xlu0 %7678
      %7680 = vrot.lane.b32.xlu0 %v6213, 10
      %v7681 = vpop.permute.xlu0 %7680
      %7689 = vrot.lane.b32.xlu0 %v6053, 11
      %v7690 = vpop.permute.xlu0 %7689
      %7691 = vrot.lane.b32.xlu0 %v6055, 11
      %v7692 = vpop.permute.xlu0 %7691
      %7693 = vrot.lane.b32.xlu0 %v6057, 11
      %v7694 = vpop.permute.xlu0 %7693
      %7695 = vrot.lane.b32.xlu0 %v6059, 11
      %v7696 = vpop.permute.xlu0 %7695
      %7697 = vrot.lane.b32.xlu0 %v6237, 11
      %v7698 = vpop.permute.xlu0 %7697
      %7699 = vrot.lane.b32.xlu0 %v6239, 11
      %v7700 = vpop.permute.xlu0 %7699
      %7701 = vrot.lane.b32.xlu0 %v6238, 11
      %v7702 = vpop.permute.xlu0 %7701
      %7710 = vrot.lane.b32.xlu0 %v6084, 12
      %v7711 = vpop.permute.xlu0 %7710
      %7712 = vrot.lane.b32.xlu0 %v6087, 12
      %v7713 = vpop.permute.xlu0 %7712
      %7714 = vrot.lane.b32.xlu0 %v6089, 12
      %v7715 = vpop.permute.xlu0 %7714
      %7716 = vrot.lane.b32.xlu0 %v6091, 12
      %v7717 = vpop.permute.xlu0 %7716
      %7718 = vrot.lane.b32.xlu0 %v6262, 12
      %v7719 = vpop.permute.xlu0 %7718
      %7720 = vrot.lane.b32.xlu0 %v6264, 12
      %v7721 = vpop.permute.xlu0 %7720
      %7728 = vrot.lane.b32.xlu0 %v421, 13
      %v7729 = vpop.permute.xlu0 %7728
      %7730 = vrot.lane.b32.xlu0 %v422, 13
      %v7731 = vpop.permute.xlu0 %7730
      %7732 = vrot.lane.b32.xlu0 %v423, 13
      %v7733 = vpop.permute.xlu0 %7732
      %7734 = vrot.lane.b32.xlu0 %v424, 13
      %v7735 = vpop.permute.xlu0 %7734
      %7736 = vrot.lane.b32.xlu0 %v425, 13
      %v7737 = vpop.permute.xlu0 %7736
      %7738 = vrot.lane.b32.xlu0 %v426, 13
      %v7739 = vpop.permute.xlu0 %7738
      %7740 = vrot.lane.b32.xlu0 %v427, 13
      %v7741 = vpop.permute.xlu0 %7740
      %7749 = vrot.lane.b32.xlu0 %v5917, 14
      %v7750 = vpop.permute.xlu0 %7749
      %7751 = vrot.lane.b32.xlu0 %v5919, 14
      %v7752 = vpop.permute.xlu0 %7751
      %7753 = vrot.lane.b32.xlu0 %v6137, 14
      %v7754 = vpop.permute.xlu0 %7753
      %7755 = vrot.lane.b32.xlu0 %v6139, 14
      %v7756 = vpop.permute.xlu0 %7755
      %7757 = vrot.lane.b32.xlu0 %v6310, 14
      %v7758 = vpop.permute.xlu0 %7757
      %7759 = vrot.lane.b32.xlu0 %v6312, 14
      %v7760 = vpop.permute.xlu0 %7759
      %7761 = vrot.lane.b32.xlu0 %v6311, 14
      %v7762 = vpop.permute.xlu0 %7761
      %v7770 = vsel %vm6334, %v7455, %v5909
      %v7771 = vsel %vm6334, %v7457, %v5911
      %v7772 = vsel %vm6334, %v7459, %v5913
      %v7773 = vsel %vm6334, %v7461, %v5915
      %v7774 = vsel %vm6334, %v7463, %v5917
      %v7775 = vsel %vm6334, %v7465, %v5919
      %v7776 = vsel %vm6334, %v7467, %v5918
      %v7777 = vsel %vm6342, %v7770, %v7483
      %v7778 = vsel %vm6342, %v7771, %v7485
      %v7779 = vsel %vm6342, %v7772, %v7487
      %v7780 = vsel %vm6342, %v7773, %v7489
      %v7781 = vsel %vm6342, %v7774, %v7491
      %v7782 = vsel %vm6342, %v7775, %v7493
      %v7783 = vsel %vm6342, %v7776, %v7495
      %v7784 = vsel %vm6350, %v7777, %v7504
      %v7785 = vsel %vm6350, %v7778, %v7506
      %v7786 = vsel %vm6350, %v7779, %v7508
      %v7787 = vsel %vm6350, %v7780, %v7510
      %v7788 = vsel %vm6350, %v7781, %v7512
      %v7789 = vsel %vm6350, %v7782, %v7514
      %v7790 = vsel %vm6350, %v7783, %v7516
      %v7791 = vsel %vm874, %v7784, %v7525
      %v7792 = vsel %vm874, %v7785, %v7527
      %v7793 = vsel %vm874, %v7786, %v7529
      %v7794 = vsel %vm874, %v7787, %v7531
      %v7795 = vsel %vm874, %v7788, %v7533
      %v7796 = vsel %vm874, %v7789, %v7535
      %v7797 = vsel %vm874, %v7790, %v7537
      %v7798 = vsel %vm6365, %v7791, %v7546
      %v7799 = vsel %vm6365, %v7792, %v7548
      %v7800 = vsel %vm6365, %v7793, %v7550
      %v7801 = vsel %vm6365, %v7794, %v7552
      %v7802 = vsel %vm6365, %v7795, %v7554
      %v7803 = vsel %vm6365, %v7796, %v7556
      %v7804 = vsel %vm6365, %v7797, %v7558
      %v7805 = vsel %vm6373, %v7798, %v7567
      %v7806 = vsel %vm6373, %v7799, %v7569
      %v7807 = vsel %vm6373, %v7800, %v7571
      %v7808 = vsel %vm6373, %v7801, %v7573
      %v7809 = vsel %vm6373, %v7802, %v7575
      %v7810 = vsel %vm6373, %v7803, %v7577
      %v7811 = vsel %vm6373, %v7804, %v6537
      %v7812 = vsel %vm6381, %v7805, %v7585
      %v7813 = vsel %vm6381, %v7806, %v7587
      %v7814 = vsel %vm6381, %v7807, %v7589
      %v7815 = vsel %vm6381, %v7808, %v7591
      %v7816 = vsel %vm6381, %v7809, %v7593
      %v7817 = vsel %vm6381, %v7810, %v7595
      %v7818 = vsel %vm6381, %v7811, %v7597
      %v7819 = vsel %vm900, %v7812, %v7606
      %v7820 = vsel %vm900, %v7813, %v7608
      %v7821 = vsel %vm900, %v7814, %v7610
      %v7822 = vsel %vm900, %v7815, %v7612
      %v7823 = vsel %vm900, %v7816, %v7614
      %v7824 = vsel %vm900, %v7817, %v7616
      %v7825 = vsel %vm900, %v7818, %v7618
      %v7826 = vsel %vm6396, %v7819, %v7627
      %v7827 = vsel %vm6396, %v7820, %v7629
      %v7828 = vsel %vm6396, %v7821, %v7631
      %v7829 = vsel %vm6396, %v7822, %v7633
      %v7830 = vsel %vm6396, %v7823, %v7635
      %v7831 = vsel %vm6396, %v7824, %v7637
      %v7832 = vsel %vm6396, %v7825, %v7639
      %v7833 = vsel %vm6404, %v7826, %v7648
      %v7834 = vsel %vm6404, %v7827, %v7650
      %v7835 = vsel %vm6404, %v7828, %v7652
      %v7836 = vsel %vm6404, %v7829, %v7654
      %v7837 = vsel %vm6404, %v7830, %v7656
      %v7838 = vsel %vm6404, %v7831, %v7658
      %v7839 = vsel %vm6404, %v7832, %v7660
      %v7840 = vsel %vm6412, %v7833, %v7669
      %v7841 = vsel %vm6412, %v7834, %v7671
      %v7842 = vsel %vm6412, %v7835, %v7673
      %v7843 = vsel %vm6412, %v7836, %v7675
      %v7844 = vsel %vm6412, %v7837, %v7677
      %v7845 = vsel %vm6412, %v7838, %v7679
      %v7846 = vsel %vm6412, %v7839, %v7681
      %v7847 = vsel %vm925, %v7840, %v7690
      %v7848 = vsel %vm925, %v7841, %v7692
      %v7849 = vsel %vm925, %v7842, %v7694
      %v7850 = vsel %vm925, %v7843, %v7696
      %v7851 = vsel %vm925, %v7844, %v7698
      %v7852 = vsel %vm925, %v7845, %v7700
      %v7853 = vsel %vm925, %v7846, %v7702
      %v7854 = vsel %vm6427, %v7847, %v7711
      %v7855 = vsel %vm6427, %v7848, %v7713
      %v7856 = vsel %vm6427, %v7849, %v7715
      %v7857 = vsel %vm6427, %v7850, %v7717
      %v7858 = vsel %vm6427, %v7851, %v7719
      %v7859 = vsel %vm6427, %v7852, %v7721
      %v7860 = vsel %vm6427, %v7853, %v6690
      %v7861 = vsel %vm6435, %v7854, %v7729
      %v7862 = vsel %vm6435, %v7855, %v7731
      %v7863 = vsel %vm6435, %v7856, %v7733
      %v7864 = vsel %vm6435, %v7857, %v7735
      %v7865 = vsel %vm6435, %v7858, %v7737
      %v7866 = vsel %vm6435, %v7859, %v7739
      %v7867 = vsel %vm6435, %v7860, %v7741
      %v7868 = vsel %vm6443, %v7861, %v7750
      %v7869 = vsel %vm6443, %v7862, %v7752
      %v7870 = vsel %vm6443, %v7863, %v7754
      %v7871 = vsel %vm6443, %v7864, %v7756
      %v7872 = vsel %vm6443, %v7865, %v7758
      %v7873 = vsel %vm6443, %v7866, %v7760
      %v7874 = vsel %vm6443, %v7867, %v7762
      %7875 = vrot.lane.b32.xlu0 %v424, 127
      %v7876 = vpop.permute.xlu0 %7875
      %7877 = vrot.lane.b32.xlu0 %v425, 127
      %v7878 = vpop.permute.xlu0 %7877
      %7879 = vrot.lane.b32.xlu0 %v426, 127
      %v7880 = vpop.permute.xlu0 %7879
      %7881 = vrot.lane.b32.xlu0 %v427, 127
      %v7882 = vpop.permute.xlu0 %7881
      %7892 = vrot.lane.b32.xlu0 %v6162, 1
      %v7893 = vpop.permute.xlu0 %7892
      %7894 = vrot.lane.b32.xlu0 %v6164, 1
      %v7895 = vpop.permute.xlu0 %7894
      %7896 = vrot.lane.b32.xlu0 %v6467, 1
      %v7897 = vpop.permute.xlu0 %7896
      %7898 = vrot.lane.b32.xlu0 %v6469, 1
      %v7899 = vpop.permute.xlu0 %7898
      %7900 = vrot.lane.b32.xlu0 %v6468, 1
      %v7901 = vpop.permute.xlu0 %7900
      %7907 = vrot.lane.b32.xlu0 %v6187, 2
      %v7908 = vpop.permute.xlu0 %7907
      %7909 = vrot.lane.b32.xlu0 %v6189, 2
      %v7910 = vpop.permute.xlu0 %7909
      %7911 = vrot.lane.b32.xlu0 %v6486, 2
      %v7912 = vpop.permute.xlu0 %7911
      %7913 = vrot.lane.b32.xlu0 %v6488, 2
      %v7914 = vpop.permute.xlu0 %7913
      %7915 = vrot.lane.b32.xlu0 %v6487, 2
      %v7916 = vpop.permute.xlu0 %7915
      %7922 = vrot.lane.b32.xlu0 %v6021, 3
      %v7923 = vpop.permute.xlu0 %7922
      %7924 = vrot.lane.b32.xlu0 %v6212, 3
      %v7925 = vpop.permute.xlu0 %7924
      %7926 = vrot.lane.b32.xlu0 %v6214, 3
      %v7927 = vpop.permute.xlu0 %7926
      %7928 = vrot.lane.b32.xlu0 %v6505, 3
      %v7929 = vpop.permute.xlu0 %7928
      %7930 = vrot.lane.b32.xlu0 %v6507, 3
      %v7931 = vpop.permute.xlu0 %7930
      %7937 = vrot.lane.b32.xlu0 %v6090, 4
      %v7938 = vpop.permute.xlu0 %7937
      %7939 = vrot.lane.b32.xlu0 %v6262, 4
      %v7940 = vpop.permute.xlu0 %7939
      %7941 = vrot.lane.b32.xlu0 %v6264, 4
      %v7942 = vpop.permute.xlu0 %7941
      %7943 = vrot.lane.b32.xlu0 %v6529, 4
      %v7944 = vpop.permute.xlu0 %7943
      %7945 = vrot.lane.b32.xlu0 %v6531, 4
      %v7946 = vpop.permute.xlu0 %7945
      %7947 = vrot.lane.b32.xlu0 %v6533, 4
      %v7948 = vpop.permute.xlu0 %7947
      %7949 = vrot.lane.b32.xlu0 %v6535, 4
      %v7950 = vpop.permute.xlu0 %7949
      %7958 = vrot.lane.b32.xlu0 %v6558, 5
      %v7959 = vpop.permute.xlu0 %7958
      %7960 = vrot.lane.b32.xlu0 %v6560, 5
      %v7961 = vpop.permute.xlu0 %7960
      %7962 = vrot.lane.b32.xlu0 %v6562, 5
      %v7963 = vpop.permute.xlu0 %7962
      %7964 = vrot.lane.b32.xlu0 %v6564, 5
      %v7965 = vpop.permute.xlu0 %7964
      %7966 = vrot.lane.b32.xlu0 %v6566, 5
      %v7967 = vpop.permute.xlu0 %7966
      %7968 = vrot.lane.b32.xlu0 %v6568, 5
      %v7969 = vpop.permute.xlu0 %7968
      %7970 = vrot.lane.b32.xlu0 %v6570, 5
      %v7971 = vpop.permute.xlu0 %7970
      %7979 = vrot.lane.b32.xlu0 %v426, 6
      %v7980 = vpop.permute.xlu0 %7979
      %7981 = vrot.lane.b32.xlu0 %v427, 6
      %v7982 = vpop.permute.xlu0 %7981
      %7983 = vrot.lane.b32.xlu0 %v428, 6
      %v7984 = vpop.permute.xlu0 %7983
      %7985 = vrot.lane.b32.xlu0 %v429, 6
      %v7986 = vpop.permute.xlu0 %7985
      %7991 = vrot.lane.b32.xlu0 %v6310, 7
      %v7992 = vpop.permute.xlu0 %7991
      %7993 = vrot.lane.b32.xlu0 %v6312, 7
      %v7994 = vpop.permute.xlu0 %7993
      %7995 = vrot.lane.b32.xlu0 %v6605, 7
      %v7996 = vpop.permute.xlu0 %7995
      %7997 = vrot.lane.b32.xlu0 %v6607, 7
      %v7998 = vpop.permute.xlu0 %7997
      %7999 = vrot.lane.b32.xlu0 %v6606, 7
      %v8000 = vpop.permute.xlu0 %7999
      %8006 = vrot.lane.b32.xlu0 %v6467, 8
      %v8007 = vpop.permute.xlu0 %8006
      %8008 = vrot.lane.b32.xlu0 %v6469, 8
      %v8009 = vpop.permute.xlu0 %8008
      %8010 = vrot.lane.b32.xlu0 %v6624, 8
      %v8011 = vpop.permute.xlu0 %8010
      %8012 = vrot.lane.b32.xlu0 %v6626, 8
      %v8013 = vpop.permute.xlu0 %8012
      %8014 = vrot.lane.b32.xlu0 %v6625, 8
      %v8015 = vpop.permute.xlu0 %8014
      %8021 = vrot.lane.b32.xlu0 %v6486, 9
      %v8022 = vpop.permute.xlu0 %8021
      %8023 = vrot.lane.b32.xlu0 %v6488, 9
      %v8024 = vpop.permute.xlu0 %8023
      %8025 = vrot.lane.b32.xlu0 %v6643, 9
      %v8026 = vpop.permute.xlu0 %8025
      %8027 = vrot.lane.b32.xlu0 %v6645, 9
      %v8028 = vpop.permute.xlu0 %8027
      %8029 = vrot.lane.b32.xlu0 %v6644, 9
      %v8030 = vpop.permute.xlu0 %8029
      %8036 = vrot.lane.b32.xlu0 %v6211, 10
      %v8037 = vpop.permute.xlu0 %8036
      %8038 = vrot.lane.b32.xlu0 %v6505, 10
      %v8039 = vpop.permute.xlu0 %8038
      %8040 = vrot.lane.b32.xlu0 %v6507, 10
      %v8041 = vpop.permute.xlu0 %8040
      %8042 = vrot.lane.b32.xlu0 %v6662, 10
      %v8043 = vpop.permute.xlu0 %8042
      %8044 = vrot.lane.b32.xlu0 %v6664, 10
      %v8045 = vpop.permute.xlu0 %8044
      %8051 = vrot.lane.b32.xlu0 %v6263, 11
      %v8052 = vpop.permute.xlu0 %8051
      %8053 = vrot.lane.b32.xlu0 %v6529, 11
      %v8054 = vpop.permute.xlu0 %8053
      %8055 = vrot.lane.b32.xlu0 %v6531, 11
      %v8056 = vpop.permute.xlu0 %8055
      %8057 = vrot.lane.b32.xlu0 %v6533, 11
      %v8058 = vpop.permute.xlu0 %8057
      %8059 = vrot.lane.b32.xlu0 %v6535, 11
      %v8060 = vpop.permute.xlu0 %8059
      %8061 = vrot.lane.b32.xlu0 %v6686, 11
      %v8062 = vpop.permute.xlu0 %8061
      %8063 = vrot.lane.b32.xlu0 %v6688, 11
      %v8064 = vpop.permute.xlu0 %8063
      %8072 = vrot.lane.b32.xlu0 %v6561, 12
      %v8073 = vpop.permute.xlu0 %8072
      %8074 = vrot.lane.b32.xlu0 %v6564, 12
      %v8075 = vpop.permute.xlu0 %8074
      %8076 = vrot.lane.b32.xlu0 %v6566, 12
      %v8077 = vpop.permute.xlu0 %8076
      %8078 = vrot.lane.b32.xlu0 %v6568, 12
      %v8079 = vpop.permute.xlu0 %8078
      %8080 = vrot.lane.b32.xlu0 %v6570, 12
      %v8081 = vpop.permute.xlu0 %8080
      %8082 = vrot.lane.b32.xlu0 %v6711, 12
      %v8083 = vpop.permute.xlu0 %8082
      %8084 = vrot.lane.b32.xlu0 %v6713, 12
      %v8085 = vpop.permute.xlu0 %8084
      %8093 = vrot.lane.b32.xlu0 %v428, 13
      %v8094 = vpop.permute.xlu0 %8093
      %8095 = vrot.lane.b32.xlu0 %v429, 13
      %v8096 = vpop.permute.xlu0 %8095
      %8097 = vrot.lane.b32.xlu0 %v430, 13
      %v8098 = vpop.permute.xlu0 %8097
      %8099 = vrot.lane.b32.xlu0 %v431, 13
      %v8100 = vpop.permute.xlu0 %8099
      %8105 = vrot.lane.b32.xlu0 %v6605, 14
      %v8106 = vpop.permute.xlu0 %8105
      %8107 = vrot.lane.b32.xlu0 %v6607, 14
      %v8108 = vpop.permute.xlu0 %8107
      %8109 = vrot.lane.b32.xlu0 %v6748, 14
      %v8110 = vpop.permute.xlu0 %8109
      %8111 = vrot.lane.b32.xlu0 %v6750, 14
      %v8112 = vpop.permute.xlu0 %8111
      %8113 = vrot.lane.b32.xlu0 %v6749, 14
      %v8114 = vpop.permute.xlu0 %8113
      %v8120 = vsel %vm6334, %v7467, %v6137
      %v8121 = vsel %vm6334, %v7876, %v6139
      %v8122 = vsel %vm6334, %v7878, %v6310
      %v8123 = vsel %vm6334, %v7880, %v6312
      %v8124 = vsel %vm6334, %v7882, %v6311
      %v8125 = vsel %vm6342, %v8120, %v7893
      %v8126 = vsel %vm6342, %v8121, %v7895
      %v8127 = vsel %vm6342, %v8122, %v7897
      %v8128 = vsel %vm6342, %v8123, %v7899
      %v8129 = vsel %vm6342, %v8124, %v7901
      %v8130 = vsel %vm6350, %v8125, %v7908
      %v8131 = vsel %vm6350, %v8126, %v7910
      %v8132 = vsel %vm6350, %v8127, %v7912
      %v8133 = vsel %vm6350, %v8128, %v7914
      %v8134 = vsel %vm6350, %v8129, %v7916
      %v8135 = vsel %vm874, %v7788, %v7923
      %v8136 = vsel %vm874, %v8130, %v7925
      %v8137 = vsel %vm874, %v8131, %v7927
      %v8138 = vsel %vm874, %v8132, %v7929
      %v8139 = vsel %vm874, %v8133, %v7931
      %v8140 = vsel %vm874, %v8134, %v6912
      %v8141 = vsel %vm6365, %v8135, %v7938
      %v8142 = vsel %vm6365, %v7796, %v7940
      %v8143 = vsel %vm6365, %v8136, %v7942
      %v8144 = vsel %vm6365, %v8137, %v7944
      %v8145 = vsel %vm6365, %v8138, %v7946
      %v8146 = vsel %vm6365, %v8139, %v7948
      %v8147 = vsel %vm6365, %v8140, %v7950
      %v8148 = vsel %vm6373, %v8141, %v7959
      %v8149 = vsel %vm6373, %v8142, %v7961
      %v8150 = vsel %vm6373, %v8143, %v7963
      %v8151 = vsel %vm6373, %v8144, %v7965
      %v8152 = vsel %vm6373, %v8145, %v7967
      %v8153 = vsel %vm6373, %v8146, %v7969
      %v8154 = vsel %vm6373, %v8147, %v7971
      %v8155 = vsel %vm6381, %v8148, %v7593
      %v8156 = vsel %vm6381, %v8149, %v7595
      %v8157 = vsel %vm6381, %v8150, %v7597
      %v8158 = vsel %vm6381, %v8151, %v7980
      %v8159 = vsel %vm6381, %v8152, %v7982
      %v8160 = vsel %vm6381, %v8153, %v7984
      %v8161 = vsel %vm6381, %v8154, %v7986
      %v8162 = vsel %vm900, %v8155, %v7614
      %v8163 = vsel %vm900, %v8156, %v7616
      %v8164 = vsel %vm900, %v8157, %v7992
      %v8165 = vsel %vm900, %v8158, %v7994
      %v8166 = vsel %vm900, %v8159, %v7996
      %v8167 = vsel %vm900, %v8160, %v7998
      %v8168 = vsel %vm900, %v8161, %v8000
      %v8169 = vsel %vm6396, %v8162, %v7635
      %v8170 = vsel %vm6396, %v8163, %v7637
      %v8171 = vsel %vm6396, %v8164, %v8007
      %v8172 = vsel %vm6396, %v8165, %v8009
      %v8173 = vsel %vm6396, %v8166, %v8011
      %v8174 = vsel %vm6396, %v8167, %v8013
      %v8175 = vsel %vm6396, %v8168, %v8015
      %v8176 = vsel %vm6404, %v8169, %v7656
      %v8177 = vsel %vm6404, %v8170, %v7658
      %v8178 = vsel %vm6404, %v8171, %v8022
      %v8179 = vsel %vm6404, %v8172, %v8024
      %v8180 = vsel %vm6404, %v8173, %v8026
      %v8181 = vsel %vm6404, %v8174, %v8028
      %v8182 = vsel %vm6404, %v8175, %v8030
      %v8183 = vsel %vm6412, %v8176, %v8037
      %v8184 = vsel %vm6412, %v8177, %v7679
      %v8185 = vsel %vm6412, %v8178, %v8039
      %v8186 = vsel %vm6412, %v8179, %v8041
      %v8187 = vsel %vm6412, %v8180, %v8043
      %v8188 = vsel %vm6412, %v8181, %v8045
      %v8189 = vsel %vm6412, %v8182, %v7064
      %v8190 = vsel %vm925, %v8183, %v8052
      %v8191 = vsel %vm925, %v8184, %v8054
      %v8192 = vsel %vm925, %v8185, %v8056
      %v8193 = vsel %vm925, %v8186, %v8058
      %v8194 = vsel %vm925, %v8187, %v8060
      %v8195 = vsel %vm925, %v8188, %v8062
      %v8196 = vsel %vm925, %v8189, %v8064
      %v8197 = vsel %vm6427, %v8190, %v8073
      %v8198 = vsel %vm6427, %v8191, %v8075
      %v8199 = vsel %vm6427, %v8192, %v8077
      %v8200 = vsel %vm6427, %v8193, %v8079
      %v8201 = vsel %vm6427, %v8194, %v8081
      %v8202 = vsel %vm6427, %v8195, %v8083
      %v8203 = vsel %vm6427, %v8196, %v8085
      %v8204 = vsel %vm6435, %v8197, %v7737
      %v8205 = vsel %vm6435, %v8198, %v7739
      %v8206 = vsel %vm6435, %v8199, %v7741
      %v8207 = vsel %vm6435, %v8200, %v8094
      %v8208 = vsel %vm6435, %v8201, %v8096
      %v8209 = vsel %vm6435, %v8202, %v8098
      %v8210 = vsel %vm6435, %v8203, %v8100
      %v8211 = vsel %vm6443, %v8204, %v7758
      %v8212 = vsel %vm6443, %v8205, %v7760
      %v8213 = vsel %vm6443, %v8206, %v8106
      %v8214 = vsel %vm6443, %v8207, %v8108
      %v8215 = vsel %vm6443, %v8208, %v8110
      %v8216 = vsel %vm6443, %v8209, %v8112
      %v8217 = vsel %vm6443, %v8210, %v8114
      %8218 = vrot.lane.b32.xlu0 %v428, 127
      %v8219 = vpop.permute.xlu0 %8218
      %8220 = vrot.lane.b32.xlu0 %v429, 127
      %v8221 = vpop.permute.xlu0 %8220
      %8222 = vrot.lane.b32.xlu0 %v430, 127
      %v8223 = vpop.permute.xlu0 %8222
      %8224 = vrot.lane.b32.xlu0 %v431, 127
      %v8225 = vpop.permute.xlu0 %8224
      %8235 = vrot.lane.b32.xlu0 %v6466, 1
      %v8236 = vpop.permute.xlu0 %8235
      %8237 = vrot.lane.b32.xlu0 %v6624, 1
      %v8238 = vpop.permute.xlu0 %8237
      %8239 = vrot.lane.b32.xlu0 %v6626, 1
      %v8240 = vpop.permute.xlu0 %8239
      %8241 = vrot.lane.b32.xlu0 %v6880, 1
      %v8242 = vpop.permute.xlu0 %8241
      %8243 = vrot.lane.b32.xlu0 %v6882, 1
      %v8244 = vpop.permute.xlu0 %8243
      %8245 = vrot.lane.b32.xlu0 %v6881, 1
      %v8246 = vpop.permute.xlu0 %8245
      %8253 = vrot.lane.b32.xlu0 %v6506, 2
      %v8254 = vpop.permute.xlu0 %8253
      %8255 = vrot.lane.b32.xlu0 %v6662, 2
      %v8256 = vpop.permute.xlu0 %8255
      %8257 = vrot.lane.b32.xlu0 %v6664, 2
      %v8258 = vpop.permute.xlu0 %8257
      %8259 = vrot.lane.b32.xlu0 %v6904, 2
      %v8260 = vpop.permute.xlu0 %8259
      %8261 = vrot.lane.b32.xlu0 %v6906, 2
      %v8262 = vpop.permute.xlu0 %8261
      %8263 = vrot.lane.b32.xlu0 %v6908, 2
      %v8264 = vpop.permute.xlu0 %8263
      %8265 = vrot.lane.b32.xlu0 %v6910, 2
      %v8266 = vpop.permute.xlu0 %8265
      %8274 = vrot.lane.b32.xlu0 %v6932, 3
      %v8275 = vpop.permute.xlu0 %8274
      %8276 = vrot.lane.b32.xlu0 %v6934, 3
      %v8277 = vpop.permute.xlu0 %8276
      %8278 = vrot.lane.b32.xlu0 %v6936, 3
      %v8279 = vpop.permute.xlu0 %8278
      %8280 = vrot.lane.b32.xlu0 %v6938, 3
      %v8281 = vpop.permute.xlu0 %8280
      %8282 = vrot.lane.b32.xlu0 %v6940, 3
      %v8283 = vpop.permute.xlu0 %8282
      %8284 = vrot.lane.b32.xlu0 %v6942, 3
      %v8285 = vpop.permute.xlu0 %8284
      %8286 = vrot.lane.b32.xlu0 %v6944, 3
      %v8287 = vpop.permute.xlu0 %8286
      %8295 = vrot.lane.b32.xlu0 %v6530, 4
      %v8296 = vpop.permute.xlu0 %8295
      %8297 = vrot.lane.b32.xlu0 %v6686, 4
      %v8298 = vpop.permute.xlu0 %8297
      %8299 = vrot.lane.b32.xlu0 %v6688, 4
      %v8300 = vpop.permute.xlu0 %8299
      %8301 = vrot.lane.b32.xlu0 %v6967, 4
      %v8302 = vpop.permute.xlu0 %8301
      %8303 = vrot.lane.b32.xlu0 %v6969, 4
      %v8304 = vpop.permute.xlu0 %8303
      %8310 = vrot.lane.b32.xlu0 %v6565, 5
      %v8311 = vpop.permute.xlu0 %8310
      %8312 = vrot.lane.b32.xlu0 %v6711, 5
      %v8313 = vpop.permute.xlu0 %8312
      %8314 = vrot.lane.b32.xlu0 %v6713, 5
      %v8315 = vpop.permute.xlu0 %8314
      %8316 = vrot.lane.b32.xlu0 %v6986, 5
      %v8317 = vpop.permute.xlu0 %8316
      %8318 = vrot.lane.b32.xlu0 %v6988, 5
      %v8319 = vpop.permute.xlu0 %8318
      %8325 = vrot.lane.b32.xlu0 %v430, 6
      %v8326 = vpop.permute.xlu0 %8325
      %8327 = vrot.lane.b32.xlu0 %v431, 6
      %v8328 = vpop.permute.xlu0 %8327
      %8329 = vrot.lane.b32.xlu0 %v432, 6
      %v8330 = vpop.permute.xlu0 %8329
      %8331 = vrot.lane.b32.xlu0 %v433, 6
      %v8332 = vpop.permute.xlu0 %8331
      %8337 = vrot.lane.b32.xlu0 %v6748, 7
      %v8338 = vpop.permute.xlu0 %8337
      %8339 = vrot.lane.b32.xlu0 %v6750, 7
      %v8340 = vpop.permute.xlu0 %8339
      %8341 = vrot.lane.b32.xlu0 %v7017, 7
      %v8342 = vpop.permute.xlu0 %8341
      %8343 = vrot.lane.b32.xlu0 %v7019, 7
      %v8344 = vpop.permute.xlu0 %8343
      %8345 = vrot.lane.b32.xlu0 %v7018, 7
      %v8346 = vpop.permute.xlu0 %8345
      %8352 = vrot.lane.b32.xlu0 %v6623, 8
      %v8353 = vpop.permute.xlu0 %8352
      %8354 = vrot.lane.b32.xlu0 %v6880, 8
      %v8355 = vpop.permute.xlu0 %8354
      %8356 = vrot.lane.b32.xlu0 %v6882, 8
      %v8357 = vpop.permute.xlu0 %8356
      %8358 = vrot.lane.b32.xlu0 %v7036, 8
      %v8359 = vpop.permute.xlu0 %8358
      %8360 = vrot.lane.b32.xlu0 %v7038, 8
      %v8361 = vpop.permute.xlu0 %8360
      %8362 = vrot.lane.b32.xlu0 %v7037, 8
      %v8363 = vpop.permute.xlu0 %8362
      %8370 = vrot.lane.b32.xlu0 %v6663, 9
      %v8371 = vpop.permute.xlu0 %8370
      %8372 = vrot.lane.b32.xlu0 %v6904, 9
      %v8373 = vpop.permute.xlu0 %8372
      %8374 = vrot.lane.b32.xlu0 %v6906, 9
      %v8375 = vpop.permute.xlu0 %8374
      %8376 = vrot.lane.b32.xlu0 %v6908, 9
      %v8377 = vpop.permute.xlu0 %8376
      %8378 = vrot.lane.b32.xlu0 %v6910, 9
      %v8379 = vpop.permute.xlu0 %8378
      %8380 = vrot.lane.b32.xlu0 %v7060, 9
      %v8381 = vpop.permute.xlu0 %8380
      %8382 = vrot.lane.b32.xlu0 %v7062, 9
      %v8383 = vpop.permute.xlu0 %8382
      %8391 = vrot.lane.b32.xlu0 %v6935, 10
      %v8392 = vpop.permute.xlu0 %8391
      %8393 = vrot.lane.b32.xlu0 %v6938, 10
      %v8394 = vpop.permute.xlu0 %8393
      %8395 = vrot.lane.b32.xlu0 %v6940, 10
      %v8396 = vpop.permute.xlu0 %8395
      %8397 = vrot.lane.b32.xlu0 %v6942, 10
      %v8398 = vpop.permute.xlu0 %8397
      %8399 = vrot.lane.b32.xlu0 %v6944, 10
      %v8400 = vpop.permute.xlu0 %8399
      %8401 = vrot.lane.b32.xlu0 %v7085, 10
      %v8402 = vpop.permute.xlu0 %8401
      %8403 = vrot.lane.b32.xlu0 %v7087, 10
      %v8404 = vpop.permute.xlu0 %8403
      %8412 = vrot.lane.b32.xlu0 %v6534, 11
      %v8413 = vpop.permute.xlu0 %8412
      %8414 = vrot.lane.b32.xlu0 %v6967, 11
      %v8415 = vpop.permute.xlu0 %8414
      %8416 = vrot.lane.b32.xlu0 %v6969, 11
      %v8417 = vpop.permute.xlu0 %8416
      %8418 = vrot.lane.b32.xlu0 %v7110, 11
      %v8419 = vpop.permute.xlu0 %8418
      %8420 = vrot.lane.b32.xlu0 %v7112, 11
      %v8421 = vpop.permute.xlu0 %8420
      %8427 = vrot.lane.b32.xlu0 %v6569, 12
      %v8428 = vpop.permute.xlu0 %8427
      %8429 = vrot.lane.b32.xlu0 %v6986, 12
      %v8430 = vpop.permute.xlu0 %8429
      %8431 = vrot.lane.b32.xlu0 %v6988, 12
      %v8432 = vpop.permute.xlu0 %8431
      %8433 = vrot.lane.b32.xlu0 %v7129, 12
      %v8434 = vpop.permute.xlu0 %8433
      %8435 = vrot.lane.b32.xlu0 %v7131, 12
      %v8436 = vpop.permute.xlu0 %8435
      %8442 = vrot.lane.b32.xlu0 %v432, 13
      %v8443 = vpop.permute.xlu0 %8442
      %8444 = vrot.lane.b32.xlu0 %v433, 13
      %v8445 = vpop.permute.xlu0 %8444
      %8446 = vrot.lane.b32.xlu0 %v434, 13
      %v8447 = vpop.permute.xlu0 %8446
      %8448 = vrot.lane.b32.xlu0 %v435, 13
      %v8449 = vpop.permute.xlu0 %8448
      %8454 = vrot.lane.b32.xlu0 %v7017, 14
      %v8455 = vpop.permute.xlu0 %8454
      %8456 = vrot.lane.b32.xlu0 %v7019, 14
      %v8457 = vpop.permute.xlu0 %8456
      %8458 = vrot.lane.b32.xlu0 %v7160, 14
      %v8459 = vpop.permute.xlu0 %8458
      %8460 = vrot.lane.b32.xlu0 %v7162, 14
      %v8461 = vpop.permute.xlu0 %8460
      %8462 = vrot.lane.b32.xlu0 %v7161, 14
      %v8463 = vpop.permute.xlu0 %8462
      %v8469 = vsel %vm6334, %v7882, %v6605
      %v8470 = vsel %vm6334, %v8219, %v6607
      %v8471 = vsel %vm6334, %v8221, %v6748
      %v8472 = vsel %vm6334, %v8223, %v6750
      %v8473 = vsel %vm6334, %v8225, %v6749
      %v8474 = vsel %vm6342, %v8122, %v8236
      %v8475 = vsel %vm6342, %v8469, %v8238
      %v8476 = vsel %vm6342, %v8470, %v8240
      %v8477 = vsel %vm6342, %v8471, %v8242
      %v8478 = vsel %vm6342, %v8472, %v8244
      %v8479 = vsel %vm6342, %v8473, %v8246
      %v8480 = vsel %vm6350, %v8474, %v8254
      %v8481 = vsel %vm6350, %v8128, %v8256
      %v8482 = vsel %vm6350, %v8475, %v8258
      %v8483 = vsel %vm6350, %v8476, %v8260
      %v8484 = vsel %vm6350, %v8477, %v8262
      %v8485 = vsel %vm6350, %v8478, %v8264
      %v8486 = vsel %vm6350, %v8479, %v8266
      %v8487 = vsel %vm874, %v8480, %v8275
      %v8488 = vsel %vm874, %v8481, %v8277
      %v8489 = vsel %vm874, %v8482, %v8279
      %v8490 = vsel %vm874, %v8483, %v8281
      %v8491 = vsel %vm874, %v8484, %v8283
      %v8492 = vsel %vm874, %v8485, %v8285
      %v8493 = vsel %vm874, %v8486, %v8287
      %v8494 = vsel %vm6365, %v8487, %v8296
      %v8495 = vsel %vm6365, %v8488, %v7948
      %v8496 = vsel %vm6365, %v8489, %v7950
      %v8497 = vsel %vm6365, %v8490, %v8298
      %v8498 = vsel %vm6365, %v8491, %v8300
      %v8499 = vsel %vm6365, %v8492, %v8302
      %v8500 = vsel %vm6365, %v8493, %v8304
      %v8501 = vsel %vm6373, %v8494, %v8311
      %v8502 = vsel %vm6373, %v8495, %v7969
      %v8503 = vsel %vm6373, %v8496, %v7971
      %v8504 = vsel %vm6373, %v8497, %v8313
      %v8505 = vsel %vm6373, %v8498, %v8315
      %v8506 = vsel %vm6373, %v8499, %v8317
      %v8507 = vsel %vm6373, %v8500, %v8319
      %v8508 = vsel %vm6381, %v8501, %v7982
      %v8509 = vsel %vm6381, %v8502, %v7984
      %v8510 = vsel %vm6381, %v8503, %v7986
      %v8511 = vsel %vm6381, %v8504, %v8326
      %v8512 = vsel %vm6381, %v8505, %v8328
      %v8513 = vsel %vm6381, %v8506, %v8330
      %v8514 = vsel %vm6381, %v8507, %v8332
      %v8515 = vsel %vm900, %v8508, %v7996
      %v8516 = vsel %vm900, %v8509, %v7998
      %v8517 = vsel %vm900, %v8510, %v8338
      %v8518 = vsel %vm900, %v8511, %v8340
      %v8519 = vsel %vm900, %v8512, %v8342
      %v8520 = vsel %vm900, %v8513, %v8344
      %v8521 = vsel %vm900, %v8514, %v8346
      %v8522 = vsel %vm6396, %v8515, %v8353
      %v8523 = vsel %vm6396, %v8516, %v8013
      %v8524 = vsel %vm6396, %v8517, %v8355
      %v8525 = vsel %vm6396, %v8518, %v8357
      %v8526 = vsel %vm6396, %v8519, %v8359
      %v8527 = vsel %vm6396, %v8520, %v8361
      %v8528 = vsel %vm6396, %v8521, %v8363
      %v8529 = vsel %vm6404, %v8522, %v8371
      %v8530 = vsel %vm6404, %v8523, %v8373
      %v8531 = vsel %vm6404, %v8524, %v8375
      %v8532 = vsel %vm6404, %v8525, %v8377
      %v8533 = vsel %vm6404, %v8526, %v8379
      %v8534 = vsel %vm6404, %v8527, %v8381
      %v8535 = vsel %vm6404, %v8528, %v8383
      %v8536 = vsel %vm6412, %v8529, %v8392
      %v8537 = vsel %vm6412, %v8530, %v8394
      %v8538 = vsel %vm6412, %v8531, %v8396
      %v8539 = vsel %vm6412, %v8532, %v8398
      %v8540 = vsel %vm6412, %v8533, %v8400
      %v8541 = vsel %vm6412, %v8534, %v8402
      %v8542 = vsel %vm6412, %v8535, %v8404
      %v8543 = vsel %vm925, %v8536, %v8413
      %v8544 = vsel %vm925, %v8537, %v8062
      %v8545 = vsel %vm925, %v8538, %v8064
      %v8546 = vsel %vm925, %v8539, %v8415
      %v8547 = vsel %vm925, %v8540, %v8417
      %v8548 = vsel %vm925, %v8541, %v8419
      %v8549 = vsel %vm925, %v8542, %v8421
      %v8550 = vsel %vm6427, %v8543, %v8428
      %v8551 = vsel %vm6427, %v8544, %v8083
      %v8552 = vsel %vm6427, %v8545, %v8085
      %v8553 = vsel %vm6427, %v8546, %v8430
      %v8554 = vsel %vm6427, %v8547, %v8432
      %v8555 = vsel %vm6427, %v8548, %v8434
      %v8556 = vsel %vm6427, %v8549, %v8436
      %v8557 = vsel %vm6435, %v8550, %v8096
      %v8558 = vsel %vm6435, %v8551, %v8098
      %v8559 = vsel %vm6435, %v8552, %v8100
      %v8560 = vsel %vm6435, %v8553, %v8443
      %v8561 = vsel %vm6435, %v8554, %v8445
      %v8562 = vsel %vm6435, %v8555, %v8447
      %v8563 = vsel %vm6435, %v8556, %v8449
      %v8564 = vsel %vm6443, %v8557, %v8110
      %v8565 = vsel %vm6443, %v8558, %v8112
      %v8566 = vsel %vm6443, %v8559, %v8455
      %v8567 = vsel %vm6443, %v8560, %v8457
      %v8568 = vsel %vm6443, %v8561, %v8459
      %v8569 = vsel %vm6443, %v8562, %v8461
      %v8570 = vsel %vm6443, %v8563, %v8463
      %8571 = vrot.lane.b32.xlu0 %v432, 127
      %v8572 = vpop.permute.xlu0 %8571
      %8573 = vrot.lane.b32.xlu0 %v433, 127
      %v8574 = vpop.permute.xlu0 %8573
      %8575 = vrot.lane.b32.xlu0 %v434, 127
      %v8576 = vpop.permute.xlu0 %8575
      %8577 = vrot.lane.b32.xlu0 %v435, 127
      %v8578 = vpop.permute.xlu0 %8577
      %v8583 = vsel %vm6334, %v8223, 0.0
      %v8584 = vsel %vm6334, %v8225, 0.0
      %v8585 = vsel %vm6334, %v8572, 0.0
      %v8586 = vsel %vm6334, %v8574, 0.0
      %v8587 = vsel %vm6334, %v8576, 0.0
      %v8588 = vsel %vm6334, %v8578, 0.0
      %v8596 = vrot.slane %v8211, 2
      %v8597 = vrot.slane %v8212, 2
      %v8598 = vsel %vm5941, %v8596, %v8597
      %v8599 = vrot.slane %v8213, 2
      %v8600 = vsel %vm5941, %v8597, %v8599
      %v8601 = vrot.slane %v8214, 2
      %v8602 = vsel %vm5941, %v8599, %v8601
      %v8603 = vrot.slane %v8215, 2
      %v8604 = vsel %vm5941, %v8601, %v8603
      %v8605 = vrot.slane %v8216, 2
      %v8606 = vsel %vm5941, %v8603, %v8605
      %v8607 = vrot.slane %v8217, 2
      %v8608 = vsel %vm5941, %v8605, %v8607
      %8609 = vrot.lane.b32.xlu0 %v8598, 16
      %v8610 = vpop.permute.xlu0 %8609
      %8611 = vrot.lane.b32.xlu0 %v8600, 16
      %v8612 = vpop.permute.xlu0 %8611
      %8613 = vrot.lane.b32.xlu0 %v8602, 16
      %v8614 = vpop.permute.xlu0 %8613
      %8615 = vrot.lane.b32.xlu0 %v8604, 16
      %v8616 = vpop.permute.xlu0 %8615
      %8617 = vrot.lane.b32.xlu0 %v8606, 16
      %v8618 = vpop.permute.xlu0 %8617
      %8619 = vrot.lane.b32.xlu0 %v8608, 16
      %v8620 = vpop.permute.xlu0 %8619
      %8621 = vrot.lane.b32.xlu0 %v8607, 16
      %v8622 = vpop.permute.xlu0 %8621
      %v8637 = vrot.slane %v8564, 4
      %v8638 = vrot.slane %v8565, 4
      %v8639 = vsel %vm6011, %v8637, %v8638
      %v8640 = vrot.slane %v8566, 4
      %v8641 = vsel %vm6011, %v8638, %v8640
      %v8642 = vrot.slane %v8567, 4
      %v8643 = vsel %vm6011, %v8640, %v8642
      %v8644 = vrot.slane %v8568, 4
      %v8645 = vsel %vm6011, %v8642, %v8644
      %v8646 = vrot.slane %v8569, 4
      %v8647 = vsel %vm6011, %v8644, %v8646
      %v8648 = vrot.slane %v8570, 4
      %v8649 = vsel %vm6011, %v8646, %v8648
      %8650 = vrot.lane.b32.xlu0 %v8639, 32
      %v8651 = vpop.permute.xlu0 %8650
      %8652 = vrot.lane.b32.xlu0 %v8641, 32
      %v8653 = vpop.permute.xlu0 %8652
      %8654 = vrot.lane.b32.xlu0 %v8643, 32
      %v8655 = vpop.permute.xlu0 %8654
      %8656 = vrot.lane.b32.xlu0 %v8645, 32
      %v8657 = vpop.permute.xlu0 %8656
      %8658 = vrot.lane.b32.xlu0 %v8647, 32
      %v8659 = vpop.permute.xlu0 %8658
      %8660 = vrot.lane.b32.xlu0 %v8649, 32
      %v8661 = vpop.permute.xlu0 %8660
      %8662 = vrot.lane.b32.xlu0 %v8648, 32
      %v8663 = vpop.permute.xlu0 %8662
      %v8677 = vrot.slane %v8583, 6
      %v8678 = vrot.slane %v8584, 6
      %v8679 = vsel %vm1124, %v8677, %v8678
      %v8680 = vrot.slane %v8585, 6
      %v8681 = vsel %vm1124, %v8678, %v8680
      %v8682 = vrot.slane %v8586, 6
      %v8683 = vsel %vm1124, %v8680, %v8682
      %v8684 = vrot.slane %v8587, 6
      %v8685 = vsel %vm1124, %v8682, %v8684
      %v8686 = vrot.slane %v8588, 6
      %v8687 = vsel %vm1124, %v8684, %v8686
      %8688 = vrot.lane.b32.xlu0 %v8677, 48
      %v8689 = vpop.permute.xlu0 %8688
      %8690 = vrot.lane.b32.xlu0 %v8679, 48
      %v8691 = vpop.permute.xlu0 %8690
      %8692 = vrot.lane.b32.xlu0 %v8681, 48
      %v8693 = vpop.permute.xlu0 %8692
      %8694 = vrot.lane.b32.xlu0 %v8683, 48
      %v8695 = vpop.permute.xlu0 %8694
      %8696 = vrot.lane.b32.xlu0 %v8685, 48
      %v8697 = vpop.permute.xlu0 %8696
      %8698 = vrot.lane.b32.xlu0 %v8687, 48
      %v8699 = vpop.permute.xlu0 %8698
      %8700 = vrot.lane.b32.xlu0 %v8686, 48
      %v8701 = vpop.permute.xlu0 %8700
      %v8709 = vsel %vm950, %v7868, %v8610
      %v8710 = vsel %vm950, %v7869, %v8612
      %v8711 = vsel %vm950, %v7870, %v8614
      %v8712 = vsel %vm950, %v7871, %v8616
      %v8713 = vsel %vm950, %v7872, %v8618
      %v8714 = vsel %vm950, %v7873, %v8620
      %v8715 = vsel %vm950, %v7874, %v8622
      %v8716 = vsel %vm1050, %v8709, %v8651
      %v8717 = vsel %vm1050, %v8710, %v8653
      %v8718 = vsel %vm1050, %v8711, %v8655
      %v8719 = vsel %vm1050, %v8712, %v8657
      %v8720 = vsel %vm1050, %v8713, %v8659
      %v8721 = vsel %vm1050, %v8714, %v8661
      %v8722 = vsel %vm1050, %v8715, %v8663
      %v8723 = vsel %vm7420, %v8716, %v8689
      %v8724 = vsel %vm7420, %v8717, %v8691
      %v8725 = vsel %vm7420, %v8718, %v8693
      %v8726 = vsel %vm7420, %v8719, %v8695
      %v8727 = vsel %vm7420, %v8720, %v8697
      %v8728 = vsel %vm7420, %v8721, %v8699
      %v8729 = vsel %vm7420, %v8722, %v8701
      %v8737 = vrot.slane %v8723, 2
      %v8738 = vrot.slane %v8724, 2
      %v8739 = vsel %vm5941, %v8737, %v8738
      %v8740 = vrot.slane %v8725, 2
      %v8741 = vsel %vm5941, %v8738, %v8740
      %v8742 = vrot.slane %v8726, 2
      %v8743 = vsel %vm5941, %v8740, %v8742
      %v8744 = vrot.slane %v8727, 2
      %v8745 = vsel %vm5941, %v8742, %v8744
      %v8746 = vrot.slane %v8728, 2
      %v8747 = vsel %vm5941, %v8744, %v8746
      %v8748 = vrot.slane %v8729, 2
      %v8749 = vsel %vm5941, %v8746, %v8748
      %8756 = vrot.lane.b32.xlu0 %v417, 126
      %v8757 = vpop.permute.xlu0 %8756
      %8758 = vrot.lane.b32.xlu0 %v418, 126
      %v8759 = vpop.permute.xlu0 %8758
      %8760 = vrot.lane.b32.xlu0 %v419, 126
      %v8761 = vpop.permute.xlu0 %8760
      %8762 = vrot.lane.b32.xlu0 %v420, 126
      %v8763 = vpop.permute.xlu0 %8762
      %8764 = vrot.lane.b32.xlu0 %v421, 126
      %v8765 = vpop.permute.xlu0 %8764
      %8766 = vrot.lane.b32.xlu0 %v422, 126
      %v8767 = vpop.permute.xlu0 %8766
      %8768 = vrot.lane.b32.xlu0 %v423, 126
      %v8769 = vpop.permute.xlu0 %8768
      %8777 = vrot.lane.b32.xlu0 %v5909, 127
      %v8778 = vpop.permute.xlu0 %8777
      %8779 = vrot.lane.b32.xlu0 %v5911, 127
      %v8780 = vpop.permute.xlu0 %8779
      %8781 = vrot.lane.b32.xlu0 %v5913, 127
      %v8782 = vpop.permute.xlu0 %8781
      %8783 = vrot.lane.b32.xlu0 %v5915, 127
      %v8784 = vpop.permute.xlu0 %8783
      %8785 = vrot.lane.b32.xlu0 %v5917, 127
      %v8786 = vpop.permute.xlu0 %8785
      %8787 = vrot.lane.b32.xlu0 %v5919, 127
      %v8788 = vpop.permute.xlu0 %8787
      %8789 = vrot.lane.b32.xlu0 %v5918, 127
      %v8790 = vpop.permute.xlu0 %8789
      %8805 = vrot.lane.b32.xlu0 %v5979, 1
      %v8806 = vpop.permute.xlu0 %8805
      %8807 = vrot.lane.b32.xlu0 %v5981, 1
      %v8808 = vpop.permute.xlu0 %8807
      %8809 = vrot.lane.b32.xlu0 %v5983, 1
      %v8810 = vpop.permute.xlu0 %8809
      %8811 = vrot.lane.b32.xlu0 %v5985, 1
      %v8812 = vpop.permute.xlu0 %8811
      %8813 = vrot.lane.b32.xlu0 %v5987, 1
      %v8814 = vpop.permute.xlu0 %8813
      %8815 = vrot.lane.b32.xlu0 %v5989, 1
      %v8816 = vpop.permute.xlu0 %8815
      %8817 = vrot.lane.b32.xlu0 %v5988, 1
      %v8818 = vpop.permute.xlu0 %8817
      %8826 = vrot.lane.b32.xlu0 %v6014, 2
      %v8827 = vpop.permute.xlu0 %8826
      %8828 = vrot.lane.b32.xlu0 %v6016, 2
      %v8829 = vpop.permute.xlu0 %8828
      %8830 = vrot.lane.b32.xlu0 %v6018, 2
      %v8831 = vpop.permute.xlu0 %8830
      %8832 = vrot.lane.b32.xlu0 %v6020, 2
      %v8833 = vpop.permute.xlu0 %8832
      %8834 = vrot.lane.b32.xlu0 %v6022, 2
      %v8835 = vpop.permute.xlu0 %8834
      %8836 = vrot.lane.b32.xlu0 %v6024, 2
      %v8837 = vpop.permute.xlu0 %8836
      %8838 = vrot.lane.b32.xlu0 %v6023, 2
      %v8839 = vpop.permute.xlu0 %8838
      %8847 = vrot.lane.b32.xlu0 %v6049, 3
      %v8848 = vpop.permute.xlu0 %8847
      %8849 = vrot.lane.b32.xlu0 %v6051, 3
      %v8850 = vpop.permute.xlu0 %8849
      %8851 = vrot.lane.b32.xlu0 %v6053, 3
      %v8852 = vpop.permute.xlu0 %8851
      %8853 = vrot.lane.b32.xlu0 %v6055, 3
      %v8854 = vpop.permute.xlu0 %8853
      %8855 = vrot.lane.b32.xlu0 %v6057, 3
      %v8856 = vpop.permute.xlu0 %8855
      %8857 = vrot.lane.b32.xlu0 %v6059, 3
      %v8858 = vpop.permute.xlu0 %8857
      %8859 = vrot.lane.b32.xlu0 %v6058, 3
      %v8860 = vpop.permute.xlu0 %8859
      %8868 = vrot.lane.b32.xlu0 %v6081, 4
      %v8869 = vpop.permute.xlu0 %8868
      %8870 = vrot.lane.b32.xlu0 %v6083, 4
      %v8871 = vpop.permute.xlu0 %8870
      %8872 = vrot.lane.b32.xlu0 %v6085, 4
      %v8873 = vpop.permute.xlu0 %8872
      %8874 = vrot.lane.b32.xlu0 %v6087, 4
      %v8875 = vpop.permute.xlu0 %8874
      %8876 = vrot.lane.b32.xlu0 %v6089, 4
      %v8877 = vpop.permute.xlu0 %8876
      %8878 = vrot.lane.b32.xlu0 %v6091, 4
      %v8879 = vpop.permute.xlu0 %8878
      %8886 = vrot.lane.b32.xlu0 %v419, 5
      %v8887 = vpop.permute.xlu0 %8886
      %8888 = vrot.lane.b32.xlu0 %v420, 5
      %v8889 = vpop.permute.xlu0 %8888
      %8890 = vrot.lane.b32.xlu0 %v421, 5
      %v8891 = vpop.permute.xlu0 %8890
      %8892 = vrot.lane.b32.xlu0 %v422, 5
      %v8893 = vpop.permute.xlu0 %8892
      %8894 = vrot.lane.b32.xlu0 %v423, 5
      %v8895 = vpop.permute.xlu0 %8894
      %8896 = vrot.lane.b32.xlu0 %v424, 5
      %v8897 = vpop.permute.xlu0 %8896
      %8898 = vrot.lane.b32.xlu0 %v425, 5
      %v8899 = vpop.permute.xlu0 %8898
      %8907 = vrot.lane.b32.xlu0 %v5913, 6
      %v8908 = vpop.permute.xlu0 %8907
      %8909 = vrot.lane.b32.xlu0 %v5915, 6
      %v8910 = vpop.permute.xlu0 %8909
      %8911 = vrot.lane.b32.xlu0 %v5917, 6
      %v8912 = vpop.permute.xlu0 %8911
      %8913 = vrot.lane.b32.xlu0 %v5919, 6
      %v8914 = vpop.permute.xlu0 %8913
      %8915 = vrot.lane.b32.xlu0 %v6137, 6
      %v8916 = vpop.permute.xlu0 %8915
      %8917 = vrot.lane.b32.xlu0 %v6139, 6
      %v8918 = vpop.permute.xlu0 %8917
      %8919 = vrot.lane.b32.xlu0 %v6138, 6
      %v8920 = vpop.permute.xlu0 %8919
      %8928 = vrot.lane.b32.xlu0 %v5948, 7
      %v8929 = vpop.permute.xlu0 %8928
      %8930 = vrot.lane.b32.xlu0 %v5950, 7
      %v8931 = vpop.permute.xlu0 %8930
      %8932 = vrot.lane.b32.xlu0 %v5952, 7
      %v8933 = vpop.permute.xlu0 %8932
      %8934 = vrot.lane.b32.xlu0 %v5954, 7
      %v8935 = vpop.permute.xlu0 %8934
      %8936 = vrot.lane.b32.xlu0 %v6162, 7
      %v8937 = vpop.permute.xlu0 %8936
      %8938 = vrot.lane.b32.xlu0 %v6164, 7
      %v8939 = vpop.permute.xlu0 %8938
      %8940 = vrot.lane.b32.xlu0 %v6163, 7
      %v8941 = vpop.permute.xlu0 %8940
      %8949 = vrot.lane.b32.xlu0 %v5983, 8
      %v8950 = vpop.permute.xlu0 %8949
      %8951 = vrot.lane.b32.xlu0 %v5985, 8
      %v8952 = vpop.permute.xlu0 %8951
      %8953 = vrot.lane.b32.xlu0 %v5987, 8
      %v8954 = vpop.permute.xlu0 %8953
      %8955 = vrot.lane.b32.xlu0 %v5989, 8
      %v8956 = vpop.permute.xlu0 %8955
      %8957 = vrot.lane.b32.xlu0 %v6187, 8
      %v8958 = vpop.permute.xlu0 %8957
      %8959 = vrot.lane.b32.xlu0 %v6189, 8
      %v8960 = vpop.permute.xlu0 %8959
      %8961 = vrot.lane.b32.xlu0 %v6188, 8
      %v8962 = vpop.permute.xlu0 %8961
      %8970 = vrot.lane.b32.xlu0 %v6018, 9
      %v8971 = vpop.permute.xlu0 %8970
      %8972 = vrot.lane.b32.xlu0 %v6020, 9
      %v8973 = vpop.permute.xlu0 %8972
      %8974 = vrot.lane.b32.xlu0 %v6022, 9
      %v8975 = vpop.permute.xlu0 %8974
      %8976 = vrot.lane.b32.xlu0 %v6024, 9
      %v8977 = vpop.permute.xlu0 %8976
      %8978 = vrot.lane.b32.xlu0 %v6212, 9
      %v8979 = vpop.permute.xlu0 %8978
      %8980 = vrot.lane.b32.xlu0 %v6214, 9
      %v8981 = vpop.permute.xlu0 %8980
      %8982 = vrot.lane.b32.xlu0 %v6213, 9
      %v8983 = vpop.permute.xlu0 %8982
      %8991 = vrot.lane.b32.xlu0 %v6053, 10
      %v8992 = vpop.permute.xlu0 %8991
      %8993 = vrot.lane.b32.xlu0 %v6055, 10
      %v8994 = vpop.permute.xlu0 %8993
      %8995 = vrot.lane.b32.xlu0 %v6057, 10
      %v8996 = vpop.permute.xlu0 %8995
      %8997 = vrot.lane.b32.xlu0 %v6059, 10
      %v8998 = vpop.permute.xlu0 %8997
      %8999 = vrot.lane.b32.xlu0 %v6237, 10
      %v9000 = vpop.permute.xlu0 %8999
      %9001 = vrot.lane.b32.xlu0 %v6239, 10
      %v9002 = vpop.permute.xlu0 %9001
      %9003 = vrot.lane.b32.xlu0 %v6238, 10
      %v9004 = vpop.permute.xlu0 %9003
      %9012 = vrot.lane.b32.xlu0 %v6084, 11
      %v9013 = vpop.permute.xlu0 %9012
      %9014 = vrot.lane.b32.xlu0 %v6087, 11
      %v9015 = vpop.permute.xlu0 %9014
      %9016 = vrot.lane.b32.xlu0 %v6089, 11
      %v9017 = vpop.permute.xlu0 %9016
      %9018 = vrot.lane.b32.xlu0 %v6091, 11
      %v9019 = vpop.permute.xlu0 %9018
      %9020 = vrot.lane.b32.xlu0 %v6262, 11
      %v9021 = vpop.permute.xlu0 %9020
      %9022 = vrot.lane.b32.xlu0 %v6264, 11
      %v9023 = vpop.permute.xlu0 %9022
      %9030 = vrot.lane.b32.xlu0 %v421, 12
      %v9031 = vpop.permute.xlu0 %9030
      %9032 = vrot.lane.b32.xlu0 %v422, 12
      %v9033 = vpop.permute.xlu0 %9032
      %9034 = vrot.lane.b32.xlu0 %v423, 12
      %v9035 = vpop.permute.xlu0 %9034
      %9036 = vrot.lane.b32.xlu0 %v424, 12
      %v9037 = vpop.permute.xlu0 %9036
      %9038 = vrot.lane.b32.xlu0 %v425, 12
      %v9039 = vpop.permute.xlu0 %9038
      %9040 = vrot.lane.b32.xlu0 %v426, 12
      %v9041 = vpop.permute.xlu0 %9040
      %9042 = vrot.lane.b32.xlu0 %v427, 12
      %v9043 = vpop.permute.xlu0 %9042
      %9051 = vrot.lane.b32.xlu0 %v5917, 13
      %v9052 = vpop.permute.xlu0 %9051
      %9053 = vrot.lane.b32.xlu0 %v5919, 13
      %v9054 = vpop.permute.xlu0 %9053
      %9055 = vrot.lane.b32.xlu0 %v6137, 13
      %v9056 = vpop.permute.xlu0 %9055
      %9057 = vrot.lane.b32.xlu0 %v6139, 13
      %v9058 = vpop.permute.xlu0 %9057
      %9059 = vrot.lane.b32.xlu0 %v6310, 13
      %v9060 = vpop.permute.xlu0 %9059
      %9061 = vrot.lane.b32.xlu0 %v6312, 13
      %v9062 = vpop.permute.xlu0 %9061
      %9063 = vrot.lane.b32.xlu0 %v6311, 13
      %v9064 = vpop.permute.xlu0 %9063
      %v9072 = vsel %vm6334, %v8757, %v8778
      %v9073 = vsel %vm6334, %v8759, %v8780
      %v9074 = vsel %vm6334, %v8761, %v8782
      %v9075 = vsel %vm6334, %v8763, %v8784
      %v9076 = vsel %vm6334, %v8765, %v8786
      %v9077 = vsel %vm6334, %v8767, %v8788
      %v9078 = vsel %vm6334, %v8769, %v8790
      %v9079 = vsel %vm6342, %v9072, %v5944
      %v9080 = vsel %vm6342, %v9073, %v5946
      %v9081 = vsel %vm6342, %v9074, %v5948
      %v9082 = vsel %vm6342, %v9075, %v5950
      %v9083 = vsel %vm6342, %v9076, %v5952
      %v9084 = vsel %vm6342, %v9077, %v5954
      %v9085 = vsel %vm6342, %v9078, %v5953
      %v9086 = vsel %vm6350, %v9079, %v8806
      %v9087 = vsel %vm6350, %v9080, %v8808
      %v9088 = vsel %vm6350, %v9081, %v8810
      %v9089 = vsel %vm6350, %v9082, %v8812
      %v9090 = vsel %vm6350, %v9083, %v8814
      %v9091 = vsel %vm6350, %v9084, %v8816
      %v9092 = vsel %vm6350, %v9085, %v8818
      %v9093 = vsel %vm874, %v9086, %v8827
      %v9094 = vsel %vm874, %v9087, %v8829
      %v9095 = vsel %vm874, %v9088, %v8831
      %v9096 = vsel %vm874, %v9089, %v8833
      %v9097 = vsel %vm874, %v9090, %v8835
      %v9098 = vsel %vm874, %v9091, %v8837
      %v9099 = vsel %vm874, %v9092, %v8839
      %v9100 = vsel %vm6365, %v9093, %v8848
      %v9101 = vsel %vm6365, %v9094, %v8850
      %v9102 = vsel %vm6365, %v9095, %v8852
      %v9103 = vsel %vm6365, %v9096, %v8854
      %v9104 = vsel %vm6365, %v9097, %v8856
      %v9105 = vsel %vm6365, %v9098, %v8858
      %v9106 = vsel %vm6365, %v9099, %v8860
      %v9107 = vsel %vm6373, %v9100, %v8869
      %v9108 = vsel %vm6373, %v9101, %v8871
      %v9109 = vsel %vm6373, %v9102, %v8873
      %v9110 = vsel %vm6373, %v9103, %v8875
      %v9111 = vsel %vm6373, %v9104, %v8877
      %v9112 = vsel %vm6373, %v9105, %v8879
      %v9113 = vsel %vm6373, %v9106, %v7938
      %v9114 = vsel %vm6381, %v9107, %v8887
      %v9115 = vsel %vm6381, %v9108, %v8889
      %v9116 = vsel %vm6381, %v9109, %v8891
      %v9117 = vsel %vm6381, %v9110, %v8893
      %v9118 = vsel %vm6381, %v9111, %v8895
      %v9119 = vsel %vm6381, %v9112, %v8897
      %v9120 = vsel %vm6381, %v9113, %v8899
      %v9121 = vsel %vm900, %v9114, %v8908
      %v9122 = vsel %vm900, %v9115, %v8910
      %v9123 = vsel %vm900, %v9116, %v8912
      %v9124 = vsel %vm900, %v9117, %v8914
      %v9125 = vsel %vm900, %v9118, %v8916
      %v9126 = vsel %vm900, %v9119, %v8918
      %v9127 = vsel %vm900, %v9120, %v8920
      %v9128 = vsel %vm6396, %v9121, %v8929
      %v9129 = vsel %vm6396, %v9122, %v8931
      %v9130 = vsel %vm6396, %v9123, %v8933
      %v9131 = vsel %vm6396, %v9124, %v8935
      %v9132 = vsel %vm6396, %v9125, %v8937
      %v9133 = vsel %vm6396, %v9126, %v8939
      %v9134 = vsel %vm6396, %v9127, %v8941
      %v9135 = vsel %vm6404, %v9128, %v8950
      %v9136 = vsel %vm6404, %v9129, %v8952
      %v9137 = vsel %vm6404, %v9130, %v8954
      %v9138 = vsel %vm6404, %v9131, %v8956
      %v9139 = vsel %vm6404, %v9132, %v8958
      %v9140 = vsel %vm6404, %v9133, %v8960
      %v9141 = vsel %vm6404, %v9134, %v8962
      %v9142 = vsel %vm6412, %v9135, %v8971
      %v9143 = vsel %vm6412, %v9136, %v8973
      %v9144 = vsel %vm6412, %v9137, %v8975
      %v9145 = vsel %vm6412, %v9138, %v8977
      %v9146 = vsel %vm6412, %v9139, %v8979
      %v9147 = vsel %vm6412, %v9140, %v8981
      %v9148 = vsel %vm6412, %v9141, %v8983
      %v9149 = vsel %vm925, %v9142, %v8992
      %v9150 = vsel %vm925, %v9143, %v8994
      %v9151 = vsel %vm925, %v9144, %v8996
      %v9152 = vsel %vm925, %v9145, %v8998
      %v9153 = vsel %vm925, %v9146, %v9000
      %v9154 = vsel %vm925, %v9147, %v9002
      %v9155 = vsel %vm925, %v9148, %v9004
      %v9156 = vsel %vm6427, %v9149, %v9013
      %v9157 = vsel %vm6427, %v9150, %v9015
      %v9158 = vsel %vm6427, %v9151, %v9017
      %v9159 = vsel %vm6427, %v9152, %v9019
      %v9160 = vsel %vm6427, %v9153, %v9021
      %v9161 = vsel %vm6427, %v9154, %v9023
      %v9162 = vsel %vm6427, %v9155, %v8052
      %v9163 = vsel %vm6435, %v9156, %v9031
      %v9164 = vsel %vm6435, %v9157, %v9033
      %v9165 = vsel %vm6435, %v9158, %v9035
      %v9166 = vsel %vm6435, %v9159, %v9037
      %v9167 = vsel %vm6435, %v9160, %v9039
      %v9168 = vsel %vm6435, %v9161, %v9041
      %v9169 = vsel %vm6435, %v9162, %v9043
      %v9170 = vsel %vm6443, %v9163, %v9052
      %v9171 = vsel %vm6443, %v9164, %v9054
      %v9172 = vsel %vm6443, %v9165, %v9056
      %v9173 = vsel %vm6443, %v9166, %v9058
      %v9174 = vsel %vm6443, %v9167, %v9060
      %v9175 = vsel %vm6443, %v9168, %v9062
      %v9176 = vsel %vm6443, %v9169, %v9064
      %9177 = vrot.lane.b32.xlu0 %v424, 126
      %v9178 = vpop.permute.xlu0 %9177
      %9179 = vrot.lane.b32.xlu0 %v425, 126
      %v9180 = vpop.permute.xlu0 %9179
      %9181 = vrot.lane.b32.xlu0 %v426, 126
      %v9182 = vpop.permute.xlu0 %9181
      %9183 = vrot.lane.b32.xlu0 %v427, 126
      %v9184 = vpop.permute.xlu0 %9183
      %9189 = vrot.lane.b32.xlu0 %v6137, 127
      %v9190 = vpop.permute.xlu0 %9189
      %9191 = vrot.lane.b32.xlu0 %v6139, 127
      %v9192 = vpop.permute.xlu0 %9191
      %9193 = vrot.lane.b32.xlu0 %v6310, 127
      %v9194 = vpop.permute.xlu0 %9193
      %9195 = vrot.lane.b32.xlu0 %v6312, 127
      %v9196 = vpop.permute.xlu0 %9195
      %9197 = vrot.lane.b32.xlu0 %v6311, 127
      %v9198 = vpop.permute.xlu0 %9197
      %9209 = vrot.lane.b32.xlu0 %v6187, 1
      %v9210 = vpop.permute.xlu0 %9209
      %9211 = vrot.lane.b32.xlu0 %v6189, 1
      %v9212 = vpop.permute.xlu0 %9211
      %9213 = vrot.lane.b32.xlu0 %v6486, 1
      %v9214 = vpop.permute.xlu0 %9213
      %9215 = vrot.lane.b32.xlu0 %v6488, 1
      %v9216 = vpop.permute.xlu0 %9215
      %9217 = vrot.lane.b32.xlu0 %v6487, 1
      %v9218 = vpop.permute.xlu0 %9217
      %9224 = vrot.lane.b32.xlu0 %v6021, 2
      %v9225 = vpop.permute.xlu0 %9224
      %9226 = vrot.lane.b32.xlu0 %v6212, 2
      %v9227 = vpop.permute.xlu0 %9226
      %9228 = vrot.lane.b32.xlu0 %v6214, 2
      %v9229 = vpop.permute.xlu0 %9228
      %9230 = vrot.lane.b32.xlu0 %v6505, 2
      %v9231 = vpop.permute.xlu0 %9230
      %9232 = vrot.lane.b32.xlu0 %v6507, 2
      %v9233 = vpop.permute.xlu0 %9232
      %9239 = vrot.lane.b32.xlu0 %v6090, 3
      %v9240 = vpop.permute.xlu0 %9239
      %9241 = vrot.lane.b32.xlu0 %v6262, 3
      %v9242 = vpop.permute.xlu0 %9241
      %9243 = vrot.lane.b32.xlu0 %v6264, 3
      %v9244 = vpop.permute.xlu0 %9243
      %9245 = vrot.lane.b32.xlu0 %v6529, 3
      %v9246 = vpop.permute.xlu0 %9245
      %9247 = vrot.lane.b32.xlu0 %v6531, 3
      %v9248 = vpop.permute.xlu0 %9247
      %9249 = vrot.lane.b32.xlu0 %v6533, 3
      %v9250 = vpop.permute.xlu0 %9249
      %9251 = vrot.lane.b32.xlu0 %v6535, 3
      %v9252 = vpop.permute.xlu0 %9251
      %9260 = vrot.lane.b32.xlu0 %v6558, 4
      %v9261 = vpop.permute.xlu0 %9260
      %9262 = vrot.lane.b32.xlu0 %v6560, 4
      %v9263 = vpop.permute.xlu0 %9262
      %9264 = vrot.lane.b32.xlu0 %v6562, 4
      %v9265 = vpop.permute.xlu0 %9264
      %9266 = vrot.lane.b32.xlu0 %v6564, 4
      %v9267 = vpop.permute.xlu0 %9266
      %9268 = vrot.lane.b32.xlu0 %v6566, 4
      %v9269 = vpop.permute.xlu0 %9268
      %9270 = vrot.lane.b32.xlu0 %v6568, 4
      %v9271 = vpop.permute.xlu0 %9270
      %9272 = vrot.lane.b32.xlu0 %v6570, 4
      %v9273 = vpop.permute.xlu0 %9272
      %9281 = vrot.lane.b32.xlu0 %v426, 5
      %v9282 = vpop.permute.xlu0 %9281
      %9283 = vrot.lane.b32.xlu0 %v427, 5
      %v9284 = vpop.permute.xlu0 %9283
      %9285 = vrot.lane.b32.xlu0 %v428, 5
      %v9286 = vpop.permute.xlu0 %9285
      %9287 = vrot.lane.b32.xlu0 %v429, 5
      %v9288 = vpop.permute.xlu0 %9287
      %9293 = vrot.lane.b32.xlu0 %v6310, 6
      %v9294 = vpop.permute.xlu0 %9293
      %9295 = vrot.lane.b32.xlu0 %v6312, 6
      %v9296 = vpop.permute.xlu0 %9295
      %9297 = vrot.lane.b32.xlu0 %v6605, 6
      %v9298 = vpop.permute.xlu0 %9297
      %9299 = vrot.lane.b32.xlu0 %v6607, 6
      %v9300 = vpop.permute.xlu0 %9299
      %9301 = vrot.lane.b32.xlu0 %v6606, 6
      %v9302 = vpop.permute.xlu0 %9301
      %9308 = vrot.lane.b32.xlu0 %v6467, 7
      %v9309 = vpop.permute.xlu0 %9308
      %9310 = vrot.lane.b32.xlu0 %v6469, 7
      %v9311 = vpop.permute.xlu0 %9310
      %9312 = vrot.lane.b32.xlu0 %v6624, 7
      %v9313 = vpop.permute.xlu0 %9312
      %9314 = vrot.lane.b32.xlu0 %v6626, 7
      %v9315 = vpop.permute.xlu0 %9314
      %9316 = vrot.lane.b32.xlu0 %v6625, 7
      %v9317 = vpop.permute.xlu0 %9316
      %9323 = vrot.lane.b32.xlu0 %v6486, 8
      %v9324 = vpop.permute.xlu0 %9323
      %9325 = vrot.lane.b32.xlu0 %v6488, 8
      %v9326 = vpop.permute.xlu0 %9325
      %9327 = vrot.lane.b32.xlu0 %v6643, 8
      %v9328 = vpop.permute.xlu0 %9327
      %9329 = vrot.lane.b32.xlu0 %v6645, 8
      %v9330 = vpop.permute.xlu0 %9329
      %9331 = vrot.lane.b32.xlu0 %v6644, 8
      %v9332 = vpop.permute.xlu0 %9331
      %9338 = vrot.lane.b32.xlu0 %v6211, 9
      %v9339 = vpop.permute.xlu0 %9338
      %9340 = vrot.lane.b32.xlu0 %v6505, 9
      %v9341 = vpop.permute.xlu0 %9340
      %9342 = vrot.lane.b32.xlu0 %v6507, 9
      %v9343 = vpop.permute.xlu0 %9342
      %9344 = vrot.lane.b32.xlu0 %v6662, 9
      %v9345 = vpop.permute.xlu0 %9344
      %9346 = vrot.lane.b32.xlu0 %v6664, 9
      %v9347 = vpop.permute.xlu0 %9346
      %9353 = vrot.lane.b32.xlu0 %v6263, 10
      %v9354 = vpop.permute.xlu0 %9353
      %9355 = vrot.lane.b32.xlu0 %v6529, 10
      %v9356 = vpop.permute.xlu0 %9355
      %9357 = vrot.lane.b32.xlu0 %v6531, 10
      %v9358 = vpop.permute.xlu0 %9357
      %9359 = vrot.lane.b32.xlu0 %v6533, 10
      %v9360 = vpop.permute.xlu0 %9359
      %9361 = vrot.lane.b32.xlu0 %v6535, 10
      %v9362 = vpop.permute.xlu0 %9361
      %9363 = vrot.lane.b32.xlu0 %v6686, 10
      %v9364 = vpop.permute.xlu0 %9363
      %9365 = vrot.lane.b32.xlu0 %v6688, 10
      %v9366 = vpop.permute.xlu0 %9365
      %9374 = vrot.lane.b32.xlu0 %v6561, 11
      %v9375 = vpop.permute.xlu0 %9374
      %9376 = vrot.lane.b32.xlu0 %v6564, 11
      %v9377 = vpop.permute.xlu0 %9376
      %9378 = vrot.lane.b32.xlu0 %v6566, 11
      %v9379 = vpop.permute.xlu0 %9378
      %9380 = vrot.lane.b32.xlu0 %v6568, 11
      %v9381 = vpop.permute.xlu0 %9380
      %9382 = vrot.lane.b32.xlu0 %v6570, 11
      %v9383 = vpop.permute.xlu0 %9382
      %9384 = vrot.lane.b32.xlu0 %v6711, 11
      %v9385 = vpop.permute.xlu0 %9384
      %9386 = vrot.lane.b32.xlu0 %v6713, 11
      %v9387 = vpop.permute.xlu0 %9386
      %9395 = vrot.lane.b32.xlu0 %v428, 12
      %v9396 = vpop.permute.xlu0 %9395
      %9397 = vrot.lane.b32.xlu0 %v429, 12
      %v9398 = vpop.permute.xlu0 %9397
      %9399 = vrot.lane.b32.xlu0 %v430, 12
      %v9400 = vpop.permute.xlu0 %9399
      %9401 = vrot.lane.b32.xlu0 %v431, 12
      %v9402 = vpop.permute.xlu0 %9401
      %9407 = vrot.lane.b32.xlu0 %v6605, 13
      %v9408 = vpop.permute.xlu0 %9407
      %9409 = vrot.lane.b32.xlu0 %v6607, 13
      %v9410 = vpop.permute.xlu0 %9409
      %9411 = vrot.lane.b32.xlu0 %v6748, 13
      %v9412 = vpop.permute.xlu0 %9411
      %9413 = vrot.lane.b32.xlu0 %v6750, 13
      %v9414 = vpop.permute.xlu0 %9413
      %9415 = vrot.lane.b32.xlu0 %v6749, 13
      %v9416 = vpop.permute.xlu0 %9415
      %v9422 = vsel %vm6334, %v8769, %v9190
      %v9423 = vsel %vm6334, %v9178, %v9192
      %v9424 = vsel %vm6334, %v9180, %v9194
      %v9425 = vsel %vm6334, %v9182, %v9196
      %v9426 = vsel %vm6334, %v9184, %v9198
      %v9427 = vsel %vm6342, %v9422, %v6162
      %v9428 = vsel %vm6342, %v9423, %v6164
      %v9429 = vsel %vm6342, %v9424, %v6467
      %v9430 = vsel %vm6342, %v9425, %v6469
      %v9431 = vsel %vm6342, %v9426, %v6468
      %v9432 = vsel %vm6350, %v9427, %v9210
      %v9433 = vsel %vm6350, %v9428, %v9212
      %v9434 = vsel %vm6350, %v9429, %v9214
      %v9435 = vsel %vm6350, %v9430, %v9216
      %v9436 = vsel %vm6350, %v9431, %v9218
      %v9437 = vsel %vm874, %v9090, %v9225
      %v9438 = vsel %vm874, %v9432, %v9227
      %v9439 = vsel %vm874, %v9433, %v9229
      %v9440 = vsel %vm874, %v9434, %v9231
      %v9441 = vsel %vm874, %v9435, %v9233
      %v9442 = vsel %vm874, %v9436, %v8254
      %v9443 = vsel %vm6365, %v9437, %v9240
      %v9444 = vsel %vm6365, %v9098, %v9242
      %v9445 = vsel %vm6365, %v9438, %v9244
      %v9446 = vsel %vm6365, %v9439, %v9246
      %v9447 = vsel %vm6365, %v9440, %v9248
      %v9448 = vsel %vm6365, %v9441, %v9250
      %v9449 = vsel %vm6365, %v9442, %v9252
      %v9450 = vsel %vm6373, %v9443, %v9261
      %v9451 = vsel %vm6373, %v9444, %v9263
      %v9452 = vsel %vm6373, %v9445, %v9265
      %v9453 = vsel %vm6373, %v9446, %v9267
      %v9454 = vsel %vm6373, %v9447, %v9269
      %v9455 = vsel %vm6373, %v9448, %v9271
      %v9456 = vsel %vm6373, %v9449, %v9273
      %v9457 = vsel %vm6381, %v9450, %v8895
      %v9458 = vsel %vm6381, %v9451, %v8897
      %v9459 = vsel %vm6381, %v9452, %v8899
      %v9460 = vsel %vm6381, %v9453, %v9282
      %v9461 = vsel %vm6381, %v9454, %v9284
      %v9462 = vsel %vm6381, %v9455, %v9286
      %v9463 = vsel %vm6381, %v9456, %v9288
      %v9464 = vsel %vm900, %v9457, %v8916
      %v9465 = vsel %vm900, %v9458, %v8918
      %v9466 = vsel %vm900, %v9459, %v9294
      %v9467 = vsel %vm900, %v9460, %v9296
      %v9468 = vsel %vm900, %v9461, %v9298
      %v9469 = vsel %vm900, %v9462, %v9300
      %v9470 = vsel %vm900, %v9463, %v9302
      %v9471 = vsel %vm6396, %v9464, %v8937
      %v9472 = vsel %vm6396, %v9465, %v8939
      %v9473 = vsel %vm6396, %v9466, %v9309
      %v9474 = vsel %vm6396, %v9467, %v9311
      %v9475 = vsel %vm6396, %v9468, %v9313
      %v9476 = vsel %vm6396, %v9469, %v9315
      %v9477 = vsel %vm6396, %v9470, %v9317
      %v9478 = vsel %vm6404, %v9471, %v8958
      %v9479 = vsel %vm6404, %v9472, %v8960
      %v9480 = vsel %vm6404, %v9473, %v9324
      %v9481 = vsel %vm6404, %v9474, %v9326
      %v9482 = vsel %vm6404, %v9475, %v9328
      %v9483 = vsel %vm6404, %v9476, %v9330
      %v9484 = vsel %vm6404, %v9477, %v9332
      %v9485 = vsel %vm6412, %v9478, %v9339
      %v9486 = vsel %vm6412, %v9479, %v8981
      %v9487 = vsel %vm6412, %v9480, %v9341
      %v9488 = vsel %vm6412, %v9481, %v9343
      %v9489 = vsel %vm6412, %v9482, %v9345
      %v9490 = vsel %vm6412, %v9483, %v9347
      %v9491 = vsel %vm6412, %v9484, %v8371
      %v9492 = vsel %vm925, %v9485, %v9354
      %v9493 = vsel %vm925, %v9486, %v9356
      %v9494 = vsel %vm925, %v9487, %v9358
      %v9495 = vsel %vm925, %v9488, %v9360
      %v9496 = vsel %vm925, %v9489, %v9362
      %v9497 = vsel %vm925, %v9490, %v9364
      %v9498 = vsel %vm925, %v9491, %v9366
      %v9499 = vsel %vm6427, %v9492, %v9375
      %v9500 = vsel %vm6427, %v9493, %v9377
      %v9501 = vsel %vm6427, %v9494, %v9379
      %v9502 = vsel %vm6427, %v9495, %v9381
      %v9503 = vsel %vm6427, %v9496, %v9383
      %v9504 = vsel %vm6427, %v9497, %v9385
      %v9505 = vsel %vm6427, %v9498, %v9387
      %v9506 = vsel %vm6435, %v9499, %v9039
      %v9507 = vsel %vm6435, %v9500, %v9041
      %v9508 = vsel %vm6435, %v9501, %v9043
      %v9509 = vsel %vm6435, %v9502, %v9396
      %v9510 = vsel %vm6435, %v9503, %v9398
      %v9511 = vsel %vm6435, %v9504, %v9400
      %v9512 = vsel %vm6435, %v9505, %v9402
      %v9513 = vsel %vm6443, %v9506, %v9060
      %v9514 = vsel %vm6443, %v9507, %v9062
      %v9515 = vsel %vm6443, %v9508, %v9408
      %v9516 = vsel %vm6443, %v9509, %v9410
      %v9517 = vsel %vm6443, %v9510, %v9412
      %v9518 = vsel %vm6443, %v9511, %v9414
      %v9519 = vsel %vm6443, %v9512, %v9416
      %9520 = vrot.lane.b32.xlu0 %v428, 126
      %v9521 = vpop.permute.xlu0 %9520
      %9522 = vrot.lane.b32.xlu0 %v429, 126
      %v9523 = vpop.permute.xlu0 %9522
      %9524 = vrot.lane.b32.xlu0 %v430, 126
      %v9525 = vpop.permute.xlu0 %9524
      %9526 = vrot.lane.b32.xlu0 %v431, 126
      %v9527 = vpop.permute.xlu0 %9526
      %9532 = vrot.lane.b32.xlu0 %v6605, 127
      %v9533 = vpop.permute.xlu0 %9532
      %9534 = vrot.lane.b32.xlu0 %v6607, 127
      %v9535 = vpop.permute.xlu0 %9534
      %9536 = vrot.lane.b32.xlu0 %v6748, 127
      %v9537 = vpop.permute.xlu0 %9536
      %9538 = vrot.lane.b32.xlu0 %v6750, 127
      %v9539 = vpop.permute.xlu0 %9538
      %9540 = vrot.lane.b32.xlu0 %v6749, 127
      %v9541 = vpop.permute.xlu0 %9540
      %9553 = vrot.lane.b32.xlu0 %v6506, 1
      %v9554 = vpop.permute.xlu0 %9553
      %9555 = vrot.lane.b32.xlu0 %v6662, 1
      %v9556 = vpop.permute.xlu0 %9555
      %9557 = vrot.lane.b32.xlu0 %v6664, 1
      %v9558 = vpop.permute.xlu0 %9557
      %9559 = vrot.lane.b32.xlu0 %v6904, 1
      %v9560 = vpop.permute.xlu0 %9559
      %9561 = vrot.lane.b32.xlu0 %v6906, 1
      %v9562 = vpop.permute.xlu0 %9561
      %9563 = vrot.lane.b32.xlu0 %v6908, 1
      %v9564 = vpop.permute.xlu0 %9563
      %9565 = vrot.lane.b32.xlu0 %v6910, 1
      %v9566 = vpop.permute.xlu0 %9565
      %9574 = vrot.lane.b32.xlu0 %v6932, 2
      %v9575 = vpop.permute.xlu0 %9574
      %9576 = vrot.lane.b32.xlu0 %v6934, 2
      %v9577 = vpop.permute.xlu0 %9576
      %9578 = vrot.lane.b32.xlu0 %v6936, 2
      %v9579 = vpop.permute.xlu0 %9578
      %9580 = vrot.lane.b32.xlu0 %v6938, 2
      %v9581 = vpop.permute.xlu0 %9580
      %9582 = vrot.lane.b32.xlu0 %v6940, 2
      %v9583 = vpop.permute.xlu0 %9582
      %9584 = vrot.lane.b32.xlu0 %v6942, 2
      %v9585 = vpop.permute.xlu0 %9584
      %9586 = vrot.lane.b32.xlu0 %v6944, 2
      %v9587 = vpop.permute.xlu0 %9586
      %9595 = vrot.lane.b32.xlu0 %v6530, 3
      %v9596 = vpop.permute.xlu0 %9595
      %9597 = vrot.lane.b32.xlu0 %v6686, 3
      %v9598 = vpop.permute.xlu0 %9597
      %9599 = vrot.lane.b32.xlu0 %v6688, 3
      %v9600 = vpop.permute.xlu0 %9599
      %9601 = vrot.lane.b32.xlu0 %v6967, 3
      %v9602 = vpop.permute.xlu0 %9601
      %9603 = vrot.lane.b32.xlu0 %v6969, 3
      %v9604 = vpop.permute.xlu0 %9603
      %9610 = vrot.lane.b32.xlu0 %v6565, 4
      %v9611 = vpop.permute.xlu0 %9610
      %9612 = vrot.lane.b32.xlu0 %v6711, 4
      %v9613 = vpop.permute.xlu0 %9612
      %9614 = vrot.lane.b32.xlu0 %v6713, 4
      %v9615 = vpop.permute.xlu0 %9614
      %9616 = vrot.lane.b32.xlu0 %v6986, 4
      %v9617 = vpop.permute.xlu0 %9616
      %9618 = vrot.lane.b32.xlu0 %v6988, 4
      %v9619 = vpop.permute.xlu0 %9618
      %9625 = vrot.lane.b32.xlu0 %v430, 5
      %v9626 = vpop.permute.xlu0 %9625
      %9627 = vrot.lane.b32.xlu0 %v431, 5
      %v9628 = vpop.permute.xlu0 %9627
      %9629 = vrot.lane.b32.xlu0 %v432, 5
      %v9630 = vpop.permute.xlu0 %9629
      %9631 = vrot.lane.b32.xlu0 %v433, 5
      %v9632 = vpop.permute.xlu0 %9631
      %9637 = vrot.lane.b32.xlu0 %v6748, 6
      %v9638 = vpop.permute.xlu0 %9637
      %9639 = vrot.lane.b32.xlu0 %v6750, 6
      %v9640 = vpop.permute.xlu0 %9639
      %9641 = vrot.lane.b32.xlu0 %v7017, 6
      %v9642 = vpop.permute.xlu0 %9641
      %9643 = vrot.lane.b32.xlu0 %v7019, 6
      %v9644 = vpop.permute.xlu0 %9643
      %9645 = vrot.lane.b32.xlu0 %v7018, 6
      %v9646 = vpop.permute.xlu0 %9645
      %9652 = vrot.lane.b32.xlu0 %v6623, 7
      %v9653 = vpop.permute.xlu0 %9652
      %9654 = vrot.lane.b32.xlu0 %v6880, 7
      %v9655 = vpop.permute.xlu0 %9654
      %9656 = vrot.lane.b32.xlu0 %v6882, 7
      %v9657 = vpop.permute.xlu0 %9656
      %9658 = vrot.lane.b32.xlu0 %v7036, 7
      %v9659 = vpop.permute.xlu0 %9658
      %9660 = vrot.lane.b32.xlu0 %v7038, 7
      %v9661 = vpop.permute.xlu0 %9660
      %9662 = vrot.lane.b32.xlu0 %v7037, 7
      %v9663 = vpop.permute.xlu0 %9662
      %9670 = vrot.lane.b32.xlu0 %v6663, 8
      %v9671 = vpop.permute.xlu0 %9670
      %9672 = vrot.lane.b32.xlu0 %v6904, 8
      %v9673 = vpop.permute.xlu0 %9672
      %9674 = vrot.lane.b32.xlu0 %v6906, 8
      %v9675 = vpop.permute.xlu0 %9674
      %9676 = vrot.lane.b32.xlu0 %v6908, 8
      %v9677 = vpop.permute.xlu0 %9676
      %9678 = vrot.lane.b32.xlu0 %v6910, 8
      %v9679 = vpop.permute.xlu0 %9678
      %9680 = vrot.lane.b32.xlu0 %v7060, 8
      %v9681 = vpop.permute.xlu0 %9680
      %9682 = vrot.lane.b32.xlu0 %v7062, 8
      %v9683 = vpop.permute.xlu0 %9682
      %9691 = vrot.lane.b32.xlu0 %v6935, 9
      %v9692 = vpop.permute.xlu0 %9691
      %9693 = vrot.lane.b32.xlu0 %v6938, 9
      %v9694 = vpop.permute.xlu0 %9693
      %9695 = vrot.lane.b32.xlu0 %v6940, 9
      %v9696 = vpop.permute.xlu0 %9695
      %9697 = vrot.lane.b32.xlu0 %v6942, 9
      %v9698 = vpop.permute.xlu0 %9697
      %9699 = vrot.lane.b32.xlu0 %v6944, 9
      %v9700 = vpop.permute.xlu0 %9699
      %9701 = vrot.lane.b32.xlu0 %v7085, 9
      %v9702 = vpop.permute.xlu0 %9701
      %9703 = vrot.lane.b32.xlu0 %v7087, 9
      %v9704 = vpop.permute.xlu0 %9703
      %9712 = vrot.lane.b32.xlu0 %v6534, 10
      %v9713 = vpop.permute.xlu0 %9712
      %9714 = vrot.lane.b32.xlu0 %v6967, 10
      %v9715 = vpop.permute.xlu0 %9714
      %9716 = vrot.lane.b32.xlu0 %v6969, 10
      %v9717 = vpop.permute.xlu0 %9716
      %9718 = vrot.lane.b32.xlu0 %v7110, 10
      %v9719 = vpop.permute.xlu0 %9718
      %9720 = vrot.lane.b32.xlu0 %v7112, 10
      %v9721 = vpop.permute.xlu0 %9720
      %9727 = vrot.lane.b32.xlu0 %v6569, 11
      %v9728 = vpop.permute.xlu0 %9727
      %9729 = vrot.lane.b32.xlu0 %v6986, 11
      %v9730 = vpop.permute.xlu0 %9729
      %9731 = vrot.lane.b32.xlu0 %v6988, 11
      %v9732 = vpop.permute.xlu0 %9731
      %9733 = vrot.lane.b32.xlu0 %v7129, 11
      %v9734 = vpop.permute.xlu0 %9733
      %9735 = vrot.lane.b32.xlu0 %v7131, 11
      %v9736 = vpop.permute.xlu0 %9735
      %9742 = vrot.lane.b32.xlu0 %v432, 12
      %v9743 = vpop.permute.xlu0 %9742
      %9744 = vrot.lane.b32.xlu0 %v433, 12
      %v9745 = vpop.permute.xlu0 %9744
      %9746 = vrot.lane.b32.xlu0 %v434, 12
      %v9747 = vpop.permute.xlu0 %9746
      %9748 = vrot.lane.b32.xlu0 %v435, 12
      %v9749 = vpop.permute.xlu0 %9748
      %9754 = vrot.lane.b32.xlu0 %v7017, 13
      %v9755 = vpop.permute.xlu0 %9754
      %9756 = vrot.lane.b32.xlu0 %v7019, 13
      %v9757 = vpop.permute.xlu0 %9756
      %9758 = vrot.lane.b32.xlu0 %v7160, 13
      %v9759 = vpop.permute.xlu0 %9758
      %9760 = vrot.lane.b32.xlu0 %v7162, 13
      %v9761 = vpop.permute.xlu0 %9760
      %9762 = vrot.lane.b32.xlu0 %v7161, 13
      %v9763 = vpop.permute.xlu0 %9762
      %v9769 = vsel %vm6334, %v9184, %v9533
      %v9770 = vsel %vm6334, %v9521, %v9535
      %v9771 = vsel %vm6334, %v9523, %v9537
      %v9772 = vsel %vm6334, %v9525, %v9539
      %v9773 = vsel %vm6334, %v9527, %v9541
      %v9774 = vsel %vm6342, %v9424, %v6466
      %v9775 = vsel %vm6342, %v9769, %v6624
      %v9776 = vsel %vm6342, %v9770, %v6626
      %v9777 = vsel %vm6342, %v9771, %v6880
      %v9778 = vsel %vm6342, %v9772, %v6882
      %v9779 = vsel %vm6342, %v9773, %v6881
      %v9780 = vsel %vm6350, %v9774, %v9554
      %v9781 = vsel %vm6350, %v9430, %v9556
      %v9782 = vsel %vm6350, %v9775, %v9558
      %v9783 = vsel %vm6350, %v9776, %v9560
      %v9784 = vsel %vm6350, %v9777, %v9562
      %v9785 = vsel %vm6350, %v9778, %v9564
      %v9786 = vsel %vm6350, %v9779, %v9566
      %v9787 = vsel %vm874, %v9780, %v9575
      %v9788 = vsel %vm874, %v9781, %v9577
      %v9789 = vsel %vm874, %v9782, %v9579
      %v9790 = vsel %vm874, %v9783, %v9581
      %v9791 = vsel %vm874, %v9784, %v9583
      %v9792 = vsel %vm874, %v9785, %v9585
      %v9793 = vsel %vm874, %v9786, %v9587
      %v9794 = vsel %vm6365, %v9787, %v9596
      %v9795 = vsel %vm6365, %v9788, %v9250
      %v9796 = vsel %vm6365, %v9789, %v9252
      %v9797 = vsel %vm6365, %v9790, %v9598
      %v9798 = vsel %vm6365, %v9791, %v9600
      %v9799 = vsel %vm6365, %v9792, %v9602
      %v9800 = vsel %vm6365, %v9793, %v9604
      %v9801 = vsel %vm6373, %v9794, %v9611
      %v9802 = vsel %vm6373, %v9795, %v9271
      %v9803 = vsel %vm6373, %v9796, %v9273
      %v9804 = vsel %vm6373, %v9797, %v9613
      %v9805 = vsel %vm6373, %v9798, %v9615
      %v9806 = vsel %vm6373, %v9799, %v9617
      %v9807 = vsel %vm6373, %v9800, %v9619
      %v9808 = vsel %vm6381, %v9801, %v9284
      %v9809 = vsel %vm6381, %v9802, %v9286
      %v9810 = vsel %vm6381, %v9803, %v9288
      %v9811 = vsel %vm6381, %v9804, %v9626
      %v9812 = vsel %vm6381, %v9805, %v9628
      %v9813 = vsel %vm6381, %v9806, %v9630
      %v9814 = vsel %vm6381, %v9807, %v9632
      %v9815 = vsel %vm900, %v9808, %v9298
      %v9816 = vsel %vm900, %v9809, %v9300
      %v9817 = vsel %vm900, %v9810, %v9638
      %v9818 = vsel %vm900, %v9811, %v9640
      %v9819 = vsel %vm900, %v9812, %v9642
      %v9820 = vsel %vm900, %v9813, %v9644
      %v9821 = vsel %vm900, %v9814, %v9646
      %v9822 = vsel %vm6396, %v9815, %v9653
      %v9823 = vsel %vm6396, %v9816, %v9315
      %v9824 = vsel %vm6396, %v9817, %v9655
      %v9825 = vsel %vm6396, %v9818, %v9657
      %v9826 = vsel %vm6396, %v9819, %v9659
      %v9827 = vsel %vm6396, %v9820, %v9661
      %v9828 = vsel %vm6396, %v9821, %v9663
      %v9829 = vsel %vm6404, %v9822, %v9671
      %v9830 = vsel %vm6404, %v9823, %v9673
      %v9831 = vsel %vm6404, %v9824, %v9675
      %v9832 = vsel %vm6404, %v9825, %v9677
      %v9833 = vsel %vm6404, %v9826, %v9679
      %v9834 = vsel %vm6404, %v9827, %v9681
      %v9835 = vsel %vm6404, %v9828, %v9683
      %v9836 = vsel %vm6412, %v9829, %v9692
      %v9837 = vsel %vm6412, %v9830, %v9694
      %v9838 = vsel %vm6412, %v9831, %v9696
      %v9839 = vsel %vm6412, %v9832, %v9698
      %v9840 = vsel %vm6412, %v9833, %v9700
      %v9841 = vsel %vm6412, %v9834, %v9702
      %v9842 = vsel %vm6412, %v9835, %v9704
      %v9843 = vsel %vm925, %v9836, %v9713
      %v9844 = vsel %vm925, %v9837, %v9364
      %v9845 = vsel %vm925, %v9838, %v9366
      %v9846 = vsel %vm925, %v9839, %v9715
      %v9847 = vsel %vm925, %v9840, %v9717
      %v9848 = vsel %vm925, %v9841, %v9719
      %v9849 = vsel %vm925, %v9842, %v9721
      %v9850 = vsel %vm6427, %v9843, %v9728
      %v9851 = vsel %vm6427, %v9844, %v9385
      %v9852 = vsel %vm6427, %v9845, %v9387
      %v9853 = vsel %vm6427, %v9846, %v9730
      %v9854 = vsel %vm6427, %v9847, %v9732
      %v9855 = vsel %vm6427, %v9848, %v9734
      %v9856 = vsel %vm6427, %v9849, %v9736
      %v9857 = vsel %vm6435, %v9850, %v9398
      %v9858 = vsel %vm6435, %v9851, %v9400
      %v9859 = vsel %vm6435, %v9852, %v9402
      %v9860 = vsel %vm6435, %v9853, %v9743
      %v9861 = vsel %vm6435, %v9854, %v9745
      %v9862 = vsel %vm6435, %v9855, %v9747
      %v9863 = vsel %vm6435, %v9856, %v9749
      %v9864 = vsel %vm6443, %v9857, %v9412
      %v9865 = vsel %vm6443, %v9858, %v9414
      %v9866 = vsel %vm6443, %v9859, %v9755
      %v9867 = vsel %vm6443, %v9860, %v9757
      %v9868 = vsel %vm6443, %v9861, %v9759
      %v9869 = vsel %vm6443, %v9862, %v9761
      %v9870 = vsel %vm6443, %v9863, %v9763
      %9871 = vrot.lane.b32.xlu0 %v432, 126
      %v9872 = vpop.permute.xlu0 %9871
      %9873 = vrot.lane.b32.xlu0 %v433, 126
      %v9874 = vpop.permute.xlu0 %9873
      %9875 = vrot.lane.b32.xlu0 %v434, 126
      %v9876 = vpop.permute.xlu0 %9875
      %9877 = vrot.lane.b32.xlu0 %v435, 126
      %v9878 = vpop.permute.xlu0 %9877
      %v9883 = vsel %vm6334, %v9525, 0.0
      %v9884 = vsel %vm6334, %v9527, 0.0
      %v9885 = vsel %vm6334, %v9872, 0.0
      %v9886 = vsel %vm6334, %v9874, 0.0
      %v9887 = vsel %vm6334, %v9876, 0.0
      %v9888 = vsel %vm6334, %v9878, 0.0
      %v9896 = vrot.slane %v9513, 2
      %v9897 = vrot.slane %v9514, 2
      %v9898 = vsel %vm5941, %v9896, %v9897
      %v9899 = vrot.slane %v9515, 2
      %v9900 = vsel %vm5941, %v9897, %v9899
      %v9901 = vrot.slane %v9516, 2
      %v9902 = vsel %vm5941, %v9899, %v9901
      %v9903 = vrot.slane %v9517, 2
      %v9904 = vsel %vm5941, %v9901, %v9903
      %v9905 = vrot.slane %v9518, 2
      %v9906 = vsel %vm5941, %v9903, %v9905
      %v9907 = vrot.slane %v9519, 2
      %v9908 = vsel %vm5941, %v9905, %v9907
      %9909 = vrot.lane.b32.xlu0 %v9898, 16
      %v9910 = vpop.permute.xlu0 %9909
      %9911 = vrot.lane.b32.xlu0 %v9900, 16
      %v9912 = vpop.permute.xlu0 %9911
      %9913 = vrot.lane.b32.xlu0 %v9902, 16
      %v9914 = vpop.permute.xlu0 %9913
      %9915 = vrot.lane.b32.xlu0 %v9904, 16
      %v9916 = vpop.permute.xlu0 %9915
      %9917 = vrot.lane.b32.xlu0 %v9906, 16
      %v9918 = vpop.permute.xlu0 %9917
      %9919 = vrot.lane.b32.xlu0 %v9908, 16
      %v9920 = vpop.permute.xlu0 %9919
      %9921 = vrot.lane.b32.xlu0 %v9907, 16
      %v9922 = vpop.permute.xlu0 %9921
      %v9937 = vrot.slane %v9864, 4
      %v9938 = vrot.slane %v9865, 4
      %v9939 = vsel %vm6011, %v9937, %v9938
      %v9940 = vrot.slane %v9866, 4
      %v9941 = vsel %vm6011, %v9938, %v9940
      %v9942 = vrot.slane %v9867, 4
      %v9943 = vsel %vm6011, %v9940, %v9942
      %v9944 = vrot.slane %v9868, 4
      %v9945 = vsel %vm6011, %v9942, %v9944
      %v9946 = vrot.slane %v9869, 4
      %v9947 = vsel %vm6011, %v9944, %v9946
      %v9948 = vrot.slane %v9870, 4
      %v9949 = vsel %vm6011, %v9946, %v9948
      %9950 = vrot.lane.b32.xlu0 %v9939, 32
      %v9951 = vpop.permute.xlu0 %9950
      %9952 = vrot.lane.b32.xlu0 %v9941, 32
      %v9953 = vpop.permute.xlu0 %9952
      %9954 = vrot.lane.b32.xlu0 %v9943, 32
      %v9955 = vpop.permute.xlu0 %9954
      %9956 = vrot.lane.b32.xlu0 %v9945, 32
      %v9957 = vpop.permute.xlu0 %9956
      %9958 = vrot.lane.b32.xlu0 %v9947, 32
      %v9959 = vpop.permute.xlu0 %9958
      %9960 = vrot.lane.b32.xlu0 %v9949, 32
      %v9961 = vpop.permute.xlu0 %9960
      %9962 = vrot.lane.b32.xlu0 %v9948, 32
      %v9963 = vpop.permute.xlu0 %9962
      %v9977 = vrot.slane %v9883, 6
      %v9978 = vrot.slane %v9884, 6
      %v9979 = vsel %vm1124, %v9977, %v9978
      %v9980 = vrot.slane %v9885, 6
      %v9981 = vsel %vm1124, %v9978, %v9980
      %v9982 = vrot.slane %v9886, 6
      %v9983 = vsel %vm1124, %v9980, %v9982
      %v9984 = vrot.slane %v9887, 6
      %v9985 = vsel %vm1124, %v9982, %v9984
      %v9986 = vrot.slane %v9888, 6
      %v9987 = vsel %vm1124, %v9984, %v9986
      %9988 = vrot.lane.b32.xlu0 %v9977, 48
      %v9989 = vpop.permute.xlu0 %9988
      %9990 = vrot.lane.b32.xlu0 %v9979, 48
      %v9991 = vpop.permute.xlu0 %9990
      %9992 = vrot.lane.b32.xlu0 %v9981, 48
      %v9993 = vpop.permute.xlu0 %9992
      %9994 = vrot.lane.b32.xlu0 %v9983, 48
      %v9995 = vpop.permute.xlu0 %9994
      %9996 = vrot.lane.b32.xlu0 %v9985, 48
      %v9997 = vpop.permute.xlu0 %9996
      %9998 = vrot.lane.b32.xlu0 %v9987, 48
      %v9999 = vpop.permute.xlu0 %9998
      %10000 = vrot.lane.b32.xlu0 %v9986, 48
      %v10001 = vpop.permute.xlu0 %10000
      %v10009 = vsel %vm950, %v9170, %v9910
      %v10010 = vsel %vm950, %v9171, %v9912
      %v10011 = vsel %vm950, %v9172, %v9914
      %v10012 = vsel %vm950, %v9173, %v9916
      %v10013 = vsel %vm950, %v9174, %v9918
      %v10014 = vsel %vm950, %v9175, %v9920
      %v10015 = vsel %vm950, %v9176, %v9922
      %v10016 = vsel %vm1050, %v10009, %v9951
      %v10017 = vsel %vm1050, %v10010, %v9953
      %v10018 = vsel %vm1050, %v10011, %v9955
      %v10019 = vsel %vm1050, %v10012, %v9957
      %v10020 = vsel %vm1050, %v10013, %v9959
      %v10021 = vsel %vm1050, %v10014, %v9961
      %v10022 = vsel %vm1050, %v10015, %v9963
      %v10023 = vsel %vm7420, %v10016, %v9989
      %v10024 = vsel %vm7420, %v10017, %v9991
      %v10025 = vsel %vm7420, %v10018, %v9993
      %v10026 = vsel %vm7420, %v10019, %v9995
      %v10027 = vsel %vm7420, %v10020, %v9997
      %v10028 = vsel %vm7420, %v10021, %v9999
      %v10029 = vsel %vm7420, %v10022, %v10001
      %v10037 = vrot.slane %v10023, 2
      %v10038 = vrot.slane %v10024, 2
      %v10039 = vsel %vm5941, %v10037, %v10038
      %v10040 = vrot.slane %v10025, 2
      %v10041 = vsel %vm5941, %v10038, %v10040
      %v10042 = vrot.slane %v10026, 2
      %v10043 = vsel %vm5941, %v10040, %v10042
      %v10044 = vrot.slane %v10027, 2
      %v10045 = vsel %vm5941, %v10042, %v10044
      %v10046 = vrot.slane %v10028, 2
      %v10047 = vsel %vm5941, %v10044, %v10046
      %v10048 = vrot.slane %v10029, 2
      %v10049 = vsel %vm5941, %v10046, %v10048
      %10056 = vrot.lane.b32.xlu0 %v417, 125
      %v10057 = vpop.permute.xlu0 %10056
      %10058 = vrot.lane.b32.xlu0 %v418, 125
      %v10059 = vpop.permute.xlu0 %10058
      %10060 = vrot.lane.b32.xlu0 %v419, 125
      %v10061 = vpop.permute.xlu0 %10060
      %10062 = vrot.lane.b32.xlu0 %v420, 125
      %v10063 = vpop.permute.xlu0 %10062
      %10064 = vrot.lane.b32.xlu0 %v421, 125
      %v10065 = vpop.permute.xlu0 %10064
      %10066 = vrot.lane.b32.xlu0 %v422, 125
      %v10067 = vpop.permute.xlu0 %10066
      %10068 = vrot.lane.b32.xlu0 %v423, 125
      %v10069 = vpop.permute.xlu0 %10068
      %10077 = vrot.lane.b32.xlu0 %v5909, 126
      %v10078 = vpop.permute.xlu0 %10077
      %10079 = vrot.lane.b32.xlu0 %v5911, 126
      %v10080 = vpop.permute.xlu0 %10079
      %10081 = vrot.lane.b32.xlu0 %v5913, 126
      %v10082 = vpop.permute.xlu0 %10081
      %10083 = vrot.lane.b32.xlu0 %v5915, 126
      %v10084 = vpop.permute.xlu0 %10083
      %10085 = vrot.lane.b32.xlu0 %v5917, 126
      %v10086 = vpop.permute.xlu0 %10085
      %10087 = vrot.lane.b32.xlu0 %v5919, 126
      %v10088 = vpop.permute.xlu0 %10087
      %10089 = vrot.lane.b32.xlu0 %v5918, 126
      %v10090 = vpop.permute.xlu0 %10089
      %10098 = vrot.lane.b32.xlu0 %v5944, 127
      %v10099 = vpop.permute.xlu0 %10098
      %10100 = vrot.lane.b32.xlu0 %v5946, 127
      %v10101 = vpop.permute.xlu0 %10100
      %10102 = vrot.lane.b32.xlu0 %v5948, 127
      %v10103 = vpop.permute.xlu0 %10102
      %10104 = vrot.lane.b32.xlu0 %v5950, 127
      %v10105 = vpop.permute.xlu0 %10104
      %10106 = vrot.lane.b32.xlu0 %v5952, 127
      %v10107 = vpop.permute.xlu0 %10106
      %10108 = vrot.lane.b32.xlu0 %v5954, 127
      %v10109 = vpop.permute.xlu0 %10108
      %10110 = vrot.lane.b32.xlu0 %v5953, 127
      %v10111 = vpop.permute.xlu0 %10110
      %10126 = vrot.lane.b32.xlu0 %v6014, 1
      %v10127 = vpop.permute.xlu0 %10126
      %10128 = vrot.lane.b32.xlu0 %v6016, 1
      %v10129 = vpop.permute.xlu0 %10128
      %10130 = vrot.lane.b32.xlu0 %v6018, 1
      %v10131 = vpop.permute.xlu0 %10130
      %10132 = vrot.lane.b32.xlu0 %v6020, 1
      %v10133 = vpop.permute.xlu0 %10132
      %10134 = vrot.lane.b32.xlu0 %v6022, 1
      %v10135 = vpop.permute.xlu0 %10134
      %10136 = vrot.lane.b32.xlu0 %v6024, 1
      %v10137 = vpop.permute.xlu0 %10136
      %10138 = vrot.lane.b32.xlu0 %v6023, 1
      %v10139 = vpop.permute.xlu0 %10138
      %10147 = vrot.lane.b32.xlu0 %v6049, 2
      %v10148 = vpop.permute.xlu0 %10147
      %10149 = vrot.lane.b32.xlu0 %v6051, 2
      %v10150 = vpop.permute.xlu0 %10149
      %10151 = vrot.lane.b32.xlu0 %v6053, 2
      %v10152 = vpop.permute.xlu0 %10151
      %10153 = vrot.lane.b32.xlu0 %v6055, 2
      %v10154 = vpop.permute.xlu0 %10153
      %10155 = vrot.lane.b32.xlu0 %v6057, 2
      %v10156 = vpop.permute.xlu0 %10155
      %10157 = vrot.lane.b32.xlu0 %v6059, 2
      %v10158 = vpop.permute.xlu0 %10157
      %10159 = vrot.lane.b32.xlu0 %v6058, 2
      %v10160 = vpop.permute.xlu0 %10159
      %10168 = vrot.lane.b32.xlu0 %v6081, 3
      %v10169 = vpop.permute.xlu0 %10168
      %10170 = vrot.lane.b32.xlu0 %v6083, 3
      %v10171 = vpop.permute.xlu0 %10170
      %10172 = vrot.lane.b32.xlu0 %v6085, 3
      %v10173 = vpop.permute.xlu0 %10172
      %10174 = vrot.lane.b32.xlu0 %v6087, 3
      %v10175 = vpop.permute.xlu0 %10174
      %10176 = vrot.lane.b32.xlu0 %v6089, 3
      %v10177 = vpop.permute.xlu0 %10176
      %10178 = vrot.lane.b32.xlu0 %v6091, 3
      %v10179 = vpop.permute.xlu0 %10178
      %10186 = vrot.lane.b32.xlu0 %v419, 4
      %v10187 = vpop.permute.xlu0 %10186
      %10188 = vrot.lane.b32.xlu0 %v420, 4
      %v10189 = vpop.permute.xlu0 %10188
      %10190 = vrot.lane.b32.xlu0 %v421, 4
      %v10191 = vpop.permute.xlu0 %10190
      %10192 = vrot.lane.b32.xlu0 %v422, 4
      %v10193 = vpop.permute.xlu0 %10192
      %10194 = vrot.lane.b32.xlu0 %v423, 4
      %v10195 = vpop.permute.xlu0 %10194
      %10196 = vrot.lane.b32.xlu0 %v424, 4
      %v10197 = vpop.permute.xlu0 %10196
      %10198 = vrot.lane.b32.xlu0 %v425, 4
      %v10199 = vpop.permute.xlu0 %10198
      %10207 = vrot.lane.b32.xlu0 %v5913, 5
      %v10208 = vpop.permute.xlu0 %10207
      %10209 = vrot.lane.b32.xlu0 %v5915, 5
      %v10210 = vpop.permute.xlu0 %10209
      %10211 = vrot.lane.b32.xlu0 %v5917, 5
      %v10212 = vpop.permute.xlu0 %10211
      %10213 = vrot.lane.b32.xlu0 %v5919, 5
      %v10214 = vpop.permute.xlu0 %10213
      %10215 = vrot.lane.b32.xlu0 %v6137, 5
      %v10216 = vpop.permute.xlu0 %10215
      %10217 = vrot.lane.b32.xlu0 %v6139, 5
      %v10218 = vpop.permute.xlu0 %10217
      %10219 = vrot.lane.b32.xlu0 %v6138, 5
      %v10220 = vpop.permute.xlu0 %10219
      %10228 = vrot.lane.b32.xlu0 %v5948, 6
      %v10229 = vpop.permute.xlu0 %10228
      %10230 = vrot.lane.b32.xlu0 %v5950, 6
      %v10231 = vpop.permute.xlu0 %10230
      %10232 = vrot.lane.b32.xlu0 %v5952, 6
      %v10233 = vpop.permute.xlu0 %10232
      %10234 = vrot.lane.b32.xlu0 %v5954, 6
      %v10235 = vpop.permute.xlu0 %10234
      %10236 = vrot.lane.b32.xlu0 %v6162, 6
      %v10237 = vpop.permute.xlu0 %10236
      %10238 = vrot.lane.b32.xlu0 %v6164, 6
      %v10239 = vpop.permute.xlu0 %10238
      %10240 = vrot.lane.b32.xlu0 %v6163, 6
      %v10241 = vpop.permute.xlu0 %10240
      %10249 = vrot.lane.b32.xlu0 %v5983, 7
      %v10250 = vpop.permute.xlu0 %10249
      %10251 = vrot.lane.b32.xlu0 %v5985, 7
      %v10252 = vpop.permute.xlu0 %10251
      %10253 = vrot.lane.b32.xlu0 %v5987, 7
      %v10254 = vpop.permute.xlu0 %10253
      %10255 = vrot.lane.b32.xlu0 %v5989, 7
      %v10256 = vpop.permute.xlu0 %10255
      %10257 = vrot.lane.b32.xlu0 %v6187, 7
      %v10258 = vpop.permute.xlu0 %10257
      %10259 = vrot.lane.b32.xlu0 %v6189, 7
      %v10260 = vpop.permute.xlu0 %10259
      %10261 = vrot.lane.b32.xlu0 %v6188, 7
      %v10262 = vpop.permute.xlu0 %10261
      %10270 = vrot.lane.b32.xlu0 %v6018, 8
      %v10271 = vpop.permute.xlu0 %10270
      %10272 = vrot.lane.b32.xlu0 %v6020, 8
      %v10273 = vpop.permute.xlu0 %10272
      %10274 = vrot.lane.b32.xlu0 %v6022, 8
      %v10275 = vpop.permute.xlu0 %10274
      %10276 = vrot.lane.b32.xlu0 %v6024, 8
      %v10277 = vpop.permute.xlu0 %10276
      %10278 = vrot.lane.b32.xlu0 %v6212, 8
      %v10279 = vpop.permute.xlu0 %10278
      %10280 = vrot.lane.b32.xlu0 %v6214, 8
      %v10281 = vpop.permute.xlu0 %10280
      %10282 = vrot.lane.b32.xlu0 %v6213, 8
      %v10283 = vpop.permute.xlu0 %10282
      %10291 = vrot.lane.b32.xlu0 %v6053, 9
      %v10292 = vpop.permute.xlu0 %10291
      %10293 = vrot.lane.b32.xlu0 %v6055, 9
      %v10294 = vpop.permute.xlu0 %10293
      %10295 = vrot.lane.b32.xlu0 %v6057, 9
      %v10296 = vpop.permute.xlu0 %10295
      %10297 = vrot.lane.b32.xlu0 %v6059, 9
      %v10298 = vpop.permute.xlu0 %10297
      %10299 = vrot.lane.b32.xlu0 %v6237, 9
      %v10300 = vpop.permute.xlu0 %10299
      %10301 = vrot.lane.b32.xlu0 %v6239, 9
      %v10302 = vpop.permute.xlu0 %10301
      %10303 = vrot.lane.b32.xlu0 %v6238, 9
      %v10304 = vpop.permute.xlu0 %10303
      %10312 = vrot.lane.b32.xlu0 %v6084, 10
      %v10313 = vpop.permute.xlu0 %10312
      %10314 = vrot.lane.b32.xlu0 %v6087, 10
      %v10315 = vpop.permute.xlu0 %10314
      %10316 = vrot.lane.b32.xlu0 %v6089, 10
      %v10317 = vpop.permute.xlu0 %10316
      %10318 = vrot.lane.b32.xlu0 %v6091, 10
      %v10319 = vpop.permute.xlu0 %10318
      %10320 = vrot.lane.b32.xlu0 %v6262, 10
      %v10321 = vpop.permute.xlu0 %10320
      %10322 = vrot.lane.b32.xlu0 %v6264, 10
      %v10323 = vpop.permute.xlu0 %10322
      %10330 = vrot.lane.b32.xlu0 %v421, 11
      %v10331 = vpop.permute.xlu0 %10330
      %10332 = vrot.lane.b32.xlu0 %v422, 11
      %v10333 = vpop.permute.xlu0 %10332
      %10334 = vrot.lane.b32.xlu0 %v423, 11
      %v10335 = vpop.permute.xlu0 %10334
      %10336 = vrot.lane.b32.xlu0 %v424, 11
      %v10337 = vpop.permute.xlu0 %10336
      %10338 = vrot.lane.b32.xlu0 %v425, 11
      %v10339 = vpop.permute.xlu0 %10338
      %10340 = vrot.lane.b32.xlu0 %v426, 11
      %v10341 = vpop.permute.xlu0 %10340
      %10342 = vrot.lane.b32.xlu0 %v427, 11
      %v10343 = vpop.permute.xlu0 %10342
      %10351 = vrot.lane.b32.xlu0 %v5917, 12
      %v10352 = vpop.permute.xlu0 %10351
      %10353 = vrot.lane.b32.xlu0 %v5919, 12
      %v10354 = vpop.permute.xlu0 %10353
      %10355 = vrot.lane.b32.xlu0 %v6137, 12
      %v10356 = vpop.permute.xlu0 %10355
      %10357 = vrot.lane.b32.xlu0 %v6139, 12
      %v10358 = vpop.permute.xlu0 %10357
      %10359 = vrot.lane.b32.xlu0 %v6310, 12
      %v10360 = vpop.permute.xlu0 %10359
      %10361 = vrot.lane.b32.xlu0 %v6312, 12
      %v10362 = vpop.permute.xlu0 %10361
      %10363 = vrot.lane.b32.xlu0 %v6311, 12
      %v10364 = vpop.permute.xlu0 %10363
      %v10372 = vsel %vm6334, %v10057, %v10078
      %v10373 = vsel %vm6334, %v10059, %v10080
      %v10374 = vsel %vm6334, %v10061, %v10082
      %v10375 = vsel %vm6334, %v10063, %v10084
      %v10376 = vsel %vm6334, %v10065, %v10086
      %v10377 = vsel %vm6334, %v10067, %v10088
      %v10378 = vsel %vm6334, %v10069, %v10090
      %v10379 = vsel %vm6342, %v10372, %v10099
      %v10380 = vsel %vm6342, %v10373, %v10101
      %v10381 = vsel %vm6342, %v10374, %v10103
      %v10382 = vsel %vm6342, %v10375, %v10105
      %v10383 = vsel %vm6342, %v10376, %v10107
      %v10384 = vsel %vm6342, %v10377, %v10109
      %v10385 = vsel %vm6342, %v10378, %v10111
      %v10386 = vsel %vm6350, %v10379, %v5979
      %v10387 = vsel %vm6350, %v10380, %v5981
      %v10388 = vsel %vm6350, %v10381, %v5983
      %v10389 = vsel %vm6350, %v10382, %v5985
      %v10390 = vsel %vm6350, %v10383, %v5987
      %v10391 = vsel %vm6350, %v10384, %v5989
      %v10392 = vsel %vm6350, %v10385, %v5988
      %v10393 = vsel %vm874, %v10386, %v10127
      %v10394 = vsel %vm874, %v10387, %v10129
      %v10395 = vsel %vm874, %v10388, %v10131
      %v10396 = vsel %vm874, %v10389, %v10133
      %v10397 = vsel %vm874, %v10390, %v10135
      %v10398 = vsel %vm874, %v10391, %v10137
      %v10399 = vsel %vm874, %v10392, %v10139
      %v10400 = vsel %vm6365, %v10393, %v10148
      %v10401 = vsel %vm6365, %v10394, %v10150
      %v10402 = vsel %vm6365, %v10395, %v10152
      %v10403 = vsel %vm6365, %v10396, %v10154
      %v10404 = vsel %vm6365, %v10397, %v10156
      %v10405 = vsel %vm6365, %v10398, %v10158
      %v10406 = vsel %vm6365, %v10399, %v10160
      %v10407 = vsel %vm6373, %v10400, %v10169
      %v10408 = vsel %vm6373, %v10401, %v10171
      %v10409 = vsel %vm6373, %v10402, %v10173
      %v10410 = vsel %vm6373, %v10403, %v10175
      %v10411 = vsel %vm6373, %v10404, %v10177
      %v10412 = vsel %vm6373, %v10405, %v10179
      %v10413 = vsel %vm6373, %v10406, %v9240
      %v10414 = vsel %vm6381, %v10407, %v10187
      %v10415 = vsel %vm6381, %v10408, %v10189
      %v10416 = vsel %vm6381, %v10409, %v10191
      %v10417 = vsel %vm6381, %v10410, %v10193
      %v10418 = vsel %vm6381, %v10411, %v10195
      %v10419 = vsel %vm6381, %v10412, %v10197
      %v10420 = vsel %vm6381, %v10413, %v10199
      %v10421 = vsel %vm900, %v10414, %v10208
      %v10422 = vsel %vm900, %v10415, %v10210
      %v10423 = vsel %vm900, %v10416, %v10212
      %v10424 = vsel %vm900, %v10417, %v10214
      %v10425 = vsel %vm900, %v10418, %v10216
      %v10426 = vsel %vm900, %v10419, %v10218
      %v10427 = vsel %vm900, %v10420, %v10220
      %v10428 = vsel %vm6396, %v10421, %v10229
      %v10429 = vsel %vm6396, %v10422, %v10231
      %v10430 = vsel %vm6396, %v10423, %v10233
      %v10431 = vsel %vm6396, %v10424, %v10235
      %v10432 = vsel %vm6396, %v10425, %v10237
      %v10433 = vsel %vm6396, %v10426, %v10239
      %v10434 = vsel %vm6396, %v10427, %v10241
      %v10435 = vsel %vm6404, %v10428, %v10250
      %v10436 = vsel %vm6404, %v10429, %v10252
      %v10437 = vsel %vm6404, %v10430, %v10254
      %v10438 = vsel %vm6404, %v10431, %v10256
      %v10439 = vsel %vm6404, %v10432, %v10258
      %v10440 = vsel %vm6404, %v10433, %v10260
      %v10441 = vsel %vm6404, %v10434, %v10262
      %v10442 = vsel %vm6412, %v10435, %v10271
      %v10443 = vsel %vm6412, %v10436, %v10273
      %v10444 = vsel %vm6412, %v10437, %v10275
      %v10445 = vsel %vm6412, %v10438, %v10277
      %v10446 = vsel %vm6412, %v10439, %v10279
      %v10447 = vsel %vm6412, %v10440, %v10281
      %v10448 = vsel %vm6412, %v10441, %v10283
      %v10449 = vsel %vm925, %v10442, %v10292
      %v10450 = vsel %vm925, %v10443, %v10294
      %v10451 = vsel %vm925, %v10444, %v10296
      %v10452 = vsel %vm925, %v10445, %v10298
      %v10453 = vsel %vm925, %v10446, %v10300
      %v10454 = vsel %vm925, %v10447, %v10302
      %v10455 = vsel %vm925, %v10448, %v10304
      %v10456 = vsel %vm6427, %v10449, %v10313
      %v10457 = vsel %vm6427, %v10450, %v10315
      %v10458 = vsel %vm6427, %v10451, %v10317
      %v10459 = vsel %vm6427, %v10452, %v10319
      %v10460 = vsel %vm6427, %v10453, %v10321
      %v10461 = vsel %vm6427, %v10454, %v10323
      %v10462 = vsel %vm6427, %v10455, %v9354
      %v10463 = vsel %vm6435, %v10456, %v10331
      %v10464 = vsel %vm6435, %v10457, %v10333
      %v10465 = vsel %vm6435, %v10458, %v10335
      %v10466 = vsel %vm6435, %v10459, %v10337
      %v10467 = vsel %vm6435, %v10460, %v10339
      %v10468 = vsel %vm6435, %v10461, %v10341
      %v10469 = vsel %vm6435, %v10462, %v10343
      %v10470 = vsel %vm6443, %v10463, %v10352
      %v10471 = vsel %vm6443, %v10464, %v10354
      %v10472 = vsel %vm6443, %v10465, %v10356
      %v10473 = vsel %vm6443, %v10466, %v10358
      %v10474 = vsel %vm6443, %v10467, %v10360
      %v10475 = vsel %vm6443, %v10468, %v10362
      %v10476 = vsel %vm6443, %v10469, %v10364
      %10477 = vrot.lane.b32.xlu0 %v424, 125
      %v10478 = vpop.permute.xlu0 %10477
      %10479 = vrot.lane.b32.xlu0 %v425, 125
      %v10480 = vpop.permute.xlu0 %10479
      %10481 = vrot.lane.b32.xlu0 %v426, 125
      %v10482 = vpop.permute.xlu0 %10481
      %10483 = vrot.lane.b32.xlu0 %v427, 125
      %v10484 = vpop.permute.xlu0 %10483
      %10489 = vrot.lane.b32.xlu0 %v6137, 126
      %v10490 = vpop.permute.xlu0 %10489
      %10491 = vrot.lane.b32.xlu0 %v6139, 126
      %v10492 = vpop.permute.xlu0 %10491
      %10493 = vrot.lane.b32.xlu0 %v6310, 126
      %v10494 = vpop.permute.xlu0 %10493
      %10495 = vrot.lane.b32.xlu0 %v6312, 126
      %v10496 = vpop.permute.xlu0 %10495
      %10497 = vrot.lane.b32.xlu0 %v6311, 126
      %v10498 = vpop.permute.xlu0 %10497
      %10504 = vrot.lane.b32.xlu0 %v6162, 127
      %v10505 = vpop.permute.xlu0 %10504
      %10506 = vrot.lane.b32.xlu0 %v6164, 127
      %v10507 = vpop.permute.xlu0 %10506
      %10508 = vrot.lane.b32.xlu0 %v6467, 127
      %v10509 = vpop.permute.xlu0 %10508
      %10510 = vrot.lane.b32.xlu0 %v6469, 127
      %v10511 = vpop.permute.xlu0 %10510
      %10512 = vrot.lane.b32.xlu0 %v6468, 127
      %v10513 = vpop.permute.xlu0 %10512
      %10524 = vrot.lane.b32.xlu0 %v6021, 1
      %v10525 = vpop.permute.xlu0 %10524
      %10526 = vrot.lane.b32.xlu0 %v6212, 1
      %v10527 = vpop.permute.xlu0 %10526
      %10528 = vrot.lane.b32.xlu0 %v6214, 1
      %v10529 = vpop.permute.xlu0 %10528
      %10530 = vrot.lane.b32.xlu0 %v6505, 1
      %v10531 = vpop.permute.xlu0 %10530
      %10532 = vrot.lane.b32.xlu0 %v6507, 1
      %v10533 = vpop.permute.xlu0 %10532
      %10539 = vrot.lane.b32.xlu0 %v6090, 2
      %v10540 = vpop.permute.xlu0 %10539
      %10541 = vrot.lane.b32.xlu0 %v6262, 2
      %v10542 = vpop.permute.xlu0 %10541
      %10543 = vrot.lane.b32.xlu0 %v6264, 2
      %v10544 = vpop.permute.xlu0 %10543
      %10545 = vrot.lane.b32.xlu0 %v6529, 2
      %v10546 = vpop.permute.xlu0 %10545
      %10547 = vrot.lane.b32.xlu0 %v6531, 2
      %v10548 = vpop.permute.xlu0 %10547
      %10549 = vrot.lane.b32.xlu0 %v6533, 2
      %v10550 = vpop.permute.xlu0 %10549
      %10551 = vrot.lane.b32.xlu0 %v6535, 2
      %v10552 = vpop.permute.xlu0 %10551
      %10560 = vrot.lane.b32.xlu0 %v6558, 3
      %v10561 = vpop.permute.xlu0 %10560
      %10562 = vrot.lane.b32.xlu0 %v6560, 3
      %v10563 = vpop.permute.xlu0 %10562
      %10564 = vrot.lane.b32.xlu0 %v6562, 3
      %v10565 = vpop.permute.xlu0 %10564
      %10566 = vrot.lane.b32.xlu0 %v6564, 3
      %v10567 = vpop.permute.xlu0 %10566
      %10568 = vrot.lane.b32.xlu0 %v6566, 3
      %v10569 = vpop.permute.xlu0 %10568
      %10570 = vrot.lane.b32.xlu0 %v6568, 3
      %v10571 = vpop.permute.xlu0 %10570
      %10572 = vrot.lane.b32.xlu0 %v6570, 3
      %v10573 = vpop.permute.xlu0 %10572
      %10581 = vrot.lane.b32.xlu0 %v426, 4
      %v10582 = vpop.permute.xlu0 %10581
      %10583 = vrot.lane.b32.xlu0 %v427, 4
      %v10584 = vpop.permute.xlu0 %10583
      %10585 = vrot.lane.b32.xlu0 %v428, 4
      %v10586 = vpop.permute.xlu0 %10585
      %10587 = vrot.lane.b32.xlu0 %v429, 4
      %v10588 = vpop.permute.xlu0 %10587
      %10593 = vrot.lane.b32.xlu0 %v6310, 5
      %v10594 = vpop.permute.xlu0 %10593
      %10595 = vrot.lane.b32.xlu0 %v6312, 5
      %v10596 = vpop.permute.xlu0 %10595
      %10597 = vrot.lane.b32.xlu0 %v6605, 5
      %v10598 = vpop.permute.xlu0 %10597
      %10599 = vrot.lane.b32.xlu0 %v6607, 5
      %v10600 = vpop.permute.xlu0 %10599
      %10601 = vrot.lane.b32.xlu0 %v6606, 5
      %v10602 = vpop.permute.xlu0 %10601
      %10608 = vrot.lane.b32.xlu0 %v6467, 6
      %v10609 = vpop.permute.xlu0 %10608
      %10610 = vrot.lane.b32.xlu0 %v6469, 6
      %v10611 = vpop.permute.xlu0 %10610
      %10612 = vrot.lane.b32.xlu0 %v6624, 6
      %v10613 = vpop.permute.xlu0 %10612
      %10614 = vrot.lane.b32.xlu0 %v6626, 6
      %v10615 = vpop.permute.xlu0 %10614
      %10616 = vrot.lane.b32.xlu0 %v6625, 6
      %v10617 = vpop.permute.xlu0 %10616
      %10623 = vrot.lane.b32.xlu0 %v6486, 7
      %v10624 = vpop.permute.xlu0 %10623
      %10625 = vrot.lane.b32.xlu0 %v6488, 7
      %v10626 = vpop.permute.xlu0 %10625
      %10627 = vrot.lane.b32.xlu0 %v6643, 7
      %v10628 = vpop.permute.xlu0 %10627
      %10629 = vrot.lane.b32.xlu0 %v6645, 7
      %v10630 = vpop.permute.xlu0 %10629
      %10631 = vrot.lane.b32.xlu0 %v6644, 7
      %v10632 = vpop.permute.xlu0 %10631
      %10638 = vrot.lane.b32.xlu0 %v6211, 8
      %v10639 = vpop.permute.xlu0 %10638
      %10640 = vrot.lane.b32.xlu0 %v6505, 8
      %v10641 = vpop.permute.xlu0 %10640
      %10642 = vrot.lane.b32.xlu0 %v6507, 8
      %v10643 = vpop.permute.xlu0 %10642
      %10644 = vrot.lane.b32.xlu0 %v6662, 8
      %v10645 = vpop.permute.xlu0 %10644
      %10646 = vrot.lane.b32.xlu0 %v6664, 8
      %v10647 = vpop.permute.xlu0 %10646
      %10653 = vrot.lane.b32.xlu0 %v6263, 9
      %v10654 = vpop.permute.xlu0 %10653
      %10655 = vrot.lane.b32.xlu0 %v6529, 9
      %v10656 = vpop.permute.xlu0 %10655
      %10657 = vrot.lane.b32.xlu0 %v6531, 9
      %v10658 = vpop.permute.xlu0 %10657
      %10659 = vrot.lane.b32.xlu0 %v6533, 9
      %v10660 = vpop.permute.xlu0 %10659
      %10661 = vrot.lane.b32.xlu0 %v6535, 9
      %v10662 = vpop.permute.xlu0 %10661
      %10663 = vrot.lane.b32.xlu0 %v6686, 9
      %v10664 = vpop.permute.xlu0 %10663
      %10665 = vrot.lane.b32.xlu0 %v6688, 9
      %v10666 = vpop.permute.xlu0 %10665
      %10674 = vrot.lane.b32.xlu0 %v6561, 10
      %v10675 = vpop.permute.xlu0 %10674
      %10676 = vrot.lane.b32.xlu0 %v6564, 10
      %v10677 = vpop.permute.xlu0 %10676
      %10678 = vrot.lane.b32.xlu0 %v6566, 10
      %v10679 = vpop.permute.xlu0 %10678
      %10680 = vrot.lane.b32.xlu0 %v6568, 10
      %v10681 = vpop.permute.xlu0 %10680
      %10682 = vrot.lane.b32.xlu0 %v6570, 10
      %v10683 = vpop.permute.xlu0 %10682
      %10684 = vrot.lane.b32.xlu0 %v6711, 10
      %v10685 = vpop.permute.xlu0 %10684
      %10686 = vrot.lane.b32.xlu0 %v6713, 10
      %v10687 = vpop.permute.xlu0 %10686
      %10695 = vrot.lane.b32.xlu0 %v428, 11
      %v10696 = vpop.permute.xlu0 %10695
      %10697 = vrot.lane.b32.xlu0 %v429, 11
      %v10698 = vpop.permute.xlu0 %10697
      %10699 = vrot.lane.b32.xlu0 %v430, 11
      %v10700 = vpop.permute.xlu0 %10699
      %10701 = vrot.lane.b32.xlu0 %v431, 11
      %v10702 = vpop.permute.xlu0 %10701
      %10707 = vrot.lane.b32.xlu0 %v6605, 12
      %v10708 = vpop.permute.xlu0 %10707
      %10709 = vrot.lane.b32.xlu0 %v6607, 12
      %v10710 = vpop.permute.xlu0 %10709
      %10711 = vrot.lane.b32.xlu0 %v6748, 12
      %v10712 = vpop.permute.xlu0 %10711
      %10713 = vrot.lane.b32.xlu0 %v6750, 12
      %v10714 = vpop.permute.xlu0 %10713
      %10715 = vrot.lane.b32.xlu0 %v6749, 12
      %v10716 = vpop.permute.xlu0 %10715
      %v10722 = vsel %vm6334, %v10069, %v10490
      %v10723 = vsel %vm6334, %v10478, %v10492
      %v10724 = vsel %vm6334, %v10480, %v10494
      %v10725 = vsel %vm6334, %v10482, %v10496
      %v10726 = vsel %vm6334, %v10484, %v10498
      %v10727 = vsel %vm6342, %v10722, %v10505
      %v10728 = vsel %vm6342, %v10723, %v10507
      %v10729 = vsel %vm6342, %v10724, %v10509
      %v10730 = vsel %vm6342, %v10725, %v10511
      %v10731 = vsel %vm6342, %v10726, %v10513
      %v10732 = vsel %vm6350, %v10727, %v6187
      %v10733 = vsel %vm6350, %v10728, %v6189
      %v10734 = vsel %vm6350, %v10729, %v6486
      %v10735 = vsel %vm6350, %v10730, %v6488
      %v10736 = vsel %vm6350, %v10731, %v6487
      %v10737 = vsel %vm874, %v10390, %v10525
      %v10738 = vsel %vm874, %v10732, %v10527
      %v10739 = vsel %vm874, %v10733, %v10529
      %v10740 = vsel %vm874, %v10734, %v10531
      %v10741 = vsel %vm874, %v10735, %v10533
      %v10742 = vsel %vm874, %v10736, %v9554
      %v10743 = vsel %vm6365, %v10737, %v10540
      %v10744 = vsel %vm6365, %v10398, %v10542
      %v10745 = vsel %vm6365, %v10738, %v10544
      %v10746 = vsel %vm6365, %v10739, %v10546
      %v10747 = vsel %vm6365, %v10740, %v10548
      %v10748 = vsel %vm6365, %v10741, %v10550
      %v10749 = vsel %vm6365, %v10742, %v10552
      %v10750 = vsel %vm6373, %v10743, %v10561
      %v10751 = vsel %vm6373, %v10744, %v10563
      %v10752 = vsel %vm6373, %v10745, %v10565
      %v10753 = vsel %vm6373, %v10746, %v10567
      %v10754 = vsel %vm6373, %v10747, %v10569
      %v10755 = vsel %vm6373, %v10748, %v10571
      %v10756 = vsel %vm6373, %v10749, %v10573
      %v10757 = vsel %vm6381, %v10750, %v10195
      %v10758 = vsel %vm6381, %v10751, %v10197
      %v10759 = vsel %vm6381, %v10752, %v10199
      %v10760 = vsel %vm6381, %v10753, %v10582
      %v10761 = vsel %vm6381, %v10754, %v10584
      %v10762 = vsel %vm6381, %v10755, %v10586
      %v10763 = vsel %vm6381, %v10756, %v10588
      %v10764 = vsel %vm900, %v10757, %v10216
      %v10765 = vsel %vm900, %v10758, %v10218
      %v10766 = vsel %vm900, %v10759, %v10594
      %v10767 = vsel %vm900, %v10760, %v10596
      %v10768 = vsel %vm900, %v10761, %v10598
      %v10769 = vsel %vm900, %v10762, %v10600
      %v10770 = vsel %vm900, %v10763, %v10602
      %v10771 = vsel %vm6396, %v10764, %v10237
      %v10772 = vsel %vm6396, %v10765, %v10239
      %v10773 = vsel %vm6396, %v10766, %v10609
      %v10774 = vsel %vm6396, %v10767, %v10611
      %v10775 = vsel %vm6396, %v10768, %v10613
      %v10776 = vsel %vm6396, %v10769, %v10615
      %v10777 = vsel %vm6396, %v10770, %v10617
      %v10778 = vsel %vm6404, %v10771, %v10258
      %v10779 = vsel %vm6404, %v10772, %v10260
      %v10780 = vsel %vm6404, %v10773, %v10624
      %v10781 = vsel %vm6404, %v10774, %v10626
      %v10782 = vsel %vm6404, %v10775, %v10628
      %v10783 = vsel %vm6404, %v10776, %v10630
      %v10784 = vsel %vm6404, %v10777, %v10632
      %v10785 = vsel %vm6412, %v10778, %v10639
      %v10786 = vsel %vm6412, %v10779, %v10281
      %v10787 = vsel %vm6412, %v10780, %v10641
      %v10788 = vsel %vm6412, %v10781, %v10643
      %v10789 = vsel %vm6412, %v10782, %v10645
      %v10790 = vsel %vm6412, %v10783, %v10647
      %v10791 = vsel %vm6412, %v10784, %v9671
      %v10792 = vsel %vm925, %v10785, %v10654
      %v10793 = vsel %vm925, %v10786, %v10656
      %v10794 = vsel %vm925, %v10787, %v10658
      %v10795 = vsel %vm925, %v10788, %v10660
      %v10796 = vsel %vm925, %v10789, %v10662
      %v10797 = vsel %vm925, %v10790, %v10664
      %v10798 = vsel %vm925, %v10791, %v10666
      %v10799 = vsel %vm6427, %v10792, %v10675
      %v10800 = vsel %vm6427, %v10793, %v10677
      %v10801 = vsel %vm6427, %v10794, %v10679
      %v10802 = vsel %vm6427, %v10795, %v10681
      %v10803 = vsel %vm6427, %v10796, %v10683
      %v10804 = vsel %vm6427, %v10797, %v10685
      %v10805 = vsel %vm6427, %v10798, %v10687
      %v10806 = vsel %vm6435, %v10799, %v10339
      %v10807 = vsel %vm6435, %v10800, %v10341
      %v10808 = vsel %vm6435, %v10801, %v10343
      %v10809 = vsel %vm6435, %v10802, %v10696
      %v10810 = vsel %vm6435, %v10803, %v10698
      %v10811 = vsel %vm6435, %v10804, %v10700
      %v10812 = vsel %vm6435, %v10805, %v10702
      %v10813 = vsel %vm6443, %v10806, %v10360
      %v10814 = vsel %vm6443, %v10807, %v10362
      %v10815 = vsel %vm6443, %v10808, %v10708
      %v10816 = vsel %vm6443, %v10809, %v10710
      %v10817 = vsel %vm6443, %v10810, %v10712
      %v10818 = vsel %vm6443, %v10811, %v10714
      %v10819 = vsel %vm6443, %v10812, %v10716
      %10820 = vrot.lane.b32.xlu0 %v428, 125
      %v10821 = vpop.permute.xlu0 %10820
      %10822 = vrot.lane.b32.xlu0 %v429, 125
      %v10823 = vpop.permute.xlu0 %10822
      %10824 = vrot.lane.b32.xlu0 %v430, 125
      %v10825 = vpop.permute.xlu0 %10824
      %10826 = vrot.lane.b32.xlu0 %v431, 125
      %v10827 = vpop.permute.xlu0 %10826
      %10832 = vrot.lane.b32.xlu0 %v6605, 126
      %v10833 = vpop.permute.xlu0 %10832
      %10834 = vrot.lane.b32.xlu0 %v6607, 126
      %v10835 = vpop.permute.xlu0 %10834
      %10836 = vrot.lane.b32.xlu0 %v6748, 126
      %v10837 = vpop.permute.xlu0 %10836
      %10838 = vrot.lane.b32.xlu0 %v6750, 126
      %v10839 = vpop.permute.xlu0 %10838
      %10840 = vrot.lane.b32.xlu0 %v6749, 126
      %v10841 = vpop.permute.xlu0 %10840
      %10847 = vrot.lane.b32.xlu0 %v6466, 127
      %v10848 = vpop.permute.xlu0 %10847
      %10849 = vrot.lane.b32.xlu0 %v6624, 127
      %v10850 = vpop.permute.xlu0 %10849
      %10851 = vrot.lane.b32.xlu0 %v6626, 127
      %v10852 = vpop.permute.xlu0 %10851
      %10853 = vrot.lane.b32.xlu0 %v6880, 127
      %v10854 = vpop.permute.xlu0 %10853
      %10855 = vrot.lane.b32.xlu0 %v6882, 127
      %v10856 = vpop.permute.xlu0 %10855
      %10857 = vrot.lane.b32.xlu0 %v6881, 127
      %v10858 = vpop.permute.xlu0 %10857
      %10872 = vrot.lane.b32.xlu0 %v6932, 1
      %v10873 = vpop.permute.xlu0 %10872
      %10874 = vrot.lane.b32.xlu0 %v6934, 1
      %v10875 = vpop.permute.xlu0 %10874
      %10876 = vrot.lane.b32.xlu0 %v6936, 1
      %v10877 = vpop.permute.xlu0 %10876
      %10878 = vrot.lane.b32.xlu0 %v6938, 1
      %v10879 = vpop.permute.xlu0 %10878
      %10880 = vrot.lane.b32.xlu0 %v6940, 1
      %v10881 = vpop.permute.xlu0 %10880
      %10882 = vrot.lane.b32.xlu0 %v6942, 1
      %v10883 = vpop.permute.xlu0 %10882
      %10884 = vrot.lane.b32.xlu0 %v6944, 1
      %v10885 = vpop.permute.xlu0 %10884
      %10893 = vrot.lane.b32.xlu0 %v6530, 2
      %v10894 = vpop.permute.xlu0 %10893
      %10895 = vrot.lane.b32.xlu0 %v6686, 2
      %v10896 = vpop.permute.xlu0 %10895
      %10897 = vrot.lane.b32.xlu0 %v6688, 2
      %v10898 = vpop.permute.xlu0 %10897
      %10899 = vrot.lane.b32.xlu0 %v6967, 2
      %v10900 = vpop.permute.xlu0 %10899
      %10901 = vrot.lane.b32.xlu0 %v6969, 2
      %v10902 = vpop.permute.xlu0 %10901
      %10908 = vrot.lane.b32.xlu0 %v6565, 3
      %v10909 = vpop.permute.xlu0 %10908
      %10910 = vrot.lane.b32.xlu0 %v6711, 3
      %v10911 = vpop.permute.xlu0 %10910
      %10912 = vrot.lane.b32.xlu0 %v6713, 3
      %v10913 = vpop.permute.xlu0 %10912
      %10914 = vrot.lane.b32.xlu0 %v6986, 3
      %v10915 = vpop.permute.xlu0 %10914
      %10916 = vrot.lane.b32.xlu0 %v6988, 3
      %v10917 = vpop.permute.xlu0 %10916
      %10923 = vrot.lane.b32.xlu0 %v430, 4
      %v10924 = vpop.permute.xlu0 %10923
      %10925 = vrot.lane.b32.xlu0 %v431, 4
      %v10926 = vpop.permute.xlu0 %10925
      %10927 = vrot.lane.b32.xlu0 %v432, 4
      %v10928 = vpop.permute.xlu0 %10927
      %10929 = vrot.lane.b32.xlu0 %v433, 4
      %v10930 = vpop.permute.xlu0 %10929
      %10935 = vrot.lane.b32.xlu0 %v6748, 5
      %v10936 = vpop.permute.xlu0 %10935
      %10937 = vrot.lane.b32.xlu0 %v6750, 5
      %v10938 = vpop.permute.xlu0 %10937
      %10939 = vrot.lane.b32.xlu0 %v7017, 5
      %v10940 = vpop.permute.xlu0 %10939
      %10941 = vrot.lane.b32.xlu0 %v7019, 5
      %v10942 = vpop.permute.xlu0 %10941
      %10943 = vrot.lane.b32.xlu0 %v7018, 5
      %v10944 = vpop.permute.xlu0 %10943
      %10950 = vrot.lane.b32.xlu0 %v6623, 6
      %v10951 = vpop.permute.xlu0 %10950
      %10952 = vrot.lane.b32.xlu0 %v6880, 6
      %v10953 = vpop.permute.xlu0 %10952
      %10954 = vrot.lane.b32.xlu0 %v6882, 6
      %v10955 = vpop.permute.xlu0 %10954
      %10956 = vrot.lane.b32.xlu0 %v7036, 6
      %v10957 = vpop.permute.xlu0 %10956
      %10958 = vrot.lane.b32.xlu0 %v7038, 6
      %v10959 = vpop.permute.xlu0 %10958
      %10960 = vrot.lane.b32.xlu0 %v7037, 6
      %v10961 = vpop.permute.xlu0 %10960
      %10968 = vrot.lane.b32.xlu0 %v6663, 7
      %v10969 = vpop.permute.xlu0 %10968
      %10970 = vrot.lane.b32.xlu0 %v6904, 7
      %v10971 = vpop.permute.xlu0 %10970
      %10972 = vrot.lane.b32.xlu0 %v6906, 7
      %v10973 = vpop.permute.xlu0 %10972
      %10974 = vrot.lane.b32.xlu0 %v6908, 7
      %v10975 = vpop.permute.xlu0 %10974
      %10976 = vrot.lane.b32.xlu0 %v6910, 7
      %v10977 = vpop.permute.xlu0 %10976
      %10978 = vrot.lane.b32.xlu0 %v7060, 7
      %v10979 = vpop.permute.xlu0 %10978
      %10980 = vrot.lane.b32.xlu0 %v7062, 7
      %v10981 = vpop.permute.xlu0 %10980
      %10989 = vrot.lane.b32.xlu0 %v6935, 8
      %v10990 = vpop.permute.xlu0 %10989
      %10991 = vrot.lane.b32.xlu0 %v6938, 8
      %v10992 = vpop.permute.xlu0 %10991
      %10993 = vrot.lane.b32.xlu0 %v6940, 8
      %v10994 = vpop.permute.xlu0 %10993
      %10995 = vrot.lane.b32.xlu0 %v6942, 8
      %v10996 = vpop.permute.xlu0 %10995
      %10997 = vrot.lane.b32.xlu0 %v6944, 8
      %v10998 = vpop.permute.xlu0 %10997
      %10999 = vrot.lane.b32.xlu0 %v7085, 8
      %v11000 = vpop.permute.xlu0 %10999
      %11001 = vrot.lane.b32.xlu0 %v7087, 8
      %v11002 = vpop.permute.xlu0 %11001
      %11010 = vrot.lane.b32.xlu0 %v6534, 9
      %v11011 = vpop.permute.xlu0 %11010
      %11012 = vrot.lane.b32.xlu0 %v6967, 9
      %v11013 = vpop.permute.xlu0 %11012
      %11014 = vrot.lane.b32.xlu0 %v6969, 9
      %v11015 = vpop.permute.xlu0 %11014
      %11016 = vrot.lane.b32.xlu0 %v7110, 9
      %v11017 = vpop.permute.xlu0 %11016
      %11018 = vrot.lane.b32.xlu0 %v7112, 9
      %v11019 = vpop.permute.xlu0 %11018
      %11025 = vrot.lane.b32.xlu0 %v6569, 10
      %v11026 = vpop.permute.xlu0 %11025
      %11027 = vrot.lane.b32.xlu0 %v6986, 10
      %v11028 = vpop.permute.xlu0 %11027
      %11029 = vrot.lane.b32.xlu0 %v6988, 10
      %v11030 = vpop.permute.xlu0 %11029
      %11031 = vrot.lane.b32.xlu0 %v7129, 10
      %v11032 = vpop.permute.xlu0 %11031
      %11033 = vrot.lane.b32.xlu0 %v7131, 10
      %v11034 = vpop.permute.xlu0 %11033
      %11040 = vrot.lane.b32.xlu0 %v432, 11
      %v11041 = vpop.permute.xlu0 %11040
      %11042 = vrot.lane.b32.xlu0 %v433, 11
      %v11043 = vpop.permute.xlu0 %11042
      %11044 = vrot.lane.b32.xlu0 %v434, 11
      %v11045 = vpop.permute.xlu0 %11044
      %11046 = vrot.lane.b32.xlu0 %v435, 11
      %v11047 = vpop.permute.xlu0 %11046
      %11052 = vrot.lane.b32.xlu0 %v7017, 12
      %v11053 = vpop.permute.xlu0 %11052
      %11054 = vrot.lane.b32.xlu0 %v7019, 12
      %v11055 = vpop.permute.xlu0 %11054
      %11056 = vrot.lane.b32.xlu0 %v7160, 12
      %v11057 = vpop.permute.xlu0 %11056
      %11058 = vrot.lane.b32.xlu0 %v7162, 12
      %v11059 = vpop.permute.xlu0 %11058
      %11060 = vrot.lane.b32.xlu0 %v7161, 12
      %v11061 = vpop.permute.xlu0 %11060
      %v11067 = vsel %vm6334, %v10484, %v10833
      %v11068 = vsel %vm6334, %v10821, %v10835
      %v11069 = vsel %vm6334, %v10823, %v10837
      %v11070 = vsel %vm6334, %v10825, %v10839
      %v11071 = vsel %vm6334, %v10827, %v10841
      %v11072 = vsel %vm6342, %v10724, %v10848
      %v11073 = vsel %vm6342, %v11067, %v10850
      %v11074 = vsel %vm6342, %v11068, %v10852
      %v11075 = vsel %vm6342, %v11069, %v10854
      %v11076 = vsel %vm6342, %v11070, %v10856
      %v11077 = vsel %vm6342, %v11071, %v10858
      %v11078 = vsel %vm6350, %v11072, %v6506
      %v11079 = vsel %vm6350, %v10730, %v6662
      %v11080 = vsel %vm6350, %v11073, %v6664
      %v11081 = vsel %vm6350, %v11074, %v6904
      %v11082 = vsel %vm6350, %v11075, %v6906
      %v11083 = vsel %vm6350, %v11076, %v6908
      %v11084 = vsel %vm6350, %v11077, %v6910
      %v11085 = vsel %vm874, %v11078, %v10873
      %v11086 = vsel %vm874, %v11079, %v10875
      %v11087 = vsel %vm874, %v11080, %v10877
      %v11088 = vsel %vm874, %v11081, %v10879
      %v11089 = vsel %vm874, %v11082, %v10881
      %v11090 = vsel %vm874, %v11083, %v10883
      %v11091 = vsel %vm874, %v11084, %v10885
      %v11092 = vsel %vm6365, %v11085, %v10894
      %v11093 = vsel %vm6365, %v11086, %v10550
      %v11094 = vsel %vm6365, %v11087, %v10552
      %v11095 = vsel %vm6365, %v11088, %v10896
      %v11096 = vsel %vm6365, %v11089, %v10898
      %v11097 = vsel %vm6365, %v11090, %v10900
      %v11098 = vsel %vm6365, %v11091, %v10902
      %v11099 = vsel %vm6373, %v11092, %v10909
      %v11100 = vsel %vm6373, %v11093, %v10571
      %v11101 = vsel %vm6373, %v11094, %v10573
      %v11102 = vsel %vm6373, %v11095, %v10911
      %v11103 = vsel %vm6373, %v11096, %v10913
      %v11104 = vsel %vm6373, %v11097, %v10915
      %v11105 = vsel %vm6373, %v11098, %v10917
      %v11106 = vsel %vm6381, %v11099, %v10584
      %v11107 = vsel %vm6381, %v11100, %v10586
      %v11108 = vsel %vm6381, %v11101, %v10588
      %v11109 = vsel %vm6381, %v11102, %v10924
      %v11110 = vsel %vm6381, %v11103, %v10926
      %v11111 = vsel %vm6381, %v11104, %v10928
      %v11112 = vsel %vm6381, %v11105, %v10930
      %v11113 = vsel %vm900, %v11106, %v10598
      %v11114 = vsel %vm900, %v11107, %v10600
      %v11115 = vsel %vm900, %v11108, %v10936
      %v11116 = vsel %vm900, %v11109, %v10938
      %v11117 = vsel %vm900, %v11110, %v10940
      %v11118 = vsel %vm900, %v11111, %v10942
      %v11119 = vsel %vm900, %v11112, %v10944
      %v11120 = vsel %vm6396, %v11113, %v10951
      %v11121 = vsel %vm6396, %v11114, %v10615
      %v11122 = vsel %vm6396, %v11115, %v10953
      %v11123 = vsel %vm6396, %v11116, %v10955
      %v11124 = vsel %vm6396, %v11117, %v10957
      %v11125 = vsel %vm6396, %v11118, %v10959
      %v11126 = vsel %vm6396, %v11119, %v10961
      %v11127 = vsel %vm6404, %v11120, %v10969
      %v11128 = vsel %vm6404, %v11121, %v10971
      %v11129 = vsel %vm6404, %v11122, %v10973
      %v11130 = vsel %vm6404, %v11123, %v10975
      %v11131 = vsel %vm6404, %v11124, %v10977
      %v11132 = vsel %vm6404, %v11125, %v10979
      %v11133 = vsel %vm6404, %v11126, %v10981
      %v11134 = vsel %vm6412, %v11127, %v10990
      %v11135 = vsel %vm6412, %v11128, %v10992
      %v11136 = vsel %vm6412, %v11129, %v10994
      %v11137 = vsel %vm6412, %v11130, %v10996
      %v11138 = vsel %vm6412, %v11131, %v10998
      %v11139 = vsel %vm6412, %v11132, %v11000
      %v11140 = vsel %vm6412, %v11133, %v11002
      %v11141 = vsel %vm925, %v11134, %v11011
      %v11142 = vsel %vm925, %v11135, %v10664
      %v11143 = vsel %vm925, %v11136, %v10666
      %v11144 = vsel %vm925, %v11137, %v11013
      %v11145 = vsel %vm925, %v11138, %v11015
      %v11146 = vsel %vm925, %v11139, %v11017
      %v11147 = vsel %vm925, %v11140, %v11019
      %v11148 = vsel %vm6427, %v11141, %v11026
      %v11149 = vsel %vm6427, %v11142, %v10685
      %v11150 = vsel %vm6427, %v11143, %v10687
      %v11151 = vsel %vm6427, %v11144, %v11028
      %v11152 = vsel %vm6427, %v11145, %v11030
      %v11153 = vsel %vm6427, %v11146, %v11032
      %v11154 = vsel %vm6427, %v11147, %v11034
      %v11155 = vsel %vm6435, %v11148, %v10698
      %v11156 = vsel %vm6435, %v11149, %v10700
      %v11157 = vsel %vm6435, %v11150, %v10702
      %v11158 = vsel %vm6435, %v11151, %v11041
      %v11159 = vsel %vm6435, %v11152, %v11043
      %v11160 = vsel %vm6435, %v11153, %v11045
      %v11161 = vsel %vm6435, %v11154, %v11047
      %v11162 = vsel %vm6443, %v11155, %v10712
      %v11163 = vsel %vm6443, %v11156, %v10714
      %v11164 = vsel %vm6443, %v11157, %v11053
      %v11165 = vsel %vm6443, %v11158, %v11055
      %v11166 = vsel %vm6443, %v11159, %v11057
      %v11167 = vsel %vm6443, %v11160, %v11059
      %v11168 = vsel %vm6443, %v11161, %v11061
      %11169 = vrot.lane.b32.xlu0 %v432, 125
      %v11170 = vpop.permute.xlu0 %11169
      %11171 = vrot.lane.b32.xlu0 %v433, 125
      %v11172 = vpop.permute.xlu0 %11171
      %11173 = vrot.lane.b32.xlu0 %v434, 125
      %v11174 = vpop.permute.xlu0 %11173
      %11175 = vrot.lane.b32.xlu0 %v435, 125
      %v11176 = vpop.permute.xlu0 %11175
      %v11181 = vsel %vm6334, %v10825, 0.0
      %v11182 = vsel %vm6334, %v10827, 0.0
      %v11183 = vsel %vm6334, %v11170, 0.0
      %v11184 = vsel %vm6334, %v11172, 0.0
      %v11185 = vsel %vm6334, %v11174, 0.0
      %v11186 = vsel %vm6334, %v11176, 0.0
      %v11194 = vrot.slane %v10813, 2
      %v11195 = vrot.slane %v10814, 2
      %v11196 = vsel %vm5941, %v11194, %v11195
      %v11197 = vrot.slane %v10815, 2
      %v11198 = vsel %vm5941, %v11195, %v11197
      %v11199 = vrot.slane %v10816, 2
      %v11200 = vsel %vm5941, %v11197, %v11199
      %v11201 = vrot.slane %v10817, 2
      %v11202 = vsel %vm5941, %v11199, %v11201
      %v11203 = vrot.slane %v10818, 2
      %v11204 = vsel %vm5941, %v11201, %v11203
      %v11205 = vrot.slane %v10819, 2
      %v11206 = vsel %vm5941, %v11203, %v11205
      %11207 = vrot.lane.b32.xlu0 %v11196, 16
      %v11208 = vpop.permute.xlu0 %11207
      %11209 = vrot.lane.b32.xlu0 %v11198, 16
      %v11210 = vpop.permute.xlu0 %11209
      %11211 = vrot.lane.b32.xlu0 %v11200, 16
      %v11212 = vpop.permute.xlu0 %11211
      %11213 = vrot.lane.b32.xlu0 %v11202, 16
      %v11214 = vpop.permute.xlu0 %11213
      %11215 = vrot.lane.b32.xlu0 %v11204, 16
      %v11216 = vpop.permute.xlu0 %11215
      %11217 = vrot.lane.b32.xlu0 %v11206, 16
      %v11218 = vpop.permute.xlu0 %11217
      %11219 = vrot.lane.b32.xlu0 %v11205, 16
      %v11220 = vpop.permute.xlu0 %11219
      %v11235 = vrot.slane %v11162, 4
      %v11236 = vrot.slane %v11163, 4
      %v11237 = vsel %vm6011, %v11235, %v11236
      %v11238 = vrot.slane %v11164, 4
      %v11239 = vsel %vm6011, %v11236, %v11238
      %v11240 = vrot.slane %v11165, 4
      %v11241 = vsel %vm6011, %v11238, %v11240
      %v11242 = vrot.slane %v11166, 4
      %v11243 = vsel %vm6011, %v11240, %v11242
      %v11244 = vrot.slane %v11167, 4
      %v11245 = vsel %vm6011, %v11242, %v11244
      %v11246 = vrot.slane %v11168, 4
      %v11247 = vsel %vm6011, %v11244, %v11246
      %11248 = vrot.lane.b32.xlu0 %v11237, 32
      %v11249 = vpop.permute.xlu0 %11248
      %11250 = vrot.lane.b32.xlu0 %v11239, 32
      %v11251 = vpop.permute.xlu0 %11250
      %11252 = vrot.lane.b32.xlu0 %v11241, 32
      %v11253 = vpop.permute.xlu0 %11252
      %11254 = vrot.lane.b32.xlu0 %v11243, 32
      %v11255 = vpop.permute.xlu0 %11254
      %11256 = vrot.lane.b32.xlu0 %v11245, 32
      %v11257 = vpop.permute.xlu0 %11256
      %11258 = vrot.lane.b32.xlu0 %v11247, 32
      %v11259 = vpop.permute.xlu0 %11258
      %11260 = vrot.lane.b32.xlu0 %v11246, 32
      %v11261 = vpop.permute.xlu0 %11260
      %v11275 = vrot.slane %v11181, 6
      %v11276 = vrot.slane %v11182, 6
      %v11277 = vsel %vm1124, %v11275, %v11276
      %v11278 = vrot.slane %v11183, 6
      %v11279 = vsel %vm1124, %v11276, %v11278
      %v11280 = vrot.slane %v11184, 6
      %v11281 = vsel %vm1124, %v11278, %v11280
      %v11282 = vrot.slane %v11185, 6
      %v11283 = vsel %vm1124, %v11280, %v11282
      %v11284 = vrot.slane %v11186, 6
      %v11285 = vsel %vm1124, %v11282, %v11284
      %11286 = vrot.lane.b32.xlu0 %v11275, 48
      %v11287 = vpop.permute.xlu0 %11286
      %11288 = vrot.lane.b32.xlu0 %v11277, 48
      %v11289 = vpop.permute.xlu0 %11288
      %11290 = vrot.lane.b32.xlu0 %v11279, 48
      %v11291 = vpop.permute.xlu0 %11290
      %11292 = vrot.lane.b32.xlu0 %v11281, 48
      %v11293 = vpop.permute.xlu0 %11292
      %11294 = vrot.lane.b32.xlu0 %v11283, 48
      %v11295 = vpop.permute.xlu0 %11294
      %11296 = vrot.lane.b32.xlu0 %v11285, 48
      %v11297 = vpop.permute.xlu0 %11296
      %11298 = vrot.lane.b32.xlu0 %v11284, 48
      %v11299 = vpop.permute.xlu0 %11298
      %v11307 = vsel %vm950, %v10470, %v11208
      %v11308 = vsel %vm950, %v10471, %v11210
      %v11309 = vsel %vm950, %v10472, %v11212
      %v11310 = vsel %vm950, %v10473, %v11214
      %v11311 = vsel %vm950, %v10474, %v11216
      %v11312 = vsel %vm950, %v10475, %v11218
      %v11313 = vsel %vm950, %v10476, %v11220
      %v11314 = vsel %vm1050, %v11307, %v11249
      %v11315 = vsel %vm1050, %v11308, %v11251
      %v11316 = vsel %vm1050, %v11309, %v11253
      %v11317 = vsel %vm1050, %v11310, %v11255
      %v11318 = vsel %vm1050, %v11311, %v11257
      %v11319 = vsel %vm1050, %v11312, %v11259
      %v11320 = vsel %vm1050, %v11313, %v11261
      %v11321 = vsel %vm7420, %v11314, %v11287
      %v11322 = vsel %vm7420, %v11315, %v11289
      %v11323 = vsel %vm7420, %v11316, %v11291
      %v11324 = vsel %vm7420, %v11317, %v11293
      %v11325 = vsel %vm7420, %v11318, %v11295
      %v11326 = vsel %vm7420, %v11319, %v11297
      %v11327 = vsel %vm7420, %v11320, %v11299
      %v11335 = vrot.slane %v11321, 2
      %v11336 = vrot.slane %v11322, 2
      %v11337 = vsel %vm5941, %v11335, %v11336
      %v11338 = vrot.slane %v11323, 2
      %v11339 = vsel %vm5941, %v11336, %v11338
      %v11340 = vrot.slane %v11324, 2
      %v11341 = vsel %vm5941, %v11338, %v11340
      %v11342 = vrot.slane %v11325, 2
      %v11343 = vsel %vm5941, %v11340, %v11342
      %v11344 = vrot.slane %v11326, 2
      %v11345 = vsel %vm5941, %v11342, %v11344
      %v11346 = vrot.slane %v11327, 2
      %v11347 = vsel %vm5941, %v11344, %v11346
      %11348 = vrot.lane.b32.xlu0 %v11337, 64
      %v11349 = vpop.permute.xlu0 %11348
      %11350 = vrot.lane.b32.xlu0 %v11339, 64
      %v11351 = vpop.permute.xlu0 %11350
      %11352 = vrot.lane.b32.xlu0 %v11341, 64
      %v11353 = vpop.permute.xlu0 %11352
      %11354 = vrot.lane.b32.xlu0 %v11343, 64
      %v11355 = vpop.permute.xlu0 %11354
      %11356 = vrot.lane.b32.xlu0 %v11345, 64
      %v11357 = vpop.permute.xlu0 %11356
      %11358 = vrot.lane.b32.xlu0 %v11347, 64
      %v11359 = vpop.permute.xlu0 %11358
      %v11366 = vsel %vm1508, %v7437, %v11349
      %v11367 = vsel %vm1508, %v7439, %v11351
      %v11368 = vsel %vm1508, %v7441, %v11353
      %v11369 = vsel %vm1508, %v7443, %v11355
      %v11370 = vsel %vm1508, %v7445, %v11357
      %v11371 = vsel %vm1508, %v7447, %v11359
      %v11372 = vsel %vm1508, %v5405, -inf
      %11373 = vmax.xlane.f32.xlu0 %v11372
      %v11374 = vpop.xlane.xlu0 %11373
      %v11375 = vsel %vm1508, %v5407, -inf
      %11376 = vmax.xlane.f32.xlu0 %v11375
      %v11377 = vpop.xlane.xlu0 %11376
      %v11378 = vsel %vm1508, %v5410, -inf
      %11379 = vmax.xlane.f32.xlu0 %v11378
      %v11380 = vpop.xlane.xlu0 %11379
      %v11381 = vsel %vm1508, %v5412, -inf
      %11382 = vmax.xlane.f32.xlu0 %v11381
      %v11383 = vpop.xlane.xlu0 %11382
      %v11384 = vsel %vm1508, %v5415, -inf
      %11385 = vmax.xlane.f32.xlu0 %v11384
      %v11386 = vpop.xlane.xlu0 %11385
      %v11387 = vsel %vm1508, %v5417, -inf
      %11388 = vmax.xlane.f32.xlu0 %v11387
      %v11389 = vpop.xlane.xlu0 %11388
      %v11390 = vsub.f32 %v5405, %v11374
      %v11391 = vsub.f32 %v5407, %v11377
      %v11392 = vsub.f32 %v5410, %v11380
      %v11393 = vsub.f32 %v5412, %v11383
      %v11394 = vsub.f32 %v5415, %v11386
      %v11395 = vsub.f32 %v5417, %v11389
      %v11396 = vmul.f32 %v11390, 1.442695
      %v11397 = vpow.pop %v11396
      %v11398 = vmul.f32 %v11391, 1.442695
      %v11399 = vpow.pop %v11398
      %v11400 = vmul.f32 %v11392, 1.442695
      %v11401 = vpow.pop %v11400
      %v11402 = vmul.f32 %v11393, 1.442695
      %v11403 = vpow.pop %v11402
      %v11404 = vmul.f32 %v11394, 1.442695
      %v11405 = vpow.pop %v11404
      %v11406 = vmul.f32 %v11395, 1.442695
      %v11407 = vpow.pop %v11406
      %v11408 = vsel %vm1508, %v11397, 0.0
      %11409 = vadd.xlane.f32.xlu0 %v11408
      %v11410 = vpop.xlane.xlu0 %11409
      %v11411 = vsel %vm1508, %v11399, 0.0
      %11412 = vadd.xlane.f32.xlu0 %v11411
      %v11413 = vpop.xlane.xlu0 %11412
      %v11414 = vsel %vm1508, %v11401, 0.0
      %11415 = vadd.xlane.f32.xlu0 %v11414
      %v11416 = vpop.xlane.xlu0 %11415
      %v11417 = vsel %vm1508, %v11403, 0.0
      %11418 = vadd.xlane.f32.xlu0 %v11417
      %v11419 = vpop.xlane.xlu0 %11418
      %v11420 = vsel %vm1508, %v11405, 0.0
      %11421 = vadd.xlane.f32.xlu0 %v11420
      %v11422 = vpop.xlane.xlu0 %11421
      %v11423 = vsel %vm1508, %v11407, 0.0
      %11424 = vadd.xlane.f32.xlu0 %v11423
      %v11425 = vpop.xlane.xlu0 %11424
      %v11426 = vrcp.pop %v11410
      %v11427 = vrcp.pop %v11413
      %v11428 = vrcp.pop %v11416
      %v11429 = vrcp.pop %v11419
      %v11430 = vrcp.pop %v11422
      %v11431 = vrcp.pop %v11425
      %v11432 = vmul.f32 %v11397, %v11426
      %v11433 = vmul.f32 %v11399, %v11427
      %v11434 = vmul.f32 %v11401, %v11428
      %v11435 = vmul.f32 %v11403, %v11429
      %v11436 = vmul.f32 %v11405, %v11430
      %v11437 = vmul.f32 %v11407, %v11431
      %v11438 = vmul.f32 %v11432, %v10039
      %v11439 = vmul.f32 %v11433, %v10041
      %v11440 = vmul.f32 %v11434, %v10043
      %v11441 = vmul.f32 %v11435, %v10045
      %v11442 = vmul.f32 %v11436, %v10047
      %v11443 = vmul.f32 %v11437, %v10049
      %v11444 = vsel %vm1508, %v11438, 0.0
      %11445 = vadd.xlane.f32.xlu0 %v11444
      %v11446 = vpop.xlane.xlu0 %11445
      %v11447 = vsel %vm1508, %v11439, 0.0
      %11448 = vadd.xlane.f32.xlu0 %v11447
      %v11449 = vpop.xlane.xlu0 %11448
      %v11450 = vsel %vm1508, %v11440, 0.0
      %11451 = vadd.xlane.f32.xlu0 %v11450
      %v11452 = vpop.xlane.xlu0 %11451
      %v11453 = vsel %vm1508, %v11441, 0.0
      %11454 = vadd.xlane.f32.xlu0 %v11453
      %v11455 = vpop.xlane.xlu0 %11454
      %v11456 = vsel %vm1508, %v11442, 0.0
      %11457 = vadd.xlane.f32.xlu0 %v11456
      %v11458 = vpop.xlane.xlu0 %11457
      %v11459 = vsel %vm1508, %v11443, 0.0
      %11460 = vadd.xlane.f32.xlu0 %v11459
      %v11461 = vpop.xlane.xlu0 %11460
      %vm11462 = vcmask 1048064
      %v11463 = vsel %vm11462, %v5405, -inf
      %11464 = vmax.xlane.f32.xlu0 %v11463
      %v11465 = vpop.xlane.xlu0 %11464
      %v11466 = vsel %vm11462, %v5407, -inf
      %11467 = vmax.xlane.f32.xlu0 %v11466
      %v11468 = vpop.xlane.xlu0 %11467
      %v11469 = vsel %vm11462, %v5410, -inf
      %11470 = vmax.xlane.f32.xlu0 %v11469
      %v11471 = vpop.xlane.xlu0 %11470
      %v11472 = vsel %vm11462, %v5412, -inf
      %11473 = vmax.xlane.f32.xlu0 %v11472
      %v11474 = vpop.xlane.xlu0 %11473
      %v11475 = vsel %vm11462, %v5415, -inf
      %11476 = vmax.xlane.f32.xlu0 %v11475
      %v11477 = vpop.xlane.xlu0 %11476
      %v11478 = vsel %vm11462, %v5417, -inf
      %11479 = vmax.xlane.f32.xlu0 %v11478
      %v11480 = vpop.xlane.xlu0 %11479
      %v11481 = vsub.f32 %v5405, %v11465
      %v11482 = vsub.f32 %v5407, %v11468
      %v11483 = vsub.f32 %v5410, %v11471
      %v11484 = vsub.f32 %v5412, %v11474
      %v11485 = vsub.f32 %v5415, %v11477
      %v11486 = vsub.f32 %v5417, %v11480
      %v11487 = vmul.f32 %v11481, 1.442695
      %v11488 = vpow.pop %v11487
      %v11489 = vmul.f32 %v11482, 1.442695
      %v11490 = vpow.pop %v11489
      %v11491 = vmul.f32 %v11483, 1.442695
      %v11492 = vpow.pop %v11491
      %v11493 = vmul.f32 %v11484, 1.442695
      %v11494 = vpow.pop %v11493
      %v11495 = vmul.f32 %v11485, 1.442695
      %v11496 = vpow.pop %v11495
      %v11497 = vmul.f32 %v11486, 1.442695
      %v11498 = vpow.pop %v11497
      %11505 = vrot.lane.b32.xlu0 %v11488, 64
      %v11506 = vpop.permute.xlu0 %11505
      %11507 = vrot.lane.b32.xlu0 %v11490, 64
      %v11508 = vpop.permute.xlu0 %11507
      %11509 = vrot.lane.b32.xlu0 %v11492, 64
      %v11510 = vpop.permute.xlu0 %11509
      %11511 = vrot.lane.b32.xlu0 %v11494, 64
      %v11512 = vpop.permute.xlu0 %11511
      %11513 = vrot.lane.b32.xlu0 %v11496, 64
      %v11514 = vpop.permute.xlu0 %11513
      %11515 = vrot.lane.b32.xlu0 %v11498, 64
      %v11516 = vpop.permute.xlu0 %11515
      %v11523 = vsel %vm1508, %v11506, 0.0
      %11524 = vadd.xlane.f32.xlu0 %v11523
      %v11525 = vpop.xlane.xlu0 %11524
      %v11526 = vsel %vm1508, %v11508, 0.0
      %11527 = vadd.xlane.f32.xlu0 %v11526
      %v11528 = vpop.xlane.xlu0 %11527
      %v11529 = vsel %vm1508, %v11510, 0.0
      %11530 = vadd.xlane.f32.xlu0 %v11529
      %v11531 = vpop.xlane.xlu0 %11530
      %v11532 = vsel %vm1508, %v11512, 0.0
      %11533 = vadd.xlane.f32.xlu0 %v11532
      %v11534 = vpop.xlane.xlu0 %11533
      %v11535 = vsel %vm1508, %v11514, 0.0
      %11536 = vadd.xlane.f32.xlu0 %v11535
      %v11537 = vpop.xlane.xlu0 %11536
      %v11538 = vsel %vm1508, %v11516, 0.0
      %11539 = vadd.xlane.f32.xlu0 %v11538
      %v11540 = vpop.xlane.xlu0 %11539
      %v11541 = vrcp.pop %v11525
      %v11542 = vrcp.pop %v11528
      %v11543 = vrcp.pop %v11531
      %v11544 = vrcp.pop %v11534
      %v11545 = vrcp.pop %v11537
      %v11546 = vrcp.pop %v11540
      %v11547 = vmul.f32 %v11488, %v11541
      %v11548 = vmul.f32 %v11490, %v11542
      %v11549 = vmul.f32 %v11492, %v11543
      %v11550 = vmul.f32 %v11494, %v11544
      %v11551 = vmul.f32 %v11496, %v11545
      %v11552 = vmul.f32 %v11498, %v11546
      %11553 = vrot.lane.b32.xlu0 %v10039, 64
      %v11554 = vpop.permute.xlu0 %11553
      %11555 = vrot.lane.b32.xlu0 %v10041, 64
      %v11556 = vpop.permute.xlu0 %11555
      %11557 = vrot.lane.b32.xlu0 %v10043, 64
      %v11558 = vpop.permute.xlu0 %11557
      %11559 = vrot.lane.b32.xlu0 %v10045, 64
      %v11560 = vpop.permute.xlu0 %11559
      %11561 = vrot.lane.b32.xlu0 %v10047, 64
      %v11562 = vpop.permute.xlu0 %11561
      %11563 = vrot.lane.b32.xlu0 %v10049, 64
      %v11564 = vpop.permute.xlu0 %11563
      %v11571 = vmul.f32 %v11547, %v11554
      %v11572 = vmul.f32 %v11548, %v11556
      %v11573 = vmul.f32 %v11549, %v11558
      %v11574 = vmul.f32 %v11550, %v11560
      %v11575 = vmul.f32 %v11551, %v11562
      %v11576 = vmul.f32 %v11552, %v11564
      %11583 = vrot.lane.b32.xlu0 %v11571, 64
      %v11584 = vpop.permute.xlu0 %11583
      %11585 = vrot.lane.b32.xlu0 %v11572, 64
      %v11586 = vpop.permute.xlu0 %11585
      %11587 = vrot.lane.b32.xlu0 %v11573, 64
      %v11588 = vpop.permute.xlu0 %11587
      %11589 = vrot.lane.b32.xlu0 %v11574, 64
      %v11590 = vpop.permute.xlu0 %11589
      %11591 = vrot.lane.b32.xlu0 %v11575, 64
      %v11592 = vpop.permute.xlu0 %11591
      %11593 = vrot.lane.b32.xlu0 %v11576, 64
      %v11594 = vpop.permute.xlu0 %11593
      %v11601 = vsel %vm1508, %v11584, 0.0
      %11602 = vadd.xlane.f32.xlu0 %v11601
      %v11603 = vpop.xlane.xlu0 %11602
      %v11604 = vsel %vm1508, %v11586, 0.0
      %11605 = vadd.xlane.f32.xlu0 %v11604
      %v11606 = vpop.xlane.xlu0 %11605
      %v11607 = vsel %vm1508, %v11588, 0.0
      %11608 = vadd.xlane.f32.xlu0 %v11607
      %v11609 = vpop.xlane.xlu0 %11608
      %v11610 = vsel %vm1508, %v11590, 0.0
      %11611 = vadd.xlane.f32.xlu0 %v11610
      %v11612 = vpop.xlane.xlu0 %11611
      %v11613 = vsel %vm1508, %v11592, 0.0
      %11614 = vadd.xlane.f32.xlu0 %v11613
      %v11615 = vpop.xlane.xlu0 %11614
      %v11616 = vsel %vm1508, %v11594, 0.0
      %11617 = vadd.xlane.f32.xlu0 %v11616
      %v11618 = vpop.xlane.xlu0 %11617
      %v11619 = vsel %vm1508, %v5525, -inf
      %11620 = vmax.xlane.f32.xlu0 %v11619
      %v11621 = vpop.xlane.xlu0 %11620
      %v11622 = vsel %vm1508, %v5527, -inf
      %11623 = vmax.xlane.f32.xlu0 %v11622
      %v11624 = vpop.xlane.xlu0 %11623
      %v11625 = vsel %vm1508, %v5530, -inf
      %11626 = vmax.xlane.f32.xlu0 %v11625
      %v11627 = vpop.xlane.xlu0 %11626
      %v11628 = vsel %vm1508, %v5532, -inf
      %11629 = vmax.xlane.f32.xlu0 %v11628
      %v11630 = vpop.xlane.xlu0 %11629
      %v11631 = vsel %vm1508, %v5535, -inf
      %11632 = vmax.xlane.f32.xlu0 %v11631
      %v11633 = vpop.xlane.xlu0 %11632
      %v11634 = vsel %vm1508, %v5537, -inf
      %11635 = vmax.xlane.f32.xlu0 %v11634
      %v11636 = vpop.xlane.xlu0 %11635
      %v11637 = vsub.f32 %v5525, %v11621
      %v11638 = vsub.f32 %v5527, %v11624
      %v11639 = vsub.f32 %v5530, %v11627
      %v11640 = vsub.f32 %v5532, %v11630
      %v11641 = vsub.f32 %v5535, %v11633
      %v11642 = vsub.f32 %v5537, %v11636
      %v11643 = vmul.f32 %v11637, 1.442695
      %v11644 = vpow.pop %v11643
      %v11645 = vmul.f32 %v11638, 1.442695
      %v11646 = vpow.pop %v11645
      %v11647 = vmul.f32 %v11639, 1.442695
      %v11648 = vpow.pop %v11647
      %v11649 = vmul.f32 %v11640, 1.442695
      %v11650 = vpow.pop %v11649
      %v11651 = vmul.f32 %v11641, 1.442695
      %v11652 = vpow.pop %v11651
      %v11653 = vmul.f32 %v11642, 1.442695
      %v11654 = vpow.pop %v11653
      %v11655 = vsel %vm1508, %v11644, 0.0
      %11656 = vadd.xlane.f32.xlu0 %v11655
      %v11657 = vpop.xlane.xlu0 %11656
      %v11658 = vsel %vm1508, %v11646, 0.0
      %11659 = vadd.xlane.f32.xlu0 %v11658
      %v11660 = vpop.xlane.xlu0 %11659
      %v11661 = vsel %vm1508, %v11648, 0.0
      %11662 = vadd.xlane.f32.xlu0 %v11661
      %v11663 = vpop.xlane.xlu0 %11662
      %v11664 = vsel %vm1508, %v11650, 0.0
      %11665 = vadd.xlane.f32.xlu0 %v11664
      %v11666 = vpop.xlane.xlu0 %11665
      %v11667 = vsel %vm1508, %v11652, 0.0
      %11668 = vadd.xlane.f32.xlu0 %v11667
      %v11669 = vpop.xlane.xlu0 %11668
      %v11670 = vsel %vm1508, %v11654, 0.0
      %11671 = vadd.xlane.f32.xlu0 %v11670
      %v11672 = vpop.xlane.xlu0 %11671
      %v11673 = vrcp.pop %v11657
      %v11674 = vrcp.pop %v11660
      %v11675 = vrcp.pop %v11663
      %v11676 = vrcp.pop %v11666
      %v11677 = vrcp.pop %v11669
      %v11678 = vrcp.pop %v11672
      %v11679 = vmul.f32 %v11644, %v11673
      %v11680 = vmul.f32 %v11646, %v11674
      %v11681 = vmul.f32 %v11648, %v11675
      %v11682 = vmul.f32 %v11650, %v11676
      %v11683 = vmul.f32 %v11652, %v11677
      %v11684 = vmul.f32 %v11654, %v11678
      %v11685 = vmul.f32 %v11679, %v10039
      %v11686 = vmul.f32 %v11680, %v10041
      %v11687 = vmul.f32 %v11681, %v10043
      %v11688 = vmul.f32 %v11682, %v10045
      %v11689 = vmul.f32 %v11683, %v10047
      %v11690 = vmul.f32 %v11684, %v10049
      %v11691 = vsel %vm1508, %v11685, 0.0
      %11692 = vadd.xlane.f32.xlu0 %v11691
      %v11693 = vpop.xlane.xlu0 %11692
      %v11694 = vsel %vm1508, %v11686, 0.0
      %11695 = vadd.xlane.f32.xlu0 %v11694
      %v11696 = vpop.xlane.xlu0 %11695
      %v11697 = vsel %vm1508, %v11687, 0.0
      %11698 = vadd.xlane.f32.xlu0 %v11697
      %v11699 = vpop.xlane.xlu0 %11698
      %v11700 = vsel %vm1508, %v11688, 0.0
      %11701 = vadd.xlane.f32.xlu0 %v11700
      %v11702 = vpop.xlane.xlu0 %11701
      %v11703 = vsel %vm1508, %v11689, 0.0
      %11704 = vadd.xlane.f32.xlu0 %v11703
      %v11705 = vpop.xlane.xlu0 %11704
      %v11706 = vsel %vm1508, %v11690, 0.0
      %11707 = vadd.xlane.f32.xlu0 %v11706
      %v11708 = vpop.xlane.xlu0 %11707
      %v11709 = vsel %vm11462, %v5525, -inf
      %11710 = vmax.xlane.f32.xlu0 %v11709
      %v11711 = vpop.xlane.xlu0 %11710
      %v11712 = vsel %vm11462, %v5527, -inf
      %11713 = vmax.xlane.f32.xlu0 %v11712
      %v11714 = vpop.xlane.xlu0 %11713
      %v11715 = vsel %vm11462, %v5530, -inf
      %11716 = vmax.xlane.f32.xlu0 %v11715
      %v11717 = vpop.xlane.xlu0 %11716
      %v11718 = vsel %vm11462, %v5532, -inf
      %11719 = vmax.xlane.f32.xlu0 %v11718
      %v11720 = vpop.xlane.xlu0 %11719
      %v11721 = vsel %vm11462, %v5535, -inf
      %11722 = vmax.xlane.f32.xlu0 %v11721
      %v11723 = vpop.xlane.xlu0 %11722
      %v11724 = vsel %vm11462, %v5537, -inf
      %11725 = vmax.xlane.f32.xlu0 %v11724
      %v11726 = vpop.xlane.xlu0 %11725
      %v11727 = vsub.f32 %v5525, %v11711
      %v11728 = vsub.f32 %v5527, %v11714
      %v11729 = vsub.f32 %v5530, %v11717
      %v11730 = vsub.f32 %v5532, %v11720
      %v11731 = vsub.f32 %v5535, %v11723
      %v11732 = vsub.f32 %v5537, %v11726
      %v11733 = vmul.f32 %v11727, 1.442695
      %v11734 = vpow.pop %v11733
      %v11735 = vmul.f32 %v11728, 1.442695
      %v11736 = vpow.pop %v11735
      %v11737 = vmul.f32 %v11729, 1.442695
      %v11738 = vpow.pop %v11737
      %v11739 = vmul.f32 %v11730, 1.442695
      %v11740 = vpow.pop %v11739
      %v11741 = vmul.f32 %v11731, 1.442695
      %v11742 = vpow.pop %v11741
      %v11743 = vmul.f32 %v11732, 1.442695
      %v11744 = vpow.pop %v11743
      %11751 = vrot.lane.b32.xlu0 %v11734, 64
      %v11752 = vpop.permute.xlu0 %11751
      %11753 = vrot.lane.b32.xlu0 %v11736, 64
      %v11754 = vpop.permute.xlu0 %11753
      %11755 = vrot.lane.b32.xlu0 %v11738, 64
      %v11756 = vpop.permute.xlu0 %11755
      %11757 = vrot.lane.b32.xlu0 %v11740, 64
      %v11758 = vpop.permute.xlu0 %11757
      %11759 = vrot.lane.b32.xlu0 %v11742, 64
      %v11760 = vpop.permute.xlu0 %11759
      %11761 = vrot.lane.b32.xlu0 %v11744, 64
      %v11762 = vpop.permute.xlu0 %11761
      %v11769 = vsel %vm1508, %v11752, 0.0
      %11770 = vadd.xlane.f32.xlu0 %v11769
      %v11771 = vpop.xlane.xlu0 %11770
      %v11772 = vsel %vm1508, %v11754, 0.0
      %11773 = vadd.xlane.f32.xlu0 %v11772
      %v11774 = vpop.xlane.xlu0 %11773
      %v11775 = vsel %vm1508, %v11756, 0.0
      %11776 = vadd.xlane.f32.xlu0 %v11775
      %v11777 = vpop.xlane.xlu0 %11776
      %v11778 = vsel %vm1508, %v11758, 0.0
      %11779 = vadd.xlane.f32.xlu0 %v11778
      %v11780 = vpop.xlane.xlu0 %11779
      %v11781 = vsel %vm1508, %v11760, 0.0
      %11782 = vadd.xlane.f32.xlu0 %v11781
      %v11783 = vpop.xlane.xlu0 %11782
      %v11784 = vsel %vm1508, %v11762, 0.0
      %11785 = vadd.xlane.f32.xlu0 %v11784
      %v11786 = vpop.xlane.xlu0 %11785
      %v11787 = vrcp.pop %v11771
      %v11788 = vrcp.pop %v11774
      %v11789 = vrcp.pop %v11777
      %v11790 = vrcp.pop %v11780
      %v11791 = vrcp.pop %v11783
      %v11792 = vrcp.pop %v11786
      %v11793 = vmul.f32 %v11734, %v11787
      %v11794 = vmul.f32 %v11736, %v11788
      %v11795 = vmul.f32 %v11738, %v11789
      %v11796 = vmul.f32 %v11740, %v11790
      %v11797 = vmul.f32 %v11742, %v11791
      %v11798 = vmul.f32 %v11744, %v11792
      %11799 = vrot.lane.b32.xlu0 %v8739, 64
      %v11800 = vpop.permute.xlu0 %11799
      %11801 = vrot.lane.b32.xlu0 %v8741, 64
      %v11802 = vpop.permute.xlu0 %11801
      %11803 = vrot.lane.b32.xlu0 %v8743, 64
      %v11804 = vpop.permute.xlu0 %11803
      %11805 = vrot.lane.b32.xlu0 %v8745, 64
      %v11806 = vpop.permute.xlu0 %11805
      %11807 = vrot.lane.b32.xlu0 %v8747, 64
      %v11808 = vpop.permute.xlu0 %11807
      %11809 = vrot.lane.b32.xlu0 %v8749, 64
      %v11810 = vpop.permute.xlu0 %11809
      %v11817 = vmul.f32 %v11793, %v11800
      %v11818 = vmul.f32 %v11794, %v11802
      %v11819 = vmul.f32 %v11795, %v11804
      %v11820 = vmul.f32 %v11796, %v11806
      %v11821 = vmul.f32 %v11797, %v11808
      %v11822 = vmul.f32 %v11798, %v11810
      %11829 = vrot.lane.b32.xlu0 %v11817, 64
      %v11830 = vpop.permute.xlu0 %11829
      %11831 = vrot.lane.b32.xlu0 %v11818, 64
      %v11832 = vpop.permute.xlu0 %11831
      %11833 = vrot.lane.b32.xlu0 %v11819, 64
      %v11834 = vpop.permute.xlu0 %11833
      %11835 = vrot.lane.b32.xlu0 %v11820, 64
      %v11836 = vpop.permute.xlu0 %11835
      %11837 = vrot.lane.b32.xlu0 %v11821, 64
      %v11838 = vpop.permute.xlu0 %11837
      %11839 = vrot.lane.b32.xlu0 %v11822, 64
      %v11840 = vpop.permute.xlu0 %11839
      %v11847 = vsel %vm1508, %v11830, 0.0
      %11848 = vadd.xlane.f32.xlu0 %v11847
      %v11849 = vpop.xlane.xlu0 %11848
      %v11850 = vsel %vm1508, %v11832, 0.0
      %11851 = vadd.xlane.f32.xlu0 %v11850
      %v11852 = vpop.xlane.xlu0 %11851
      %v11853 = vsel %vm1508, %v11834, 0.0
      %11854 = vadd.xlane.f32.xlu0 %v11853
      %v11855 = vpop.xlane.xlu0 %11854
      %v11856 = vsel %vm1508, %v11836, 0.0
      %11857 = vadd.xlane.f32.xlu0 %v11856
      %v11858 = vpop.xlane.xlu0 %11857
      %v11859 = vsel %vm1508, %v11838, 0.0
      %11860 = vadd.xlane.f32.xlu0 %v11859
      %v11861 = vpop.xlane.xlu0 %11860
      %v11862 = vsel %vm1508, %v11840, 0.0
      %11863 = vadd.xlane.f32.xlu0 %v11862
      %v11864 = vpop.xlane.xlu0 %11863
      %v11865 = vsel %vm1508, %v5645, -inf
      %11866 = vmax.xlane.f32.xlu0 %v11865
      %v11867 = vpop.xlane.xlu0 %11866
      %v11868 = vsel %vm1508, %v5647, -inf
      %11869 = vmax.xlane.f32.xlu0 %v11868
      %v11870 = vpop.xlane.xlu0 %11869
      %v11871 = vsel %vm1508, %v5650, -inf
      %11872 = vmax.xlane.f32.xlu0 %v11871
      %v11873 = vpop.xlane.xlu0 %11872
      %v11874 = vsel %vm1508, %v5652, -inf
      %11875 = vmax.xlane.f32.xlu0 %v11874
      %v11876 = vpop.xlane.xlu0 %11875
      %v11877 = vsel %vm1508, %v5655, -inf
      %11878 = vmax.xlane.f32.xlu0 %v11877
      %v11879 = vpop.xlane.xlu0 %11878
      %v11880 = vsel %vm1508, %v5657, -inf
      %11881 = vmax.xlane.f32.xlu0 %v11880
      %v11882 = vpop.xlane.xlu0 %11881
      %v11883 = vsub.f32 %v5645, %v11867
      %v11884 = vsub.f32 %v5647, %v11870
      %v11885 = vsub.f32 %v5650, %v11873
      %v11886 = vsub.f32 %v5652, %v11876
      %v11887 = vsub.f32 %v5655, %v11879
      %v11888 = vsub.f32 %v5657, %v11882
      %v11889 = vmul.f32 %v11883, 1.442695
      %v11890 = vpow.pop %v11889
      %v11891 = vmul.f32 %v11884, 1.442695
      %v11892 = vpow.pop %v11891
      %v11893 = vmul.f32 %v11885, 1.442695
      %v11894 = vpow.pop %v11893
      %v11895 = vmul.f32 %v11886, 1.442695
      %v11896 = vpow.pop %v11895
      %v11897 = vmul.f32 %v11887, 1.442695
      %v11898 = vpow.pop %v11897
      %v11899 = vmul.f32 %v11888, 1.442695
      %v11900 = vpow.pop %v11899
      %v11901 = vsel %vm1508, %v11890, 0.0
      %11902 = vadd.xlane.f32.xlu0 %v11901
      %v11903 = vpop.xlane.xlu0 %11902
      %v11904 = vsel %vm1508, %v11892, 0.0
      %11905 = vadd.xlane.f32.xlu0 %v11904
      %v11906 = vpop.xlane.xlu0 %11905
      %v11907 = vsel %vm1508, %v11894, 0.0
      %11908 = vadd.xlane.f32.xlu0 %v11907
      %v11909 = vpop.xlane.xlu0 %11908
      %v11910 = vsel %vm1508, %v11896, 0.0
      %11911 = vadd.xlane.f32.xlu0 %v11910
      %v11912 = vpop.xlane.xlu0 %11911
      %v11913 = vsel %vm1508, %v11898, 0.0
      %11914 = vadd.xlane.f32.xlu0 %v11913
      %v11915 = vpop.xlane.xlu0 %11914
      %v11916 = vsel %vm1508, %v11900, 0.0
      %11917 = vadd.xlane.f32.xlu0 %v11916
      %v11918 = vpop.xlane.xlu0 %11917
      %v11919 = vrcp.pop %v11903
      %v11920 = vrcp.pop %v11906
      %v11921 = vrcp.pop %v11909
      %v11922 = vrcp.pop %v11912
      %v11923 = vrcp.pop %v11915
      %v11924 = vrcp.pop %v11918
      %v11925 = vmul.f32 %v11890, %v11919
      %v11926 = vmul.f32 %v11892, %v11920
      %v11927 = vmul.f32 %v11894, %v11921
      %v11928 = vmul.f32 %v11896, %v11922
      %v11929 = vmul.f32 %v11898, %v11923
      %v11930 = vmul.f32 %v11900, %v11924
      %v11931 = vmul.f32 %v11925, %v8739
      %v11932 = vmul.f32 %v11926, %v8741
      %v11933 = vmul.f32 %v11927, %v8743
      %v11934 = vmul.f32 %v11928, %v8745
      %v11935 = vmul.f32 %v11929, %v8747
      %v11936 = vmul.f32 %v11930, %v8749
      %v11937 = vsel %vm1508, %v11931, 0.0
      %11938 = vadd.xlane.f32.xlu0 %v11937
      %v11939 = vpop.xlane.xlu0 %11938
      %v11940 = vsel %vm1508, %v11932, 0.0
      %11941 = vadd.xlane.f32.xlu0 %v11940
      %v11942 = vpop.xlane.xlu0 %11941
      %v11943 = vsel %vm1508, %v11933, 0.0
      %11944 = vadd.xlane.f32.xlu0 %v11943
      %v11945 = vpop.xlane.xlu0 %11944
      %v11946 = vsel %vm1508, %v11934, 0.0
      %11947 = vadd.xlane.f32.xlu0 %v11946
      %v11948 = vpop.xlane.xlu0 %11947
      %v11949 = vsel %vm1508, %v11935, 0.0
      %11950 = vadd.xlane.f32.xlu0 %v11949
      %v11951 = vpop.xlane.xlu0 %11950
      %v11952 = vsel %vm1508, %v11936, 0.0
      %11953 = vadd.xlane.f32.xlu0 %v11952
      %v11954 = vpop.xlane.xlu0 %11953
      %v11955 = vsel %vm11462, %v5645, -inf
      %11956 = vmax.xlane.f32.xlu0 %v11955
      %v11957 = vpop.xlane.xlu0 %11956
      %v11958 = vsel %vm11462, %v5647, -inf
      %11959 = vmax.xlane.f32.xlu0 %v11958
      %v11960 = vpop.xlane.xlu0 %11959
      %v11961 = vsel %vm11462, %v5650, -inf
      %11962 = vmax.xlane.f32.xlu0 %v11961
      %v11963 = vpop.xlane.xlu0 %11962
      %v11964 = vsel %vm11462, %v5652, -inf
      %11965 = vmax.xlane.f32.xlu0 %v11964
      %v11966 = vpop.xlane.xlu0 %11965
      %v11967 = vsel %vm11462, %v5655, -inf
      %11968 = vmax.xlane.f32.xlu0 %v11967
      %v11969 = vpop.xlane.xlu0 %11968
      %v11970 = vsel %vm11462, %v5657, -inf
      %11971 = vmax.xlane.f32.xlu0 %v11970
      %v11972 = vpop.xlane.xlu0 %11971
      %v11973 = vsub.f32 %v5645, %v11957
      %v11974 = vsub.f32 %v5647, %v11960
      %v11975 = vsub.f32 %v5650, %v11963
      %v11976 = vsub.f32 %v5652, %v11966
      %v11977 = vsub.f32 %v5655, %v11969
      %v11978 = vsub.f32 %v5657, %v11972
      %v11979 = vmul.f32 %v11973, 1.442695
      %v11980 = vpow.pop %v11979
      %v11981 = vmul.f32 %v11974, 1.442695
      %v11982 = vpow.pop %v11981
      %v11983 = vmul.f32 %v11975, 1.442695
      %v11984 = vpow.pop %v11983
      %v11985 = vmul.f32 %v11976, 1.442695
      %v11986 = vpow.pop %v11985
      %v11987 = vmul.f32 %v11977, 1.442695
      %v11988 = vpow.pop %v11987
      %v11989 = vmul.f32 %v11978, 1.442695
      %v11990 = vpow.pop %v11989
      %11997 = vrot.lane.b32.xlu0 %v11980, 64
      %v11998 = vpop.permute.xlu0 %11997
      %11999 = vrot.lane.b32.xlu0 %v11982, 64
      %v12000 = vpop.permute.xlu0 %11999
      %12001 = vrot.lane.b32.xlu0 %v11984, 64
      %v12002 = vpop.permute.xlu0 %12001
      %12003 = vrot.lane.b32.xlu0 %v11986, 64
      %v12004 = vpop.permute.xlu0 %12003
      %12005 = vrot.lane.b32.xlu0 %v11988, 64
      %v12006 = vpop.permute.xlu0 %12005
      %12007 = vrot.lane.b32.xlu0 %v11990, 64
      %v12008 = vpop.permute.xlu0 %12007
      %v12015 = vsel %vm1508, %v11998, 0.0
      %12016 = vadd.xlane.f32.xlu0 %v12015
      %v12017 = vpop.xlane.xlu0 %12016
      %v12018 = vsel %vm1508, %v12000, 0.0
      %12019 = vadd.xlane.f32.xlu0 %v12018
      %v12020 = vpop.xlane.xlu0 %12019
      %v12021 = vsel %vm1508, %v12002, 0.0
      %12022 = vadd.xlane.f32.xlu0 %v12021
      %v12023 = vpop.xlane.xlu0 %12022
      %v12024 = vsel %vm1508, %v12004, 0.0
      %12025 = vadd.xlane.f32.xlu0 %v12024
      %v12026 = vpop.xlane.xlu0 %12025
      %v12027 = vsel %vm1508, %v12006, 0.0
      %12028 = vadd.xlane.f32.xlu0 %v12027
      %v12029 = vpop.xlane.xlu0 %12028
      %v12030 = vsel %vm1508, %v12008, 0.0
      %12031 = vadd.xlane.f32.xlu0 %v12030
      %v12032 = vpop.xlane.xlu0 %12031
      %v12033 = vrcp.pop %v12017
      %v12034 = vrcp.pop %v12020
      %v12035 = vrcp.pop %v12023
      %v12036 = vrcp.pop %v12026
      %v12037 = vrcp.pop %v12029
      %v12038 = vrcp.pop %v12032
      %v12039 = vmul.f32 %v11980, %v12033
      %v12040 = vmul.f32 %v11982, %v12034
      %v12041 = vmul.f32 %v11984, %v12035
      %v12042 = vmul.f32 %v11986, %v12036
      %v12043 = vmul.f32 %v11988, %v12037
      %v12044 = vmul.f32 %v11990, %v12038
      %v12045 = vmul.f32 %v12039, %v11800
      %v12046 = vmul.f32 %v12040, %v11802
      %v12047 = vmul.f32 %v12041, %v11804
      %v12048 = vmul.f32 %v12042, %v11806
      %v12049 = vmul.f32 %v12043, %v11808
      %v12050 = vmul.f32 %v12044, %v11810
      %12057 = vrot.lane.b32.xlu0 %v12045, 64
      %v12058 = vpop.permute.xlu0 %12057
      %12059 = vrot.lane.b32.xlu0 %v12046, 64
      %v12060 = vpop.permute.xlu0 %12059
      %12061 = vrot.lane.b32.xlu0 %v12047, 64
      %v12062 = vpop.permute.xlu0 %12061
      %12063 = vrot.lane.b32.xlu0 %v12048, 64
      %v12064 = vpop.permute.xlu0 %12063
      %12065 = vrot.lane.b32.xlu0 %v12049, 64
      %v12066 = vpop.permute.xlu0 %12065
      %12067 = vrot.lane.b32.xlu0 %v12050, 64
      %v12068 = vpop.permute.xlu0 %12067
      %v12075 = vsel %vm1508, %v12058, 0.0
      %12076 = vadd.xlane.f32.xlu0 %v12075
      %v12077 = vpop.xlane.xlu0 %12076
      %v12078 = vsel %vm1508, %v12060, 0.0
      %12079 = vadd.xlane.f32.xlu0 %v12078
      %v12080 = vpop.xlane.xlu0 %12079
      %v12081 = vsel %vm1508, %v12062, 0.0
      %12082 = vadd.xlane.f32.xlu0 %v12081
      %v12083 = vpop.xlane.xlu0 %12082
      %v12084 = vsel %vm1508, %v12064, 0.0
      %12085 = vadd.xlane.f32.xlu0 %v12084
      %v12086 = vpop.xlane.xlu0 %12085
      %v12087 = vsel %vm1508, %v12066, 0.0
      %12088 = vadd.xlane.f32.xlu0 %v12087
      %v12089 = vpop.xlane.xlu0 %12088
      %v12090 = vsel %vm1508, %v12068, 0.0
      %12091 = vadd.xlane.f32.xlu0 %v12090
      %v12092 = vpop.xlane.xlu0 %12091
      %12093 = vmax.xlane.f32.xlu0 %v5765
      %v12094 = vpop.xlane.xlu0 %12093
      %12095 = vmax.xlane.f32.xlu0 %v5767
      %v12096 = vpop.xlane.xlu0 %12095
      %12097 = vmax.xlane.f32.xlu0 %v5770
      %v12098 = vpop.xlane.xlu0 %12097
      %12099 = vmax.xlane.f32.xlu0 %v5772
      %v12100 = vpop.xlane.xlu0 %12099
      %12101 = vmax.xlane.f32.xlu0 %v5775
      %v12102 = vpop.xlane.xlu0 %12101
      %12103 = vmax.xlane.f32.xlu0 %v5777
      %v12104 = vpop.xlane.xlu0 %12103
      %v12105 = vsub.f32 %v5765, %v12094
      %v12106 = vsub.f32 %v5767, %v12096
      %v12107 = vsub.f32 %v5770, %v12098
      %v12108 = vsub.f32 %v5772, %v12100
      %v12109 = vsub.f32 %v5775, %v12102
      %v12110 = vsub.f32 %v5777, %v12104
      %v12111 = vmul.f32 %v12105, 1.442695
      %v12112 = vpow.pop %v12111
      %v12113 = vmul.f32 %v12106, 1.442695
      %v12114 = vpow.pop %v12113
      %v12115 = vmul.f32 %v12107, 1.442695
      %v12116 = vpow.pop %v12115
      %v12117 = vmul.f32 %v12108, 1.442695
      %v12118 = vpow.pop %v12117
      %v12119 = vmul.f32 %v12109, 1.442695
      %v12120 = vpow.pop %v12119
      %v12121 = vmul.f32 %v12110, 1.442695
      %v12122 = vpow.pop %v12121
      %12123 = vadd.xlane.f32.xlu0 %v12112
      %v12124 = vpop.xlane.xlu0 %12123
      %12125 = vadd.xlane.f32.xlu0 %v12114
      %v12126 = vpop.xlane.xlu0 %12125
      %12127 = vadd.xlane.f32.xlu0 %v12116
      %v12128 = vpop.xlane.xlu0 %12127
      %12129 = vadd.xlane.f32.xlu0 %v12118
      %v12130 = vpop.xlane.xlu0 %12129
      %12131 = vadd.xlane.f32.xlu0 %v12120
      %v12132 = vpop.xlane.xlu0 %12131
      %12133 = vadd.xlane.f32.xlu0 %v12122
      %v12134 = vpop.xlane.xlu0 %12133
      %v12135 = vrcp.pop %v12124
      %v12136 = vrcp.pop %v12126
      %v12137 = vrcp.pop %v12128
      %v12138 = vrcp.pop %v12130
      %v12139 = vrcp.pop %v12132
      %v12140 = vrcp.pop %v12134
      %v12141 = vmul.f32 %v12112, %v12135
      %v12142 = vmul.f32 %v12114, %v12136
      %v12143 = vmul.f32 %v12116, %v12137
      %v12144 = vmul.f32 %v12118, %v12138
      %v12145 = vmul.f32 %v12120, %v12139
      %v12146 = vmul.f32 %v12122, %v12140
      %v12147 = vmul.f32 %v12141, %v11366
      %v12148 = vmul.f32 %v12142, %v11367
      %v12149 = vmul.f32 %v12143, %v11368
      %v12150 = vmul.f32 %v12144, %v11369
      %v12151 = vmul.f32 %v12145, %v11370
      %v12152 = vmul.f32 %v12146, %v11371
      %12153 = vadd.xlane.f32.xlu0 %v12147
      %v12154 = vpop.xlane.xlu0 %12153
      %12155 = vadd.xlane.f32.xlu0 %v12148
      %v12156 = vpop.xlane.xlu0 %12155
      %12157 = vadd.xlane.f32.xlu0 %v12149
      %v12158 = vpop.xlane.xlu0 %12157
      %12159 = vadd.xlane.f32.xlu0 %v12150
      %v12160 = vpop.xlane.xlu0 %12159
      %12161 = vadd.xlane.f32.xlu0 %v12151
      %v12162 = vpop.xlane.xlu0 %12161
      %12163 = vadd.xlane.f32.xlu0 %v12152
      %v12164 = vpop.xlane.xlu0 %12163
      %12165 = vmax.xlane.f32.xlu0 %v5885
      %v12166 = vpop.xlane.xlu0 %12165
      %12167 = vmax.xlane.f32.xlu0 %v5887
      %v12168 = vpop.xlane.xlu0 %12167
      %12169 = vmax.xlane.f32.xlu0 %v5890
      %v12170 = vpop.xlane.xlu0 %12169
      %12171 = vmax.xlane.f32.xlu0 %v5892
      %v12172 = vpop.xlane.xlu0 %12171
      %12173 = vmax.xlane.f32.xlu0 %v5895
      %v12174 = vpop.xlane.xlu0 %12173
      %12175 = vmax.xlane.f32.xlu0 %v5897
      %v12176 = vpop.xlane.xlu0 %12175
      %v12177 = vsub.f32 %v5885, %v12166
      %v12178 = vsub.f32 %v5887, %v12168
      %v12179 = vsub.f32 %v5890, %v12170
      %v12180 = vsub.f32 %v5892, %v12172
      %v12181 = vsub.f32 %v5895, %v12174
      %v12182 = vsub.f32 %v5897, %v12176
      %v12183 = vmul.f32 %v12177, 1.442695
      %v12184 = vpow.pop %v12183
      %v12185 = vmul.f32 %v12178, 1.442695
      %v12186 = vpow.pop %v12185
      %v12187 = vmul.f32 %v12179, 1.442695
      %v12188 = vpow.pop %v12187
      %v12189 = vmul.f32 %v12180, 1.442695
      %v12190 = vpow.pop %v12189
      %v12191 = vmul.f32 %v12181, 1.442695
      %v12192 = vpow.pop %v12191
      %v12193 = vmul.f32 %v12182, 1.442695
      %v12194 = vpow.pop %v12193
      %12195 = vadd.xlane.f32.xlu0 %v12184
      %v12196 = vpop.xlane.xlu0 %12195
      %12197 = vadd.xlane.f32.xlu0 %v12186
      %v12198 = vpop.xlane.xlu0 %12197
      %12199 = vadd.xlane.f32.xlu0 %v12188
      %v12200 = vpop.xlane.xlu0 %12199
      %12201 = vadd.xlane.f32.xlu0 %v12190
      %v12202 = vpop.xlane.xlu0 %12201
      %12203 = vadd.xlane.f32.xlu0 %v12192
      %v12204 = vpop.xlane.xlu0 %12203
      %12205 = vadd.xlane.f32.xlu0 %v12194
      %v12206 = vpop.xlane.xlu0 %12205
      %v12207 = vrcp.pop %v12196
      %v12208 = vrcp.pop %v12198
      %v12209 = vrcp.pop %v12200
      %v12210 = vrcp.pop %v12202
      %v12211 = vrcp.pop %v12204
      %v12212 = vrcp.pop %v12206
      %v12213 = vmul.f32 %v12184, %v12207
      %v12214 = vmul.f32 %v12186, %v12208
      %v12215 = vmul.f32 %v12188, %v12209
      %v12216 = vmul.f32 %v12190, %v12210
      %v12217 = vmul.f32 %v12192, %v12211
      %v12218 = vmul.f32 %v12194, %v12212
      %v12219 = vmul.f32 %v12213, %v11366
      %v12220 = vmul.f32 %v12214, %v11367
      %v12221 = vmul.f32 %v12215, %v11368
      %v12222 = vmul.f32 %v12216, %v11369
      %v12223 = vmul.f32 %v12217, %v11370
      %v12224 = vmul.f32 %v12218, %v11371
      %12225 = vadd.xlane.f32.xlu0 %v12219
      %v12226 = vpop.xlane.xlu0 %12225
      %12227 = vadd.xlane.f32.xlu0 %v12220
      %v12228 = vpop.xlane.xlu0 %12227
      %12229 = vadd.xlane.f32.xlu0 %v12221
      %v12230 = vpop.xlane.xlu0 %12229
      %12231 = vadd.xlane.f32.xlu0 %v12222
      %v12232 = vpop.xlane.xlu0 %12231
      %12233 = vadd.xlane.f32.xlu0 %v12223
      %v12234 = vpop.xlane.xlu0 %12233
      %12235 = vadd.xlane.f32.xlu0 %v12224
      %v12236 = vpop.xlane.xlu0 %12235
      %v12243 = vlaneseq
      %v12244 = vand.u32 %v12243, 127
      %v12245 = vperm.slane %v11446, %v12244
      %v12246 = vadd.s32 %v12244, 4294967288
      %v12247 = vperm.slane %v11449, %v12246
      %vm12248 = vcmask 130112
      %v12249 = vsel %vm12248, %v12247, %v12245
      %v12250 = vperm.slane %v11452, %v12244
      %v12251 = vperm.slane %v11455, %v12246
      %v12252 = vsel %vm12248, %v12251, %v12250
      %v12253 = vperm.slane %v11458, %v12244
      %v12254 = vperm.slane %v11461, %v12246
      %v12255 = vsel %vm12248, %v12254, %v12253
      %v12265 = vperm.slane %v11603, %v12244
      %v12266 = vperm.slane %v11606, %v12246
      %v12267 = vsel %vm12248, %v12266, %v12265
      %v12268 = vperm.slane %v11609, %v12244
      %v12269 = vperm.slane %v11612, %v12246
      %v12270 = vsel %vm12248, %v12269, %v12268
      %v12271 = vperm.slane %v11615, %v12244
      %v12272 = vperm.slane %v11618, %v12246
      %v12273 = vsel %vm12248, %v12272, %v12271
      %v12283 = vperm.slane %v11693, %v12244
      %v12284 = vperm.slane %v11696, %v12246
      %v12285 = vsel %vm12248, %v12284, %v12283
      %v12286 = vperm.slane %v11699, %v12244
      %v12287 = vperm.slane %v11702, %v12246
      %v12288 = vsel %vm12248, %v12287, %v12286
      %v12289 = vperm.slane %v11705, %v12244
      %v12290 = vperm.slane %v11708, %v12246
      %v12291 = vsel %vm12248, %v12290, %v12289
      %v12301 = vperm.slane %v11849, %v12244
      %v12302 = vperm.slane %v11852, %v12246
      %v12303 = vsel %vm12248, %v12302, %v12301
      %v12304 = vperm.slane %v11855, %v12244
      %v12305 = vperm.slane %v11858, %v12246
      %v12306 = vsel %vm12248, %v12305, %v12304
      %v12307 = vperm.slane %v11861, %v12244
      %v12308 = vperm.slane %v11864, %v12246
      %v12309 = vsel %vm12248, %v12308, %v12307
      %v12319 = vperm.slane %v11939, %v12244
      %v12320 = vperm.slane %v11942, %v12246
      %v12321 = vsel %vm12248, %v12320, %v12319
      %v12322 = vperm.slane %v11945, %v12244
      %v12323 = vperm.slane %v11948, %v12246
      %v12324 = vsel %vm12248, %v12323, %v12322
      %v12325 = vperm.slane %v11951, %v12244
      %v12326 = vperm.slane %v11954, %v12246
      %v12327 = vsel %vm12248, %v12326, %v12325
      %v12337 = vperm.slane %v12077, %v12244
      %v12338 = vperm.slane %v12080, %v12246
      %v12339 = vsel %vm12248, %v12338, %v12337
      %v12340 = vperm.slane %v12083, %v12244
      %v12341 = vperm.slane %v12086, %v12246
      %v12342 = vsel %vm12248, %v12341, %v12340
      %v12343 = vperm.slane %v12089, %v12244
      %v12344 = vperm.slane %v12092, %v12246
      %v12345 = vsel %vm12248, %v12344, %v12343
      %v12355 = vperm.slane %v12154, %v12244
      %v12356 = vperm.slane %v12156, %v12246
      %v12357 = vsel %vm12248, %v12356, %v12355
      %v12358 = vperm.slane %v12158, %v12244
      %v12359 = vperm.slane %v12160, %v12246
      %v12360 = vsel %vm12248, %v12359, %v12358
      %v12361 = vperm.slane %v12162, %v12244
      %v12362 = vperm.slane %v12164, %v12246
      %v12363 = vsel %vm12248, %v12362, %v12361
      %v12373 = vperm.slane %v12226, %v12244
      %v12374 = vperm.slane %v12228, %v12246
      %v12375 = vsel %vm12248, %v12374, %v12373
      %v12376 = vperm.slane %v12230, %v12244
      %v12377 = vperm.slane %v12232, %v12246
      %v12378 = vsel %vm12248, %v12377, %v12376
      %v12379 = vperm.slane %v12234, %v12244
      %v12380 = vperm.slane %v12236, %v12246
      %v12381 = vsel %vm12248, %v12380, %v12379
      %v12385 = vsel %vm6557, %v12249, %v12267
      %v12386 = vsel %vm6557, %v12252, %v12270
      %v12387 = vsel %vm6557, %v12255, %v12273
      %v12388 = vsel %vm1124, %v12385, %v12285
      %v12389 = vsel %vm1124, %v12386, %v12288
      %v12390 = vsel %vm1124, %v12387, %v12291
      %v12391 = vsel %vm6046, %v12388, %v12303
      %v12392 = vsel %vm6046, %v12389, %v12306
      %v12393 = vsel %vm6046, %v12390, %v12309
      %v12394 = vsel %vm6011, %v12391, %v12321
      %v12395 = vsel %vm6011, %v12392, %v12324
      %v12396 = vsel %vm6011, %v12393, %v12327
      %v12397 = vsel %vm5976, %v12394, %v12339
      %v12398 = vsel %vm5976, %v12395, %v12342
      %v12399 = vsel %vm5976, %v12396, %v12345
      %v12400 = vsel %vm5941, %v12397, %v12357
      %v12401 = vsel %vm5941, %v12398, %v12360
      %v12402 = vsel %vm5941, %v12399, %v12363
      %v12403 = vsel %vm5906, %v12400, %v12375
      %v12404 = vsel %vm5906, %v12401, %v12378
      %v12405 = vsel %vm5906, %v12402, %v12381
      %12406 = vst.msk [vmem:[%s408] sm:$0xff] %vm950, %v12403
      %12407 = vst.msk [vmem:[%s408 + $0x8] sm:$0xff] %vm950, %v12404
      %12408 = vst.msk [vmem:[%s408 + $0x10] sm:$0xff] %vm950, %v12405
      %s12409 = smul.u32 3, %s27
      %p12410 = scmp.lt.s32.totalorder %s26, 1
      %s12411 = scalar_select %p12410, %s26, 1
      %p12412 = scmp.lt.s32.totalorder %s12409, 5
      %s12413 = scalar_select %p12412, %s12409, 5
      %s12414 = smul.addr %s12411, 6
      %s12415 = sadd.s32 %s12413, %s12414
      %s12416 = smul.addr %s12415, 8
      %s12417 = scalar_lea.vmem %s11, %s12416
      // Predicated region
      $region65: #{_lambda_.1} parent=63 // pred_check
        %p12418 = pneg %p290
      $region66: #{_lambda_.1} parent=63 // pred_check_branch
        %12420 = sbr.rel (%p12418) target = $region68
      $region67: #{_lambda_.1} parent=63 // pred_region
        %s12421 = smul.u32 3, %s27
      $region68: #{_lambda_.1} parent=63 // pred_fallthru
        _
    $region64: #{_lambda_.1} parent=5 // pred_fallthru
      _
    %p12422 = scmp.le.s32.totalorder 2, %s17
    // Predicated region
    $region69: #{_lambda_.1} parent=5 // pred_check
      %p12423 = pneg %p12422
    $region70: #{_lambda_.1} parent=5 // pred_check_branch
      %12425 = sbr.rel (%p12423) target = $region72
    $region71: #{_lambda_.1} parent=5 // pred_region
      %s12426 = ssub.s32 %s17, 2
      // Predicated region
      $region73: #{_lambda_.1} parent=71 // pred_check
        %p12427 = pneg %p296
      $region74: #{_lambda_.1} parent=71 // pred_check_branch
        %12429 = sbr.rel (%p12427) target = $region76
      $region75: #{_lambda_.1} parent=71 // pred_region
        %s12430 = smul.u32 3, %s29
        %p12431 = scmp.lt.s32.totalorder %s28, 1
        %s12432 = scalar_select %p12431, %s28, 1
        %p12433 = scmp.lt.s32.totalorder %s12430, 5
        %s12434 = scalar_select %p12433, %s12430, 5
        %s12435 = smul.addr %s12432, 6
        %s12436 = sadd.s32 %s12434, %s12435
        %s12437 = smul.addr %s12436, 8
        %s12438 = scalar_lea.vmem %s11, %s12437
      $region76: #{_lambda_.1} parent=71 // pred_fallthru
        _
    $region72: #{_lambda_.1} parent=5 // pred_fallthru
      _
  $region6: #{_lambda_.1} parent=0 // loop_footer
    %s21 = sadd.s32 1, %s17
  $region7: #{_lambda_.1} parent=0 // loop_footer_branch
    %16 = sbr.rel target = $region3
  $region8: #{_lambda_.1} parent=0 // loop_exit
    _

</llo_original>
